<compile_context>
chip_gen: v5e
topology: v5e:2x2
jax: 0.10.0
libtpu: 0.0.40
codegen_flags: <defaults>
</compile_context>

<pallas_src>
import functools

import jax
import jax.numpy as jnp
from jax.experimental import pallas as pl
from jax.experimental.pallas import tpu as pltpu

KSIZE = 5                        # conv kernel (5x5, stride 1, pad 2)
PAD = KSIZE // 2
_VMEM_LIMIT = 32 * 1024 * 1024   # explicit budget: fits v7x's 64 MiB with headroom


def _round_up(x, m):
    return (x + m - 1) // m * m


def _pick_block_n(n):
    """Images per conv grid step: largest of (8,4,2,1) dividing the batch."""
    for d in (8, 4, 2, 1):
        if d <= n and n % d == 0:
            return d
    return 1


# ----------------------------------------------------------------------------
# conv1 kernel (Cin == 1): in-register im2col, no VMEM patches scratch.
#
# The image arrives zero-padded and row-flattened: x[0, p], p = r*SW + c.
# Output position m = h*SW + w, so the im2col tap (kh, kw) is the lane shift
# x[0, m + kh*SW + kw]; the 25 shifted slices are concatenated in registers
# (f32 pieces -> the well-supported 32-bit sublane concat path) and fed to a
# single bf16 MXU matmul (Cout, 25) @ (25, M) with f32 accumulation.
# Bias + ReLU + 2x2 window max are fused; decimation happens in glue.
# ----------------------------------------------------------------------------
def _conv1_relu_pool_kernel(x_ref, w_ref, b_ref, o_ref, *, nb, sw, m):
    w = w_ref[...]                                   # (Cout, 25)  bf16, resident
    b = b_ref[...]                                   # (Cout, 1)   f32
    for i in range(nb):                              # small static unroll
        x = x_ref[i].astype(jnp.float32)             # (1, L)
        patches = jnp.concatenate(
            [x[:, (t // KSIZE) * sw + (t % KSIZE):
                  (t // KSIZE) * sw + (t % KSIZE) + m]
             for t in range(KSIZE * KSIZE)],
            axis=0).astype(w.dtype)                  # (25, M) bf16, in vregs
        acc = jnp.dot(w, patches, preferred_element_type=jnp.float32)
        acc = jnp.maximum(acc + b, 0.0)              # bias + ReLU (f32)
        # 2x2 window max: max over (w, w+1) then over (h, h+1)
        r = jnp.maximum(acc, pltpu.roll(acc, m - 1, 1))
        r = jnp.maximum(r, pltpu.roll(r, m - sw, 1))
        o_ref[i] = r.astype(o_ref.dtype)


# ----------------------------------------------------------------------------
# generic conv kernel (Cin > 1): VMEM patches scratch, Nb images laid
# side-by-side along the lane axis -> one (Cout, K) @ (K, Nb*M) matmul per
# grid step.  Patch stores are full-Cin (16-row) dense stores.
# ----------------------------------------------------------------------------
def _conv_relu_pool_kernel(x_ref, w_ref, b_ref, o_ref, patches_ref,
                           *, cin, nb, sw, m):
    for i in range(nb):
        x = x_ref[i]                                 # (Cin, L)
        for t in range(KSIZE * KSIZE):               # in-kernel im2col
            kh, kw = divmod(t, KSIZE)
            s = kh * sw + kw
            patches_ref[t * cin:(t + 1) * cin, i * m:(i + 1) * m] = x[:, s:s + m]

    acc = jnp.dot(w_ref[...], patches_ref[...],      # (Cout, Nb*M) lane-dense
                  preferred_element_type=jnp.float32)
    acc = jnp.maximum(acc + b_ref[...], 0.0)         # bias + ReLU (f32)

    wm = nb * m
    r = jnp.maximum(acc, pltpu.roll(acc, wm - 1, 1))
    r = jnp.maximum(r, pltpu.roll(r, wm - sw, 1))
    for i in range(nb):                              # dense per-image stores
        o_ref[i] = r[:, i * m:(i + 1) * m].astype(o_ref.dtype)


def conv5x5_relu_pool(x, wmat, bias):
    """x: (N, Cin, H, W); wmat: (Cout, 25*Cin) bf16, column k = (kh*5+kw)*Cin+ci;
    bias: (Cout, 1) f32.  Returns ReLU + 2x2-maxpool output, NCHW,
    (N, Cout, H//2, W//2), bfloat16."""
    N, Cin, H, W = x.shape
    Cout, K = wmat.shape
    assert K == KSIZE * KSIZE * Cin
    assert H % 2 == 0 and W % 2 == 0
    cdtype = wmat.dtype

    SW = _round_up(W + 2 * PAD, 32)                   # padded row stride (even)
    M = _round_up((H - 1) * SW + W, 128)              # per-image lane width
    L = _round_up(M + (KSIZE - 1) * (SW + 1), 128)    # input flat length
    SH = L // SW                                      # padded rows
    # The fused pool relies on roll wrap/overhang lanes landing only on
    # rows/cols the decimation below discards:
    assert M % SW == 0 and M // SW >= H

    Nb = _pick_block_n(N)

    xp = jnp.pad(x.astype(cdtype),
                 ((0, 0), (0, 0), (PAD, SH - H - PAD), (PAD, SW - W - PAD)))
    xflat = xp.reshape(N, Cin, L)

    if Cin == 1:
        kernel = functools.partial(_conv1_relu_pool_kernel, nb=Nb, sw=SW, m=M)
        scratch = []
    else:
        kernel = functools.partial(_conv_relu_pool_kernel,
                                   cin=Cin, nb=Nb, sw=SW, m=M)
        scratch = [pltpu.VMEM((K, Nb * M), cdtype)]

    out = pl.pallas_call(
        kernel,
        out_shape=jax.ShapeDtypeStruct((N, Cout, M), jnp.bfloat16),
        grid_spec=pltpu.PrefetchScalarGridSpec(
            num_scalar_prefetch=0,
            grid=(N // Nb,),                          # Nb images per grid step
            in_specs=[
                pl.BlockSpec((Nb, Cin, L), lambda n: (n, 0, 0)),
                pl.BlockSpec((Cout, K), lambda n: (0, 0)),   # weights resident
                pl.BlockSpec((Cout, 1), lambda n: (0, 0)),
            ],
            out_specs=pl.BlockSpec((Nb, Cout, M), lambda n: (n, 0, 0)),
            scratch_shapes=scratch,
        ),
        compiler_params=pltpu.CompilerParams(
            # TODO(synk): on v7x, try pltpu.CORE_PARALLEL here (and in the fc
            # kernel) once the batch grid has >= 2 steps; kept "parallel" so
            # the kernel compiles on single-TensorCore generations.
            dimension_semantics=("parallel",),
            vmem_limit_bytes=_VMEM_LIMIT),
    )(xflat, wmat, bias)

    # decimate the fused window-max to pooled resolution and restore NCHW
    # (one small XLA slice; no transposes, no extra pool kernel).
    return out.reshape(N, Cout, M // SW, SW)[:, :, 0:H:2, 0:W:2]


# ----------------------------------------------------------------------------
# Fused fc1 + ReLU + (eval-mode dropout) + fc2 in a single pallas_call.
# The (tm, 128) fc1 activation stays in vregs/VMEM; only logits are written.
# ----------------------------------------------------------------------------
def _mlp_kernel(x_ref, w1_ref, b1_ref, w2_ref, b2_ref, o_ref):
    h = jnp.dot(x_ref[...], w1_ref[...], preferred_element_type=jnp.float32)
    h = jnp.maximum(h + b1_ref[...], 0.0)             # fc1 + ReLU
    # TODO(synk): nn.Dropout(p=0.5) is identity in eval mode; training-mode
    # RNG masking/scaling is not ported.
    y = jnp.dot(h.astype(w2_ref.dtype), w2_ref[...],
                preferred_element_type=jnp.float32)
    o_ref[...] = (y + b2_ref[...]).astype(o_ref.dtype)  # fc2 logits (masked 10-wide store)


def mlp(x, w1, b1, w2, b2, *, tile_m=128):
    """logits = (relu(x @ w1 + b1)) @ w2 + b2; weights stored (K, N)."""
    M, K = x.shape
    N1 = w1.shape[1]
    N2 = w2.shape[1]
    tm = min(tile_m, _round_up(M, 16))        # multiple of 16 (bf16 sublane tile)
    Mp = _round_up(M, tm)
    if Mp != M:
        x = jnp.pad(x, ((0, Mp - M), (0, 0)))
    out = pl.pallas_call(
        _mlp_kernel,
        out_shape=jax.ShapeDtypeStruct((Mp, N2), jnp.float32),
        grid_spec=pltpu.PrefetchScalarGridSpec(
            num_scalar_prefetch=0,
            grid=(Mp // tm,),
            in_specs=[
                pl.BlockSpec((tm, K), lambda i: (i, 0)),
                pl.BlockSpec((K, N1), lambda i: (0, 0)),
                pl.BlockSpec((1, N1), lambda i: (0, 0)),
                pl.BlockSpec((N1, N2), lambda i: (0, 0)),
                pl.BlockSpec((1, N2), lambda i: (0, 0)),
            ],
            out_specs=pl.BlockSpec((tm, N2), lambda i: (i, 0)),
        ),
        compiler_params=pltpu.CompilerParams(
            dimension_semantics=("parallel",),
            vmem_limit_bytes=_VMEM_LIMIT),
    )(x, w1, b1, w2, b2)
    return out[:M] if Mp != M else out


# ----------------------------------------------------------------------------
# Full CNN forward (matches the PyTorch module's forward, eval mode)
# ----------------------------------------------------------------------------
def cnn_forward(x, params):
    wm1, b1, wm2, b2, wf1, bf1, wf2, bf2 = params
    h = conv5x5_relu_pool(x, wm1, b1)             # conv1+ReLU+pool: (N,16,14,14)
    h = conv5x5_relu_pool(h, wm2, b2)             # conv2+ReLU+pool: (N,32,7,7)
    n = h.shape[0]
    h = h.reshape(n, 32 * 7 * 7)                  # == torch .view(-1, 7*7*32)
    return mlp(h, wf1, bf1, wf2, bf2)             # fused fc1+ReLU+fc2 logits (f32)


# ----------------------------------------------------------------------------
# Parameters
# ----------------------------------------------------------------------------
def _pack_conv_w(w, dtype):
    cout, cin = w.shape[:2]
    # columns ordered k = (kh*5 + kw)*Cin + ci to match the in-kernel im2col
    return w.transpose(0, 2, 3, 1).reshape(cout, KSIZE * KSIZE * cin).astype(dtype)


def pack_params(p):
    """PyTorch-layout params -> the inference layout used by the kernels
    (conv weights (Cout, 25*Cin) bf16; fc weights pre-transposed to (K, N) bf16;
    f32 biases)."""
    w1, b1, w2, b2, wf1, bf1, wf2, bf2 = p
    return (
        _pack_conv_w(w1, jnp.bfloat16), b1.reshape(-1, 1).astype(jnp.float32),
        _pack_conv_w(w2, jnp.bfloat16), b2.reshape(-1, 1).astype(jnp.float32),
        wf1.T.astype(jnp.bfloat16), bf1.reshape(1, -1).astype(jnp.float32),
        wf2.T.astype(jnp.bfloat16), bf2.reshape(1, -1).astype(jnp.float32),
    )


def init_params(key):
    """PyTorch-like uniform(-1/sqrt(fan_in), 1/sqrt(fan_in)) init, torch layouts."""
    ks = jax.random.split(key, 8)

    def u(k, shape, fan_in):
        bound = 1.0 / jnp.sqrt(jnp.float32(fan_in))
        return jax.random.uniform(k, shape, jnp.float32, -bound, bound)

    w1 = u(ks[0], (16, 1, 5, 5), 1 * 5 * 5)
    b1 = u(ks[1], (16,), 1 * 5 * 5)
    w2 = u(ks[2], (32, 16, 5, 5), 16 * 5 * 5)
    b2 = u(ks[3], (32,), 16 * 5 * 5)
    wf1 = u(ks[4], (128, 7 * 7 * 32), 7 * 7 * 32)
    bf1 = u(ks[5], (128,), 7 * 7 * 32)
    wf2 = u(ks[6], (10, 128), 128)
    bf2 = u(ks[7], (10,), 128)
    return (w1, b1, w2, b2, wf1, bf1, wf2, bf2)


def reference_forward(x, p):
    """Pure-XLA f32 reference of the PyTorch module (sanity check)."""
    w1, b1, w2, b2, wf1, bf1, wf2, bf2 = p

    def conv_relu(h, w, b):
        y = jax.lax.conv_general_dilated(
            h, w, (1, 1), ((PAD, PAD), (PAD, PAD)),
            dimension_numbers=("NCHW", "OIHW", "NCHW"))
        return jax.nn.relu(y + b[None, :, None, None])

    def pool(h):
        n, c, hh, ww = h.shape
        return h.reshape(n, c, hh // 2, 2, ww // 2, 2).max(axis=(3, 5))

    h = pool(conv_relu(x, w1, b1))
    h = pool(conv_relu(h, w2, b2))
    h = h.reshape(x.shape[0], -1)
    h = jax.nn.relu(h @ wf1.T + bf1)
    return h @ wf2.T + bf2


if __name__ == "__main__":
    key = jax.random.PRNGKey(0)
    kx, kp = jax.random.split(key)
    # NCHW MNIST-sized input (28x28 spatial is required by fc1 = 7*7*32)
    x = jax.random.normal(kx, (2, 1, 28, 28), jnp.float32)
    torch_params = init_params(kp)
    params = pack_params(torch_params)

    out = jax.jit(cnn_forward)(x, params)
    out = jax.block_until_ready(out)
    assert out.shape == (2, 10) and out.dtype == jnp.float32

    # sanity check against the f32 XLA reference (loose tol: bf16 matmuls)
    ref = reference_forward(x, torch_params)
    max_err = float(jnp.max(jnp.abs(out - ref)))
    assert max_err < 0.1, f"mismatch vs reference: max abs err {max_err}"

    print("KERNEL_OK")
</pallas_src>

<mosaic_0001>
module attributes {stable_mosaic.version = 11 : i64} {
  func.func @_conv1_relu_pool_kernel(%arg0: i32, %arg1: memref<2x1x1152xbf16, #tpu.memory_space<vmem>>, %arg2: memref<16x25xbf16, #tpu.memory_space<vmem>>, %arg3: memref<16x1xf32, #tpu.memory_space<vmem>>, %arg4: memref<2x16x896xbf16, #tpu.memory_space<vmem>>) attributes {dimension_semantics = [#tpu.dimension_semantics<parallel>], iteration_bounds = array<i64: 1>, scalar_prefetch = 0 : i64, scratch_operands = 0 : i64, tpu.core_type = #tpu.core_type<tc>, window_params = [{transform_indices = @transform_0, window_bounds = array<i64: 2, 1, 1152>}, {pipeline_mode = #tpu.pipeline_mode<synchronous>, transform_indices = @transform_1, window_bounds = array<i64: 16, 25>}, {pipeline_mode = #tpu.pipeline_mode<synchronous>, transform_indices = @transform_2, window_bounds = array<i64: 16, 1>}, {transform_indices = @transform_3, window_bounds = array<i64: 2, 16, 896>}]} {
    %c0 = arith.constant 0 : index
    %c0_0 = arith.constant 0 : index
    %0 = vector.load %arg2[%c0, %c0_0] : memref<16x25xbf16, #tpu.memory_space<vmem>>, vector<16x25xbf16>
    %c0_1 = arith.constant 0 : index
    %c0_2 = arith.constant 0 : index
    %1 = vector.load %arg3[%c0_1, %c0_2] : memref<16x1xf32, #tpu.memory_space<vmem>>, vector<16x1xf32>
    %c0_3 = arith.constant 0 : index
    %c0_4 = arith.constant 0 : index
    %c0_5 = arith.constant 0 : index
    %2 = vector.load %arg1[%c0_3, %c0_4, %c0_5] : memref<2x1x1152xbf16, #tpu.memory_space<vmem>>, vector<1x1x1152xbf16>
    %3 = vector.shape_cast %2 : vector<1x1x1152xbf16> to vector<1x1152xbf16>
    %4 = arith.extf %3 : vector<1x1152xbf16> to vector<1x1152xf32>
    %5 = vector.extract_strided_slice %4 {offsets = [0, 0], sizes = [1, 896], strides = [1, 1]} : vector<1x1152xf32> to vector<1x896xf32>
    %6 = vector.extract_strided_slice %4 {offsets = [0, 1], sizes = [1, 896], strides = [1, 1]} : vector<1x1152xf32> to vector<1x896xf32>
    %7 = vector.extract_strided_slice %4 {offsets = [0, 2], sizes = [1, 896], strides = [1, 1]} : vector<1x1152xf32> to vector<1x896xf32>
    %8 = vector.extract_strided_slice %4 {offsets = [0, 3], sizes = [1, 896], strides = [1, 1]} : vector<1x1152xf32> to vector<1x896xf32>
    %9 = vector.extract_strided_slice %4 {offsets = [0, 4], sizes = [1, 896], strides = [1, 1]} : vector<1x1152xf32> to vector<1x896xf32>
    %10 = vector.extract_strided_slice %4 {offsets = [0, 32], sizes = [1, 896], strides = [1, 1]} : vector<1x1152xf32> to vector<1x896xf32>
    %11 = vector.extract_strided_slice %4 {offsets = [0, 33], sizes = [1, 896], strides = [1, 1]} : vector<1x1152xf32> to vector<1x896xf32>
    %12 = vector.extract_strided_slice %4 {offsets = [0, 34], sizes = [1, 896], strides = [1, 1]} : vector<1x1152xf32> to vector<1x896xf32>
    %13 = vector.extract_strided_slice %4 {offsets = [0, 35], sizes = [1, 896], strides = [1, 1]} : vector<1x1152xf32> to vector<1x896xf32>
    %14 = vector.extract_strided_slice %4 {offsets = [0, 36], sizes = [1, 896], strides = [1, 1]} : vector<1x1152xf32> to vector<1x896xf32>
    %15 = vector.extract_strided_slice %4 {offsets = [0, 64], sizes = [1, 896], strides = [1, 1]} : vector<1x1152xf32> to vector<1x896xf32>
    %16 = vector.extract_strided_slice %4 {offsets = [0, 65], sizes = [1, 896], strides = [1, 1]} : vector<1x1152xf32> to vector<1x896xf32>
    %17 = vector.extract_strided_slice %4 {offsets = [0, 66], sizes = [1, 896], strides = [1, 1]} : vector<1x1152xf32> to vector<1x896xf32>
    %18 = vector.extract_strided_slice %4 {offsets = [0, 67], sizes = [1, 896], strides = [1, 1]} : vector<1x1152xf32> to vector<1x896xf32>
    %19 = vector.extract_strided_slice %4 {offsets = [0, 68], sizes = [1, 896], strides = [1, 1]} : vector<1x1152xf32> to vector<1x896xf32>
    %20 = vector.extract_strided_slice %4 {offsets = [0, 96], sizes = [1, 896], strides = [1, 1]} : vector<1x1152xf32> to vector<1x896xf32>
    %21 = vector.extract_strided_slice %4 {offsets = [0, 97], sizes = [1, 896], strides = [1, 1]} : vector<1x1152xf32> to vector<1x896xf32>
    %22 = vector.extract_strided_slice %4 {offsets = [0, 98], sizes = [1, 896], strides = [1, 1]} : vector<1x1152xf32> to vector<1x896xf32>
    %23 = vector.extract_strided_slice %4 {offsets = [0, 99], sizes = [1, 896], strides = [1, 1]} : vector<1x1152xf32> to vector<1x896xf32>
    %24 = vector.extract_strided_slice %4 {offsets = [0, 100], sizes = [1, 896], strides = [1, 1]} : vector<1x1152xf32> to vector<1x896xf32>
    %25 = vector.extract_strided_slice %4 {offsets = [0, 128], sizes = [1, 896], strides = [1, 1]} : vector<1x1152xf32> to vector<1x896xf32>
    %26 = vector.extract_strided_slice %4 {offsets = [0, 129], sizes = [1, 896], strides = [1, 1]} : vector<1x1152xf32> to vector<1x896xf32>
    %27 = vector.extract_strided_slice %4 {offsets = [0, 130], sizes = [1, 896], strides = [1, 1]} : vector<1x1152xf32> to vector<1x896xf32>
    %28 = vector.extract_strided_slice %4 {offsets = [0, 131], sizes = [1, 896], strides = [1, 1]} : vector<1x1152xf32> to vector<1x896xf32>
    %29 = vector.extract_strided_slice %4 {offsets = [0, 132], sizes = [1, 896], strides = [1, 1]} : vector<1x1152xf32> to vector<1x896xf32>
    %30 = tpu.concatenate %5, %6, %7, %8, %9, %10, %11, %12, %13, %14, %15, %16, %17, %18, %19, %20 in 0 : vector<1x896xf32>, vector<1x896xf32>, vector<1x896xf32>, vector<1x896xf32>, vector<1x896xf32>, vector<1x896xf32>, vector<1x896xf32>, vector<1x896xf32>, vector<1x896xf32>, vector<1x896xf32>, vector<1x896xf32>, vector<1x896xf32>, vector<1x896xf32>, vector<1x896xf32>, vector<1x896xf32>, vector<1x896xf32> -> vector<16x896xf32>
    %31 = tpu.concatenate %21, %22, %23, %24, %25, %26, %27, %28, %29 in 0 : vector<1x896xf32>, vector<1x896xf32>, vector<1x896xf32>, vector<1x896xf32>, vector<1x896xf32>, vector<1x896xf32>, vector<1x896xf32>, vector<1x896xf32>, vector<1x896xf32> -> vector<9x896xf32>
    %32 = tpu.concatenate %30, %31 in 0 : vector<16x896xf32>, vector<9x896xf32> -> vector<25x896xf32>
    %33 = arith.truncf %32 : vector<25x896xf32> to vector<25x896xbf16>
    %cst = arith.constant dense<0.000000e+00> : vector<16x896xf32>
    %34 = tpu.matmul %0, %33, %cst {dimension_numbers = #tpu.dot_dimension_numbers<[1], [0], [0], [1], [0, 0, 1, 1], [], []>} : vector<16x25xbf16>, vector<25x896xbf16>, vector<16x896xf32> -> vector<16x896xf32>
    %35 = vector.broadcast %1 : vector<16x1xf32> to vector<16x896xf32>
    %36 = arith.addf %34, %35 : vector<16x896xf32>
    %cst_6 = arith.constant 0.000000e+00 : f32
    %37 = vector.broadcast %cst_6 : f32 to vector<16x896xf32>
    %38 = arith.maximumf %36, %37 : vector<16x896xf32>
    %c895_i32 = arith.constant 895 : i32
    %39 = tpu.dynamic_rotate %38 by %c895_i32 dim 1 : vector<16x896xf32>, i32 -> vector<16x896xf32>
    %40 = arith.maximumf %38, %39 : vector<16x896xf32>
    %c864_i32 = arith.constant 864 : i32
    %41 = tpu.dynamic_rotate %40 by %c864_i32 dim 1 : vector<16x896xf32>, i32 -> vector<16x896xf32>
    %42 = arith.maximumf %40, %41 : vector<16x896xf32>
    %43 = arith.truncf %42 : vector<16x896xf32> to vector<16x896xbf16>
    %c0_7 = arith.constant 0 : index
    %c0_8 = arith.constant 0 : index
    %c0_9 = arith.constant 0 : index
    %44 = vector.load %arg4[%c0_7, %c0_8, %c0_9] : memref<2x16x896xbf16, #tpu.memory_space<vmem>>, vector<1x16x896xbf16>
    %45 = vector.shape_cast %44 : vector<1x16x896xbf16> to vector<16x896xbf16>
    %46 = vector.shape_cast %43 : vector<16x896xbf16> to vector<1x16x896xbf16>
    tpu.vector_store %arg4[%c0_7, %c0_8, %c0_9], %46 {strides = array<i32>} : memref<2x16x896xbf16, #tpu.memory_space<vmem>>, vector<1x16x896xbf16>,
    %c1 = arith.constant 1 : index
    %c0_10 = arith.constant 0 : index
    %c0_11 = arith.constant 0 : index
    %47 = vector.load %arg1[%c1, %c0_10, %c0_11] : memref<2x1x1152xbf16, #tpu.memory_space<vmem>>, vector<1x1x1152xbf16>
    %48 = vector.shape_cast %47 : vector<1x1x1152xbf16> to vector<1x1152xbf16>
    %49 = arith.extf %48 : vector<1x1152xbf16> to vector<1x1152xf32>
    %50 = vector.extract_strided_slice %49 {offsets = [0, 0], sizes = [1, 896], strides = [1, 1]} : vector<1x1152xf32> to vector<1x896xf32>
    %51 = vector.extract_strided_slice %49 {offsets = [0, 1], sizes = [1, 896], strides = [1, 1]} : vector<1x1152xf32> to vector<1x896xf32>
    %52 = vector.extract_strided_slice %49 {offsets = [0, 2], sizes = [1, 896], strides = [1, 1]} : vector<1x1152xf32> to vector<1x896xf32>
    %53 = vector.extract_strided_slice %49 {offsets = [0, 3], sizes = [1, 896], strides = [1, 1]} : vector<1x1152xf32> to vector<1x896xf32>
    %54 = vector.extract_strided_slice %49 {offsets = [0, 4], sizes = [1, 896], strides = [1, 1]} : vector<1x1152xf32> to vector<1x896xf32>
    %55 = vector.extract_strided_slice %49 {offsets = [0, 32], sizes = [1, 896], strides = [1, 1]} : vector<1x1152xf32> to vector<1x896xf32>
    %56 = vector.extract_strided_slice %49 {offsets = [0, 33], sizes = [1, 896], strides = [1, 1]} : vector<1x1152xf32> to vector<1x896xf32>
    %57 = vector.extract_strided_slice %49 {offsets = [0, 34], sizes = [1, 896], strides = [1, 1]} : vector<1x1152xf32> to vector<1x896xf32>
    %58 = vector.extract_strided_slice %49 {offsets = [0, 35], sizes = [1, 896], strides = [1, 1]} : vector<1x1152xf32> to vector<1x896xf32>
    %59 = vector.extract_strided_slice %49 {offsets = [0, 36], sizes = [1, 896], strides = [1, 1]} : vector<1x1152xf32> to vector<1x896xf32>
    %60 = vector.extract_strided_slice %49 {offsets = [0, 64], sizes = [1, 896], strides = [1, 1]} : vector<1x1152xf32> to vector<1x896xf32>
    %61 = vector.extract_strided_slice %49 {offsets = [0, 65], sizes = [1, 896], strides = [1, 1]} : vector<1x1152xf32> to vector<1x896xf32>
    %62 = vector.extract_strided_slice %49 {offsets = [0, 66], sizes = [1, 896], strides = [1, 1]} : vector<1x1152xf32> to vector<1x896xf32>
    %63 = vector.extract_strided_slice %49 {offsets = [0, 67], sizes = [1, 896], strides = [1, 1]} : vector<1x1152xf32> to vector<1x896xf32>
    %64 = vector.extract_strided_slice %49 {offsets = [0, 68], sizes = [1, 896], strides = [1, 1]} : vector<1x1152xf32> to vector<1x896xf32>
    %65 = vector.extract_strided_slice %49 {offsets = [0, 96], sizes = [1, 896], strides = [1, 1]} : vector<1x1152xf32> to vector<1x896xf32>
    %66 = vector.extract_strided_slice %49 {offsets = [0, 97], sizes = [1, 896], strides = [1, 1]} : vector<1x1152xf32> to vector<1x896xf32>
    %67 = vector.extract_strided_slice %49 {offsets = [0, 98], sizes = [1, 896], strides = [1, 1]} : vector<1x1152xf32> to vector<1x896xf32>
    %68 = vector.extract_strided_slice %49 {offsets = [0, 99], sizes = [1, 896], strides = [1, 1]} : vector<1x1152xf32> to vector<1x896xf32>
    %69 = vector.extract_strided_slice %49 {offsets = [0, 100], sizes = [1, 896], strides = [1, 1]} : vector<1x1152xf32> to vector<1x896xf32>
    %70 = vector.extract_strided_slice %49 {offsets = [0, 128], sizes = [1, 896], strides = [1, 1]} : vector<1x1152xf32> to vector<1x896xf32>
    %71 = vector.extract_strided_slice %49 {offsets = [0, 129], sizes = [1, 896], strides = [1, 1]} : vector<1x1152xf32> to vector<1x896xf32>
    %72 = vector.extract_strided_slice %49 {offsets = [0, 130], sizes = [1, 896], strides = [1, 1]} : vector<1x1152xf32> to vector<1x896xf32>
    %73 = vector.extract_strided_slice %49 {offsets = [0, 131], sizes = [1, 896], strides = [1, 1]} : vector<1x1152xf32> to vector<1x896xf32>
    %74 = vector.extract_strided_slice %49 {offsets = [0, 132], sizes = [1, 896], strides = [1, 1]} : vector<1x1152xf32> to vector<1x896xf32>
    %75 = tpu.concatenate %50, %51, %52, %53, %54, %55, %56, %57, %58, %59, %60, %61, %62, %63, %64, %65 in 0 : vector<1x896xf32>, vector<1x896xf32>, vector<1x896xf32>, vector<1x896xf32>, vector<1x896xf32>, vector<1x896xf32>, vector<1x896xf32>, vector<1x896xf32>, vector<1x896xf32>, vector<1x896xf32>, vector<1x896xf32>, vector<1x896xf32>, vector<1x896xf32>, vector<1x896xf32>, vector<1x896xf32>, vector<1x896xf32> -> vector<16x896xf32>
    %76 = tpu.concatenate %66, %67, %68, %69, %70, %71, %72, %73, %74 in 0 : vector<1x896xf32>, vector<1x896xf32>, vector<1x896xf32>, vector<1x896xf32>, vector<1x896xf32>, vector<1x896xf32>, vector<1x896xf32>, vector<1x896xf32>, vector<1x896xf32> -> vector<9x896xf32>
    %77 = tpu.concatenate %75, %76 in 0 : vector<16x896xf32>, vector<9x896xf32> -> vector<25x896xf32>
    %78 = arith.truncf %77 : vector<25x896xf32> to vector<25x896xbf16>
    %cst_12 = arith.constant dense<0.000000e+00> : vector<16x896xf32>
    %79 = tpu.matmul %0, %78, %cst_12 {dimension_numbers = #tpu.dot_dimension_numbers<[1], [0], [0], [1], [0, 0, 1, 1], [], []>} : vector<16x25xbf16>, vector<25x896xbf16>, vector<16x896xf32> -> vector<16x896xf32>
    %80 = vector.broadcast %1 : vector<16x1xf32> to vector<16x896xf32>
    %81 = arith.addf %79, %80 : vector<16x896xf32>
    %cst_13 = arith.constant 0.000000e+00 : f32
    %82 = vector.broadcast %cst_13 : f32 to vector<16x896xf32>
    %83 = arith.maximumf %81, %82 : vector<16x896xf32>
    %c895_i32_14 = arith.constant 895 : i32
    %84 = tpu.dynamic_rotate %83 by %c895_i32_14 dim 1 : vector<16x896xf32>, i32 -> vector<16x896xf32>
    %85 = arith.maximumf %83, %84 : vector<16x896xf32>
    %c864_i32_15 = arith.constant 864 : i32
    %86 = tpu.dynamic_rotate %85 by %c864_i32_15 dim 1 : vector<16x896xf32>, i32 -> vector<16x896xf32>
    %87 = arith.maximumf %85, %86 : vector<16x896xf32>
    %88 = arith.truncf %87 : vector<16x896xf32> to vector<16x896xbf16>
    %c1_16 = arith.constant 1 : index
    %c0_17 = arith.constant 0 : index
    %c0_18 = arith.constant 0 : index
    %89 = vector.load %arg4[%c1_16, %c0_17, %c0_18] : memref<2x16x896xbf16, #tpu.memory_space<vmem>>, vector<1x16x896xbf16>
    %90 = vector.shape_cast %89 : vector<1x16x896xbf16> to vector<16x896xbf16>
    %91 = vector.shape_cast %88 : vector<16x896xbf16> to vector<1x16x896xbf16>
    tpu.vector_store %arg4[%c1_16, %c0_17, %c0_18], %91 {strides = array<i32>} : memref<2x16x896xbf16, #tpu.memory_space<vmem>>, vector<1x16x896xbf16>,
    return
  }
  func.func @transform_0(%arg0: i32) -> (i32, i32, i32) {
    %c0_i32 = arith.constant 0 : i32
    %c0_i32_0 = arith.constant 0 : i32
    %c0_i32_1 = arith.constant 0 : i32
    return %arg0, %c0_i32, %c0_i32_0 : i32, i32, i32
  }
  func.func @transform_1(%arg0: i32) -> (i32, i32) {
    %c0_i32 = arith.constant 0 : i32
    %c0_i32_0 = arith.constant 0 : i32
    %c0_i32_1 = arith.constant 0 : i32
    return %c0_i32, %c0_i32_0 : i32, i32
  }
  func.func @transform_2(%arg0: i32) -> (i32, i32) {
    %c0_i32 = arith.constant 0 : i32
    %c0_i32_0 = arith.constant 0 : i32
    %c0_i32_1 = arith.constant 0 : i32
    return %c0_i32, %c0_i32_0 : i32, i32
  }
  func.func @transform_3(%arg0: i32) -> (i32, i32, i32) {
    %c0_i32 = arith.constant 0 : i32
    %c0_i32_0 = arith.constant 0 : i32
    %c0_i32_1 = arith.constant 0 : i32
    return %arg0, %c0_i32, %c0_i32_0 : i32, i32, i32
  }
}

module attributes {stable_mosaic.version = 11 : i64} {
  func.func @_conv_relu_pool_kernel(%arg0: i32, %arg1: memref<2x16x768xbf16, #tpu.memory_space<vmem>>, %arg2: memref<32x400xbf16, #tpu.memory_space<vmem>>, %arg3: memref<32x1xf32, #tpu.memory_space<vmem>>, %arg4: memref<2x32x512xbf16, #tpu.memory_space<vmem>>, %arg5: memref<400x1024xbf16, #tpu.memory_space<vmem>>) attributes {dimension_semantics = [#tpu.dimension_semantics<parallel>], iteration_bounds = array<i64: 1>, scalar_prefetch = 0 : i64, scratch_operands = 1 : i64, tpu.core_type = #tpu.core_type<tc>, window_params = [{transform_indices = @transform_0, window_bounds = array<i64: 2, 16, 768>}, {pipeline_mode = #tpu.pipeline_mode<synchronous>, transform_indices = @transform_1, window_bounds = array<i64: 32, 400>}, {pipeline_mode = #tpu.pipeline_mode<synchronous>, transform_indices = @transform_2, window_bounds = array<i64: 32, 1>}, {transform_indices = @transform_3, window_bounds = array<i64: 2, 32, 512>}]} {
    %c0 = arith.constant 0 : index
    %c0_0 = arith.constant 0 : index
    %c0_1 = arith.constant 0 : index
    %0 = vector.load %arg1[%c0, %c0_0, %c0_1] : memref<2x16x768xbf16, #tpu.memory_space<vmem>>, vector<1x16x768xbf16>
    %1 = vector.shape_cast %0 : vector<1x16x768xbf16> to vector<16x768xbf16>
    %2 = vector.extract_strided_slice %1 {offsets = [0, 0], sizes = [16, 512], strides = [1, 1]} : vector<16x768xbf16> to vector<16x512xbf16>
    %c0_2 = arith.constant 0 : index
    %c0_3 = arith.constant 0 : index
    %3 = vector.load %arg5[%c0_2, %c0_3] : memref<400x1024xbf16, #tpu.memory_space<vmem>>, vector<16x512xbf16>
    tpu.vector_store %arg5[%c0_2, %c0_3], %2 {strides = array<i32>} : memref<400x1024xbf16, #tpu.memory_space<vmem>>, vector<16x512xbf16>,
    %4 = vector.extract_strided_slice %1 {offsets = [0, 1], sizes = [16, 512], strides = [1, 1]} : vector<16x768xbf16> to vector<16x512xbf16>
    %c16 = arith.constant 16 : index
    %c0_4 = arith.constant 0 : index
    %5 = vector.load %arg5[%c16, %c0_4] : memref<400x1024xbf16, #tpu.memory_space<vmem>>, vector<16x512xbf16>
    tpu.vector_store %arg5[%c16, %c0_4], %4 {strides = array<i32>} : memref<400x1024xbf16, #tpu.memory_space<vmem>>, vector<16x512xbf16>,
    %6 = vector.extract_strided_slice %1 {offsets = [0, 2], sizes = [16, 512], strides = [1, 1]} : vector<16x768xbf16> to vector<16x512xbf16>
    %c32 = arith.constant 32 : index
    %c0_5 = arith.constant 0 : index
    %7 = vector.load %arg5[%c32, %c0_5] : memref<400x1024xbf16, #tpu.memory_space<vmem>>, vector<16x512xbf16>
    tpu.vector_store %arg5[%c32, %c0_5], %6 {strides = array<i32>} : memref<400x1024xbf16, #tpu.memory_space<vmem>>, vector<16x512xbf16>,
    %8 = vector.extract_strided_slice %1 {offsets = [0, 3], sizes = [16, 512], strides = [1, 1]} : vector<16x768xbf16> to vector<16x512xbf16>
    %c48 = arith.constant 48 : index
    %c0_6 = arith.constant 0 : index
    %9 = vector.load %arg5[%c48, %c0_6] : memref<400x1024xbf16, #tpu.memory_space<vmem>>, vector<16x512xbf16>
    tpu.vector_store %arg5[%c48, %c0_6], %8 {strides = array<i32>} : memref<400x1024xbf16, #tpu.memory_space<vmem>>, vector<16x512xbf16>,
    %10 = vector.extract_strided_slice %1 {offsets = [0, 4], sizes = [16, 512], strides = [1, 1]} : vector<16x768xbf16> to vector<16x512xbf16>
    %c64 = arith.constant 64 : index
    %c0_7 = arith.constant 0 : index
    %11 = vector.load %arg5[%c64, %c0_7] : memref<400x1024xbf16, #tpu.memory_space<vmem>>, vector<16x512xbf16>
    tpu.vector_store %arg5[%c64, %c0_7], %10 {strides = array<i32>} : memref<400x1024xbf16, #tpu.memory_space<vmem>>, vector<16x512xbf16>,
    %12 = vector.extract_strided_slice %1 {offsets = [0, 32], sizes = [16, 512], strides = [1, 1]} : vector<16x768xbf16> to vector<16x512xbf16>
    %c80 = arith.constant 80 : index
    %c0_8 = arith.constant 0 : index
    %13 = vector.load %arg5[%c80, %c0_8] : memref<400x1024xbf16, #tpu.memory_space<vmem>>, vector<16x512xbf16>
    tpu.vector_store %arg5[%c80, %c0_8], %12 {strides = array<i32>} : memref<400x1024xbf16, #tpu.memory_space<vmem>>, vector<16x512xbf16>,
    %14 = vector.extract_strided_slice %1 {offsets = [0, 33], sizes = [16, 512], strides = [1, 1]} : vector<16x768xbf16> to vector<16x512xbf16>
    %c96 = arith.constant 96 : index
    %c0_9 = arith.constant 0 : index
    %15 = vector.load %arg5[%c96, %c0_9] : memref<400x1024xbf16, #tpu.memory_space<vmem>>, vector<16x512xbf16>
    tpu.vector_store %arg5[%c96, %c0_9], %14 {strides = array<i32>} : memref<400x1024xbf16, #tpu.memory_space<vmem>>, vector<16x512xbf16>,
    %16 = vector.extract_strided_slice %1 {offsets = [0, 34], sizes = [16, 512], strides = [1, 1]} : vector<16x768xbf16> to vector<16x512xbf16>
    %c112 = arith.constant 112 : index
    %c0_10 = arith.constant 0 : index
    %17 = vector.load %arg5[%c112, %c0_10] : memref<400x1024xbf16, #tpu.memory_space<vmem>>, vector<16x512xbf16>
    tpu.vector_store %arg5[%c112, %c0_10], %16 {strides = array<i32>} : memref<400x1024xbf16, #tpu.memory_space<vmem>>, vector<16x512xbf16>,
    %18 = vector.extract_strided_slice %1 {offsets = [0, 35], sizes = [16, 512], strides = [1, 1]} : vector<16x768xbf16> to vector<16x512xbf16>
    %c128 = arith.constant 128 : index
    %c0_11 = arith.constant 0 : index
    %19 = vector.load %arg5[%c128, %c0_11] : memref<400x1024xbf16, #tpu.memory_space<vmem>>, vector<16x512xbf16>
    tpu.vector_store %arg5[%c128, %c0_11], %18 {strides = array<i32>} : memref<400x1024xbf16, #tpu.memory_space<vmem>>, vector<16x512xbf16>,
    %20 = vector.extract_strided_slice %1 {offsets = [0, 36], sizes = [16, 512], strides = [1, 1]} : vector<16x768xbf16> to vector<16x512xbf16>
    %c144 = arith.constant 144 : index
    %c0_12 = arith.constant 0 : index
    %21 = vector.load %arg5[%c144, %c0_12] : memref<400x1024xbf16, #tpu.memory_space<vmem>>, vector<16x512xbf16>
    tpu.vector_store %arg5[%c144, %c0_12], %20 {strides = array<i32>} : memref<400x1024xbf16, #tpu.memory_space<vmem>>, vector<16x512xbf16>,
    %22 = vector.extract_strided_slice %1 {offsets = [0, 64], sizes = [16, 512], strides = [1, 1]} : vector<16x768xbf16> to vector<16x512xbf16>
    %c160 = arith.constant 160 : index
    %c0_13 = arith.constant 0 : index
    %23 = vector.load %arg5[%c160, %c0_13] : memref<400x1024xbf16, #tpu.memory_space<vmem>>, vector<16x512xbf16>
    tpu.vector_store %arg5[%c160, %c0_13], %22 {strides = array<i32>} : memref<400x1024xbf16, #tpu.memory_space<vmem>>, vector<16x512xbf16>,
    %24 = vector.extract_strided_slice %1 {offsets = [0, 65], sizes = [16, 512], strides = [1, 1]} : vector<16x768xbf16> to vector<16x512xbf16>
    %c176 = arith.constant 176 : index
    %c0_14 = arith.constant 0 : index
    %25 = vector.load %arg5[%c176, %c0_14] : memref<400x1024xbf16, #tpu.memory_space<vmem>>, vector<16x512xbf16>
    tpu.vector_store %arg5[%c176, %c0_14], %24 {strides = array<i32>} : memref<400x1024xbf16, #tpu.memory_space<vmem>>, vector<16x512xbf16>,
    %26 = vector.extract_strided_slice %1 {offsets = [0, 66], sizes = [16, 512], strides = [1, 1]} : vector<16x768xbf16> to vector<16x512xbf16>
    %c192 = arith.constant 192 : index
    %c0_15 = arith.constant 0 : index
    %27 = vector.load %arg5[%c192, %c0_15] : memref<400x1024xbf16, #tpu.memory_space<vmem>>, vector<16x512xbf16>
    tpu.vector_store %arg5[%c192, %c0_15], %26 {strides = array<i32>} : memref<400x1024xbf16, #tpu.memory_space<vmem>>, vector<16x512xbf16>,
    %28 = vector.extract_strided_slice %1 {offsets = [0, 67], sizes = [16, 512], strides = [1, 1]} : vector<16x768xbf16> to vector<16x512xbf16>
    %c208 = arith.constant 208 : index
    %c0_16 = arith.constant 0 : index
    %29 = vector.load %arg5[%c208, %c0_16] : memref<400x1024xbf16, #tpu.memory_space<vmem>>, vector<16x512xbf16>
    tpu.vector_store %arg5[%c208, %c0_16], %28 {strides = array<i32>} : memref<400x1024xbf16, #tpu.memory_space<vmem>>, vector<16x512xbf16>,
    %30 = vector.extract_strided_slice %1 {offsets = [0, 68], sizes = [16, 512], strides = [1, 1]} : vector<16x768xbf16> to vector<16x512xbf16>
    %c224 = arith.constant 224 : index
    %c0_17 = arith.constant 0 : index
    %31 = vector.load %arg5[%c224, %c0_17] : memref<400x1024xbf16, #tpu.memory_space<vmem>>, vector<16x512xbf16>
    tpu.vector_store %arg5[%c224, %c0_17], %30 {strides = array<i32>} : memref<400x1024xbf16, #tpu.memory_space<vmem>>, vector<16x512xbf16>,
    %32 = vector.extract_strided_slice %1 {offsets = [0, 96], sizes = [16, 512], strides = [1, 1]} : vector<16x768xbf16> to vector<16x512xbf16>
    %c240 = arith.constant 240 : index
    %c0_18 = arith.constant 0 : index
    %33 = vector.load %arg5[%c240, %c0_18] : memref<400x1024xbf16, #tpu.memory_space<vmem>>, vector<16x512xbf16>
    tpu.vector_store %arg5[%c240, %c0_18], %32 {strides = array<i32>} : memref<400x1024xbf16, #tpu.memory_space<vmem>>, vector<16x512xbf16>,
    %34 = vector.extract_strided_slice %1 {offsets = [0, 97], sizes = [16, 512], strides = [1, 1]} : vector<16x768xbf16> to vector<16x512xbf16>
    %c256 = arith.constant 256 : index
    %c0_19 = arith.constant 0 : index
    %35 = vector.load %arg5[%c256, %c0_19] : memref<400x1024xbf16, #tpu.memory_space<vmem>>, vector<16x512xbf16>
    tpu.vector_store %arg5[%c256, %c0_19], %34 {strides = array<i32>} : memref<400x1024xbf16, #tpu.memory_space<vmem>>, vector<16x512xbf16>,
    %36 = vector.extract_strided_slice %1 {offsets = [0, 98], sizes = [16, 512], strides = [1, 1]} : vector<16x768xbf16> to vector<16x512xbf16>
    %c272 = arith.constant 272 : index
    %c0_20 = arith.constant 0 : index
    %37 = vector.load %arg5[%c272, %c0_20] : memref<400x1024xbf16, #tpu.memory_space<vmem>>, vector<16x512xbf16>
    tpu.vector_store %arg5[%c272, %c0_20], %36 {strides = array<i32>} : memref<400x1024xbf16, #tpu.memory_space<vmem>>, vector<16x512xbf16>,
    %38 = vector.extract_strided_slice %1 {offsets = [0, 99], sizes = [16, 512], strides = [1, 1]} : vector<16x768xbf16> to vector<16x512xbf16>
    %c288 = arith.constant 288 : index
    %c0_21 = arith.constant 0 : index
    %39 = vector.load %arg5[%c288, %c0_21] : memref<400x1024xbf16, #tpu.memory_space<vmem>>, vector<16x512xbf16>
    tpu.vector_store %arg5[%c288, %c0_21], %38 {strides = array<i32>} : memref<400x1024xbf16, #tpu.memory_space<vmem>>, vector<16x512xbf16>,
    %40 = vector.extract_strided_slice %1 {offsets = [0, 100], sizes = [16, 512], strides = [1, 1]} : vector<16x768xbf16> to vector<16x512xbf16>
    %c304 = arith.constant 304 : index
    %c0_22 = arith.constant 0 : index
    %41 = vector.load %arg5[%c304, %c0_22] : memref<400x1024xbf16, #tpu.memory_space<vmem>>, vector<16x512xbf16>
    tpu.vector_store %arg5[%c304, %c0_22], %40 {strides = array<i32>} : memref<400x1024xbf16, #tpu.memory_space<vmem>>, vector<16x512xbf16>,
    %42 = vector.extract_strided_slice %1 {offsets = [0, 128], sizes = [16, 512], strides = [1, 1]} : vector<16x768xbf16> to vector<16x512xbf16>
    %c320 = arith.constant 320 : index
    %c0_23 = arith.constant 0 : index
    %43 = vector.load %arg5[%c320, %c0_23] : memref<400x1024xbf16, #tpu.memory_space<vmem>>, vector<16x512xbf16>
    tpu.vector_store %arg5[%c320, %c0_23], %42 {strides = array<i32>} : memref<400x1024xbf16, #tpu.memory_space<vmem>>, vector<16x512xbf16>,
    %44 = vector.extract_strided_slice %1 {offsets = [0, 129], sizes = [16, 512], strides = [1, 1]} : vector<16x768xbf16> to vector<16x512xbf16>
    %c336 = arith.constant 336 : index
    %c0_24 = arith.constant 0 : index
    %45 = vector.load %arg5[%c336, %c0_24] : memref<400x1024xbf16, #tpu.memory_space<vmem>>, vector<16x512xbf16>
    tpu.vector_store %arg5[%c336, %c0_24], %44 {strides = array<i32>} : memref<400x1024xbf16, #tpu.memory_space<vmem>>, vector<16x512xbf16>,
    %46 = vector.extract_strided_slice %1 {offsets = [0, 130], sizes = [16, 512], strides = [1, 1]} : vector<16x768xbf16> to vector<16x512xbf16>
    %c352 = arith.constant 352 : index
    %c0_25 = arith.constant 0 : index
    %47 = vector.load %arg5[%c352, %c0_25] : memref<400x1024xbf16, #tpu.memory_space<vmem>>, vector<16x512xbf16>
    tpu.vector_store %arg5[%c352, %c0_25], %46 {strides = array<i32>} : memref<400x1024xbf16, #tpu.memory_space<vmem>>, vector<16x512xbf16>,
    %48 = vector.extract_strided_slice %1 {offsets = [0, 131], sizes = [16, 512], strides = [1, 1]} : vector<16x768xbf16> to vector<16x512xbf16>
    %c368 = arith.constant 368 : index
    %c0_26 = arith.constant 0 : index
    %49 = vector.load %arg5[%c368, %c0_26] : memref<400x1024xbf16, #tpu.memory_space<vmem>>, vector<16x512xbf16>
    tpu.vector_store %arg5[%c368, %c0_26], %48 {strides = array<i32>} : memref<400x1024xbf16, #tpu.memory_space<vmem>>, vector<16x512xbf16>,
    %50 = vector.extract_strided_slice %1 {offsets = [0, 132], sizes = [16, 512], strides = [1, 1]} : vector<16x768xbf16> to vector<16x512xbf16>
    %c384 = arith.constant 384 : index
    %c0_27 = arith.constant 0 : index
    %51 = vector.load %arg5[%c384, %c0_27] : memref<400x1024xbf16, #tpu.memory_space<vmem>>, vector<16x512xbf16>
    tpu.vector_store %arg5[%c384, %c0_27], %50 {strides = array<i32>} : memref<400x1024xbf16, #tpu.memory_space<vmem>>, vector<16x512xbf16>,
    %c1 = arith.constant 1 : index
    %c0_28 = arith.constant 0 : index
    %c0_29 = arith.constant 0 : index
    %52 = vector.load %arg1[%c1, %c0_28, %c0_29] : memref<2x16x768xbf16, #tpu.memory_space<vmem>>, vector<1x16x768xbf16>
    %53 = vector.shape_cast %52 : vector<1x16x768xbf16> to vector<16x768xbf16>
    %54 = vector.extract_strided_slice %53 {offsets = [0, 0], sizes = [16, 512], strides = [1, 1]} : vector<16x768xbf16> to vector<16x512xbf16>
    %c0_30 = arith.constant 0 : index
    %c512 = arith.constant 512 : index
    %55 = vector.load %arg5[%c0_30, %c512] : memref<400x1024xbf16, #tpu.memory_space<vmem>>, vector<16x512xbf16>
    tpu.vector_store %arg5[%c0_30, %c512], %54 {strides = array<i32>} : memref<400x1024xbf16, #tpu.memory_space<vmem>>, vector<16x512xbf16>,
    %56 = vector.extract_strided_slice %53 {offsets = [0, 1], sizes = [16, 512], strides = [1, 1]} : vector<16x768xbf16> to vector<16x512xbf16>
    %c16_31 = arith.constant 16 : index
    %c512_32 = arith.constant 512 : index
    %57 = vector.load %arg5[%c16_31, %c512_32] : memref<400x1024xbf16, #tpu.memory_space<vmem>>, vector<16x512xbf16>
    tpu.vector_store %arg5[%c16_31, %c512_32], %56 {strides = array<i32>} : memref<400x1024xbf16, #tpu.memory_space<vmem>>, vector<16x512xbf16>,
    %58 = vector.extract_strided_slice %53 {offsets = [0, 2], sizes = [16, 512], strides = [1, 1]} : vector<16x768xbf16> to vector<16x512xbf16>
    %c32_33 = arith.constant 32 : index
    %c512_34 = arith.constant 512 : index
    %59 = vector.load %arg5[%c32_33, %c512_34] : memref<400x1024xbf16, #tpu.memory_space<vmem>>, vector<16x512xbf16>
    tpu.vector_store %arg5[%c32_33, %c512_34], %58 {strides = array<i32>} : memref<400x1024xbf16, #tpu.memory_space<vmem>>, vector<16x512xbf16>,
    %60 = vector.extract_strided_slice %53 {offsets = [0, 3], sizes = [16, 512], strides = [1, 1]} : vector<16x768xbf16> to vector<16x512xbf16>
    %c48_35 = arith.constant 48 : index
    %c512_36 = arith.constant 512 : index
    %61 = vector.load %arg5[%c48_35, %c512_36] : memref<400x1024xbf16, #tpu.memory_space<vmem>>, vector<16x512xbf16>
    tpu.vector_store %arg5[%c48_35, %c512_36], %60 {strides = array<i32>} : memref<400x1024xbf16, #tpu.memory_space<vmem>>, vector<16x512xbf16>,
    %62 = vector.extract_strided_slice %53 {offsets = [0, 4], sizes = [16, 512], strides = [1, 1]} : vector<16x768xbf16> to vector<16x512xbf16>
    %c64_37 = arith.constant 64 : index
    %c512_38 = arith.constant 512 : index
    %63 = vector.load %arg5[%c64_37, %c512_38] : memref<400x1024xbf16, #tpu.memory_space<vmem>>, vector<16x512xbf16>
    tpu.vector_store %arg5[%c64_37, %c512_38], %62 {strides = array<i32>} : memref<400x1024xbf16, #tpu.memory_space<vmem>>, vector<16x512xbf16>,
    %64 = vector.extract_strided_slice %53 {offsets = [0, 32], sizes = [16, 512], strides = [1, 1]} : vector<16x768xbf16> to vector<16x512xbf16>
    %c80_39 = arith.constant 80 : index
    %c512_40 = arith.constant 512 : index
    %65 = vector.load %arg5[%c80_39, %c512_40] : memref<400x1024xbf16, #tpu.memory_space<vmem>>, vector<16x512xbf16>
    tpu.vector_store %arg5[%c80_39, %c512_40], %64 {strides = array<i32>} : memref<400x1024xbf16, #tpu.memory_space<vmem>>, vector<16x512xbf16>,
    %66 = vector.extract_strided_slice %53 {offsets = [0, 33], sizes = [16, 512], strides = [1, 1]} : vector<16x768xbf16> to vector<16x512xbf16>
    %c96_41 = arith.constant 96 : index
    %c512_42 = arith.constant 512 : index
    %67 = vector.load %arg5[%c96_41, %c512_42] : memref<400x1024xbf16, #tpu.memory_space<vmem>>, vector<16x512xbf16>
    tpu.vector_store %arg5[%c96_41, %c512_42], %66 {strides = array<i32>} : memref<400x1024xbf16, #tpu.memory_space<vmem>>, vector<16x512xbf16>,
    %68 = vector.extract_strided_slice %53 {offsets = [0, 34], sizes = [16, 512], strides = [1, 1]} : vector<16x768xbf16> to vector<16x512xbf16>
    %c112_43 = arith.constant 112 : index
    %c512_44 = arith.constant 512 : index
    %69 = vector.load %arg5[%c112_43, %c512_44] : memref<400x1024xbf16, #tpu.memory_space<vmem>>, vector<16x512xbf16>
    tpu.vector_store %arg5[%c112_43, %c512_44], %68 {strides = array<i32>} : memref<400x1024xbf16, #tpu.memory_space<vmem>>, vector<16x512xbf16>,
    %70 = vector.extract_strided_slice %53 {offsets = [0, 35], sizes = [16, 512], strides = [1, 1]} : vector<16x768xbf16> to vector<16x512xbf16>
    %c128_45 = arith.constant 128 : index
    %c512_46 = arith.constant 512 : index
    %71 = vector.load %arg5[%c128_45, %c512_46] : memref<400x1024xbf16, #tpu.memory_space<vmem>>, vector<16x512xbf16>
    tpu.vector_store %arg5[%c128_45, %c512_46], %70 {strides = array<i32>} : memref<400x1024xbf16, #tpu.memory_space<vmem>>, vector<16x512xbf16>,
    %72 = vector.extract_strided_slice %53 {offsets = [0, 36], sizes = [16, 512], strides = [1, 1]} : vector<16x768xbf16> to vector<16x512xbf16>
    %c144_47 = arith.constant 144 : index
    %c512_48 = arith.constant 512 : index
    %73 = vector.load %arg5[%c144_47, %c512_48] : memref<400x1024xbf16, #tpu.memory_space<vmem>>, vector<16x512xbf16>
    tpu.vector_store %arg5[%c144_47, %c512_48], %72 {strides = array<i32>} : memref<400x1024xbf16, #tpu.memory_space<vmem>>, vector<16x512xbf16>,
    %74 = vector.extract_strided_slice %53 {offsets = [0, 64], sizes = [16, 512], strides = [1, 1]} : vector<16x768xbf16> to vector<16x512xbf16>
    %c160_49 = arith.constant 160 : index
    %c512_50 = arith.constant 512 : index
    %75 = vector.load %arg5[%c160_49, %c512_50] : memref<400x1024xbf16, #tpu.memory_space<vmem>>, vector<16x512xbf16>
    tpu.vector_store %arg5[%c160_49, %c512_50], %74 {strides = array<i32>} : memref<400x1024xbf16, #tpu.memory_space<vmem>>, vector<16x512xbf16>,
    %76 = vector.extract_strided_slice %53 {offsets = [0, 65], sizes = [16, 512], strides = [1, 1]} : vector<16x768xbf16> to vector<16x512xbf16>
    %c176_51 = arith.constant 176 : index
    %c512_52 = arith.constant 512 : index
    %77 = vector.load %arg5[%c176_51, %c512_52] : memref<400x1024xbf16, #tpu.memory_space<vmem>>, vector<16x512xbf16>
    tpu.vector_store %arg5[%c176_51, %c512_52], %76 {strides = array<i32>} : memref<400x1024xbf16, #tpu.memory_space<vmem>>, vector<16x512xbf16>,
    %78 = vector.extract_strided_slice %53 {offsets = [0, 66], sizes = [16, 512], strides = [1, 1]} : vector<16x768xbf16> to vector<16x512xbf16>
    %c192_53 = arith.constant 192 : index
    %c512_54 = arith.constant 512 : index
    %79 = vector.load %arg5[%c192_53, %c512_54] : memref<400x1024xbf16, #tpu.memory_space<vmem>>, vector<16x512xbf16>
    tpu.vector_store %arg5[%c192_53, %c512_54], %78 {strides = array<i32>} : memref<400x1024xbf16, #tpu.memory_space<vmem>>, vector<16x512xbf16>,
    %80 = vector.extract_strided_slice %53 {offsets = [0, 67], sizes = [16, 512], strides = [1, 1]} : vector<16x768xbf16> to vector<16x512xbf16>
    %c208_55 = arith.constant 208 : index
    %c512_56 = arith.constant 512 : index
    %81 = vector.load %arg5[%c208_55, %c512_56] : memref<400x1024xbf16, #tpu.memory_space<vmem>>, vector<16x512xbf16>
    tpu.vector_store %arg5[%c208_55, %c512_56], %80 {strides = array<i32>} : memref<400x1024xbf16, #tpu.memory_space<vmem>>, vector<16x512xbf16>,
    %82 = vector.extract_strided_slice %53 {offsets = [0, 68], sizes = [16, 512], strides = [1, 1]} : vector<16x768xbf16> to vector<16x512xbf16>
    %c224_57 = arith.constant 224 : index
    %c512_58 = arith.constant 512 : index
    %83 = vector.load %arg5[%c224_57, %c512_58] : memref<400x1024xbf16, #tpu.memory_space<vmem>>, vector<16x512xbf16>
    tpu.vector_store %arg5[%c224_57, %c512_58], %82 {strides = array<i32>} : memref<400x1024xbf16, #tpu.memory_space<vmem>>, vector<16x512xbf16>,
    %84 = vector.extract_strided_slice %53 {offsets = [0, 96], sizes = [16, 512], strides = [1, 1]} : vector<16x768xbf16> to vector<16x512xbf16>
    %c240_59 = arith.constant 240 : index
    %c512_60 = arith.constant 512 : index
    %85 = vector.load %arg5[%c240_59, %c512_60] : memref<400x1024xbf16, #tpu.memory_space<vmem>>, vector<16x512xbf16>
    tpu.vector_store %arg5[%c240_59, %c512_60], %84 {strides = array<i32>} : memref<400x1024xbf16, #tpu.memory_space<vmem>>, vector<16x512xbf16>,
    %86 = vector.extract_strided_slice %53 {offsets = [0, 97], sizes = [16, 512], strides = [1, 1]} : vector<16x768xbf16> to vector<16x512xbf16>
    %c256_61 = arith.constant 256 : index
    %c512_62 = arith.constant 512 : index
    %87 = vector.load %arg5[%c256_61, %c512_62] : memref<400x1024xbf16, #tpu.memory_space<vmem>>, vector<16x512xbf16>
    tpu.vector_store %arg5[%c256_61, %c512_62], %86 {strides = array<i32>} : memref<400x1024xbf16, #tpu.memory_space<vmem>>, vector<16x512xbf16>,
    %88 = vector.extract_strided_slice %53 {offsets = [0, 98], sizes = [16, 512], strides = [1, 1]} : vector<16x768xbf16> to vector<16x512xbf16>
    %c272_63 = arith.constant 272 : index
    %c512_64 = arith.constant 512 : index
    %89 = vector.load %arg5[%c272_63, %c512_64] : memref<400x1024xbf16, #tpu.memory_space<vmem>>, vector<16x512xbf16>
    tpu.vector_store %arg5[%c272_63, %c512_64], %88 {strides = array<i32>} : memref<400x1024xbf16, #tpu.memory_space<vmem>>, vector<16x512xbf16>,
    %90 = vector.extract_strided_slice %53 {offsets = [0, 99], sizes = [16, 512], strides = [1, 1]} : vector<16x768xbf16> to vector<16x512xbf16>
    %c288_65 = arith.constant 288 : index
    %c512_66 = arith.constant 512 : index
    %91 = vector.load %arg5[%c288_65, %c512_66] : memref<400x1024xbf16, #tpu.memory_space<vmem>>, vector<16x512xbf16>
    tpu.vector_store %arg5[%c288_65, %c512_66], %90 {strides = array<i32>} : memref<400x1024xbf16, #tpu.memory_space<vmem>>, vector<16x512xbf16>,
    %92 = vector.extract_strided_slice %53 {offsets = [0, 100], sizes = [16, 512], strides = [1, 1]} : vector<16x768xbf16> to vector<16x512xbf16>
    %c304_67 = arith.constant 304 : index
    %c512_68 = arith.constant 512 : index
    %93 = vector.load %arg5[%c304_67, %c512_68] : memref<400x1024xbf16, #tpu.memory_space<vmem>>, vector<16x512xbf16>
    tpu.vector_store %arg5[%c304_67, %c512_68], %92 {strides = array<i32>} : memref<400x1024xbf16, #tpu.memory_space<vmem>>, vector<16x512xbf16>,
    %94 = vector.extract_strided_slice %53 {offsets = [0, 128], sizes = [16, 512], strides = [1, 1]} : vector<16x768xbf16> to vector<16x512xbf16>
    %c320_69 = arith.constant 320 : index
    %c512_70 = arith.constant 512 : index
    %95 = vector.load %arg5[%c320_69, %c512_70] : memref<400x1024xbf16, #tpu.memory_space<vmem>>, vector<16x512xbf16>
    tpu.vector_store %arg5[%c320_69, %c512_70], %94 {strides = array<i32>} : memref<400x1024xbf16, #tpu.memory_space<vmem>>, vector<16x512xbf16>,
    %96 = vector.extract_strided_slice %53 {offsets = [0, 129], sizes = [16, 512], strides = [1, 1]} : vector<16x768xbf16> to vector<16x512xbf16>
    %c336_71 = arith.constant 336 : index
    %c512_72 = arith.constant 512 : index
    %97 = vector.load %arg5[%c336_71, %c512_72] : memref<400x1024xbf16, #tpu.memory_space<vmem>>, vector<16x512xbf16>
    tpu.vector_store %arg5[%c336_71, %c512_72], %96 {strides = array<i32>} : memref<400x1024xbf16, #tpu.memory_space<vmem>>, vector<16x512xbf16>,
    %98 = vector.extract_strided_slice %53 {offsets = [0, 130], sizes = [16, 512], strides = [1, 1]} : vector<16x768xbf16> to vector<16x512xbf16>
    %c352_73 = arith.constant 352 : index
    %c512_74 = arith.constant 512 : index
    %99 = vector.load %arg5[%c352_73, %c512_74] : memref<400x1024xbf16, #tpu.memory_space<vmem>>, vector<16x512xbf16>
    tpu.vector_store %arg5[%c352_73, %c512_74], %98 {strides = array<i32>} : memref<400x1024xbf16, #tpu.memory_space<vmem>>, vector<16x512xbf16>,
    %100 = vector.extract_strided_slice %53 {offsets = [0, 131], sizes = [16, 512], strides = [1, 1]} : vector<16x768xbf16> to vector<16x512xbf16>
    %c368_75 = arith.constant 368 : index
    %c512_76 = arith.constant 512 : index
    %101 = vector.load %arg5[%c368_75, %c512_76] : memref<400x1024xbf16, #tpu.memory_space<vmem>>, vector<16x512xbf16>
    tpu.vector_store %arg5[%c368_75, %c512_76], %100 {strides = array<i32>} : memref<400x1024xbf16, #tpu.memory_space<vmem>>, vector<16x512xbf16>,
    %102 = vector.extract_strided_slice %53 {offsets = [0, 132], sizes = [16, 512], strides = [1, 1]} : vector<16x768xbf16> to vector<16x512xbf16>
    %c384_77 = arith.constant 384 : index
    %c512_78 = arith.constant 512 : index
    %103 = vector.load %arg5[%c384_77, %c512_78] : memref<400x1024xbf16, #tpu.memory_space<vmem>>, vector<16x512xbf16>
    tpu.vector_store %arg5[%c384_77, %c512_78], %102 {strides = array<i32>} : memref<400x1024xbf16, #tpu.memory_space<vmem>>, vector<16x512xbf16>,
    %c0_79 = arith.constant 0 : index
    %c0_80 = arith.constant 0 : index
    %104 = vector.load %arg2[%c0_79, %c0_80] : memref<32x400xbf16, #tpu.memory_space<vmem>>, vector<32x400xbf16>
    %c0_81 = arith.constant 0 : index
    %c0_82 = arith.constant 0 : index
    %105 = vector.load %arg5[%c0_81, %c0_82] : memref<400x1024xbf16, #tpu.memory_space<vmem>>, vector<400x1024xbf16>
    %cst = arith.constant dense<0.000000e+00> : vector<32x1024xf32>
    %106 = tpu.matmul %104, %105, %cst {dimension_numbers = #tpu.dot_dimension_numbers<[1], [0], [0], [1], [0, 0, 1, 1], [], []>} : vector<32x400xbf16>, vector<400x1024xbf16>, vector<32x1024xf32> -> vector<32x1024xf32>
    %c0_83 = arith.constant 0 : index
    %c0_84 = arith.constant 0 : index
    %107 = vector.load %arg3[%c0_83, %c0_84] : memref<32x1xf32, #tpu.memory_space<vmem>>, vector<32x1xf32>
    %108 = vector.broadcast %107 : vector<32x1xf32> to vector<32x1024xf32>
    %109 = arith.addf %106, %108 : vector<32x1024xf32>
    %cst_85 = arith.constant 0.000000e+00 : f32
    %110 = vector.broadcast %cst_85 : f32 to vector<32x1024xf32>
    %111 = arith.maximumf %109, %110 : vector<32x1024xf32>
    %c1023_i32 = arith.constant 1023 : i32
    %112 = tpu.dynamic_rotate %111 by %c1023_i32 dim 1 : vector<32x1024xf32>, i32 -> vector<32x1024xf32>
    %113 = arith.maximumf %111, %112 : vector<32x1024xf32>
    %c992_i32 = arith.constant 992 : i32
    %114 = tpu.dynamic_rotate %113 by %c992_i32 dim 1 : vector<32x1024xf32>, i32 -> vector<32x1024xf32>
    %115 = arith.maximumf %113, %114 : vector<32x1024xf32>
    %116 = vector.extract_strided_slice %115 {offsets = [0, 0], sizes = [32, 512], strides = [1, 1]} : vector<32x1024xf32> to vector<32x512xf32>
    %117 = arith.truncf %116 : vector<32x512xf32> to vector<32x512xbf16>
    %c0_86 = arith.constant 0 : index
    %c0_87 = arith.constant 0 : index
    %c0_88 = arith.constant 0 : index
    %118 = vector.load %arg4[%c0_86, %c0_87, %c0_88] : memref<2x32x512xbf16, #tpu.memory_space<vmem>>, vector<1x32x512xbf16>
    %119 = vector.shape_cast %118 : vector<1x32x512xbf16> to vector<32x512xbf16>
    %120 = vector.shape_cast %117 : vector<32x512xbf16> to vector<1x32x512xbf16>
    tpu.vector_store %arg4[%c0_86, %c0_87, %c0_88], %120 {strides = array<i32>} : memref<2x32x512xbf16, #tpu.memory_space<vmem>>, vector<1x32x512xbf16>,
    %121 = vector.extract_strided_slice %115 {offsets = [0, 512], sizes = [32, 512], strides = [1, 1]} : vector<32x1024xf32> to vector<32x512xf32>
    %122 = arith.truncf %121 : vector<32x512xf32> to vector<32x512xbf16>
    %c1_89 = arith.constant 1 : index
    %c0_90 = arith.constant 0 : index
    %c0_91 = arith.constant 0 : index
    %123 = vector.load %arg4[%c1_89, %c0_90, %c0_91] : memref<2x32x512xbf16, #tpu.memory_space<vmem>>, vector<1x32x512xbf16>
    %124 = vector.shape_cast %123 : vector<1x32x512xbf16> to vector<32x512xbf16>
    %125 = vector.shape_cast %122 : vector<32x512xbf16> to vector<1x32x512xbf16>
    tpu.vector_store %arg4[%c1_89, %c0_90, %c0_91], %125 {strides = array<i32>} : memref<2x32x512xbf16, #tpu.memory_space<vmem>>, vector<1x32x512xbf16>,
    return
  }
  func.func @transform_0(%arg0: i32) -> (i32, i32, i32) {
    %c0_i32 = arith.constant 0 : i32
    %c0_i32_0 = arith.constant 0 : i32
    %c0_i32_1 = arith.constant 0 : i32
    return %arg0, %c0_i32, %c0_i32_0 : i32, i32, i32
  }
  func.func @transform_1(%arg0: i32) -> (i32, i32) {
    %c0_i32 = arith.constant 0 : i32
    %c0_i32_0 = arith.constant 0 : i32
    %c0_i32_1 = arith.constant 0 : i32
    return %c0_i32, %c0_i32_0 : i32, i32
  }
  func.func @transform_2(%arg0: i32) -> (i32, i32) {
    %c0_i32 = arith.constant 0 : i32
    %c0_i32_0 = arith.constant 0 : i32
    %c0_i32_1 = arith.constant 0 : i32
    return %c0_i32, %c0_i32_0 : i32, i32
  }
  func.func @transform_3(%arg0: i32) -> (i32, i32, i32) {
    %c0_i32 = arith.constant 0 : i32
    %c0_i32_0 = arith.constant 0 : i32
    %c0_i32_1 = arith.constant 0 : i32
    return %arg0, %c0_i32, %c0_i32_0 : i32, i32, i32
  }
}

module attributes {stable_mosaic.version = 11 : i64} {
  func.func @_mlp_kernel(%arg0: i32, %arg1: memref<16x1568xbf16, #tpu.memory_space<vmem>>, %arg2: memref<1568x128xbf16, #tpu.memory_space<vmem>>, %arg3: memref<1x128xf32, #tpu.memory_space<vmem>>, %arg4: memref<128x10xbf16, #tpu.memory_space<vmem>>, %arg5: memref<1x10xf32, #tpu.memory_space<vmem>>, %arg6: memref<16x10xf32, #tpu.memory_space<vmem>>) attributes {dimension_semantics = [#tpu.dimension_semantics<parallel>], iteration_bounds = array<i64: 1>, scalar_prefetch = 0 : i64, scratch_operands = 0 : i64, tpu.core_type = #tpu.core_type<tc>, window_params = [{transform_indices = @transform_0, window_bounds = array<i64: 16, 1568>}, {pipeline_mode = #tpu.pipeline_mode<synchronous>, transform_indices = @transform_1, window_bounds = array<i64: 1568, 128>}, {pipeline_mode = #tpu.pipeline_mode<synchronous>, transform_indices = @transform_2, window_bounds = array<i64: 1, 128>}, {pipeline_mode = #tpu.pipeline_mode<synchronous>, transform_indices = @transform_3, window_bounds = array<i64: 128, 10>}, {pipeline_mode = #tpu.pipeline_mode<synchronous>, transform_indices = @transform_4, window_bounds = array<i64: 1, 10>}, {transform_indices = @transform_5, window_bounds = array<i64: 16, 10>}]} {
    %c0 = arith.constant 0 : index
    %c0_0 = arith.constant 0 : index
    %0 = vector.load %arg1[%c0, %c0_0] : memref<16x1568xbf16, #tpu.memory_space<vmem>>, vector<16x1568xbf16>
    %c0_1 = arith.constant 0 : index
    %c0_2 = arith.constant 0 : index
    %1 = vector.load %arg2[%c0_1, %c0_2] : memref<1568x128xbf16, #tpu.memory_space<vmem>>, vector<1568x128xbf16>
    %cst = arith.constant dense<0.000000e+00> : vector<16x128xf32>
    %2 = tpu.matmul %0, %1, %cst {dimension_numbers = #tpu.dot_dimension_numbers<[1], [0], [0], [1], [0, 0, 1, 1], [], []>} : vector<16x1568xbf16>, vector<1568x128xbf16>, vector<16x128xf32> -> vector<16x128xf32>
    %c0_3 = arith.constant 0 : index
    %c0_4 = arith.constant 0 : index
    %3 = vector.load %arg3[%c0_3, %c0_4] : memref<1x128xf32, #tpu.memory_space<vmem>>, vector<1x128xf32>
    %4 = vector.broadcast %3 : vector<1x128xf32> to vector<16x128xf32>
    %5 = arith.addf %2, %4 : vector<16x128xf32>
    %cst_5 = arith.constant 0.000000e+00 : f32
    %6 = vector.broadcast %cst_5 : f32 to vector<16x128xf32>
    %7 = arith.maximumf %5, %6 : vector<16x128xf32>
    %8 = arith.truncf %7 : vector<16x128xf32> to vector<16x128xbf16>
    %c0_6 = arith.constant 0 : index
    %c0_7 = arith.constant 0 : index
    %9 = vector.load %arg4[%c0_6, %c0_7] : memref<128x10xbf16, #tpu.memory_space<vmem>>, vector<128x10xbf16>
    %cst_8 = arith.constant dense<0.000000e+00> : vector<16x10xf32>
    %10 = tpu.matmul %8, %9, %cst_8 {dimension_numbers = #tpu.dot_dimension_numbers<[1], [0], [0], [1], [0, 0, 1, 1], [], []>} : vector<16x128xbf16>, vector<128x10xbf16>, vector<16x10xf32> -> vector<16x10xf32>
    %c0_9 = arith.constant 0 : index
    %c0_10 = arith.constant 0 : index
    %11 = vector.load %arg5[%c0_9, %c0_10] : memref<1x10xf32, #tpu.memory_space<vmem>>, vector<1x10xf32>
    %12 = vector.broadcast %11 : vector<1x10xf32> to vector<16x10xf32>
    %13 = arith.addf %10, %12 : vector<16x10xf32>
    %c0_11 = arith.constant 0 : index
    %c0_12 = arith.constant 0 : index
    %14 = vector.load %arg6[%c0_11, %c0_12] : memref<16x10xf32, #tpu.memory_space<vmem>>, vector<16x10xf32>
    tpu.vector_store %arg6[%c0_11, %c0_12], %13 {strides = array<i32>} : memref<16x10xf32, #tpu.memory_space<vmem>>, vector<16x10xf32>,
    return
  }
  func.func @transform_0(%arg0: i32) -> (i32, i32) {
    %c0_i32 = arith.constant 0 : i32
    %c0_i32_0 = arith.constant 0 : i32
    return %arg0, %c0_i32 : i32, i32
  }
  func.func @transform_1(%arg0: i32) -> (i32, i32) {
    %c0_i32 = arith.constant 0 : i32
    %c0_i32_0 = arith.constant 0 : i32
    %c0_i32_1 = arith.constant 0 : i32
    return %c0_i32, %c0_i32_0 : i32, i32
  }
  func.func @transform_2(%arg0: i32) -> (i32, i32) {
    %c0_i32 = arith.constant 0 : i32
    %c0_i32_0 = arith.constant 0 : i32
    %c0_i32_1 = arith.constant 0 : i32
    return %c0_i32, %c0_i32_0 : i32, i32
  }
  func.func @transform_3(%arg0: i32) -> (i32, i32) {
    %c0_i32 = arith.constant 0 : i32
    %c0_i32_0 = arith.constant 0 : i32
    %c0_i32_1 = arith.constant 0 : i32
    return %c0_i32, %c0_i32_0 : i32, i32
  }
  func.func @transform_4(%arg0: i32) -> (i32, i32) {
    %c0_i32 = arith.constant 0 : i32
    %c0_i32_0 = arith.constant 0 : i32
    %c0_i32_1 = arith.constant 0 : i32
    return %c0_i32, %c0_i32_0 : i32, i32
  }
  func.func @transform_5(%arg0: i32) -> (i32, i32) {
    %c0_i32 = arith.constant 0 : i32
    %c0_i32_0 = arith.constant 0 : i32
    return %arg0, %c0_i32 : i32, i32
  }
}

</mosaic_0001>

<llo_original>
// kernel: cnn_forward.3
$region0: #{cnn_forward.3}
  #allocation0 [shape = 'u32[]', space=smem, size = 0x4, offset = 0x4, fixed_abs, tag = 'smem constant byte address 0x4 - core index']
  #allocation1 [shape = 'u32[72,128]{1,0:T(1,128)}', space=vmem, size = 0x9000, scoped, tag = 'internal scratch']
  %s0 = inlined_call_operand.vmem [shape: bf16[2,1,1152], index: 0, kind: input, shape index: {}]
  %s1 = inlined_call_operand.vmem [shape: bf16[16,25], index: 1, kind: input, shape index: {}]
  %s2 = inlined_call_operand.vmem [shape: f32[16,1], index: 2, kind: input, shape index: {}]
  %s3 = inlined_call_operand.vmem [shape: bf16[2,16,896], index: 3, kind: output, shape index: {}]
  %s4 = sld [smem:[#allocation0]]
  $region22: #{cnn_forward.3} parent=0
    _
  %s6 = ssub.s32 1, %s4
  %s7 = scalar_select 0, %s6, %s4
  // Predicated region
  $region2: #{cnn_forward.3} parent=0 // pred_check
    _
  $region3: #{cnn_forward.3} parent=0 // pred_check_branch
    %9 = sbr.rel (0) target = $region5
  $region4: #{cnn_forward.3} parent=0 // pred_region
    _
  $region5: #{cnn_forward.3} parent=0 // pred_fallthru
    _
  // Predicated region
  $region6: #{cnn_forward.3} parent=0 // pred_check
    _
  $region7: #{cnn_forward.3} parent=0 // pred_check_branch
    %11 = sbr.rel (0) target = $region9
  $region8: #{cnn_forward.3} parent=0 // pred_region
    _
  $region9: #{cnn_forward.3} parent=0 // pred_fallthru
    _
  // Predicated region
  $region10: #{cnn_forward.3} parent=0 // pred_check
    _
  $region11: #{cnn_forward.3} parent=0 // pred_check_branch
    %13 = sbr.rel (0) target = $region13
  $region12: #{cnn_forward.3} parent=0 // pred_region
    _
  $region13: #{cnn_forward.3} parent=0 // pred_fallthru
    _
  %v15 = vld [vmem:[%s1] sm:$0xf]
  %v16 = vld [vmem:[%s1 + $0x4] sm:$0xf]
  %v17 = vld [vmem:[%s2] sm:$0xff]
  %v18 = vld [vmem:[%s2 + $0x8] sm:$0xff]
  %v19 = vld [vmem:[%s0] sm:$0xff]
  %v20 = vld [vmem:[%s0 + $0x8] sm:$0x1]
  %v21 = vunpack.c.l.bf16 %v19
  %v22 = vunpack.c.h.bf16 %v19
  %v23 = vunpack.c.l.bf16 %v20
  %v26 = vperm.slane %v21, 0
  %v27 = vperm.slane %v21, 2
  %v28 = vperm.slane %v21, 4
  %v29 = vperm.slane %v21, 6
  %v30 = vperm.slane %v22, 0
  %v31 = vperm.slane %v22, 2
  %v32 = vperm.slane %v22, 4
  %v40 = vperm.slane %v22, 6
  %41 = vrot.lane.b32.xlu0 %v26, 127
  %v42 = vpop.permute.xlu0 %41
  %43 = vrot.lane.b32.xlu0 %v27, 127
  %v44 = vpop.permute.xlu0 %43
  %45 = vrot.lane.b32.xlu0 %v28, 127
  %v46 = vpop.permute.xlu0 %45
  %47 = vrot.lane.b32.xlu0 %v29, 127
  %v48 = vpop.permute.xlu0 %47
  %49 = vrot.lane.b32.xlu0 %v30, 127
  %v50 = vpop.permute.xlu0 %49
  %51 = vrot.lane.b32.xlu0 %v31, 127
  %v52 = vpop.permute.xlu0 %51
  %53 = vrot.lane.b32.xlu0 %v32, 127
  %v54 = vpop.permute.xlu0 %53
  %55 = vrot.lane.b32.xlu0 %v40, 127
  %v56 = vpop.permute.xlu0 %55
  %vm57 = vcmask 1039360
  %v58 = vsel %vm57, %v42, %v44
  %v59 = vsel %vm57, %v44, %v46
  %v60 = vsel %vm57, %v46, %v48
  %v61 = vsel %vm57, %v48, %v50
  %v62 = vsel %vm57, %v50, %v52
  %v63 = vsel %vm57, %v52, %v54
  %v64 = vsel %vm57, %v54, %v56
  %72 = vrot.lane.b32.xlu0 %v26, 126
  %v73 = vpop.permute.xlu0 %72
  %74 = vrot.lane.b32.xlu0 %v27, 126
  %v75 = vpop.permute.xlu0 %74
  %76 = vrot.lane.b32.xlu0 %v28, 126
  %v77 = vpop.permute.xlu0 %76
  %78 = vrot.lane.b32.xlu0 %v29, 126
  %v79 = vpop.permute.xlu0 %78
  %80 = vrot.lane.b32.xlu0 %v30, 126
  %v81 = vpop.permute.xlu0 %80
  %82 = vrot.lane.b32.xlu0 %v31, 126
  %v83 = vpop.permute.xlu0 %82
  %84 = vrot.lane.b32.xlu0 %v32, 126
  %v85 = vpop.permute.xlu0 %84
  %86 = vrot.lane.b32.xlu0 %v40, 126
  %v87 = vpop.permute.xlu0 %86
  %vm88 = vcmask 1031168
  %v89 = vsel %vm88, %v73, %v75
  %v90 = vsel %vm88, %v75, %v77
  %v91 = vsel %vm88, %v77, %v79
  %v92 = vsel %vm88, %v79, %v81
  %v93 = vsel %vm88, %v81, %v83
  %v94 = vsel %vm88, %v83, %v85
  %v95 = vsel %vm88, %v85, %v87
  %103 = vrot.lane.b32.xlu0 %v26, 125
  %v104 = vpop.permute.xlu0 %103
  %105 = vrot.lane.b32.xlu0 %v27, 125
  %v106 = vpop.permute.xlu0 %105
  %107 = vrot.lane.b32.xlu0 %v28, 125
  %v108 = vpop.permute.xlu0 %107
  %109 = vrot.lane.b32.xlu0 %v29, 125
  %v110 = vpop.permute.xlu0 %109
  %111 = vrot.lane.b32.xlu0 %v30, 125
  %v112 = vpop.permute.xlu0 %111
  %113 = vrot.lane.b32.xlu0 %v31, 125
  %v114 = vpop.permute.xlu0 %113
  %115 = vrot.lane.b32.xlu0 %v32, 125
  %v116 = vpop.permute.xlu0 %115
  %117 = vrot.lane.b32.xlu0 %v40, 125
  %v118 = vpop.permute.xlu0 %117
  %vm119 = vcmask 1022976
  %v120 = vsel %vm119, %v104, %v106
  %v121 = vsel %vm119, %v106, %v108
  %v122 = vsel %vm119, %v108, %v110
  %v123 = vsel %vm119, %v110, %v112
  %v124 = vsel %vm119, %v112, %v114
  %v125 = vsel %vm119, %v114, %v116
  %v126 = vsel %vm119, %v116, %v118
  %134 = vrot.lane.b32.xlu0 %v26, 124
  %v135 = vpop.permute.xlu0 %134
  %136 = vrot.lane.b32.xlu0 %v27, 124
  %v137 = vpop.permute.xlu0 %136
  %138 = vrot.lane.b32.xlu0 %v28, 124
  %v139 = vpop.permute.xlu0 %138
  %140 = vrot.lane.b32.xlu0 %v29, 124
  %v141 = vpop.permute.xlu0 %140
  %142 = vrot.lane.b32.xlu0 %v30, 124
  %v143 = vpop.permute.xlu0 %142
  %144 = vrot.lane.b32.xlu0 %v31, 124
  %v145 = vpop.permute.xlu0 %144
  %146 = vrot.lane.b32.xlu0 %v32, 124
  %v147 = vpop.permute.xlu0 %146
  %148 = vrot.lane.b32.xlu0 %v40, 124
  %v149 = vpop.permute.xlu0 %148
  %vm150 = vcmask 1014784
  %v151 = vsel %vm150, %v135, %v137
  %v152 = vsel %vm150, %v137, %v139
  %v153 = vsel %vm150, %v139, %v141
  %v154 = vsel %vm150, %v141, %v143
  %v155 = vsel %vm150, %v143, %v145
  %v156 = vsel %vm150, %v145, %v147
  %v157 = vsel %vm150, %v147, %v149
  %165 = vrot.lane.b32.xlu0 %v26, 96
  %v166 = vpop.permute.xlu0 %165
  %167 = vrot.lane.b32.xlu0 %v27, 96
  %v168 = vpop.permute.xlu0 %167
  %169 = vrot.lane.b32.xlu0 %v28, 96
  %v170 = vpop.permute.xlu0 %169
  %171 = vrot.lane.b32.xlu0 %v29, 96
  %v172 = vpop.permute.xlu0 %171
  %173 = vrot.lane.b32.xlu0 %v30, 96
  %v174 = vpop.permute.xlu0 %173
  %175 = vrot.lane.b32.xlu0 %v31, 96
  %v176 = vpop.permute.xlu0 %175
  %177 = vrot.lane.b32.xlu0 %v32, 96
  %v178 = vpop.permute.xlu0 %177
  %179 = vrot.lane.b32.xlu0 %v40, 96
  %v180 = vpop.permute.xlu0 %179
  %vm181 = vcmask 785408
  %v182 = vsel %vm181, %v166, %v168
  %v183 = vsel %vm181, %v168, %v170
  %v184 = vsel %vm181, %v170, %v172
  %v185 = vsel %vm181, %v172, %v174
  %v186 = vsel %vm181, %v174, %v176
  %v187 = vsel %vm181, %v176, %v178
  %v188 = vsel %vm181, %v178, %v180
  %196 = vrot.lane.b32.xlu0 %v26, 95
  %v197 = vpop.permute.xlu0 %196
  %198 = vrot.lane.b32.xlu0 %v27, 95
  %v199 = vpop.permute.xlu0 %198
  %200 = vrot.lane.b32.xlu0 %v28, 95
  %v201 = vpop.permute.xlu0 %200
  %202 = vrot.lane.b32.xlu0 %v29, 95
  %v203 = vpop.permute.xlu0 %202
  %204 = vrot.lane.b32.xlu0 %v30, 95
  %v205 = vpop.permute.xlu0 %204
  %206 = vrot.lane.b32.xlu0 %v31, 95
  %v207 = vpop.permute.xlu0 %206
  %208 = vrot.lane.b32.xlu0 %v32, 95
  %v209 = vpop.permute.xlu0 %208
  %210 = vrot.lane.b32.xlu0 %v40, 95
  %v211 = vpop.permute.xlu0 %210
  %vm212 = vcmask 777216
  %v213 = vsel %vm212, %v197, %v199
  %v214 = vsel %vm212, %v199, %v201
  %v215 = vsel %vm212, %v201, %v203
  %v216 = vsel %vm212, %v203, %v205
  %v217 = vsel %vm212, %v205, %v207
  %v218 = vsel %vm212, %v207, %v209
  %v219 = vsel %vm212, %v209, %v211
  %227 = vrot.lane.b32.xlu0 %v26, 94
  %v228 = vpop.permute.xlu0 %227
  %229 = vrot.lane.b32.xlu0 %v27, 94
  %v230 = vpop.permute.xlu0 %229
  %231 = vrot.lane.b32.xlu0 %v28, 94
  %v232 = vpop.permute.xlu0 %231
  %233 = vrot.lane.b32.xlu0 %v29, 94
  %v234 = vpop.permute.xlu0 %233
  %235 = vrot.lane.b32.xlu0 %v30, 94
  %v236 = vpop.permute.xlu0 %235
  %237 = vrot.lane.b32.xlu0 %v31, 94
  %v238 = vpop.permute.xlu0 %237
  %239 = vrot.lane.b32.xlu0 %v32, 94
  %v240 = vpop.permute.xlu0 %239
  %241 = vrot.lane.b32.xlu0 %v40, 94
  %v242 = vpop.permute.xlu0 %241
  %vm243 = vcmask 769024
  %v244 = vsel %vm243, %v228, %v230
  %v245 = vsel %vm243, %v230, %v232
  %v246 = vsel %vm243, %v232, %v234
  %v247 = vsel %vm243, %v234, %v236
  %v248 = vsel %vm243, %v236, %v238
  %v249 = vsel %vm243, %v238, %v240
  %v250 = vsel %vm243, %v240, %v242
  %258 = vrot.lane.b32.xlu0 %v26, 93
  %v259 = vpop.permute.xlu0 %258
  %260 = vrot.lane.b32.xlu0 %v27, 93
  %v261 = vpop.permute.xlu0 %260
  %262 = vrot.lane.b32.xlu0 %v28, 93
  %v263 = vpop.permute.xlu0 %262
  %264 = vrot.lane.b32.xlu0 %v29, 93
  %v265 = vpop.permute.xlu0 %264
  %266 = vrot.lane.b32.xlu0 %v30, 93
  %v267 = vpop.permute.xlu0 %266
  %268 = vrot.lane.b32.xlu0 %v31, 93
  %v269 = vpop.permute.xlu0 %268
  %270 = vrot.lane.b32.xlu0 %v32, 93
  %v271 = vpop.permute.xlu0 %270
  %272 = vrot.lane.b32.xlu0 %v40, 93
  %v273 = vpop.permute.xlu0 %272
  %vm274 = vcmask 760832
  %v275 = vsel %vm274, %v259, %v261
  %v276 = vsel %vm274, %v261, %v263
  %v277 = vsel %vm274, %v263, %v265
  %v278 = vsel %vm274, %v265, %v267
  %v279 = vsel %vm274, %v267, %v269
  %v280 = vsel %vm274, %v269, %v271
  %v281 = vsel %vm274, %v271, %v273
  %289 = vrot.lane.b32.xlu0 %v26, 92
  %v290 = vpop.permute.xlu0 %289
  %291 = vrot.lane.b32.xlu0 %v27, 92
  %v292 = vpop.permute.xlu0 %291
  %293 = vrot.lane.b32.xlu0 %v28, 92
  %v294 = vpop.permute.xlu0 %293
  %295 = vrot.lane.b32.xlu0 %v29, 92
  %v296 = vpop.permute.xlu0 %295
  %297 = vrot.lane.b32.xlu0 %v30, 92
  %v298 = vpop.permute.xlu0 %297
  %299 = vrot.lane.b32.xlu0 %v31, 92
  %v300 = vpop.permute.xlu0 %299
  %301 = vrot.lane.b32.xlu0 %v32, 92
  %v302 = vpop.permute.xlu0 %301
  %303 = vrot.lane.b32.xlu0 %v40, 92
  %v304 = vpop.permute.xlu0 %303
  %vm305 = vcmask 752640
  %v306 = vsel %vm305, %v290, %v292
  %v307 = vsel %vm305, %v292, %v294
  %v308 = vsel %vm305, %v294, %v296
  %v309 = vsel %vm305, %v296, %v298
  %v310 = vsel %vm305, %v298, %v300
  %v311 = vsel %vm305, %v300, %v302
  %v312 = vsel %vm305, %v302, %v304
  %320 = vrot.lane.b32.xlu0 %v26, 64
  %v321 = vpop.permute.xlu0 %320
  %322 = vrot.lane.b32.xlu0 %v27, 64
  %v323 = vpop.permute.xlu0 %322
  %324 = vrot.lane.b32.xlu0 %v28, 64
  %v325 = vpop.permute.xlu0 %324
  %326 = vrot.lane.b32.xlu0 %v29, 64
  %v327 = vpop.permute.xlu0 %326
  %328 = vrot.lane.b32.xlu0 %v30, 64
  %v329 = vpop.permute.xlu0 %328
  %330 = vrot.lane.b32.xlu0 %v31, 64
  %v331 = vpop.permute.xlu0 %330
  %332 = vrot.lane.b32.xlu0 %v32, 64
  %v333 = vpop.permute.xlu0 %332
  %334 = vrot.lane.b32.xlu0 %v40, 64
  %v335 = vpop.permute.xlu0 %334
  %vm336 = vcmask 523264
  %v337 = vsel %vm336, %v321, %v323
  %v338 = vsel %vm336, %v323, %v325
  %v339 = vsel %vm336, %v325, %v327
  %v340 = vsel %vm336, %v327, %v329
  %v341 = vsel %vm336, %v329, %v331
  %v342 = vsel %vm336, %v331, %v333
  %v343 = vsel %vm336, %v333, %v335
  %351 = vrot.lane.b32.xlu0 %v26, 63
  %v352 = vpop.permute.xlu0 %351
  %353 = vrot.lane.b32.xlu0 %v27, 63
  %v354 = vpop.permute.xlu0 %353
  %355 = vrot.lane.b32.xlu0 %v28, 63
  %v356 = vpop.permute.xlu0 %355
  %357 = vrot.lane.b32.xlu0 %v29, 63
  %v358 = vpop.permute.xlu0 %357
  %359 = vrot.lane.b32.xlu0 %v30, 63
  %v360 = vpop.permute.xlu0 %359
  %361 = vrot.lane.b32.xlu0 %v31, 63
  %v362 = vpop.permute.xlu0 %361
  %363 = vrot.lane.b32.xlu0 %v32, 63
  %v364 = vpop.permute.xlu0 %363
  %365 = vrot.lane.b32.xlu0 %v40, 63
  %v366 = vpop.permute.xlu0 %365
  %vm367 = vcmask 515072
  %v368 = vsel %vm367, %v352, %v354
  %v369 = vsel %vm367, %v354, %v356
  %v370 = vsel %vm367, %v356, %v358
  %v371 = vsel %vm367, %v358, %v360
  %v372 = vsel %vm367, %v360, %v362
  %v373 = vsel %vm367, %v362, %v364
  %v374 = vsel %vm367, %v364, %v366
  %382 = vrot.lane.b32.xlu0 %v26, 62
  %v383 = vpop.permute.xlu0 %382
  %384 = vrot.lane.b32.xlu0 %v27, 62
  %v385 = vpop.permute.xlu0 %384
  %386 = vrot.lane.b32.xlu0 %v28, 62
  %v387 = vpop.permute.xlu0 %386
  %388 = vrot.lane.b32.xlu0 %v29, 62
  %v389 = vpop.permute.xlu0 %388
  %390 = vrot.lane.b32.xlu0 %v30, 62
  %v391 = vpop.permute.xlu0 %390
  %392 = vrot.lane.b32.xlu0 %v31, 62
  %v393 = vpop.permute.xlu0 %392
  %394 = vrot.lane.b32.xlu0 %v32, 62
  %v395 = vpop.permute.xlu0 %394
  %396 = vrot.lane.b32.xlu0 %v40, 62
  %v397 = vpop.permute.xlu0 %396
  %vm398 = vcmask 506880
  %v399 = vsel %vm398, %v383, %v385
  %v400 = vsel %vm398, %v385, %v387
  %v401 = vsel %vm398, %v387, %v389
  %v402 = vsel %vm398, %v389, %v391
  %v403 = vsel %vm398, %v391, %v393
  %v404 = vsel %vm398, %v393, %v395
  %v405 = vsel %vm398, %v395, %v397
  %413 = vrot.lane.b32.xlu0 %v26, 61
  %v414 = vpop.permute.xlu0 %413
  %415 = vrot.lane.b32.xlu0 %v27, 61
  %v416 = vpop.permute.xlu0 %415
  %417 = vrot.lane.b32.xlu0 %v28, 61
  %v418 = vpop.permute.xlu0 %417
  %419 = vrot.lane.b32.xlu0 %v29, 61
  %v420 = vpop.permute.xlu0 %419
  %421 = vrot.lane.b32.xlu0 %v30, 61
  %v422 = vpop.permute.xlu0 %421
  %423 = vrot.lane.b32.xlu0 %v31, 61
  %v424 = vpop.permute.xlu0 %423
  %425 = vrot.lane.b32.xlu0 %v32, 61
  %v426 = vpop.permute.xlu0 %425
  %427 = vrot.lane.b32.xlu0 %v40, 61
  %v428 = vpop.permute.xlu0 %427
  %vm429 = vcmask 498688
  %v430 = vsel %vm429, %v414, %v416
  %v431 = vsel %vm429, %v416, %v418
  %v432 = vsel %vm429, %v418, %v420
  %v433 = vsel %vm429, %v420, %v422
  %v434 = vsel %vm429, %v422, %v424
  %v435 = vsel %vm429, %v424, %v426
  %v436 = vsel %vm429, %v426, %v428
  %444 = vrot.lane.b32.xlu0 %v26, 60
  %v445 = vpop.permute.xlu0 %444
  %446 = vrot.lane.b32.xlu0 %v27, 60
  %v447 = vpop.permute.xlu0 %446
  %448 = vrot.lane.b32.xlu0 %v28, 60
  %v449 = vpop.permute.xlu0 %448
  %450 = vrot.lane.b32.xlu0 %v29, 60
  %v451 = vpop.permute.xlu0 %450
  %452 = vrot.lane.b32.xlu0 %v30, 60
  %v453 = vpop.permute.xlu0 %452
  %454 = vrot.lane.b32.xlu0 %v31, 60
  %v455 = vpop.permute.xlu0 %454
  %456 = vrot.lane.b32.xlu0 %v32, 60
  %v457 = vpop.permute.xlu0 %456
  %458 = vrot.lane.b32.xlu0 %v40, 60
  %v459 = vpop.permute.xlu0 %458
  %vm460 = vcmask 490496
  %v461 = vsel %vm460, %v445, %v447
  %v462 = vsel %vm460, %v447, %v449
  %v463 = vsel %vm460, %v449, %v451
  %v464 = vsel %vm460, %v451, %v453
  %v465 = vsel %vm460, %v453, %v455
  %v466 = vsel %vm460, %v455, %v457
  %v467 = vsel %vm460, %v457, %v459
  %475 = vrot.lane.b32.xlu0 %v26, 32
  %v476 = vpop.permute.xlu0 %475
  %477 = vrot.lane.b32.xlu0 %v27, 32
  %v478 = vpop.permute.xlu0 %477
  %479 = vrot.lane.b32.xlu0 %v28, 32
  %v480 = vpop.permute.xlu0 %479
  %481 = vrot.lane.b32.xlu0 %v29, 32
  %v482 = vpop.permute.xlu0 %481
  %483 = vrot.lane.b32.xlu0 %v30, 32
  %v484 = vpop.permute.xlu0 %483
  %485 = vrot.lane.b32.xlu0 %v31, 32
  %v486 = vpop.permute.xlu0 %485
  %487 = vrot.lane.b32.xlu0 %v32, 32
  %v488 = vpop.permute.xlu0 %487
  %489 = vrot.lane.b32.xlu0 %v40, 32
  %v490 = vpop.permute.xlu0 %489
  %vm491 = vcmask 261120
  %v492 = vsel %vm491, %v476, %v478
  %v493 = vsel %vm491, %v478, %v480
  %v494 = vsel %vm491, %v480, %v482
  %v495 = vsel %vm491, %v482, %v484
  %v496 = vsel %vm491, %v484, %v486
  %v497 = vsel %vm491, %v486, %v488
  %v498 = vsel %vm491, %v488, %v490
  %vm506 = vcmask 1040384
  %v507 = vsel %vm506, %v26, %v58
  %v508 = vsel %vm506, %v27, %v59
  %v509 = vsel %vm506, %v28, %v60
  %v510 = vsel %vm506, %v29, %v61
  %v511 = vsel %vm506, %v30, %v62
  %v512 = vsel %vm506, %v31, %v63
  %v513 = vsel %vm506, %v32, %v64
  %vm514 = vcmask 1041408
  %v515 = vsel %vm514, %v507, %v89
  %v516 = vsel %vm514, %v508, %v90
  %v517 = vsel %vm514, %v509, %v91
  %v518 = vsel %vm514, %v510, %v92
  %v519 = vsel %vm514, %v511, %v93
  %v520 = vsel %vm514, %v512, %v94
  %v521 = vsel %vm514, %v513, %v95
  %vm522 = vcmask 1042432
  %v523 = vsel %vm522, %v515, %v120
  %v524 = vsel %vm522, %v516, %v121
  %v525 = vsel %vm522, %v517, %v122
  %v526 = vsel %vm522, %v518, %v123
  %v527 = vsel %vm522, %v519, %v124
  %v528 = vsel %vm522, %v520, %v125
  %v529 = vsel %vm522, %v521, %v126
  %vm530 = vcmask 1043456
  %v531 = vsel %vm530, %v523, %v151
  %v532 = vsel %vm530, %v524, %v152
  %v533 = vsel %vm530, %v525, %v153
  %v534 = vsel %vm530, %v526, %v154
  %v535 = vsel %vm530, %v527, %v155
  %v536 = vsel %vm530, %v528, %v156
  %v537 = vsel %vm530, %v529, %v157
  %vm538 = vcmask 1044480
  %v539 = vsel %vm538, %v531, %v182
  %v540 = vsel %vm538, %v532, %v183
  %v541 = vsel %vm538, %v533, %v184
  %v542 = vsel %vm538, %v534, %v185
  %v543 = vsel %vm538, %v535, %v186
  %v544 = vsel %vm538, %v536, %v187
  %v545 = vsel %vm538, %v537, %v188
  %vm546 = vcmask 1045504
  %v547 = vsel %vm546, %v539, %v213
  %v548 = vsel %vm546, %v540, %v214
  %v549 = vsel %vm546, %v541, %v215
  %v550 = vsel %vm546, %v542, %v216
  %v551 = vsel %vm546, %v543, %v217
  %v552 = vsel %vm546, %v544, %v218
  %v553 = vsel %vm546, %v545, %v219
  %vm554 = vcmask 1046528
  %v555 = vsel %vm554, %v547, %v244
  %v556 = vsel %vm554, %v548, %v245
  %v557 = vsel %vm554, %v549, %v246
  %v558 = vsel %vm554, %v550, %v247
  %v559 = vsel %vm554, %v551, %v248
  %v560 = vsel %vm554, %v552, %v249
  %v561 = vsel %vm554, %v553, %v250
  %v562 = vsel %vm506, %v275, %v306
  %v563 = vsel %vm506, %v276, %v307
  %v564 = vsel %vm506, %v277, %v308
  %v565 = vsel %vm506, %v278, %v309
  %v566 = vsel %vm506, %v279, %v310
  %v567 = vsel %vm506, %v280, %v311
  %v568 = vsel %vm506, %v281, %v312
  %v569 = vsel %vm514, %v562, %v337
  %v570 = vsel %vm514, %v563, %v338
  %v571 = vsel %vm514, %v564, %v339
  %v572 = vsel %vm514, %v565, %v340
  %v573 = vsel %vm514, %v566, %v341
  %v574 = vsel %vm514, %v567, %v342
  %v575 = vsel %vm514, %v568, %v343
  %v576 = vsel %vm522, %v569, %v368
  %v577 = vsel %vm522, %v570, %v369
  %v578 = vsel %vm522, %v571, %v370
  %v579 = vsel %vm522, %v572, %v371
  %v580 = vsel %vm522, %v573, %v372
  %v581 = vsel %vm522, %v574, %v373
  %v582 = vsel %vm522, %v575, %v374
  %v583 = vsel %vm530, %v576, %v399
  %v584 = vsel %vm530, %v577, %v400
  %v585 = vsel %vm530, %v578, %v401
  %v586 = vsel %vm530, %v579, %v402
  %v587 = vsel %vm530, %v580, %v403
  %v588 = vsel %vm530, %v581, %v404
  %v589 = vsel %vm530, %v582, %v405
  %v590 = vsel %vm538, %v583, %v430
  %v591 = vsel %vm538, %v584, %v431
  %v592 = vsel %vm538, %v585, %v432
  %v593 = vsel %vm538, %v586, %v433
  %v594 = vsel %vm538, %v587, %v434
  %v595 = vsel %vm538, %v588, %v435
  %v596 = vsel %vm538, %v589, %v436
  %v597 = vsel %vm546, %v590, %v461
  %v598 = vsel %vm546, %v591, %v462
  %v599 = vsel %vm546, %v592, %v463
  %v600 = vsel %vm546, %v593, %v464
  %v601 = vsel %vm546, %v594, %v465
  %v602 = vsel %vm546, %v595, %v466
  %v603 = vsel %vm546, %v596, %v467
  %v604 = vsel %vm554, %v597, %v492
  %v605 = vsel %vm554, %v598, %v493
  %v606 = vsel %vm554, %v599, %v494
  %v607 = vsel %vm554, %v600, %v495
  %v608 = vsel %vm554, %v601, %v496
  %v609 = vsel %vm554, %v602, %v497
  %v610 = vsel %vm554, %v603, %v498
  %615 = vrot.lane.b32.xlu0 %v27, 97
  %v616 = vpop.permute.xlu0 %615
  %617 = vrot.lane.b32.xlu0 %v28, 97
  %v618 = vpop.permute.xlu0 %617
  %619 = vrot.lane.b32.xlu0 %v29, 97
  %v620 = vpop.permute.xlu0 %619
  %621 = vrot.lane.b32.xlu0 %v30, 97
  %v622 = vpop.permute.xlu0 %621
  %623 = vrot.lane.b32.xlu0 %v31, 97
  %v624 = vpop.permute.xlu0 %623
  %625 = vrot.lane.b32.xlu0 %v32, 97
  %v626 = vpop.permute.xlu0 %625
  %627 = vrot.lane.b32.xlu0 %v40, 97
  %v628 = vpop.permute.xlu0 %627
  %vm629 = vcmask 793600
  %v630 = vsel %vm629, %v616, %v618
  %v631 = vsel %vm629, %v618, %v620
  %v632 = vsel %vm629, %v620, %v622
  %v633 = vsel %vm629, %v622, %v624
  %v634 = vsel %vm629, %v624, %v626
  %v635 = vsel %vm629, %v626, %v628
  %v645 = vperm.slane %v23, 0
  %646 = vrot.lane.b32.xlu0 %v645, 96
  %v647 = vpop.permute.xlu0 %646
  %v648 = vsel %vm181, %v180, %v647
  %651 = vrot.lane.b32.xlu0 %v645, 95
  %v652 = vpop.permute.xlu0 %651
  %v653 = vsel %vm212, %v211, %v652
  %656 = vrot.lane.b32.xlu0 %v645, 94
  %v657 = vpop.permute.xlu0 %656
  %v658 = vsel %vm243, %v242, %v657
  %661 = vrot.lane.b32.xlu0 %v645, 93
  %v662 = vpop.permute.xlu0 %661
  %v663 = vsel %vm274, %v273, %v662
  %v664 = vsel %vm506, %v40, %v56
  %v665 = vsel %vm514, %v664, %v87
  %v666 = vsel %vm522, %v665, %v118
  %v667 = vsel %vm530, %v523, %v616
  %v668 = vsel %vm530, %v524, %v630
  %v669 = vsel %vm530, %v525, %v631
  %v670 = vsel %vm530, %v526, %v632
  %v671 = vsel %vm530, %v527, %v633
  %v672 = vsel %vm530, %v528, %v634
  %v673 = vsel %vm530, %v529, %v635
  %v674 = vsel %vm530, %v666, %v628
  %v675 = vsel %vm538, %v667, %v168
  %v676 = vsel %vm538, %v668, %v183
  %v677 = vsel %vm538, %v669, %v184
  %v678 = vsel %vm538, %v670, %v185
  %v679 = vsel %vm538, %v671, %v186
  %v680 = vsel %vm538, %v672, %v187
  %v681 = vsel %vm538, %v673, %v188
  %v682 = vsel %vm538, %v674, %v648
  %v683 = vsel %vm546, %v675, %v199
  %v684 = vsel %vm546, %v676, %v214
  %v685 = vsel %vm546, %v677, %v215
  %v686 = vsel %vm546, %v678, %v216
  %v687 = vsel %vm546, %v679, %v217
  %v688 = vsel %vm546, %v680, %v218
  %v689 = vsel %vm546, %v681, %v219
  %v690 = vsel %vm546, %v682, %v653
  %v691 = vsel %vm554, %v683, %v230
  %v692 = vsel %vm554, %v684, %v245
  %v693 = vsel %vm554, %v685, %v246
  %v694 = vsel %vm554, %v686, %v247
  %v695 = vsel %vm554, %v687, %v248
  %v696 = vsel %vm554, %v688, %v249
  %v697 = vsel %vm554, %v689, %v250
  %v698 = vsel %vm554, %v690, %v658
  %707 = vrot.lane.b32.xlu0 %v691, 31
  %v708 = vpop.permute.xlu0 %707
  %709 = vrot.lane.b32.xlu0 %v692, 31
  %v710 = vpop.permute.xlu0 %709
  %711 = vrot.lane.b32.xlu0 %v693, 31
  %v712 = vpop.permute.xlu0 %711
  %713 = vrot.lane.b32.xlu0 %v694, 31
  %v714 = vpop.permute.xlu0 %713
  %715 = vrot.lane.b32.xlu0 %v695, 31
  %v716 = vpop.permute.xlu0 %715
  %717 = vrot.lane.b32.xlu0 %v696, 31
  %v718 = vpop.permute.xlu0 %717
  %719 = vrot.lane.b32.xlu0 %v697, 31
  %v720 = vpop.permute.xlu0 %719
  %721 = vrot.lane.b32.xlu0 %v698, 31
  %v722 = vpop.permute.xlu0 %721
  %723 = vrot.lane.b32.xlu0 %v261, 31
  %v724 = vpop.permute.xlu0 %723
  %725 = vrot.lane.b32.xlu0 %v276, 31
  %v726 = vpop.permute.xlu0 %725
  %727 = vrot.lane.b32.xlu0 %v277, 31
  %v728 = vpop.permute.xlu0 %727
  %729 = vrot.lane.b32.xlu0 %v278, 31
  %v730 = vpop.permute.xlu0 %729
  %731 = vrot.lane.b32.xlu0 %v279, 31
  %v732 = vpop.permute.xlu0 %731
  %733 = vrot.lane.b32.xlu0 %v280, 31
  %v734 = vpop.permute.xlu0 %733
  %735 = vrot.lane.b32.xlu0 %v281, 31
  %v736 = vpop.permute.xlu0 %735
  %737 = vrot.lane.b32.xlu0 %v663, 31
  %v738 = vpop.permute.xlu0 %737
  %vm739 = vcmask 252928
  %v740 = vsel %vm739, %v708, %v710
  %v741 = vsel %vm739, %v710, %v712
  %v742 = vsel %vm739, %v712, %v714
  %v743 = vsel %vm739, %v714, %v716
  %v744 = vsel %vm739, %v716, %v718
  %v745 = vsel %vm739, %v718, %v720
  %v746 = vsel %vm739, %v720, %v722
  %v747 = vsel %vm739, %v724, %v726
  %v748 = vsel %vm739, %v726, %v728
  %v749 = vsel %vm739, %v728, %v730
  %v750 = vsel %vm739, %v730, %v732
  %v751 = vsel %vm739, %v732, %v734
  %v752 = vsel %vm739, %v734, %v736
  %v753 = vsel %vm739, %v736, %v738
  %v768 = vpack.c.bf16 %v604, %v555
  %v769 = vpack.c.bf16 %v605, %v556
  %v770 = vpack.c.bf16 %v606, %v557
  %v771 = vpack.c.bf16 %v607, %v558
  %v772 = vpack.c.bf16 %v608, %v559
  %v773 = vpack.c.bf16 %v609, %v560
  %v774 = vpack.c.bf16 %v610, %v561
  %v775 = vpack.c.bf16 %v747, %v740
  %v776 = vpack.c.bf16 %v748, %v741
  %v777 = vpack.c.bf16 %v749, %v742
  %v778 = vpack.c.bf16 %v750, %v743
  %v779 = vpack.c.bf16 %v751, %v744
  %v780 = vpack.c.bf16 %v752, %v745
  %v781 = vpack.c.bf16 %v753, %v746
  %783 = vset.pattern.permute.xlu0 0
  %784 = vperm.xlu0 %783, %v17
  %v785 = vpop.permute.xlu0 %784
  %788 = vset.pattern.permute.xlu0 0
  %789 = vperm.xlu0 %788, %v18
  %v790 = vpop.permute.xlu0 %789
  %v794 = vunpack.c.l.b16 %v15
  %v795 = vunpack.c.l.b16 %v16
  %v796 = vpack.c.b16 %v795, %v794
  %vm797 = vcmask 203776
  %v799 = vsel %vm797, %v796, 0
  %v801 = vsel %vm530, 4294967295, 65535
  %v802 = vsel %vm538, %v801, 0
  %v804 = vand.u32 %v775, %v802
  %v807 = vand.u32 %v776, %v802
  %v810 = vand.u32 %v777, %v802
  %v813 = vand.u32 %v778, %v802
  %v816 = vand.u32 %v779, %v802
  %v819 = vand.u32 %v780, %v802
  %v822 = vand.u32 %v781, %v802
  %824 = vmatpush.bf16.msra.mxu0 0
  %825 = vmatpush.bf16.msra.mxu0 0
  %826 = vmatpush.bf16.msra.mxu0 0
  %827 = vmatpush.bf16.msra.mxu0 0
  %828 = vmatpush.bf16.msra.mxu0 0
  %829 = vmatpush.bf16.msra.mxu0 0
  %830 = vmatpush.bf16.msra.mxu0 %v804
  %831 = vmatpush.bf16.msra.mxu0 %v768
  %832 = vmatmul.bf16.gmra.mxu0 %v799
  %v833 = vpop.f32.mrf.mxu0
  %v834 = vadd.f32 %v785, %v833
  %v835 = vpop.f32.mrf.mxu0
  %v836 = vadd.f32 %v790, %v835
  %837 = vdwg.mxu0
  %838 = vmatpush.bf16.msra.mxu0 0
  %839 = vmatpush.bf16.msra.mxu0 0
  %840 = vmatpush.bf16.msra.mxu0 0
  %841 = vmatpush.bf16.msra.mxu0 0
  %842 = vmatpush.bf16.msra.mxu0 0
  %843 = vmatpush.bf16.msra.mxu0 0
  %844 = vmatpush.bf16.msra.mxu0 %v807
  %845 = vmatpush.bf16.msra.mxu0 %v769
  %846 = vmatmul.bf16.gmra.mxu0 %v799
  %v847 = vpop.f32.mrf.mxu0
  %v848 = vadd.f32 %v785, %v847
  %v849 = vpop.f32.mrf.mxu0
  %v850 = vadd.f32 %v790, %v849
  %851 = vdwg.mxu0
  %852 = vmatpush.bf16.msra.mxu0 0
  %853 = vmatpush.bf16.msra.mxu0 0
  %854 = vmatpush.bf16.msra.mxu0 0
  %855 = vmatpush.bf16.msra.mxu0 0
  %856 = vmatpush.bf16.msra.mxu0 0
  %857 = vmatpush.bf16.msra.mxu0 0
  %858 = vmatpush.bf16.msra.mxu0 %v810
  %859 = vmatpush.bf16.msra.mxu0 %v770
  %860 = vmatmul.bf16.gmra.mxu0 %v799
  %v861 = vpop.f32.mrf.mxu0
  %v862 = vadd.f32 %v785, %v861
  %v863 = vpop.f32.mrf.mxu0
  %v864 = vadd.f32 %v790, %v863
  %865 = vdwg.mxu0
  %866 = vmatpush.bf16.msra.mxu0 0
  %867 = vmatpush.bf16.msra.mxu0 0
  %868 = vmatpush.bf16.msra.mxu0 0
  %869 = vmatpush.bf16.msra.mxu0 0
  %870 = vmatpush.bf16.msra.mxu0 0
  %871 = vmatpush.bf16.msra.mxu0 0
  %872 = vmatpush.bf16.msra.mxu0 %v813
  %873 = vmatpush.bf16.msra.mxu0 %v771
  %874 = vmatmul.bf16.gmra.mxu0 %v799
  %v875 = vpop.f32.mrf.mxu0
  %v876 = vadd.f32 %v785, %v875
  %v877 = vpop.f32.mrf.mxu0
  %v878 = vadd.f32 %v790, %v877
  %879 = vdwg.mxu0
  %880 = vmatpush.bf16.msra.mxu0 0
  %881 = vmatpush.bf16.msra.mxu0 0
  %882 = vmatpush.bf16.msra.mxu0 0
  %883 = vmatpush.bf16.msra.mxu0 0
  %884 = vmatpush.bf16.msra.mxu0 0
  %885 = vmatpush.bf16.msra.mxu0 0
  %886 = vmatpush.bf16.msra.mxu0 %v816
  %887 = vmatpush.bf16.msra.mxu0 %v772
  %888 = vmatmul.bf16.gmra.mxu0 %v799
  %v889 = vpop.f32.mrf.mxu0
  %v890 = vadd.f32 %v785, %v889
  %v891 = vpop.f32.mrf.mxu0
  %v892 = vadd.f32 %v790, %v891
  %893 = vdwg.mxu0
  %894 = vmatpush.bf16.msra.mxu0 0
  %895 = vmatpush.bf16.msra.mxu0 0
  %896 = vmatpush.bf16.msra.mxu0 0
  %897 = vmatpush.bf16.msra.mxu0 0
  %898 = vmatpush.bf16.msra.mxu0 0
  %899 = vmatpush.bf16.msra.mxu0 0
  %900 = vmatpush.bf16.msra.mxu0 %v819
  %901 = vmatpush.bf16.msra.mxu0 %v773
  %902 = vmatmul.bf16.gmra.mxu0 %v799
  %v903 = vpop.f32.mrf.mxu0
  %v904 = vadd.f32 %v785, %v903
  %v905 = vpop.f32.mrf.mxu0
  %v906 = vadd.f32 %v790, %v905
  %907 = vdwg.mxu0
  %908 = vmatpush.bf16.msra.mxu0 0
  %909 = vmatpush.bf16.msra.mxu0 0
  %910 = vmatpush.bf16.msra.mxu0 0
  %911 = vmatpush.bf16.msra.mxu0 0
  %912 = vmatpush.bf16.msra.mxu0 0
  %913 = vmatpush.bf16.msra.mxu0 0
  %914 = vmatpush.bf16.msra.mxu0 %v822
  %915 = vmatpush.bf16.msra.mxu0 %v774
  %916 = vmatmul.bf16.gmra.mxu0 %v799
  %v917 = vpop.f32.mrf.mxu0
  %v918 = vadd.f32 %v785, %v917
  %v919 = vpop.f32.mrf.mxu0
  %v920 = vadd.f32 %v790, %v919
  %921 = vdwg.mxu0
  %v922 = vmax.f32 %v834, 0.0
  %v923 = vmax.f32 %v848, 0.0
  %v924 = vmax.f32 %v862, 0.0
  %v925 = vmax.f32 %v876, 0.0
  %v926 = vmax.f32 %v890, 0.0
  %v927 = vmax.f32 %v904, 0.0
  %v928 = vmax.f32 %v918, 0.0
  %v929 = vmax.f32 %v836, 0.0
  %v930 = vmax.f32 %v850, 0.0
  %v931 = vmax.f32 %v864, 0.0
  %v932 = vmax.f32 %v878, 0.0
  %v933 = vmax.f32 %v892, 0.0
  %v934 = vmax.f32 %v906, 0.0
  %v935 = vmax.f32 %v920, 0.0
  %936 = vrot.lane.b32.xlu0 %v922, 127
  %v937 = vpop.permute.xlu0 %936
  %938 = vrot.lane.b32.xlu0 %v929, 127
  %v939 = vpop.permute.xlu0 %938
  %940 = vrot.lane.b32.xlu0 %v923, 127
  %v941 = vpop.permute.xlu0 %940
  %942 = vrot.lane.b32.xlu0 %v930, 127
  %v943 = vpop.permute.xlu0 %942
  %944 = vrot.lane.b32.xlu0 %v924, 127
  %v945 = vpop.permute.xlu0 %944
  %946 = vrot.lane.b32.xlu0 %v931, 127
  %v947 = vpop.permute.xlu0 %946
  %948 = vrot.lane.b32.xlu0 %v925, 127
  %v949 = vpop.permute.xlu0 %948
  %950 = vrot.lane.b32.xlu0 %v932, 127
  %v951 = vpop.permute.xlu0 %950
  %952 = vrot.lane.b32.xlu0 %v926, 127
  %v953 = vpop.permute.xlu0 %952
  %954 = vrot.lane.b32.xlu0 %v933, 127
  %v955 = vpop.permute.xlu0 %954
  %956 = vrot.lane.b32.xlu0 %v927, 127
  %v957 = vpop.permute.xlu0 %956
  %958 = vrot.lane.b32.xlu0 %v934, 127
  %v959 = vpop.permute.xlu0 %958
  %960 = vrot.lane.b32.xlu0 %v928, 127
  %v961 = vpop.permute.xlu0 %960
  %962 = vrot.lane.b32.xlu0 %v935, 127
  %v963 = vpop.permute.xlu0 %962
  %v964 = vlaneseq
  %v965 = vand.u32 %v964, 127
  %vm966 = vcmp.lt.s32.totalorder %v965, 127
  %v967 = vsel %vm966, %v957, %v961
  %v968 = vsel %vm966, %v959, %v963
  %v969 = vsel %vm966, %v953, %v957
  %v970 = vsel %vm966, %v955, %v959
  %v971 = vsel %vm966, %v949, %v953
  %v972 = vsel %vm966, %v951, %v955
  %v973 = vsel %vm966, %v945, %v949
  %v974 = vsel %vm966, %v947, %v951
  %v975 = vsel %vm966, %v941, %v945
  %v976 = vsel %vm966, %v943, %v947
  %v977 = vsel %vm966, %v937, %v941
  %v978 = vsel %vm966, %v939, %v943
  %v979 = vsel %vm966, %v961, %v937
  %v980 = vsel %vm966, %v963, %v939
  %v981 = vmax.f32 %v922, %v977
  %v982 = vmax.f32 %v923, %v975
  %v983 = vmax.f32 %v924, %v973
  %v984 = vmax.f32 %v925, %v971
  %v985 = vmax.f32 %v926, %v969
  %v986 = vmax.f32 %v927, %v967
  %v987 = vmax.f32 %v928, %v979
  %v988 = vmax.f32 %v929, %v978
  %v989 = vmax.f32 %v930, %v976
  %v990 = vmax.f32 %v931, %v974
  %v991 = vmax.f32 %v932, %v972
  %v992 = vmax.f32 %v933, %v970
  %v993 = vmax.f32 %v934, %v968
  %v994 = vmax.f32 %v935, %v980
  %995 = vrot.lane.b32.xlu0 %v981, 96
  %v996 = vpop.permute.xlu0 %995
  %997 = vrot.lane.b32.xlu0 %v988, 96
  %v998 = vpop.permute.xlu0 %997
  %999 = vrot.lane.b32.xlu0 %v982, 96
  %v1000 = vpop.permute.xlu0 %999
  %1001 = vrot.lane.b32.xlu0 %v989, 96
  %v1002 = vpop.permute.xlu0 %1001
  %1003 = vrot.lane.b32.xlu0 %v983, 96
  %v1004 = vpop.permute.xlu0 %1003
  %1005 = vrot.lane.b32.xlu0 %v990, 96
  %v1006 = vpop.permute.xlu0 %1005
  %1007 = vrot.lane.b32.xlu0 %v984, 96
  %v1008 = vpop.permute.xlu0 %1007
  %1009 = vrot.lane.b32.xlu0 %v991, 96
  %v1010 = vpop.permute.xlu0 %1009
  %1011 = vrot.lane.b32.xlu0 %v985, 96
  %v1012 = vpop.permute.xlu0 %1011
  %1013 = vrot.lane.b32.xlu0 %v992, 96
  %v1014 = vpop.permute.xlu0 %1013
  %1015 = vrot.lane.b32.xlu0 %v986, 96
  %v1016 = vpop.permute.xlu0 %1015
  %1017 = vrot.lane.b32.xlu0 %v993, 96
  %v1018 = vpop.permute.xlu0 %1017
  %1019 = vrot.lane.b32.xlu0 %v987, 96
  %v1020 = vpop.permute.xlu0 %1019
  %1021 = vrot.lane.b32.xlu0 %v994, 96
  %v1022 = vpop.permute.xlu0 %1021
  %vm1023 = vcmp.lt.s32.totalorder %v965, 96
  %v1024 = vsel %vm1023, %v1016, %v1020
  %v1025 = vsel %vm1023, %v1018, %v1022
  %v1026 = vsel %vm1023, %v1012, %v1016
  %v1027 = vsel %vm1023, %v1014, %v1018
  %v1028 = vsel %vm1023, %v1008, %v1012
  %v1029 = vsel %vm1023, %v1010, %v1014
  %v1030 = vsel %vm1023, %v1004, %v1008
  %v1031 = vsel %vm1023, %v1006, %v1010
  %v1032 = vsel %vm1023, %v1000, %v1004
  %v1033 = vsel %vm1023, %v1002, %v1006
  %v1034 = vsel %vm1023, %v996, %v1000
  %v1035 = vsel %vm1023, %v998, %v1002
  %v1036 = vsel %vm1023, %v1020, %v996
  %v1037 = vsel %vm1023, %v1022, %v998
  %v1038 = vmax.f32 %v981, %v1034
  %v1039 = vmax.f32 %v982, %v1032
  %v1040 = vmax.f32 %v983, %v1030
  %v1041 = vmax.f32 %v984, %v1028
  %v1042 = vmax.f32 %v985, %v1026
  %v1043 = vmax.f32 %v986, %v1024
  %v1044 = vmax.f32 %v987, %v1036
  %v1045 = vmax.f32 %v988, %v1035
  %v1046 = vmax.f32 %v989, %v1033
  %v1047 = vmax.f32 %v990, %v1031
  %v1048 = vmax.f32 %v991, %v1029
  %v1049 = vmax.f32 %v992, %v1027
  %v1050 = vmax.f32 %v993, %v1025
  %v1051 = vmax.f32 %v994, %v1037
  %v1052 = vpack.c.bf16 %v1039, %v1038
  %v1053 = vpack.c.bf16 %v1041, %v1040
  %v1054 = vpack.c.bf16 %v1043, %v1042
  %v1055 = vpack.c.bf16 %v1044, %v1044
  %v1056 = vpack.c.bf16 %v1046, %v1045
  %v1057 = vpack.c.bf16 %v1048, %v1047
  %v1058 = vpack.c.bf16 %v1050, %v1049
  %v1059 = vpack.c.bf16 %v1051, %v1051
  %1060 = vst [vmem:[%s3] sm:$0xff] %v1052
  %1061 = vst [vmem:[%s3 + $0x8] sm:$0xff] %v1053
  %1062 = vst [vmem:[%s3 + $0x10] sm:$0xff] %v1054
  %1063 = vst [vmem:[%s3 + $0x18] sm:$0xf] %v1055
  %1064 = vst [vmem:[%s3 + $0x1c] sm:$0xff] %v1056
  %1065 = vst [vmem:[%s3 + $0x24] sm:$0xff] %v1057
  %1066 = vst [vmem:[%s3 + $0x2c] sm:$0xff] %v1058
  %1067 = vst [vmem:[%s3 + $0x34] sm:$0xf] %v1059
  %s1068 = scalar_lea.vmem %s0, 9
  %v1069 = vld [vmem:[%s1068] sm:$0xff]
  %v1070 = vld [vmem:[%s1068 + $0x8] sm:$0x1]
  %v1071 = vunpack.c.l.bf16 %v1069
  %v1072 = vunpack.c.h.bf16 %v1069
  %v1073 = vunpack.c.l.bf16 %v1070
  %v1076 = vperm.slane %v1071, 0
  %v1077 = vperm.slane %v1071, 2
  %v1078 = vperm.slane %v1071, 4
  %v1079 = vperm.slane %v1071, 6
  %v1080 = vperm.slane %v1072, 0
  %v1081 = vperm.slane %v1072, 2
  %v1082 = vperm.slane %v1072, 4
  %v1090 = vperm.slane %v1072, 6
  %1091 = vrot.lane.b32.xlu0 %v1076, 127
  %v1092 = vpop.permute.xlu0 %1091
  %1093 = vrot.lane.b32.xlu0 %v1077, 127
  %v1094 = vpop.permute.xlu0 %1093
  %1095 = vrot.lane.b32.xlu0 %v1078, 127
  %v1096 = vpop.permute.xlu0 %1095
  %1097 = vrot.lane.b32.xlu0 %v1079, 127
  %v1098 = vpop.permute.xlu0 %1097
  %1099 = vrot.lane.b32.xlu0 %v1080, 127
  %v1100 = vpop.permute.xlu0 %1099
  %1101 = vrot.lane.b32.xlu0 %v1081, 127
  %v1102 = vpop.permute.xlu0 %1101
  %1103 = vrot.lane.b32.xlu0 %v1082, 127
  %v1104 = vpop.permute.xlu0 %1103
  %1105 = vrot.lane.b32.xlu0 %v1090, 127
  %v1106 = vpop.permute.xlu0 %1105
  %v1107 = vsel %vm57, %v1092, %v1094
  %v1108 = vsel %vm57, %v1094, %v1096
  %v1109 = vsel %vm57, %v1096, %v1098
  %v1110 = vsel %vm57, %v1098, %v1100
  %v1111 = vsel %vm57, %v1100, %v1102
  %v1112 = vsel %vm57, %v1102, %v1104
  %v1113 = vsel %vm57, %v1104, %v1106
  %1121 = vrot.lane.b32.xlu0 %v1076, 126
  %v1122 = vpop.permute.xlu0 %1121
  %1123 = vrot.lane.b32.xlu0 %v1077, 126
  %v1124 = vpop.permute.xlu0 %1123
  %1125 = vrot.lane.b32.xlu0 %v1078, 126
  %v1126 = vpop.permute.xlu0 %1125
  %1127 = vrot.lane.b32.xlu0 %v1079, 126
  %v1128 = vpop.permute.xlu0 %1127
  %1129 = vrot.lane.b32.xlu0 %v1080, 126
  %v1130 = vpop.permute.xlu0 %1129
  %1131 = vrot.lane.b32.xlu0 %v1081, 126
  %v1132 = vpop.permute.xlu0 %1131
  %1133 = vrot.lane.b32.xlu0 %v1082, 126
  %v1134 = vpop.permute.xlu0 %1133
  %1135 = vrot.lane.b32.xlu0 %v1090, 126
  %v1136 = vpop.permute.xlu0 %1135
  %v1137 = vsel %vm88, %v1122, %v1124
  %v1138 = vsel %vm88, %v1124, %v1126
  %v1139 = vsel %vm88, %v1126, %v1128
  %v1140 = vsel %vm88, %v1128, %v1130
  %v1141 = vsel %vm88, %v1130, %v1132
  %v1142 = vsel %vm88, %v1132, %v1134
  %v1143 = vsel %vm88, %v1134, %v1136
  %1151 = vrot.lane.b32.xlu0 %v1076, 125
  %v1152 = vpop.permute.xlu0 %1151
  %1153 = vrot.lane.b32.xlu0 %v1077, 125
  %v1154 = vpop.permute.xlu0 %1153
  %1155 = vrot.lane.b32.xlu0 %v1078, 125
  %v1156 = vpop.permute.xlu0 %1155
  %1157 = vrot.lane.b32.xlu0 %v1079, 125
  %v1158 = vpop.permute.xlu0 %1157
  %1159 = vrot.lane.b32.xlu0 %v1080, 125
  %v1160 = vpop.permute.xlu0 %1159
  %1161 = vrot.lane.b32.xlu0 %v1081, 125
  %v1162 = vpop.permute.xlu0 %1161
  %1163 = vrot.lane.b32.xlu0 %v1082, 125
  %v1164 = vpop.permute.xlu0 %1163
  %1165 = vrot.lane.b32.xlu0 %v1090, 125
  %v1166 = vpop.permute.xlu0 %1165
  %v1167 = vsel %vm119, %v1152, %v1154
  %v1168 = vsel %vm119, %v1154, %v1156
  %v1169 = vsel %vm119, %v1156, %v1158
  %v1170 = vsel %vm119, %v1158, %v1160
  %v1171 = vsel %vm119, %v1160, %v1162
  %v1172 = vsel %vm119, %v1162, %v1164
  %v1173 = vsel %vm119, %v1164, %v1166
  %1181 = vrot.lane.b32.xlu0 %v1076, 124
  %v1182 = vpop.permute.xlu0 %1181
  %1183 = vrot.lane.b32.xlu0 %v1077, 124
  %v1184 = vpop.permute.xlu0 %1183
  %1185 = vrot.lane.b32.xlu0 %v1078, 124
  %v1186 = vpop.permute.xlu0 %1185
  %1187 = vrot.lane.b32.xlu0 %v1079, 124
  %v1188 = vpop.permute.xlu0 %1187
  %1189 = vrot.lane.b32.xlu0 %v1080, 124
  %v1190 = vpop.permute.xlu0 %1189
  %1191 = vrot.lane.b32.xlu0 %v1081, 124
  %v1192 = vpop.permute.xlu0 %1191
  %1193 = vrot.lane.b32.xlu0 %v1082, 124
  %v1194 = vpop.permute.xlu0 %1193
  %1195 = vrot.lane.b32.xlu0 %v1090, 124
  %v1196 = vpop.permute.xlu0 %1195
  %v1197 = vsel %vm150, %v1182, %v1184
  %v1198 = vsel %vm150, %v1184, %v1186
  %v1199 = vsel %vm150, %v1186, %v1188
  %v1200 = vsel %vm150, %v1188, %v1190
  %v1201 = vsel %vm150, %v1190, %v1192
  %v1202 = vsel %vm150, %v1192, %v1194
  %v1203 = vsel %vm150, %v1194, %v1196
  %1211 = vrot.lane.b32.xlu0 %v1076, 96
  %v1212 = vpop.permute.xlu0 %1211
  %1213 = vrot.lane.b32.xlu0 %v1077, 96
  %v1214 = vpop.permute.xlu0 %1213
  %1215 = vrot.lane.b32.xlu0 %v1078, 96
  %v1216 = vpop.permute.xlu0 %1215
  %1217 = vrot.lane.b32.xlu0 %v1079, 96
  %v1218 = vpop.permute.xlu0 %1217
  %1219 = vrot.lane.b32.xlu0 %v1080, 96
  %v1220 = vpop.permute.xlu0 %1219
  %1221 = vrot.lane.b32.xlu0 %v1081, 96
  %v1222 = vpop.permute.xlu0 %1221
  %1223 = vrot.lane.b32.xlu0 %v1082, 96
  %v1224 = vpop.permute.xlu0 %1223
  %1225 = vrot.lane.b32.xlu0 %v1090, 96
  %v1226 = vpop.permute.xlu0 %1225
  %v1227 = vsel %vm181, %v1212, %v1214
  %v1228 = vsel %vm181, %v1214, %v1216
  %v1229 = vsel %vm181, %v1216, %v1218
  %v1230 = vsel %vm181, %v1218, %v1220
  %v1231 = vsel %vm181, %v1220, %v1222
  %v1232 = vsel %vm181, %v1222, %v1224
  %v1233 = vsel %vm181, %v1224, %v1226
  %1241 = vrot.lane.b32.xlu0 %v1076, 95
  %v1242 = vpop.permute.xlu0 %1241
  %1243 = vrot.lane.b32.xlu0 %v1077, 95
  %v1244 = vpop.permute.xlu0 %1243
  %1245 = vrot.lane.b32.xlu0 %v1078, 95
  %v1246 = vpop.permute.xlu0 %1245
  %1247 = vrot.lane.b32.xlu0 %v1079, 95
  %v1248 = vpop.permute.xlu0 %1247
  %1249 = vrot.lane.b32.xlu0 %v1080, 95
  %v1250 = vpop.permute.xlu0 %1249
  %1251 = vrot.lane.b32.xlu0 %v1081, 95
  %v1252 = vpop.permute.xlu0 %1251
  %1253 = vrot.lane.b32.xlu0 %v1082, 95
  %v1254 = vpop.permute.xlu0 %1253
  %1255 = vrot.lane.b32.xlu0 %v1090, 95
  %v1256 = vpop.permute.xlu0 %1255
  %v1257 = vsel %vm212, %v1242, %v1244
  %v1258 = vsel %vm212, %v1244, %v1246
  %v1259 = vsel %vm212, %v1246, %v1248
  %v1260 = vsel %vm212, %v1248, %v1250
  %v1261 = vsel %vm212, %v1250, %v1252
  %v1262 = vsel %vm212, %v1252, %v1254
  %v1263 = vsel %vm212, %v1254, %v1256
  %1271 = vrot.lane.b32.xlu0 %v1076, 94
  %v1272 = vpop.permute.xlu0 %1271
  %1273 = vrot.lane.b32.xlu0 %v1077, 94
  %v1274 = vpop.permute.xlu0 %1273
  %1275 = vrot.lane.b32.xlu0 %v1078, 94
  %v1276 = vpop.permute.xlu0 %1275
  %1277 = vrot.lane.b32.xlu0 %v1079, 94
  %v1278 = vpop.permute.xlu0 %1277
  %1279 = vrot.lane.b32.xlu0 %v1080, 94
  %v1280 = vpop.permute.xlu0 %1279
  %1281 = vrot.lane.b32.xlu0 %v1081, 94
  %v1282 = vpop.permute.xlu0 %1281
  %1283 = vrot.lane.b32.xlu0 %v1082, 94
  %v1284 = vpop.permute.xlu0 %1283
  %1285 = vrot.lane.b32.xlu0 %v1090, 94
  %v1286 = vpop.permute.xlu0 %1285
  %v1287 = vsel %vm243, %v1272, %v1274
  %v1288 = vsel %vm243, %v1274, %v1276
  %v1289 = vsel %vm243, %v1276, %v1278
  %v1290 = vsel %vm243, %v1278, %v1280
  %v1291 = vsel %vm243, %v1280, %v1282
  %v1292 = vsel %vm243, %v1282, %v1284
  %v1293 = vsel %vm243, %v1284, %v1286
  %1301 = vrot.lane.b32.xlu0 %v1076, 93
  %v1302 = vpop.permute.xlu0 %1301
  %1303 = vrot.lane.b32.xlu0 %v1077, 93
  %v1304 = vpop.permute.xlu0 %1303
  %1305 = vrot.lane.b32.xlu0 %v1078, 93
  %v1306 = vpop.permute.xlu0 %1305
  %1307 = vrot.lane.b32.xlu0 %v1079, 93
  %v1308 = vpop.permute.xlu0 %1307
  %1309 = vrot.lane.b32.xlu0 %v1080, 93
  %v1310 = vpop.permute.xlu0 %1309
  %1311 = vrot.lane.b32.xlu0 %v1081, 93
  %v1312 = vpop.permute.xlu0 %1311
  %1313 = vrot.lane.b32.xlu0 %v1082, 93
  %v1314 = vpop.permute.xlu0 %1313
  %1315 = vrot.lane.b32.xlu0 %v1090, 93
  %v1316 = vpop.permute.xlu0 %1315
  %v1317 = vsel %vm274, %v1302, %v1304
  %v1318 = vsel %vm274, %v1304, %v1306
  %v1319 = vsel %vm274, %v1306, %v1308
  %v1320 = vsel %vm274, %v1308, %v1310
  %v1321 = vsel %vm274, %v1310, %v1312
  %v1322 = vsel %vm274, %v1312, %v1314
  %v1323 = vsel %vm274, %v1314, %v1316
  %1331 = vrot.lane.b32.xlu0 %v1076, 92
  %v1332 = vpop.permute.xlu0 %1331
  %1333 = vrot.lane.b32.xlu0 %v1077, 92
  %v1334 = vpop.permute.xlu0 %1333
  %1335 = vrot.lane.b32.xlu0 %v1078, 92
  %v1336 = vpop.permute.xlu0 %1335
  %1337 = vrot.lane.b32.xlu0 %v1079, 92
  %v1338 = vpop.permute.xlu0 %1337
  %1339 = vrot.lane.b32.xlu0 %v1080, 92
  %v1340 = vpop.permute.xlu0 %1339
  %1341 = vrot.lane.b32.xlu0 %v1081, 92
  %v1342 = vpop.permute.xlu0 %1341
  %1343 = vrot.lane.b32.xlu0 %v1082, 92
  %v1344 = vpop.permute.xlu0 %1343
  %1345 = vrot.lane.b32.xlu0 %v1090, 92
  %v1346 = vpop.permute.xlu0 %1345
  %v1347 = vsel %vm305, %v1332, %v1334
  %v1348 = vsel %vm305, %v1334, %v1336
  %v1349 = vsel %vm305, %v1336, %v1338
  %v1350 = vsel %vm305, %v1338, %v1340
  %v1351 = vsel %vm305, %v1340, %v1342
  %v1352 = vsel %vm305, %v1342, %v1344
  %v1353 = vsel %vm305, %v1344, %v1346
  %1361 = vrot.lane.b32.xlu0 %v1076, 64
  %v1362 = vpop.permute.xlu0 %1361
  %1363 = vrot.lane.b32.xlu0 %v1077, 64
  %v1364 = vpop.permute.xlu0 %1363
  %1365 = vrot.lane.b32.xlu0 %v1078, 64
  %v1366 = vpop.permute.xlu0 %1365
  %1367 = vrot.lane.b32.xlu0 %v1079, 64
  %v1368 = vpop.permute.xlu0 %1367
  %1369 = vrot.lane.b32.xlu0 %v1080, 64
  %v1370 = vpop.permute.xlu0 %1369
  %1371 = vrot.lane.b32.xlu0 %v1081, 64
  %v1372 = vpop.permute.xlu0 %1371
  %1373 = vrot.lane.b32.xlu0 %v1082, 64
  %v1374 = vpop.permute.xlu0 %1373
  %1375 = vrot.lane.b32.xlu0 %v1090, 64
  %v1376 = vpop.permute.xlu0 %1375
  %v1377 = vsel %vm336, %v1362, %v1364
  %v1378 = vsel %vm336, %v1364, %v1366
  %v1379 = vsel %vm336, %v1366, %v1368
  %v1380 = vsel %vm336, %v1368, %v1370
  %v1381 = vsel %vm336, %v1370, %v1372
  %v1382 = vsel %vm336, %v1372, %v1374
  %v1383 = vsel %vm336, %v1374, %v1376
  %1391 = vrot.lane.b32.xlu0 %v1076, 63
  %v1392 = vpop.permute.xlu0 %1391
  %1393 = vrot.lane.b32.xlu0 %v1077, 63
  %v1394 = vpop.permute.xlu0 %1393
  %1395 = vrot.lane.b32.xlu0 %v1078, 63
  %v1396 = vpop.permute.xlu0 %1395
  %1397 = vrot.lane.b32.xlu0 %v1079, 63
  %v1398 = vpop.permute.xlu0 %1397
  %1399 = vrot.lane.b32.xlu0 %v1080, 63
  %v1400 = vpop.permute.xlu0 %1399
  %1401 = vrot.lane.b32.xlu0 %v1081, 63
  %v1402 = vpop.permute.xlu0 %1401
  %1403 = vrot.lane.b32.xlu0 %v1082, 63
  %v1404 = vpop.permute.xlu0 %1403
  %1405 = vrot.lane.b32.xlu0 %v1090, 63
  %v1406 = vpop.permute.xlu0 %1405
  %v1407 = vsel %vm367, %v1392, %v1394
  %v1408 = vsel %vm367, %v1394, %v1396
  %v1409 = vsel %vm367, %v1396, %v1398
  %v1410 = vsel %vm367, %v1398, %v1400
  %v1411 = vsel %vm367, %v1400, %v1402
  %v1412 = vsel %vm367, %v1402, %v1404
  %v1413 = vsel %vm367, %v1404, %v1406
  %1421 = vrot.lane.b32.xlu0 %v1076, 62
  %v1422 = vpop.permute.xlu0 %1421
  %1423 = vrot.lane.b32.xlu0 %v1077, 62
  %v1424 = vpop.permute.xlu0 %1423
  %1425 = vrot.lane.b32.xlu0 %v1078, 62
  %v1426 = vpop.permute.xlu0 %1425
  %1427 = vrot.lane.b32.xlu0 %v1079, 62
  %v1428 = vpop.permute.xlu0 %1427
  %1429 = vrot.lane.b32.xlu0 %v1080, 62
  %v1430 = vpop.permute.xlu0 %1429
  %1431 = vrot.lane.b32.xlu0 %v1081, 62
  %v1432 = vpop.permute.xlu0 %1431
  %1433 = vrot.lane.b32.xlu0 %v1082, 62
  %v1434 = vpop.permute.xlu0 %1433
  %1435 = vrot.lane.b32.xlu0 %v1090, 62
  %v1436 = vpop.permute.xlu0 %1435
  %v1437 = vsel %vm398, %v1422, %v1424
  %v1438 = vsel %vm398, %v1424, %v1426
  %v1439 = vsel %vm398, %v1426, %v1428
  %v1440 = vsel %vm398, %v1428, %v1430
  %v1441 = vsel %vm398, %v1430, %v1432
  %v1442 = vsel %vm398, %v1432, %v1434
  %v1443 = vsel %vm398, %v1434, %v1436
  %1451 = vrot.lane.b32.xlu0 %v1076, 61
  %v1452 = vpop.permute.xlu0 %1451
  %1453 = vrot.lane.b32.xlu0 %v1077, 61
  %v1454 = vpop.permute.xlu0 %1453
  %1455 = vrot.lane.b32.xlu0 %v1078, 61
  %v1456 = vpop.permute.xlu0 %1455
  %1457 = vrot.lane.b32.xlu0 %v1079, 61
  %v1458 = vpop.permute.xlu0 %1457
  %1459 = vrot.lane.b32.xlu0 %v1080, 61
  %v1460 = vpop.permute.xlu0 %1459
  %1461 = vrot.lane.b32.xlu0 %v1081, 61
  %v1462 = vpop.permute.xlu0 %1461
  %1463 = vrot.lane.b32.xlu0 %v1082, 61
  %v1464 = vpop.permute.xlu0 %1463
  %1465 = vrot.lane.b32.xlu0 %v1090, 61
  %v1466 = vpop.permute.xlu0 %1465
  %v1467 = vsel %vm429, %v1452, %v1454
  %v1468 = vsel %vm429, %v1454, %v1456
  %v1469 = vsel %vm429, %v1456, %v1458
  %v1470 = vsel %vm429, %v1458, %v1460
  %v1471 = vsel %vm429, %v1460, %v1462
  %v1472 = vsel %vm429, %v1462, %v1464
  %v1473 = vsel %vm429, %v1464, %v1466
  %1481 = vrot.lane.b32.xlu0 %v1076, 60
  %v1482 = vpop.permute.xlu0 %1481
  %1483 = vrot.lane.b32.xlu0 %v1077, 60
  %v1484 = vpop.permute.xlu0 %1483
  %1485 = vrot.lane.b32.xlu0 %v1078, 60
  %v1486 = vpop.permute.xlu0 %1485
  %1487 = vrot.lane.b32.xlu0 %v1079, 60
  %v1488 = vpop.permute.xlu0 %1487
  %1489 = vrot.lane.b32.xlu0 %v1080, 60
  %v1490 = vpop.permute.xlu0 %1489
  %1491 = vrot.lane.b32.xlu0 %v1081, 60
  %v1492 = vpop.permute.xlu0 %1491
  %1493 = vrot.lane.b32.xlu0 %v1082, 60
  %v1494 = vpop.permute.xlu0 %1493
  %1495 = vrot.lane.b32.xlu0 %v1090, 60
  %v1496 = vpop.permute.xlu0 %1495
  %v1497 = vsel %vm460, %v1482, %v1484
  %v1498 = vsel %vm460, %v1484, %v1486
  %v1499 = vsel %vm460, %v1486, %v1488
  %v1500 = vsel %vm460, %v1488, %v1490
  %v1501 = vsel %vm460, %v1490, %v1492
  %v1502 = vsel %vm460, %v1492, %v1494
  %v1503 = vsel %vm460, %v1494, %v1496
  %1511 = vrot.lane.b32.xlu0 %v1076, 32
  %v1512 = vpop.permute.xlu0 %1511
  %1513 = vrot.lane.b32.xlu0 %v1077, 32
  %v1514 = vpop.permute.xlu0 %1513
  %1515 = vrot.lane.b32.xlu0 %v1078, 32
  %v1516 = vpop.permute.xlu0 %1515
  %1517 = vrot.lane.b32.xlu0 %v1079, 32
  %v1518 = vpop.permute.xlu0 %1517
  %1519 = vrot.lane.b32.xlu0 %v1080, 32
  %v1520 = vpop.permute.xlu0 %1519
  %1521 = vrot.lane.b32.xlu0 %v1081, 32
  %v1522 = vpop.permute.xlu0 %1521
  %1523 = vrot.lane.b32.xlu0 %v1082, 32
  %v1524 = vpop.permute.xlu0 %1523
  %1525 = vrot.lane.b32.xlu0 %v1090, 32
  %v1526 = vpop.permute.xlu0 %1525
  %v1527 = vsel %vm491, %v1512, %v1514
  %v1528 = vsel %vm491, %v1514, %v1516
  %v1529 = vsel %vm491, %v1516, %v1518
  %v1530 = vsel %vm491, %v1518, %v1520
  %v1531 = vsel %vm491, %v1520, %v1522
  %v1532 = vsel %vm491, %v1522, %v1524
  %v1533 = vsel %vm491, %v1524, %v1526
  %v1541 = vsel %vm506, %v1076, %v1107
  %v1542 = vsel %vm506, %v1077, %v1108
  %v1543 = vsel %vm506, %v1078, %v1109
  %v1544 = vsel %vm506, %v1079, %v1110
  %v1545 = vsel %vm506, %v1080, %v1111
  %v1546 = vsel %vm506, %v1081, %v1112
  %v1547 = vsel %vm506, %v1082, %v1113
  %v1548 = vsel %vm514, %v1541, %v1137
  %v1549 = vsel %vm514, %v1542, %v1138
  %v1550 = vsel %vm514, %v1543, %v1139
  %v1551 = vsel %vm514, %v1544, %v1140
  %v1552 = vsel %vm514, %v1545, %v1141
  %v1553 = vsel %vm514, %v1546, %v1142
  %v1554 = vsel %vm514, %v1547, %v1143
  %v1555 = vsel %vm522, %v1548, %v1167
  %v1556 = vsel %vm522, %v1549, %v1168
  %v1557 = vsel %vm522, %v1550, %v1169
  %v1558 = vsel %vm522, %v1551, %v1170
  %v1559 = vsel %vm522, %v1552, %v1171
  %v1560 = vsel %vm522, %v1553, %v1172
  %v1561 = vsel %vm522, %v1554, %v1173
  %v1562 = vsel %vm530, %v1555, %v1197
  %v1563 = vsel %vm530, %v1556, %v1198
  %v1564 = vsel %vm530, %v1557, %v1199
  %v1565 = vsel %vm530, %v1558, %v1200
  %v1566 = vsel %vm530, %v1559, %v1201
  %v1567 = vsel %vm530, %v1560, %v1202
  %v1568 = vsel %vm530, %v1561, %v1203
  %v1569 = vsel %vm538, %v1562, %v1227
  %v1570 = vsel %vm538, %v1563, %v1228
  %v1571 = vsel %vm538, %v1564, %v1229
  %v1572 = vsel %vm538, %v1565, %v1230
  %v1573 = vsel %vm538, %v1566, %v1231
  %v1574 = vsel %vm538, %v1567, %v1232
  %v1575 = vsel %vm538, %v1568, %v1233
  %v1576 = vsel %vm546, %v1569, %v1257
  %v1577 = vsel %vm546, %v1570, %v1258
  %v1578 = vsel %vm546, %v1571, %v1259
  %v1579 = vsel %vm546, %v1572, %v1260
  %v1580 = vsel %vm546, %v1573, %v1261
  %v1581 = vsel %vm546, %v1574, %v1262
  %v1582 = vsel %vm546, %v1575, %v1263
  %v1583 = vsel %vm554, %v1576, %v1287
  %v1584 = vsel %vm554, %v1577, %v1288
  %v1585 = vsel %vm554, %v1578, %v1289
  %v1586 = vsel %vm554, %v1579, %v1290
  %v1587 = vsel %vm554, %v1580, %v1291
  %v1588 = vsel %vm554, %v1581, %v1292
  %v1589 = vsel %vm554, %v1582, %v1293
  %v1590 = vsel %vm506, %v1317, %v1347
  %v1591 = vsel %vm506, %v1318, %v1348
  %v1592 = vsel %vm506, %v1319, %v1349
  %v1593 = vsel %vm506, %v1320, %v1350
  %v1594 = vsel %vm506, %v1321, %v1351
  %v1595 = vsel %vm506, %v1322, %v1352
  %v1596 = vsel %vm506, %v1323, %v1353
  %v1597 = vsel %vm514, %v1590, %v1377
  %v1598 = vsel %vm514, %v1591, %v1378
  %v1599 = vsel %vm514, %v1592, %v1379
  %v1600 = vsel %vm514, %v1593, %v1380
  %v1601 = vsel %vm514, %v1594, %v1381
  %v1602 = vsel %vm514, %v1595, %v1382
  %v1603 = vsel %vm514, %v1596, %v1383
  %v1604 = vsel %vm522, %v1597, %v1407
  %v1605 = vsel %vm522, %v1598, %v1408
  %v1606 = vsel %vm522, %v1599, %v1409
  %v1607 = vsel %vm522, %v1600, %v1410
  %v1608 = vsel %vm522, %v1601, %v1411
  %v1609 = vsel %vm522, %v1602, %v1412
  %v1610 = vsel %vm522, %v1603, %v1413
  %v1611 = vsel %vm530, %v1604, %v1437
  %v1612 = vsel %vm530, %v1605, %v1438
  %v1613 = vsel %vm530, %v1606, %v1439
  %v1614 = vsel %vm530, %v1607, %v1440
  %v1615 = vsel %vm530, %v1608, %v1441
  %v1616 = vsel %vm530, %v1609, %v1442
  %v1617 = vsel %vm530, %v1610, %v1443
  %v1618 = vsel %vm538, %v1611, %v1467
  %v1619 = vsel %vm538, %v1612, %v1468
  %v1620 = vsel %vm538, %v1613, %v1469
  %v1621 = vsel %vm538, %v1614, %v1470
  %v1622 = vsel %vm538, %v1615, %v1471
  %v1623 = vsel %vm538, %v1616, %v1472
  %v1624 = vsel %vm538, %v1617, %v1473
  %v1625 = vsel %vm546, %v1618, %v1497
  %v1626 = vsel %vm546, %v1619, %v1498
  %v1627 = vsel %vm546, %v1620, %v1499
  %v1628 = vsel %vm546, %v1621, %v1500
  %v1629 = vsel %vm546, %v1622, %v1501
  %v1630 = vsel %vm546, %v1623, %v1502
  %v1631 = vsel %vm546, %v1624, %v1503
  %v1632 = vsel %vm554, %v1625, %v1527
  %v1633 = vsel %vm554, %v1626, %v1528
  %v1634 = vsel %vm554, %v1627, %v1529
  %v1635 = vsel %vm554, %v1628, %v1530
  %v1636 = vsel %vm554, %v1629, %v1531
  %v1637 = vsel %vm554, %v1630, %v1532
  %v1638 = vsel %vm554, %v1631, %v1533
  %1643 = vrot.lane.b32.xlu0 %v1077, 97
  %v1644 = vpop.permute.xlu0 %1643
  %1645 = vrot.lane.b32.xlu0 %v1078, 97
  %v1646 = vpop.permute.xlu0 %1645
  %1647 = vrot.lane.b32.xlu0 %v1079, 97
  %v1648 = vpop.permute.xlu0 %1647
  %1649 = vrot.lane.b32.xlu0 %v1080, 97
  %v1650 = vpop.permute.xlu0 %1649
  %1651 = vrot.lane.b32.xlu0 %v1081, 97
  %v1652 = vpop.permute.xlu0 %1651
  %1653 = vrot.lane.b32.xlu0 %v1082, 97
  %v1654 = vpop.permute.xlu0 %1653
  %1655 = vrot.lane.b32.xlu0 %v1090, 97
  %v1656 = vpop.permute.xlu0 %1655
  %v1657 = vsel %vm629, %v1644, %v1646
  %v1658 = vsel %vm629, %v1646, %v1648
  %v1659 = vsel %vm629, %v1648, %v1650
  %v1660 = vsel %vm629, %v1650, %v1652
  %v1661 = vsel %vm629, %v1652, %v1654
  %v1662 = vsel %vm629, %v1654, %v1656
  %v1672 = vperm.slane %v1073, 0
  %1673 = vrot.lane.b32.xlu0 %v1672, 96
  %v1674 = vpop.permute.xlu0 %1673
  %v1675 = vsel %vm181, %v1226, %v1674
  %1678 = vrot.lane.b32.xlu0 %v1672, 95
  %v1679 = vpop.permute.xlu0 %1678
  %v1680 = vsel %vm212, %v1256, %v1679
  %1683 = vrot.lane.b32.xlu0 %v1672, 94
  %v1684 = vpop.permute.xlu0 %1683
  %v1685 = vsel %vm243, %v1286, %v1684
  %1688 = vrot.lane.b32.xlu0 %v1672, 93
  %v1689 = vpop.permute.xlu0 %1688
  %v1690 = vsel %vm274, %v1316, %v1689
  %v1691 = vsel %vm506, %v1090, %v1106
  %v1692 = vsel %vm514, %v1691, %v1136
  %v1693 = vsel %vm522, %v1692, %v1166
  %v1694 = vsel %vm530, %v1555, %v1644
  %v1695 = vsel %vm530, %v1556, %v1657
  %v1696 = vsel %vm530, %v1557, %v1658
  %v1697 = vsel %vm530, %v1558, %v1659
  %v1698 = vsel %vm530, %v1559, %v1660
  %v1699 = vsel %vm530, %v1560, %v1661
  %v1700 = vsel %vm530, %v1561, %v1662
  %v1701 = vsel %vm530, %v1693, %v1656
  %v1702 = vsel %vm538, %v1694, %v1214
  %v1703 = vsel %vm538, %v1695, %v1228
  %v1704 = vsel %vm538, %v1696, %v1229
  %v1705 = vsel %vm538, %v1697, %v1230
  %v1706 = vsel %vm538, %v1698, %v1231
  %v1707 = vsel %vm538, %v1699, %v1232
  %v1708 = vsel %vm538, %v1700, %v1233
  %v1709 = vsel %vm538, %v1701, %v1675
  %v1710 = vsel %vm546, %v1702, %v1244
  %v1711 = vsel %vm546, %v1703, %v1258
  %v1712 = vsel %vm546, %v1704, %v1259
  %v1713 = vsel %vm546, %v1705, %v1260
  %v1714 = vsel %vm546, %v1706, %v1261
  %v1715 = vsel %vm546, %v1707, %v1262
  %v1716 = vsel %vm546, %v1708, %v1263
  %v1717 = vsel %vm546, %v1709, %v1680
  %v1718 = vsel %vm554, %v1710, %v1274
  %v1719 = vsel %vm554, %v1711, %v1288
  %v1720 = vsel %vm554, %v1712, %v1289
  %v1721 = vsel %vm554, %v1713, %v1290
  %v1722 = vsel %vm554, %v1714, %v1291
  %v1723 = vsel %vm554, %v1715, %v1292
  %v1724 = vsel %vm554, %v1716, %v1293
  %v1725 = vsel %vm554, %v1717, %v1685
  %1734 = vrot.lane.b32.xlu0 %v1718, 31
  %v1735 = vpop.permute.xlu0 %1734
  %1736 = vrot.lane.b32.xlu0 %v1719, 31
  %v1737 = vpop.permute.xlu0 %1736
  %1738 = vrot.lane.b32.xlu0 %v1720, 31
  %v1739 = vpop.permute.xlu0 %1738
  %1740 = vrot.lane.b32.xlu0 %v1721, 31
  %v1741 = vpop.permute.xlu0 %1740
  %1742 = vrot.lane.b32.xlu0 %v1722, 31
  %v1743 = vpop.permute.xlu0 %1742
  %1744 = vrot.lane.b32.xlu0 %v1723, 31
  %v1745 = vpop.permute.xlu0 %1744
  %1746 = vrot.lane.b32.xlu0 %v1724, 31
  %v1747 = vpop.permute.xlu0 %1746
  %1748 = vrot.lane.b32.xlu0 %v1725, 31
  %v1749 = vpop.permute.xlu0 %1748
  %1750 = vrot.lane.b32.xlu0 %v1304, 31
  %v1751 = vpop.permute.xlu0 %1750
  %1752 = vrot.lane.b32.xlu0 %v1318, 31
  %v1753 = vpop.permute.xlu0 %1752
  %1754 = vrot.lane.b32.xlu0 %v1319, 31
  %v1755 = vpop.permute.xlu0 %1754
  %1756 = vrot.lane.b32.xlu0 %v1320, 31
  %v1757 = vpop.permute.xlu0 %1756
  %1758 = vrot.lane.b32.xlu0 %v1321, 31
  %v1759 = vpop.permute.xlu0 %1758
  %1760 = vrot.lane.b32.xlu0 %v1322, 31
  %v1761 = vpop.permute.xlu0 %1760
  %1762 = vrot.lane.b32.xlu0 %v1323, 31
  %v1763 = vpop.permute.xlu0 %1762
  %1764 = vrot.lane.b32.xlu0 %v1690, 31
  %v1765 = vpop.permute.xlu0 %1764
  %v1766 = vsel %vm739, %v1735, %v1737
  %v1767 = vsel %vm739, %v1737, %v1739
  %v1768 = vsel %vm739, %v1739, %v1741
  %v1769 = vsel %vm739, %v1741, %v1743
  %v1770 = vsel %vm739, %v1743, %v1745
  %v1771 = vsel %vm739, %v1745, %v1747
  %v1772 = vsel %vm739, %v1747, %v1749
  %v1773 = vsel %vm739, %v1751, %v1753
  %v1774 = vsel %vm739, %v1753, %v1755
  %v1775 = vsel %vm739, %v1755, %v1757
  %v1776 = vsel %vm739, %v1757, %v1759
  %v1777 = vsel %vm739, %v1759, %v1761
  %v1778 = vsel %vm739, %v1761, %v1763
  %v1779 = vsel %vm739, %v1763, %v1765
  %v1794 = vpack.c.bf16 %v1632, %v1583
  %v1795 = vpack.c.bf16 %v1633, %v1584
  %v1796 = vpack.c.bf16 %v1634, %v1585
  %v1797 = vpack.c.bf16 %v1635, %v1586
  %v1798 = vpack.c.bf16 %v1636, %v1587
  %v1799 = vpack.c.bf16 %v1637, %v1588
  %v1800 = vpack.c.bf16 %v1638, %v1589
  %v1801 = vpack.c.bf16 %v1773, %v1766
  %v1802 = vpack.c.bf16 %v1774, %v1767
  %v1803 = vpack.c.bf16 %v1775, %v1768
  %v1804 = vpack.c.bf16 %v1776, %v1769
  %v1805 = vpack.c.bf16 %v1777, %v1770
  %v1806 = vpack.c.bf16 %v1778, %v1771
  %v1807 = vpack.c.bf16 %v1779, %v1772
  %v1809 = vand.u32 %v1801, %v802
  %v1812 = vand.u32 %v1802, %v802
  %v1815 = vand.u32 %v1803, %v802
  %v1818 = vand.u32 %v1804, %v802
  %v1821 = vand.u32 %v1805, %v802
  %v1824 = vand.u32 %v1806, %v802
  %v1827 = vand.u32 %v1807, %v802
  %1829 = vmatpush.bf16.msra.mxu0 0
  %1830 = vmatpush.bf16.msra.mxu0 0
  %1831 = vmatpush.bf16.msra.mxu0 0
  %1832 = vmatpush.bf16.msra.mxu0 0
  %1833 = vmatpush.bf16.msra.mxu0 0
  %1834 = vmatpush.bf16.msra.mxu0 0
  %1835 = vmatpush.bf16.msra.mxu0 %v1809
  %1836 = vmatpush.bf16.msra.mxu0 %v1794
  %1837 = vmatmul.bf16.gmra.mxu0 %v799
  %v1838 = vpop.f32.mrf.mxu0
  %v1839 = vadd.f32 %v785, %v1838
  %v1840 = vpop.f32.mrf.mxu0
  %v1841 = vadd.f32 %v790, %v1840
  %1842 = vdwg.mxu0
  %1843 = vmatpush.bf16.msra.mxu0 0
  %1844 = vmatpush.bf16.msra.mxu0 0
  %1845 = vmatpush.bf16.msra.mxu0 0
  %1846 = vmatpush.bf16.msra.mxu0 0
  %1847 = vmatpush.bf16.msra.mxu0 0
  %1848 = vmatpush.bf16.msra.mxu0 0
  %1849 = vmatpush.bf16.msra.mxu0 %v1812
  %1850 = vmatpush.bf16.msra.mxu0 %v1795
  %1851 = vmatmul.bf16.gmra.mxu0 %v799
  %v1852 = vpop.f32.mrf.mxu0
  %v1853 = vadd.f32 %v785, %v1852
  %v1854 = vpop.f32.mrf.mxu0
  %v1855 = vadd.f32 %v790, %v1854
  %1856 = vdwg.mxu0
  %1857 = vmatpush.bf16.msra.mxu0 0
  %1858 = vmatpush.bf16.msra.mxu0 0
  %1859 = vmatpush.bf16.msra.mxu0 0
  %1860 = vmatpush.bf16.msra.mxu0 0
  %1861 = vmatpush.bf16.msra.mxu0 0
  %1862 = vmatpush.bf16.msra.mxu0 0
  %1863 = vmatpush.bf16.msra.mxu0 %v1815
  %1864 = vmatpush.bf16.msra.mxu0 %v1796
  %1865 = vmatmul.bf16.gmra.mxu0 %v799
  %v1866 = vpop.f32.mrf.mxu0
  %v1867 = vadd.f32 %v785, %v1866
  %v1868 = vpop.f32.mrf.mxu0
  %v1869 = vadd.f32 %v790, %v1868
  %1870 = vdwg.mxu0
  %1871 = vmatpush.bf16.msra.mxu0 0
  %1872 = vmatpush.bf16.msra.mxu0 0
  %1873 = vmatpush.bf16.msra.mxu0 0
  %1874 = vmatpush.bf16.msra.mxu0 0
  %1875 = vmatpush.bf16.msra.mxu0 0
  %1876 = vmatpush.bf16.msra.mxu0 0
  %1877 = vmatpush.bf16.msra.mxu0 %v1818
  %1878 = vmatpush.bf16.msra.mxu0 %v1797
  %1879 = vmatmul.bf16.gmra.mxu0 %v799
  %v1880 = vpop.f32.mrf.mxu0
  %v1881 = vadd.f32 %v785, %v1880
  %v1882 = vpop.f32.mrf.mxu0
  %v1883 = vadd.f32 %v790, %v1882
  %1884 = vdwg.mxu0
  %1885 = vmatpush.bf16.msra.mxu0 0
  %1886 = vmatpush.bf16.msra.mxu0 0
  %1887 = vmatpush.bf16.msra.mxu0 0
  %1888 = vmatpush.bf16.msra.mxu0 0
  %1889 = vmatpush.bf16.msra.mxu0 0
  %1890 = vmatpush.bf16.msra.mxu0 0
  %1891 = vmatpush.bf16.msra.mxu0 %v1821
  %1892 = vmatpush.bf16.msra.mxu0 %v1798
  %1893 = vmatmul.bf16.gmra.mxu0 %v799
  %v1894 = vpop.f32.mrf.mxu0
  %v1895 = vadd.f32 %v785, %v1894
  %v1896 = vpop.f32.mrf.mxu0
  %v1897 = vadd.f32 %v790, %v1896
  %1898 = vdwg.mxu0
  %1899 = vmatpush.bf16.msra.mxu0 0
  %1900 = vmatpush.bf16.msra.mxu0 0
  %1901 = vmatpush.bf16.msra.mxu0 0
  %1902 = vmatpush.bf16.msra.mxu0 0
  %1903 = vmatpush.bf16.msra.mxu0 0
  %1904 = vmatpush.bf16.msra.mxu0 0
  %1905 = vmatpush.bf16.msra.mxu0 %v1824
  %1906 = vmatpush.bf16.msra.mxu0 %v1799
  %1907 = vmatmul.bf16.gmra.mxu0 %v799
  %v1908 = vpop.f32.mrf.mxu0
  %v1909 = vadd.f32 %v785, %v1908
  %v1910 = vpop.f32.mrf.mxu0
  %v1911 = vadd.f32 %v790, %v1910
  %1912 = vdwg.mxu0
  %1913 = vmatpush.bf16.msra.mxu0 0
  %1914 = vmatpush.bf16.msra.mxu0 0
  %1915 = vmatpush.bf16.msra.mxu0 0
  %1916 = vmatpush.bf16.msra.mxu0 0
  %1917 = vmatpush.bf16.msra.mxu0 0
  %1918 = vmatpush.bf16.msra.mxu0 0
  %1919 = vmatpush.bf16.msra.mxu0 %v1827
  %1920 = vmatpush.bf16.msra.mxu0 %v1800
  %1921 = vmatmul.bf16.gmra.mxu0 %v799
  %v1922 = vpop.f32.mrf.mxu0
  %v1923 = vadd.f32 %v785, %v1922
  %v1924 = vpop.f32.mrf.mxu0
  %v1925 = vadd.f32 %v790, %v1924
  %1926 = vdwg.mxu0
  %v1927 = vmax.f32 %v1839, 0.0
  %v1928 = vmax.f32 %v1853, 0.0
  %v1929 = vmax.f32 %v1867, 0.0
  %v1930 = vmax.f32 %v1881, 0.0
  %v1931 = vmax.f32 %v1895, 0.0
  %v1932 = vmax.f32 %v1909, 0.0
  %v1933 = vmax.f32 %v1923, 0.0
  %v1934 = vmax.f32 %v1841, 0.0
  %v1935 = vmax.f32 %v1855, 0.0
  %v1936 = vmax.f32 %v1869, 0.0
  %v1937 = vmax.f32 %v1883, 0.0
  %v1938 = vmax.f32 %v1897, 0.0
  %v1939 = vmax.f32 %v1911, 0.0
  %v1940 = vmax.f32 %v1925, 0.0
  %1941 = vrot.lane.b32.xlu0 %v1927, 127
  %v1942 = vpop.permute.xlu0 %1941
  %1943 = vrot.lane.b32.xlu0 %v1934, 127
  %v1944 = vpop.permute.xlu0 %1943
  %1945 = vrot.lane.b32.xlu0 %v1928, 127
  %v1946 = vpop.permute.xlu0 %1945
  %1947 = vrot.lane.b32.xlu0 %v1935, 127
  %v1948 = vpop.permute.xlu0 %1947
  %1949 = vrot.lane.b32.xlu0 %v1929, 127
  %v1950 = vpop.permute.xlu0 %1949
  %1951 = vrot.lane.b32.xlu0 %v1936, 127
  %v1952 = vpop.permute.xlu0 %1951
  %1953 = vrot.lane.b32.xlu0 %v1930, 127
  %v1954 = vpop.permute.xlu0 %1953
  %1955 = vrot.lane.b32.xlu0 %v1937, 127
  %v1956 = vpop.permute.xlu0 %1955
  %1957 = vrot.lane.b32.xlu0 %v1931, 127
  %v1958 = vpop.permute.xlu0 %1957
  %1959 = vrot.lane.b32.xlu0 %v1938, 127
  %v1960 = vpop.permute.xlu0 %1959
  %1961 = vrot.lane.b32.xlu0 %v1932, 127
  %v1962 = vpop.permute.xlu0 %1961
  %1963 = vrot.lane.b32.xlu0 %v1939, 127
  %v1964 = vpop.permute.xlu0 %1963
  %1965 = vrot.lane.b32.xlu0 %v1933, 127
  %v1966 = vpop.permute.xlu0 %1965
  %1967 = vrot.lane.b32.xlu0 %v1940, 127
  %v1968 = vpop.permute.xlu0 %1967
  %v1969 = vsel %vm966, %v1962, %v1966
  %v1970 = vsel %vm966, %v1964, %v1968
  %v1971 = vsel %vm966, %v1958, %v1962
  %v1972 = vsel %vm966, %v1960, %v1964
  %v1973 = vsel %vm966, %v1954, %v1958
  %v1974 = vsel %vm966, %v1956, %v1960
  %v1975 = vsel %vm966, %v1950, %v1954
  %v1976 = vsel %vm966, %v1952, %v1956
  %v1977 = vsel %vm966, %v1946, %v1950
  %v1978 = vsel %vm966, %v1948, %v1952
  %v1979 = vsel %vm966, %v1942, %v1946
  %v1980 = vsel %vm966, %v1944, %v1948
  %v1981 = vsel %vm966, %v1966, %v1942
  %v1982 = vsel %vm966, %v1968, %v1944
  %v1983 = vmax.f32 %v1927, %v1979
  %v1984 = vmax.f32 %v1928, %v1977
  %v1985 = vmax.f32 %v1929, %v1975
  %v1986 = vmax.f32 %v1930, %v1973
  %v1987 = vmax.f32 %v1931, %v1971
  %v1988 = vmax.f32 %v1932, %v1969
  %v1989 = vmax.f32 %v1933, %v1981
  %v1990 = vmax.f32 %v1934, %v1980
  %v1991 = vmax.f32 %v1935, %v1978
  %v1992 = vmax.f32 %v1936, %v1976
  %v1993 = vmax.f32 %v1937, %v1974
  %v1994 = vmax.f32 %v1938, %v1972
  %v1995 = vmax.f32 %v1939, %v1970
  %v1996 = vmax.f32 %v1940, %v1982
  %1997 = vrot.lane.b32.xlu0 %v1983, 96
  %v1998 = vpop.permute.xlu0 %1997
  %1999 = vrot.lane.b32.xlu0 %v1990, 96
  %v2000 = vpop.permute.xlu0 %1999
  %2001 = vrot.lane.b32.xlu0 %v1984, 96
  %v2002 = vpop.permute.xlu0 %2001
  %2003 = vrot.lane.b32.xlu0 %v1991, 96
  %v2004 = vpop.permute.xlu0 %2003
  %2005 = vrot.lane.b32.xlu0 %v1985, 96
  %v2006 = vpop.permute.xlu0 %2005
  %2007 = vrot.lane.b32.xlu0 %v1992, 96
  %v2008 = vpop.permute.xlu0 %2007
  %2009 = vrot.lane.b32.xlu0 %v1986, 96
  %v2010 = vpop.permute.xlu0 %2009
  %2011 = vrot.lane.b32.xlu0 %v1993, 96
  %v2012 = vpop.permute.xlu0 %2011
  %2013 = vrot.lane.b32.xlu0 %v1987, 96
  %v2014 = vpop.permute.xlu0 %2013
  %2015 = vrot.lane.b32.xlu0 %v1994, 96
  %v2016 = vpop.permute.xlu0 %2015
  %2017 = vrot.lane.b32.xlu0 %v1988, 96
  %v2018 = vpop.permute.xlu0 %2017
  %2019 = vrot.lane.b32.xlu0 %v1995, 96
  %v2020 = vpop.permute.xlu0 %2019
  %2021 = vrot.lane.b32.xlu0 %v1989, 96
  %v2022 = vpop.permute.xlu0 %2021
  %2023 = vrot.lane.b32.xlu0 %v1996, 96
  %v2024 = vpop.permute.xlu0 %2023
  %v2025 = vsel %vm1023, %v2018, %v2022
  %v2026 = vsel %vm1023, %v2020, %v2024
  %v2027 = vsel %vm1023, %v2014, %v2018
  %v2028 = vsel %vm1023, %v2016, %v2020
  %v2029 = vsel %vm1023, %v2010, %v2014
  %v2030 = vsel %vm1023, %v2012, %v2016
  %v2031 = vsel %vm1023, %v2006, %v2010
  %v2032 = vsel %vm1023, %v2008, %v2012
  %v2033 = vsel %vm1023, %v2002, %v2006
  %v2034 = vsel %vm1023, %v2004, %v2008
  %v2035 = vsel %vm1023, %v1998, %v2002
  %v2036 = vsel %vm1023, %v2000, %v2004
  %v2037 = vsel %vm1023, %v2022, %v1998
  %v2038 = vsel %vm1023, %v2024, %v2000
  %v2039 = vmax.f32 %v1983, %v2035
  %v2040 = vmax.f32 %v1984, %v2033
  %v2041 = vmax.f32 %v1985, %v2031
  %v2042 = vmax.f32 %v1986, %v2029
  %v2043 = vmax.f32 %v1987, %v2027
  %v2044 = vmax.f32 %v1988, %v2025
  %v2045 = vmax.f32 %v1989, %v2037
  %v2046 = vmax.f32 %v1990, %v2036
  %v2047 = vmax.f32 %v1991, %v2034
  %v2048 = vmax.f32 %v1992, %v2032
  %v2049 = vmax.f32 %v1993, %v2030
  %v2050 = vmax.f32 %v1994, %v2028
  %v2051 = vmax.f32 %v1995, %v2026
  %v2052 = vmax.f32 %v1996, %v2038
  %v2053 = vpack.c.bf16 %v2040, %v2039
  %v2054 = vpack.c.bf16 %v2042, %v2041
  %v2055 = vpack.c.bf16 %v2044, %v2043
  %v2056 = vpack.c.bf16 %v2045, %v2045
  %v2057 = vpack.c.bf16 %v2047, %v2046
  %v2058 = vpack.c.bf16 %v2049, %v2048
  %v2059 = vpack.c.bf16 %v2051, %v2050
  %v2060 = vpack.c.bf16 %v2052, %v2052
  %s2061 = scalar_lea.vmem %s3, 56
  %2062 = vst [vmem:[%s2061] sm:$0xff] %v2053
  %2063 = vst [vmem:[%s2061 + $0x8] sm:$0xff] %v2054
  %2064 = vst [vmem:[%s2061 + $0x10] sm:$0xff] %v2055
  %2065 = vst [vmem:[%s2061 + $0x18] sm:$0xf] %v2056
  %2066 = vst [vmem:[%s2061 + $0x1c] sm:$0xff] %v2057
  %2067 = vst [vmem:[%s2061 + $0x24] sm:$0xff] %v2058
  %2068 = vst [vmem:[%s2061 + $0x2c] sm:$0xff] %v2059
  %2069 = vst [vmem:[%s2061 + $0x34] sm:$0xf] %v2060
  // Predicated region
  $region14: #{cnn_forward.3} parent=0 // pred_check
    _
  $region15: #{cnn_forward.3} parent=0 // pred_check_branch
    %2071 = sbr.rel (0) target = $region17
  $region16: #{cnn_forward.3} parent=0 // pred_region
    _
  $region17: #{cnn_forward.3} parent=0 // pred_fallthru
    _
  // Predicated region
  $region18: #{cnn_forward.3} parent=0 // pred_check
    _
  $region19: #{cnn_forward.3} parent=0 // pred_check_branch
    %2073 = sbr.rel (0) target = $region21
  $region20: #{cnn_forward.3} parent=0 // pred_region
    _
  $region21: #{cnn_forward.3} parent=0 // pred_fallthru
    _

// kernel: cnn_forward.4
$region0: #{cnn_forward.4}
  #allocation0 [shape = 'u32[]', space=smem, size = 0x4, offset = 0x4, fixed_abs, tag = 'smem constant byte address 0x4 - core index']
  #allocation1 [shape = 'u32[72,128]{1,0:T(1,128)}', space=vmem, size = 0x9000, scoped, tag = 'internal scratch']
  #allocation2 [shape = 'bf16[400,1024]{1,0:T(8,128)(2,1)}', space=vmem, size = 0xc8000, scoped, tag = 'scratch operand']
  %s0 = inlined_call_operand.vmem [shape: bf16[2,16,768], index: 0, kind: input, shape index: {}]
  %s1 = inlined_call_operand.vmem [shape: bf16[32,400], index: 1, kind: input, shape index: {}]
  %s2 = inlined_call_operand.vmem [shape: f32[32,1], index: 2, kind: input, shape index: {}]
  %s3 = inlined_call_operand.vmem [shape: bf16[2,32,512], index: 3, kind: output, shape index: {}]
  %s4 = sld [smem:[#allocation0]]
  $region22: #{cnn_forward.4} parent=0
    _
  %s6 = ssub.s32 1, %s4
  %s7 = scalar_select 0, %s6, %s4
  // Predicated region
  $region2: #{cnn_forward.4} parent=0 // pred_check
    _
  $region3: #{cnn_forward.4} parent=0 // pred_check_branch
    %9 = sbr.rel (0) target = $region5
  $region4: #{cnn_forward.4} parent=0 // pred_region
    _
  $region5: #{cnn_forward.4} parent=0 // pred_fallthru
    _
  // Predicated region
  $region6: #{cnn_forward.4} parent=0 // pred_check
    _
  $region7: #{cnn_forward.4} parent=0 // pred_check_branch
    %11 = sbr.rel (0) target = $region9
  $region8: #{cnn_forward.4} parent=0 // pred_region
    _
  $region9: #{cnn_forward.4} parent=0 // pred_fallthru
    _
  // Predicated region
  $region10: #{cnn_forward.4} parent=0 // pred_check
    _
  $region11: #{cnn_forward.4} parent=0 // pred_check_branch
    %13 = sbr.rel (0) target = $region13
  $region12: #{cnn_forward.4} parent=0 // pred_region
    _
  $region13: #{cnn_forward.4} parent=0 // pred_fallthru
    _
  %v15 = vld [vmem:[%s0] sm:$0xff]
  %v16 = vld [vmem:[%s0 + $0x8] sm:$0xff]
  %v17 = vld [vmem:[%s0 + $0x10] sm:$0xff]
  %v18 = vld [vmem:[%s0 + $0x18] sm:$0xff]
  %v19 = vld [vmem:[%s0 + $0x20] sm:$0xff]
  %v20 = vld [vmem:[%s0 + $0x28] sm:$0xff]
  %21 = vst [vmem:[#allocation2] sm:$0xff] %v15
  %22 = vst [vmem:[#allocation2 + $0x8] sm:$0xff] %v16
  %23 = vst [vmem:[#allocation2 + $0x20] sm:$0xff] %v18
  %24 = vst [vmem:[#allocation2 + $0x28] sm:$0xff] %v19
  %31 = vrot.lane.b32.xlu0 %v15, 127
  %v32 = vpop.permute.xlu0 %31
  %33 = vrot.lane.b32.xlu0 %v16, 127
  %v34 = vpop.permute.xlu0 %33
  %35 = vrot.lane.b32.xlu0 %v17, 127
  %v36 = vpop.permute.xlu0 %35
  %37 = vrot.lane.b32.xlu0 %v18, 127
  %v38 = vpop.permute.xlu0 %37
  %39 = vrot.lane.b32.xlu0 %v19, 127
  %v40 = vpop.permute.xlu0 %39
  %41 = vrot.lane.b32.xlu0 %v20, 127
  %v42 = vpop.permute.xlu0 %41
  %v43 = vrot.slane %v32, 4
  %v44 = vrot.slane %v34, 4
  %v45 = vrot.slane %v36, 4
  %v46 = vrot.slane %v38, 4
  %v47 = vrot.slane %v40, 4
  %v48 = vrot.slane %v42, 4
  %vm49 = vcmask 1043456
  %v50 = vsel %vm49, %v43, %v44
  %vm51 = vcmask 1039360
  %v52 = vsel %vm51, %v32, %v50
  %v53 = vsel %vm49, %v44, %v45
  %v54 = vsel %vm51, %v34, %v53
  %v55 = vsel %vm49, %v46, %v47
  %v56 = vsel %vm51, %v38, %v55
  %v57 = vsel %vm49, %v47, %v48
  %v58 = vsel %vm51, %v40, %v57
  %63 = vst [vmem:[#allocation2 + $0x40] sm:$0xff] %v52
  %64 = vst [vmem:[#allocation2 + $0x48] sm:$0xff] %v54
  %65 = vst [vmem:[#allocation2 + $0x60] sm:$0xff] %v56
  %66 = vst [vmem:[#allocation2 + $0x68] sm:$0xff] %v58
  %67 = vrot.lane.b32.xlu0 %v15, 126
  %v68 = vpop.permute.xlu0 %67
  %69 = vrot.lane.b32.xlu0 %v16, 126
  %v70 = vpop.permute.xlu0 %69
  %71 = vrot.lane.b32.xlu0 %v17, 126
  %v72 = vpop.permute.xlu0 %71
  %73 = vrot.lane.b32.xlu0 %v18, 126
  %v74 = vpop.permute.xlu0 %73
  %75 = vrot.lane.b32.xlu0 %v19, 126
  %v76 = vpop.permute.xlu0 %75
  %77 = vrot.lane.b32.xlu0 %v20, 126
  %v78 = vpop.permute.xlu0 %77
  %v79 = vrot.slane %v68, 4
  %v80 = vrot.slane %v70, 4
  %v81 = vrot.slane %v72, 4
  %v82 = vrot.slane %v74, 4
  %v83 = vrot.slane %v76, 4
  %v84 = vrot.slane %v78, 4
  %v85 = vsel %vm49, %v79, %v80
  %vm86 = vcmask 1031168
  %v87 = vsel %vm86, %v68, %v85
  %v88 = vsel %vm49, %v80, %v81
  %v89 = vsel %vm86, %v70, %v88
  %v90 = vsel %vm49, %v82, %v83
  %v91 = vsel %vm86, %v74, %v90
  %v92 = vsel %vm49, %v83, %v84
  %v93 = vsel %vm86, %v76, %v92
  %98 = vst [vmem:[#allocation2 + $0x80] sm:$0xff] %v87
  %99 = vst [vmem:[#allocation2 + $0x88] sm:$0xff] %v89
  %100 = vst [vmem:[#allocation2 + $0xa0] sm:$0xff] %v91
  %101 = vst [vmem:[#allocation2 + $0xa8] sm:$0xff] %v93
  %102 = vrot.lane.b32.xlu0 %v15, 125
  %v103 = vpop.permute.xlu0 %102
  %104 = vrot.lane.b32.xlu0 %v16, 125
  %v105 = vpop.permute.xlu0 %104
  %106 = vrot.lane.b32.xlu0 %v17, 125
  %v107 = vpop.permute.xlu0 %106
  %108 = vrot.lane.b32.xlu0 %v18, 125
  %v109 = vpop.permute.xlu0 %108
  %110 = vrot.lane.b32.xlu0 %v19, 125
  %v111 = vpop.permute.xlu0 %110
  %112 = vrot.lane.b32.xlu0 %v20, 125
  %v113 = vpop.permute.xlu0 %112
  %v114 = vrot.slane %v103, 4
  %v115 = vrot.slane %v105, 4
  %v116 = vrot.slane %v107, 4
  %v117 = vrot.slane %v109, 4
  %v118 = vrot.slane %v111, 4
  %v119 = vrot.slane %v113, 4
  %v120 = vsel %vm49, %v114, %v115
  %vm121 = vcmask 1022976
  %v122 = vsel %vm121, %v103, %v120
  %v123 = vsel %vm49, %v115, %v116
  %v124 = vsel %vm121, %v105, %v123
  %v125 = vsel %vm49, %v117, %v118
  %v126 = vsel %vm121, %v109, %v125
  %v127 = vsel %vm49, %v118, %v119
  %v128 = vsel %vm121, %v111, %v127
  %133 = vst [vmem:[#allocation2 + $0xc0] sm:$0xff] %v122
  %134 = vst [vmem:[#allocation2 + $0xc8] sm:$0xff] %v124
  %135 = vst [vmem:[#allocation2 + $0xe0] sm:$0xff] %v126
  %136 = vst [vmem:[#allocation2 + $0xe8] sm:$0xff] %v128
  %137 = vrot.lane.b32.xlu0 %v15, 124
  %v138 = vpop.permute.xlu0 %137
  %139 = vrot.lane.b32.xlu0 %v16, 124
  %v140 = vpop.permute.xlu0 %139
  %141 = vrot.lane.b32.xlu0 %v17, 124
  %v142 = vpop.permute.xlu0 %141
  %143 = vrot.lane.b32.xlu0 %v18, 124
  %v144 = vpop.permute.xlu0 %143
  %145 = vrot.lane.b32.xlu0 %v19, 124
  %v146 = vpop.permute.xlu0 %145
  %147 = vrot.lane.b32.xlu0 %v20, 124
  %v148 = vpop.permute.xlu0 %147
  %v149 = vrot.slane %v138, 4
  %v150 = vrot.slane %v140, 4
  %v151 = vrot.slane %v142, 4
  %v152 = vrot.slane %v144, 4
  %v153 = vrot.slane %v146, 4
  %v154 = vrot.slane %v148, 4
  %v155 = vsel %vm49, %v149, %v150
  %vm156 = vcmask 1014784
  %v157 = vsel %vm156, %v138, %v155
  %v158 = vsel %vm49, %v150, %v151
  %v159 = vsel %vm156, %v140, %v158
  %v160 = vsel %vm49, %v152, %v153
  %v161 = vsel %vm156, %v144, %v160
  %v162 = vsel %vm49, %v153, %v154
  %v163 = vsel %vm156, %v146, %v162
  %168 = vst [vmem:[#allocation2 + $0x100] sm:$0xff] %v157
  %169 = vst [vmem:[#allocation2 + $0x108] sm:$0xff] %v159
  %170 = vst [vmem:[#allocation2 + $0x120] sm:$0xff] %v161
  %171 = vst [vmem:[#allocation2 + $0x128] sm:$0xff] %v163
  %172 = vrot.lane.b32.xlu0 %v15, 96
  %v173 = vpop.permute.xlu0 %172
  %174 = vrot.lane.b32.xlu0 %v16, 96
  %v175 = vpop.permute.xlu0 %174
  %176 = vrot.lane.b32.xlu0 %v17, 96
  %v177 = vpop.permute.xlu0 %176
  %178 = vrot.lane.b32.xlu0 %v18, 96
  %v179 = vpop.permute.xlu0 %178
  %180 = vrot.lane.b32.xlu0 %v19, 96
  %v181 = vpop.permute.xlu0 %180
  %182 = vrot.lane.b32.xlu0 %v20, 96
  %v183 = vpop.permute.xlu0 %182
  %v184 = vrot.slane %v173, 4
  %v185 = vrot.slane %v175, 4
  %v186 = vrot.slane %v177, 4
  %v187 = vrot.slane %v179, 4
  %v188 = vrot.slane %v181, 4
  %v189 = vrot.slane %v183, 4
  %v190 = vsel %vm49, %v184, %v185
  %vm191 = vcmask 785408
  %v192 = vsel %vm191, %v173, %v190
  %v193 = vsel %vm49, %v185, %v186
  %v194 = vsel %vm191, %v175, %v193
  %v195 = vsel %vm49, %v187, %v188
  %v196 = vsel %vm191, %v179, %v195
  %v197 = vsel %vm49, %v188, %v189
  %v198 = vsel %vm191, %v181, %v197
  %203 = vst [vmem:[#allocation2 + $0x140] sm:$0xff] %v192
  %204 = vst [vmem:[#allocation2 + $0x148] sm:$0xff] %v194
  %205 = vst [vmem:[#allocation2 + $0x160] sm:$0xff] %v196
  %206 = vst [vmem:[#allocation2 + $0x168] sm:$0xff] %v198
  %207 = vrot.lane.b32.xlu0 %v15, 95
  %v208 = vpop.permute.xlu0 %207
  %209 = vrot.lane.b32.xlu0 %v16, 95
  %v210 = vpop.permute.xlu0 %209
  %211 = vrot.lane.b32.xlu0 %v17, 95
  %v212 = vpop.permute.xlu0 %211
  %213 = vrot.lane.b32.xlu0 %v18, 95
  %v214 = vpop.permute.xlu0 %213
  %215 = vrot.lane.b32.xlu0 %v19, 95
  %v216 = vpop.permute.xlu0 %215
  %217 = vrot.lane.b32.xlu0 %v20, 95
  %v218 = vpop.permute.xlu0 %217
  %v219 = vrot.slane %v208, 4
  %v220 = vrot.slane %v210, 4
  %v221 = vrot.slane %v212, 4
  %v222 = vrot.slane %v214, 4
  %v223 = vrot.slane %v216, 4
  %v224 = vrot.slane %v218, 4
  %v225 = vsel %vm49, %v219, %v220
  %vm226 = vcmask 777216
  %v227 = vsel %vm226, %v208, %v225
  %v228 = vsel %vm49, %v220, %v221
  %v229 = vsel %vm226, %v210, %v228
  %v230 = vsel %vm49, %v222, %v223
  %v231 = vsel %vm226, %v214, %v230
  %v232 = vsel %vm49, %v223, %v224
  %v233 = vsel %vm226, %v216, %v232
  %238 = vst [vmem:[#allocation2 + $0x180] sm:$0xff] %v227
  %239 = vst [vmem:[#allocation2 + $0x188] sm:$0xff] %v229
  %240 = vst [vmem:[#allocation2 + $0x1a0] sm:$0xff] %v231
  %241 = vst [vmem:[#allocation2 + $0x1a8] sm:$0xff] %v233
  %242 = vrot.lane.b32.xlu0 %v15, 94
  %v243 = vpop.permute.xlu0 %242
  %244 = vrot.lane.b32.xlu0 %v16, 94
  %v245 = vpop.permute.xlu0 %244
  %246 = vrot.lane.b32.xlu0 %v17, 94
  %v247 = vpop.permute.xlu0 %246
  %248 = vrot.lane.b32.xlu0 %v18, 94
  %v249 = vpop.permute.xlu0 %248
  %250 = vrot.lane.b32.xlu0 %v19, 94
  %v251 = vpop.permute.xlu0 %250
  %252 = vrot.lane.b32.xlu0 %v20, 94
  %v253 = vpop.permute.xlu0 %252
  %v254 = vrot.slane %v243, 4
  %v255 = vrot.slane %v245, 4
  %v256 = vrot.slane %v247, 4
  %v257 = vrot.slane %v249, 4
  %v258 = vrot.slane %v251, 4
  %v259 = vrot.slane %v253, 4
  %v260 = vsel %vm49, %v254, %v255
  %vm261 = vcmask 769024
  %v262 = vsel %vm261, %v243, %v260
  %v263 = vsel %vm49, %v255, %v256
  %v264 = vsel %vm261, %v245, %v263
  %v265 = vsel %vm49, %v257, %v258
  %v266 = vsel %vm261, %v249, %v265
  %v267 = vsel %vm49, %v258, %v259
  %v268 = vsel %vm261, %v251, %v267
  %273 = vst [vmem:[#allocation2 + $0x1c0] sm:$0xff] %v262
  %274 = vst [vmem:[#allocation2 + $0x1c8] sm:$0xff] %v264
  %275 = vst [vmem:[#allocation2 + $0x1e0] sm:$0xff] %v266
  %276 = vst [vmem:[#allocation2 + $0x1e8] sm:$0xff] %v268
  %277 = vrot.lane.b32.xlu0 %v15, 93
  %v278 = vpop.permute.xlu0 %277
  %279 = vrot.lane.b32.xlu0 %v16, 93
  %v280 = vpop.permute.xlu0 %279
  %281 = vrot.lane.b32.xlu0 %v17, 93
  %v282 = vpop.permute.xlu0 %281
  %283 = vrot.lane.b32.xlu0 %v18, 93
  %v284 = vpop.permute.xlu0 %283
  %285 = vrot.lane.b32.xlu0 %v19, 93
  %v286 = vpop.permute.xlu0 %285
  %287 = vrot.lane.b32.xlu0 %v20, 93
  %v288 = vpop.permute.xlu0 %287
  %v289 = vrot.slane %v278, 4
  %v290 = vrot.slane %v280, 4
  %v291 = vrot.slane %v282, 4
  %v292 = vrot.slane %v284, 4
  %v293 = vrot.slane %v286, 4
  %v294 = vrot.slane %v288, 4
  %v295 = vsel %vm49, %v289, %v290
  %vm296 = vcmask 760832
  %v297 = vsel %vm296, %v278, %v295
  %v298 = vsel %vm49, %v290, %v291
  %v299 = vsel %vm296, %v280, %v298
  %v300 = vsel %vm49, %v292, %v293
  %v301 = vsel %vm296, %v284, %v300
  %v302 = vsel %vm49, %v293, %v294
  %v303 = vsel %vm296, %v286, %v302
  %308 = vst [vmem:[#allocation2 + $0x200] sm:$0xff] %v297
  %309 = vst [vmem:[#allocation2 + $0x208] sm:$0xff] %v299
  %310 = vst [vmem:[#allocation2 + $0x220] sm:$0xff] %v301
  %311 = vst [vmem:[#allocation2 + $0x228] sm:$0xff] %v303
  %312 = vrot.lane.b32.xlu0 %v15, 92
  %v313 = vpop.permute.xlu0 %312
  %314 = vrot.lane.b32.xlu0 %v16, 92
  %v315 = vpop.permute.xlu0 %314
  %316 = vrot.lane.b32.xlu0 %v17, 92
  %v317 = vpop.permute.xlu0 %316
  %318 = vrot.lane.b32.xlu0 %v18, 92
  %v319 = vpop.permute.xlu0 %318
  %320 = vrot.lane.b32.xlu0 %v19, 92
  %v321 = vpop.permute.xlu0 %320
  %322 = vrot.lane.b32.xlu0 %v20, 92
  %v323 = vpop.permute.xlu0 %322
  %v324 = vrot.slane %v313, 4
  %v325 = vrot.slane %v315, 4
  %v326 = vrot.slane %v317, 4
  %v327 = vrot.slane %v319, 4
  %v328 = vrot.slane %v321, 4
  %v329 = vrot.slane %v323, 4
  %v330 = vsel %vm49, %v324, %v325
  %vm331 = vcmask 752640
  %v332 = vsel %vm331, %v313, %v330
  %v333 = vsel %vm49, %v325, %v326
  %v334 = vsel %vm331, %v315, %v333
  %v335 = vsel %vm49, %v327, %v328
  %v336 = vsel %vm331, %v319, %v335
  %v337 = vsel %vm49, %v328, %v329
  %v338 = vsel %vm331, %v321, %v337
  %343 = vst [vmem:[#allocation2 + $0x240] sm:$0xff] %v332
  %344 = vst [vmem:[#allocation2 + $0x248] sm:$0xff] %v334
  %345 = vst [vmem:[#allocation2 + $0x260] sm:$0xff] %v336
  %346 = vst [vmem:[#allocation2 + $0x268] sm:$0xff] %v338
  %347 = vrot.lane.b32.xlu0 %v15, 64
  %v348 = vpop.permute.xlu0 %347
  %349 = vrot.lane.b32.xlu0 %v16, 64
  %v350 = vpop.permute.xlu0 %349
  %351 = vrot.lane.b32.xlu0 %v17, 64
  %v352 = vpop.permute.xlu0 %351
  %353 = vrot.lane.b32.xlu0 %v18, 64
  %v354 = vpop.permute.xlu0 %353
  %355 = vrot.lane.b32.xlu0 %v19, 64
  %v356 = vpop.permute.xlu0 %355
  %357 = vrot.lane.b32.xlu0 %v20, 64
  %v358 = vpop.permute.xlu0 %357
  %v359 = vrot.slane %v348, 4
  %v360 = vrot.slane %v350, 4
  %v361 = vrot.slane %v352, 4
  %v362 = vrot.slane %v354, 4
  %v363 = vrot.slane %v356, 4
  %v364 = vrot.slane %v358, 4
  %v365 = vsel %vm49, %v359, %v360
  %vm366 = vcmask 523264
  %v367 = vsel %vm366, %v348, %v365
  %v368 = vsel %vm49, %v360, %v361
  %v369 = vsel %vm366, %v350, %v368
  %v370 = vsel %vm49, %v362, %v363
  %v371 = vsel %vm366, %v354, %v370
  %v372 = vsel %vm49, %v363, %v364
  %v373 = vsel %vm366, %v356, %v372
  %378 = vst [vmem:[#allocation2 + $0x280] sm:$0xff] %v367
  %379 = vst [vmem:[#allocation2 + $0x288] sm:$0xff] %v369
  %380 = vst [vmem:[#allocation2 + $0x2a0] sm:$0xff] %v371
  %381 = vst [vmem:[#allocation2 + $0x2a8] sm:$0xff] %v373
  %382 = vrot.lane.b32.xlu0 %v15, 63
  %v383 = vpop.permute.xlu0 %382
  %384 = vrot.lane.b32.xlu0 %v16, 63
  %v385 = vpop.permute.xlu0 %384
  %386 = vrot.lane.b32.xlu0 %v17, 63
  %v387 = vpop.permute.xlu0 %386
  %388 = vrot.lane.b32.xlu0 %v18, 63
  %v389 = vpop.permute.xlu0 %388
  %390 = vrot.lane.b32.xlu0 %v19, 63
  %v391 = vpop.permute.xlu0 %390
  %392 = vrot.lane.b32.xlu0 %v20, 63
  %v393 = vpop.permute.xlu0 %392
  %v394 = vrot.slane %v383, 4
  %v395 = vrot.slane %v385, 4
  %v396 = vrot.slane %v387, 4
  %v397 = vrot.slane %v389, 4
  %v398 = vrot.slane %v391, 4
  %v399 = vrot.slane %v393, 4
  %v400 = vsel %vm49, %v394, %v395
  %vm401 = vcmask 515072
  %v402 = vsel %vm401, %v383, %v400
  %v403 = vsel %vm49, %v395, %v396
  %v404 = vsel %vm401, %v385, %v403
  %v405 = vsel %vm49, %v397, %v398
  %v406 = vsel %vm401, %v389, %v405
  %v407 = vsel %vm49, %v398, %v399
  %v408 = vsel %vm401, %v391, %v407
  %413 = vst [vmem:[#allocation2 + $0x2c0] sm:$0xff] %v402
  %414 = vst [vmem:[#allocation2 + $0x2c8] sm:$0xff] %v404
  %415 = vst [vmem:[#allocation2 + $0x2e0] sm:$0xff] %v406
  %416 = vst [vmem:[#allocation2 + $0x2e8] sm:$0xff] %v408
  %417 = vrot.lane.b32.xlu0 %v15, 62
  %v418 = vpop.permute.xlu0 %417
  %419 = vrot.lane.b32.xlu0 %v16, 62
  %v420 = vpop.permute.xlu0 %419
  %421 = vrot.lane.b32.xlu0 %v17, 62
  %v422 = vpop.permute.xlu0 %421
  %423 = vrot.lane.b32.xlu0 %v18, 62
  %v424 = vpop.permute.xlu0 %423
  %425 = vrot.lane.b32.xlu0 %v19, 62
  %v426 = vpop.permute.xlu0 %425
  %427 = vrot.lane.b32.xlu0 %v20, 62
  %v428 = vpop.permute.xlu0 %427
  %v429 = vrot.slane %v418, 4
  %v430 = vrot.slane %v420, 4
  %v431 = vrot.slane %v422, 4
  %v432 = vrot.slane %v424, 4
  %v433 = vrot.slane %v426, 4
  %v434 = vrot.slane %v428, 4
  %v435 = vsel %vm49, %v429, %v430
  %vm436 = vcmask 506880
  %v437 = vsel %vm436, %v418, %v435
  %v438 = vsel %vm49, %v430, %v431
  %v439 = vsel %vm436, %v420, %v438
  %v440 = vsel %vm49, %v432, %v433
  %v441 = vsel %vm436, %v424, %v440
  %v442 = vsel %vm49, %v433, %v434
  %v443 = vsel %vm436, %v426, %v442
  %448 = vst [vmem:[#allocation2 + $0x300] sm:$0xff] %v437
  %449 = vst [vmem:[#allocation2 + $0x308] sm:$0xff] %v439
  %450 = vst [vmem:[#allocation2 + $0x320] sm:$0xff] %v441
  %451 = vst [vmem:[#allocation2 + $0x328] sm:$0xff] %v443
  %452 = vrot.lane.b32.xlu0 %v15, 61
  %v453 = vpop.permute.xlu0 %452
  %454 = vrot.lane.b32.xlu0 %v16, 61
  %v455 = vpop.permute.xlu0 %454
  %456 = vrot.lane.b32.xlu0 %v17, 61
  %v457 = vpop.permute.xlu0 %456
  %458 = vrot.lane.b32.xlu0 %v18, 61
  %v459 = vpop.permute.xlu0 %458
  %460 = vrot.lane.b32.xlu0 %v19, 61
  %v461 = vpop.permute.xlu0 %460
  %462 = vrot.lane.b32.xlu0 %v20, 61
  %v463 = vpop.permute.xlu0 %462
  %v464 = vrot.slane %v453, 4
  %v465 = vrot.slane %v455, 4
  %v466 = vrot.slane %v457, 4
  %v467 = vrot.slane %v459, 4
  %v468 = vrot.slane %v461, 4
  %v469 = vrot.slane %v463, 4
  %v470 = vsel %vm49, %v464, %v465
  %vm471 = vcmask 498688
  %v472 = vsel %vm471, %v453, %v470
  %v473 = vsel %vm49, %v465, %v466
  %v474 = vsel %vm471, %v455, %v473
  %v475 = vsel %vm49, %v467, %v468
  %v476 = vsel %vm471, %v459, %v475
  %v477 = vsel %vm49, %v468, %v469
  %v478 = vsel %vm471, %v461, %v477
  %483 = vst [vmem:[#allocation2 + $0x340] sm:$0xff] %v472
  %484 = vst [vmem:[#allocation2 + $0x348] sm:$0xff] %v474
  %485 = vst [vmem:[#allocation2 + $0x360] sm:$0xff] %v476
  %486 = vst [vmem:[#allocation2 + $0x368] sm:$0xff] %v478
  %487 = vrot.lane.b32.xlu0 %v15, 60
  %v488 = vpop.permute.xlu0 %487
  %489 = vrot.lane.b32.xlu0 %v16, 60
  %v490 = vpop.permute.xlu0 %489
  %491 = vrot.lane.b32.xlu0 %v17, 60
  %v492 = vpop.permute.xlu0 %491
  %493 = vrot.lane.b32.xlu0 %v18, 60
  %v494 = vpop.permute.xlu0 %493
  %495 = vrot.lane.b32.xlu0 %v19, 60
  %v496 = vpop.permute.xlu0 %495
  %497 = vrot.lane.b32.xlu0 %v20, 60
  %v498 = vpop.permute.xlu0 %497
  %v499 = vrot.slane %v488, 4
  %v500 = vrot.slane %v490, 4
  %v501 = vrot.slane %v492, 4
  %v502 = vrot.slane %v494, 4
  %v503 = vrot.slane %v496, 4
  %v504 = vrot.slane %v498, 4
  %v505 = vsel %vm49, %v499, %v500
  %vm506 = vcmask 490496
  %v507 = vsel %vm506, %v488, %v505
  %v508 = vsel %vm49, %v500, %v501
  %v509 = vsel %vm506, %v490, %v508
  %v510 = vsel %vm49, %v502, %v503
  %v511 = vsel %vm506, %v494, %v510
  %v512 = vsel %vm49, %v503, %v504
  %v513 = vsel %vm506, %v496, %v512
  %518 = vst [vmem:[#allocation2 + $0x380] sm:$0xff] %v507
  %519 = vst [vmem:[#allocation2 + $0x388] sm:$0xff] %v509
  %520 = vst [vmem:[#allocation2 + $0x3a0] sm:$0xff] %v511
  %521 = vst [vmem:[#allocation2 + $0x3a8] sm:$0xff] %v513
  %522 = vrot.lane.b32.xlu0 %v15, 32
  %v523 = vpop.permute.xlu0 %522
  %524 = vrot.lane.b32.xlu0 %v16, 32
  %v525 = vpop.permute.xlu0 %524
  %526 = vrot.lane.b32.xlu0 %v17, 32
  %v527 = vpop.permute.xlu0 %526
  %528 = vrot.lane.b32.xlu0 %v18, 32
  %v529 = vpop.permute.xlu0 %528
  %530 = vrot.lane.b32.xlu0 %v19, 32
  %v531 = vpop.permute.xlu0 %530
  %532 = vrot.lane.b32.xlu0 %v20, 32
  %v533 = vpop.permute.xlu0 %532
  %v534 = vrot.slane %v523, 4
  %v535 = vrot.slane %v525, 4
  %v536 = vrot.slane %v527, 4
  %v537 = vrot.slane %v529, 4
  %v538 = vrot.slane %v531, 4
  %v539 = vrot.slane %v533, 4
  %v540 = vsel %vm49, %v534, %v535
  %vm541 = vcmask 261120
  %v542 = vsel %vm541, %v523, %v540
  %v543 = vsel %vm49, %v535, %v536
  %v544 = vsel %vm541, %v525, %v543
  %v545 = vsel %vm49, %v537, %v538
  %v546 = vsel %vm541, %v529, %v545
  %v547 = vsel %vm49, %v538, %v539
  %v548 = vsel %vm541, %v531, %v547
  %553 = vst [vmem:[#allocation2 + $0x3c0] sm:$0xff] %v542
  %554 = vst [vmem:[#allocation2 + $0x3c8] sm:$0xff] %v544
  %555 = vst [vmem:[#allocation2 + $0x3e0] sm:$0xff] %v546
  %556 = vst [vmem:[#allocation2 + $0x3e8] sm:$0xff] %v548
  %557 = vrot.lane.b32.xlu0 %v15, 31
  %v558 = vpop.permute.xlu0 %557
  %559 = vrot.lane.b32.xlu0 %v16, 31
  %v560 = vpop.permute.xlu0 %559
  %561 = vrot.lane.b32.xlu0 %v17, 31
  %v562 = vpop.permute.xlu0 %561
  %563 = vrot.lane.b32.xlu0 %v18, 31
  %v564 = vpop.permute.xlu0 %563
  %565 = vrot.lane.b32.xlu0 %v19, 31
  %v566 = vpop.permute.xlu0 %565
  %567 = vrot.lane.b32.xlu0 %v20, 31
  %v568 = vpop.permute.xlu0 %567
  %v569 = vrot.slane %v558, 4
  %v570 = vrot.slane %v560, 4
  %v571 = vrot.slane %v562, 4
  %v572 = vrot.slane %v564, 4
  %v573 = vrot.slane %v566, 4
  %v574 = vrot.slane %v568, 4
  %v575 = vsel %vm49, %v569, %v570
  %vm576 = vcmask 252928
  %v577 = vsel %vm576, %v558, %v575
  %v578 = vsel %vm49, %v570, %v571
  %v579 = vsel %vm576, %v560, %v578
  %v580 = vsel %vm49, %v572, %v573
  %v581 = vsel %vm576, %v564, %v580
  %v582 = vsel %vm49, %v573, %v574
  %v583 = vsel %vm576, %v566, %v582
  %588 = vst [vmem:[#allocation2 + $0x400] sm:$0xff] %v577
  %589 = vst [vmem:[#allocation2 + $0x408] sm:$0xff] %v579
  %590 = vst [vmem:[#allocation2 + $0x420] sm:$0xff] %v581
  %591 = vst [vmem:[#allocation2 + $0x428] sm:$0xff] %v583
  %592 = vrot.lane.b32.xlu0 %v15, 30
  %v593 = vpop.permute.xlu0 %592
  %594 = vrot.lane.b32.xlu0 %v16, 30
  %v595 = vpop.permute.xlu0 %594
  %596 = vrot.lane.b32.xlu0 %v17, 30
  %v597 = vpop.permute.xlu0 %596
  %598 = vrot.lane.b32.xlu0 %v18, 30
  %v599 = vpop.permute.xlu0 %598
  %600 = vrot.lane.b32.xlu0 %v19, 30
  %v601 = vpop.permute.xlu0 %600
  %602 = vrot.lane.b32.xlu0 %v20, 30
  %v603 = vpop.permute.xlu0 %602
  %v604 = vrot.slane %v593, 4
  %v605 = vrot.slane %v595, 4
  %v606 = vrot.slane %v597, 4
  %v607 = vrot.slane %v599, 4
  %v608 = vrot.slane %v601, 4
  %v609 = vrot.slane %v603, 4
  %v610 = vsel %vm49, %v604, %v605
  %vm611 = vcmask 244736
  %v612 = vsel %vm611, %v593, %v610
  %v613 = vsel %vm49, %v605, %v606
  %v614 = vsel %vm611, %v595, %v613
  %v615 = vsel %vm49, %v607, %v608
  %v616 = vsel %vm611, %v599, %v615
  %v617 = vsel %vm49, %v608, %v609
  %v618 = vsel %vm611, %v601, %v617
  %623 = vst [vmem:[#allocation2 + $0x440] sm:$0xff] %v612
  %624 = vst [vmem:[#allocation2 + $0x448] sm:$0xff] %v614
  %625 = vst [vmem:[#allocation2 + $0x460] sm:$0xff] %v616
  %626 = vst [vmem:[#allocation2 + $0x468] sm:$0xff] %v618
  %627 = vrot.lane.b32.xlu0 %v15, 29
  %v628 = vpop.permute.xlu0 %627
  %629 = vrot.lane.b32.xlu0 %v16, 29
  %v630 = vpop.permute.xlu0 %629
  %631 = vrot.lane.b32.xlu0 %v17, 29
  %v632 = vpop.permute.xlu0 %631
  %633 = vrot.lane.b32.xlu0 %v18, 29
  %v634 = vpop.permute.xlu0 %633
  %635 = vrot.lane.b32.xlu0 %v19, 29
  %v636 = vpop.permute.xlu0 %635
  %637 = vrot.lane.b32.xlu0 %v20, 29
  %v638 = vpop.permute.xlu0 %637
  %v639 = vrot.slane %v628, 4
  %v640 = vrot.slane %v630, 4
  %v641 = vrot.slane %v632, 4
  %v642 = vrot.slane %v634, 4
  %v643 = vrot.slane %v636, 4
  %v644 = vrot.slane %v638, 4
  %v645 = vsel %vm49, %v639, %v640
  %vm646 = vcmask 236544
  %v647 = vsel %vm646, %v628, %v645
  %v648 = vsel %vm49, %v640, %v641
  %v649 = vsel %vm646, %v630, %v648
  %v650 = vsel %vm49, %v642, %v643
  %v651 = vsel %vm646, %v634, %v650
  %v652 = vsel %vm49, %v643, %v644
  %v653 = vsel %vm646, %v636, %v652
  %658 = vst [vmem:[#allocation2 + $0x480] sm:$0xff] %v647
  %659 = vst [vmem:[#allocation2 + $0x488] sm:$0xff] %v649
  %660 = vst [vmem:[#allocation2 + $0x4a0] sm:$0xff] %v651
  %661 = vst [vmem:[#allocation2 + $0x4a8] sm:$0xff] %v653
  %662 = vrot.lane.b32.xlu0 %v15, 28
  %v663 = vpop.permute.xlu0 %662
  %664 = vrot.lane.b32.xlu0 %v16, 28
  %v665 = vpop.permute.xlu0 %664
  %666 = vrot.lane.b32.xlu0 %v17, 28
  %v667 = vpop.permute.xlu0 %666
  %668 = vrot.lane.b32.xlu0 %v18, 28
  %v669 = vpop.permute.xlu0 %668
  %670 = vrot.lane.b32.xlu0 %v19, 28
  %v671 = vpop.permute.xlu0 %670
  %672 = vrot.lane.b32.xlu0 %v20, 28
  %v673 = vpop.permute.xlu0 %672
  %v674 = vrot.slane %v663, 4
  %v675 = vrot.slane %v665, 4
  %v676 = vrot.slane %v667, 4
  %v677 = vrot.slane %v669, 4
  %v678 = vrot.slane %v671, 4
  %v679 = vrot.slane %v673, 4
  %v680 = vsel %vm49, %v674, %v675
  %vm681 = vcmask 228352
  %v682 = vsel %vm681, %v663, %v680
  %v683 = vsel %vm49, %v675, %v676
  %v684 = vsel %vm681, %v665, %v683
  %v685 = vsel %vm49, %v677, %v678
  %v686 = vsel %vm681, %v669, %v685
  %v687 = vsel %vm49, %v678, %v679
  %v688 = vsel %vm681, %v671, %v687
  %693 = vst [vmem:[#allocation2 + $0x4c0] sm:$0xff] %v682
  %694 = vst [vmem:[#allocation2 + $0x4c8] sm:$0xff] %v684
  %695 = vst [vmem:[#allocation2 + $0x4e0] sm:$0xff] %v686
  %696 = vst [vmem:[#allocation2 + $0x4e8] sm:$0xff] %v688
  %v697 = vrot.slane %v15, 4
  %v698 = vrot.slane %v16, 4
  %v699 = vrot.slane %v17, 4
  %v700 = vrot.slane %v18, 4
  %v701 = vrot.slane %v19, 4
  %v702 = vrot.slane %v20, 4
  %v703 = vsel %vm49, %v697, %v698
  %v704 = vsel %vm49, %v698, %v699
  %v705 = vsel %vm49, %v700, %v701
  %v706 = vsel %vm49, %v701, %v702
  %711 = vst [vmem:[#allocation2 + $0x500] sm:$0xff] %v703
  %712 = vst [vmem:[#allocation2 + $0x508] sm:$0xff] %v704
  %713 = vst [vmem:[#allocation2 + $0x520] sm:$0xff] %v705
  %714 = vst [vmem:[#allocation2 + $0x528] sm:$0xff] %v706
  %v715 = vsel %vm51, %v50, %v34
  %v716 = vsel %vm51, %v53, %v36
  %v717 = vsel %vm51, %v55, %v40
  %v718 = vsel %vm51, %v57, %v42
  %723 = vst [vmem:[#allocation2 + $0x540] sm:$0xff] %v715
  %724 = vst [vmem:[#allocation2 + $0x548] sm:$0xff] %v716
  %725 = vst [vmem:[#allocation2 + $0x560] sm:$0xff] %v717
  %726 = vst [vmem:[#allocation2 + $0x568] sm:$0xff] %v718
  %v727 = vsel %vm86, %v85, %v70
  %v728 = vsel %vm86, %v88, %v72
  %v729 = vsel %vm86, %v90, %v76
  %v730 = vsel %vm86, %v92, %v78
  %735 = vst [vmem:[#allocation2 + $0x580] sm:$0xff] %v727
  %736 = vst [vmem:[#allocation2 + $0x588] sm:$0xff] %v728
  %737 = vst [vmem:[#allocation2 + $0x5a0] sm:$0xff] %v729
  %738 = vst [vmem:[#allocation2 + $0x5a8] sm:$0xff] %v730
  %v739 = vsel %vm121, %v120, %v105
  %v740 = vsel %vm121, %v123, %v107
  %v741 = vsel %vm121, %v125, %v111
  %v742 = vsel %vm121, %v127, %v113
  %747 = vst [vmem:[#allocation2 + $0x5c0] sm:$0xff] %v739
  %748 = vst [vmem:[#allocation2 + $0x5c8] sm:$0xff] %v740
  %749 = vst [vmem:[#allocation2 + $0x5e0] sm:$0xff] %v741
  %750 = vst [vmem:[#allocation2 + $0x5e8] sm:$0xff] %v742
  %v751 = vsel %vm156, %v155, %v140
  %v752 = vsel %vm156, %v158, %v142
  %v753 = vsel %vm156, %v160, %v146
  %v754 = vsel %vm156, %v162, %v148
  %759 = vst [vmem:[#allocation2 + $0x600] sm:$0xff] %v751
  %760 = vst [vmem:[#allocation2 + $0x608] sm:$0xff] %v752
  %761 = vst [vmem:[#allocation2 + $0x620] sm:$0xff] %v753
  %762 = vst [vmem:[#allocation2 + $0x628] sm:$0xff] %v754
  %s763 = scalar_lea.vmem %s0, 48
  %v764 = vld [vmem:[%s763] sm:$0xff]
  %v765 = vld [vmem:[%s763 + $0x8] sm:$0xff]
  %v766 = vld [vmem:[%s763 + $0x10] sm:$0xff]
  %v767 = vld [vmem:[%s763 + $0x18] sm:$0xff]
  %v768 = vld [vmem:[%s763 + $0x20] sm:$0xff]
  %v769 = vld [vmem:[%s763 + $0x28] sm:$0xff]
  %770 = vst [vmem:[#allocation2 + $0x10] sm:$0xff] %v764
  %771 = vst [vmem:[#allocation2 + $0x18] sm:$0xff] %v765
  %772 = vst [vmem:[#allocation2 + $0x30] sm:$0xff] %v767
  %773 = vst [vmem:[#allocation2 + $0x38] sm:$0xff] %v768
  %780 = vrot.lane.b32.xlu0 %v764, 127
  %v781 = vpop.permute.xlu0 %780
  %782 = vrot.lane.b32.xlu0 %v765, 127
  %v783 = vpop.permute.xlu0 %782
  %784 = vrot.lane.b32.xlu0 %v766, 127
  %v785 = vpop.permute.xlu0 %784
  %786 = vrot.lane.b32.xlu0 %v767, 127
  %v787 = vpop.permute.xlu0 %786
  %788 = vrot.lane.b32.xlu0 %v768, 127
  %v789 = vpop.permute.xlu0 %788
  %790 = vrot.lane.b32.xlu0 %v769, 127
  %v791 = vpop.permute.xlu0 %790
  %v792 = vrot.slane %v781, 4
  %v793 = vrot.slane %v783, 4
  %v794 = vrot.slane %v785, 4
  %v795 = vrot.slane %v787, 4
  %v796 = vrot.slane %v789, 4
  %v797 = vrot.slane %v791, 4
  %v798 = vsel %vm49, %v792, %v793
  %v799 = vsel %vm51, %v781, %v798
  %v800 = vsel %vm49, %v793, %v794
  %v801 = vsel %vm51, %v783, %v800
  %v802 = vsel %vm49, %v795, %v796
  %v803 = vsel %vm51, %v787, %v802
  %v804 = vsel %vm49, %v796, %v797
  %v805 = vsel %vm51, %v789, %v804
  %810 = vst [vmem:[#allocation2 + $0x50] sm:$0xff] %v799
  %811 = vst [vmem:[#allocation2 + $0x58] sm:$0xff] %v801
  %812 = vst [vmem:[#allocation2 + $0x70] sm:$0xff] %v803
  %813 = vst [vmem:[#allocation2 + $0x78] sm:$0xff] %v805
  %814 = vrot.lane.b32.xlu0 %v764, 126
  %v815 = vpop.permute.xlu0 %814
  %816 = vrot.lane.b32.xlu0 %v765, 126
  %v817 = vpop.permute.xlu0 %816
  %818 = vrot.lane.b32.xlu0 %v766, 126
  %v819 = vpop.permute.xlu0 %818
  %820 = vrot.lane.b32.xlu0 %v767, 126
  %v821 = vpop.permute.xlu0 %820
  %822 = vrot.lane.b32.xlu0 %v768, 126
  %v823 = vpop.permute.xlu0 %822
  %824 = vrot.lane.b32.xlu0 %v769, 126
  %v825 = vpop.permute.xlu0 %824
  %v826 = vrot.slane %v815, 4
  %v827 = vrot.slane %v817, 4
  %v828 = vrot.slane %v819, 4
  %v829 = vrot.slane %v821, 4
  %v830 = vrot.slane %v823, 4
  %v831 = vrot.slane %v825, 4
  %v832 = vsel %vm49, %v826, %v827
  %v833 = vsel %vm86, %v815, %v832
  %v834 = vsel %vm49, %v827, %v828
  %v835 = vsel %vm86, %v817, %v834
  %v836 = vsel %vm49, %v829, %v830
  %v837 = vsel %vm86, %v821, %v836
  %v838 = vsel %vm49, %v830, %v831
  %v839 = vsel %vm86, %v823, %v838
  %844 = vst [vmem:[#allocation2 + $0x90] sm:$0xff] %v833
  %845 = vst [vmem:[#allocation2 + $0x98] sm:$0xff] %v835
  %846 = vst [vmem:[#allocation2 + $0xb0] sm:$0xff] %v837
  %847 = vst [vmem:[#allocation2 + $0xb8] sm:$0xff] %v839
  %848 = vrot.lane.b32.xlu0 %v764, 125
  %v849 = vpop.permute.xlu0 %848
  %850 = vrot.lane.b32.xlu0 %v765, 125
  %v851 = vpop.permute.xlu0 %850
  %852 = vrot.lane.b32.xlu0 %v766, 125
  %v853 = vpop.permute.xlu0 %852
  %854 = vrot.lane.b32.xlu0 %v767, 125
  %v855 = vpop.permute.xlu0 %854
  %856 = vrot.lane.b32.xlu0 %v768, 125
  %v857 = vpop.permute.xlu0 %856
  %858 = vrot.lane.b32.xlu0 %v769, 125
  %v859 = vpop.permute.xlu0 %858
  %v860 = vrot.slane %v849, 4
  %v861 = vrot.slane %v851, 4
  %v862 = vrot.slane %v853, 4
  %v863 = vrot.slane %v855, 4
  %v864 = vrot.slane %v857, 4
  %v865 = vrot.slane %v859, 4
  %v866 = vsel %vm49, %v860, %v861
  %v867 = vsel %vm121, %v849, %v866
  %v868 = vsel %vm49, %v861, %v862
  %v869 = vsel %vm121, %v851, %v868
  %v870 = vsel %vm49, %v863, %v864
  %v871 = vsel %vm121, %v855, %v870
  %v872 = vsel %vm49, %v864, %v865
  %v873 = vsel %vm121, %v857, %v872
  %878 = vst [vmem:[#allocation2 + $0xd0] sm:$0xff] %v867
  %879 = vst [vmem:[#allocation2 + $0xd8] sm:$0xff] %v869
  %880 = vst [vmem:[#allocation2 + $0xf0] sm:$0xff] %v871
  %881 = vst [vmem:[#allocation2 + $0xf8] sm:$0xff] %v873
  %882 = vrot.lane.b32.xlu0 %v764, 124
  %v883 = vpop.permute.xlu0 %882
  %884 = vrot.lane.b32.xlu0 %v765, 124
  %v885 = vpop.permute.xlu0 %884
  %886 = vrot.lane.b32.xlu0 %v766, 124
  %v887 = vpop.permute.xlu0 %886
  %888 = vrot.lane.b32.xlu0 %v767, 124
  %v889 = vpop.permute.xlu0 %888
  %890 = vrot.lane.b32.xlu0 %v768, 124
  %v891 = vpop.permute.xlu0 %890
  %892 = vrot.lane.b32.xlu0 %v769, 124
  %v893 = vpop.permute.xlu0 %892
  %v894 = vrot.slane %v883, 4
  %v895 = vrot.slane %v885, 4
  %v896 = vrot.slane %v887, 4
  %v897 = vrot.slane %v889, 4
  %v898 = vrot.slane %v891, 4
  %v899 = vrot.slane %v893, 4
  %v900 = vsel %vm49, %v894, %v895
  %v901 = vsel %vm156, %v883, %v900
  %v902 = vsel %vm49, %v895, %v896
  %v903 = vsel %vm156, %v885, %v902
  %v904 = vsel %vm49, %v897, %v898
  %v905 = vsel %vm156, %v889, %v904
  %v906 = vsel %vm49, %v898, %v899
  %v907 = vsel %vm156, %v891, %v906
  %912 = vst [vmem:[#allocation2 + $0x110] sm:$0xff] %v901
  %913 = vst [vmem:[#allocation2 + $0x118] sm:$0xff] %v903
  %914 = vst [vmem:[#allocation2 + $0x130] sm:$0xff] %v905
  %915 = vst [vmem:[#allocation2 + $0x138] sm:$0xff] %v907
  %916 = vrot.lane.b32.xlu0 %v764, 96
  %v917 = vpop.permute.xlu0 %916
  %918 = vrot.lane.b32.xlu0 %v765, 96
  %v919 = vpop.permute.xlu0 %918
  %920 = vrot.lane.b32.xlu0 %v766, 96
  %v921 = vpop.permute.xlu0 %920
  %922 = vrot.lane.b32.xlu0 %v767, 96
  %v923 = vpop.permute.xlu0 %922
  %924 = vrot.lane.b32.xlu0 %v768, 96
  %v925 = vpop.permute.xlu0 %924
  %926 = vrot.lane.b32.xlu0 %v769, 96
  %v927 = vpop.permute.xlu0 %926
  %v928 = vrot.slane %v917, 4
  %v929 = vrot.slane %v919, 4
  %v930 = vrot.slane %v921, 4
  %v931 = vrot.slane %v923, 4
  %v932 = vrot.slane %v925, 4
  %v933 = vrot.slane %v927, 4
  %v934 = vsel %vm49, %v928, %v929
  %v935 = vsel %vm191, %v917, %v934
  %v936 = vsel %vm49, %v929, %v930
  %v937 = vsel %vm191, %v919, %v936
  %v938 = vsel %vm49, %v931, %v932
  %v939 = vsel %vm191, %v923, %v938
  %v940 = vsel %vm49, %v932, %v933
  %v941 = vsel %vm191, %v925, %v940
  %946 = vst [vmem:[#allocation2 + $0x150] sm:$0xff] %v935
  %947 = vst [vmem:[#allocation2 + $0x158] sm:$0xff] %v937
  %948 = vst [vmem:[#allocation2 + $0x170] sm:$0xff] %v939
  %949 = vst [vmem:[#allocation2 + $0x178] sm:$0xff] %v941
  %950 = vrot.lane.b32.xlu0 %v764, 95
  %v951 = vpop.permute.xlu0 %950
  %952 = vrot.lane.b32.xlu0 %v765, 95
  %v953 = vpop.permute.xlu0 %952
  %954 = vrot.lane.b32.xlu0 %v766, 95
  %v955 = vpop.permute.xlu0 %954
  %956 = vrot.lane.b32.xlu0 %v767, 95
  %v957 = vpop.permute.xlu0 %956
  %958 = vrot.lane.b32.xlu0 %v768, 95
  %v959 = vpop.permute.xlu0 %958
  %960 = vrot.lane.b32.xlu0 %v769, 95
  %v961 = vpop.permute.xlu0 %960
  %v962 = vrot.slane %v951, 4
  %v963 = vrot.slane %v953, 4
  %v964 = vrot.slane %v955, 4
  %v965 = vrot.slane %v957, 4
  %v966 = vrot.slane %v959, 4
  %v967 = vrot.slane %v961, 4
  %v968 = vsel %vm49, %v962, %v963
  %v969 = vsel %vm226, %v951, %v968
  %v970 = vsel %vm49, %v963, %v964
  %v971 = vsel %vm226, %v953, %v970
  %v972 = vsel %vm49, %v965, %v966
  %v973 = vsel %vm226, %v957, %v972
  %v974 = vsel %vm49, %v966, %v967
  %v975 = vsel %vm226, %v959, %v974
  %980 = vst [vmem:[#allocation2 + $0x190] sm:$0xff] %v969
  %981 = vst [vmem:[#allocation2 + $0x198] sm:$0xff] %v971
  %982 = vst [vmem:[#allocation2 + $0x1b0] sm:$0xff] %v973
  %983 = vst [vmem:[#allocation2 + $0x1b8] sm:$0xff] %v975
  %984 = vrot.lane.b32.xlu0 %v764, 94
  %v985 = vpop.permute.xlu0 %984
  %986 = vrot.lane.b32.xlu0 %v765, 94
  %v987 = vpop.permute.xlu0 %986
  %988 = vrot.lane.b32.xlu0 %v766, 94
  %v989 = vpop.permute.xlu0 %988
  %990 = vrot.lane.b32.xlu0 %v767, 94
  %v991 = vpop.permute.xlu0 %990
  %992 = vrot.lane.b32.xlu0 %v768, 94
  %v993 = vpop.permute.xlu0 %992
  %994 = vrot.lane.b32.xlu0 %v769, 94
  %v995 = vpop.permute.xlu0 %994
  %v996 = vrot.slane %v985, 4
  %v997 = vrot.slane %v987, 4
  %v998 = vrot.slane %v989, 4
  %v999 = vrot.slane %v991, 4
  %v1000 = vrot.slane %v993, 4
  %v1001 = vrot.slane %v995, 4
  %v1002 = vsel %vm49, %v996, %v997
  %v1003 = vsel %vm261, %v985, %v1002
  %v1004 = vsel %vm49, %v997, %v998
  %v1005 = vsel %vm261, %v987, %v1004
  %v1006 = vsel %vm49, %v999, %v1000
  %v1007 = vsel %vm261, %v991, %v1006
  %v1008 = vsel %vm49, %v1000, %v1001
  %v1009 = vsel %vm261, %v993, %v1008
  %1014 = vst [vmem:[#allocation2 + $0x1d0] sm:$0xff] %v1003
  %1015 = vst [vmem:[#allocation2 + $0x1d8] sm:$0xff] %v1005
  %1016 = vst [vmem:[#allocation2 + $0x1f0] sm:$0xff] %v1007
  %1017 = vst [vmem:[#allocation2 + $0x1f8] sm:$0xff] %v1009
  %1018 = vrot.lane.b32.xlu0 %v764, 93
  %v1019 = vpop.permute.xlu0 %1018
  %1020 = vrot.lane.b32.xlu0 %v765, 93
  %v1021 = vpop.permute.xlu0 %1020
  %1022 = vrot.lane.b32.xlu0 %v766, 93
  %v1023 = vpop.permute.xlu0 %1022
  %1024 = vrot.lane.b32.xlu0 %v767, 93
  %v1025 = vpop.permute.xlu0 %1024
  %1026 = vrot.lane.b32.xlu0 %v768, 93
  %v1027 = vpop.permute.xlu0 %1026
  %1028 = vrot.lane.b32.xlu0 %v769, 93
  %v1029 = vpop.permute.xlu0 %1028
  %v1030 = vrot.slane %v1019, 4
  %v1031 = vrot.slane %v1021, 4
  %v1032 = vrot.slane %v1023, 4
  %v1033 = vrot.slane %v1025, 4
  %v1034 = vrot.slane %v1027, 4
  %v1035 = vrot.slane %v1029, 4
  %v1036 = vsel %vm49, %v1030, %v1031
  %v1037 = vsel %vm296, %v1019, %v1036
  %v1038 = vsel %vm49, %v1031, %v1032
  %v1039 = vsel %vm296, %v1021, %v1038
  %v1040 = vsel %vm49, %v1033, %v1034
  %v1041 = vsel %vm296, %v1025, %v1040
  %v1042 = vsel %vm49, %v1034, %v1035
  %v1043 = vsel %vm296, %v1027, %v1042
  %1048 = vst [vmem:[#allocation2 + $0x210] sm:$0xff] %v1037
  %1049 = vst [vmem:[#allocation2 + $0x218] sm:$0xff] %v1039
  %1050 = vst [vmem:[#allocation2 + $0x230] sm:$0xff] %v1041
  %1051 = vst [vmem:[#allocation2 + $0x238] sm:$0xff] %v1043
  %1052 = vrot.lane.b32.xlu0 %v764, 92
  %v1053 = vpop.permute.xlu0 %1052
  %1054 = vrot.lane.b32.xlu0 %v765, 92
  %v1055 = vpop.permute.xlu0 %1054
  %1056 = vrot.lane.b32.xlu0 %v766, 92
  %v1057 = vpop.permute.xlu0 %1056
  %1058 = vrot.lane.b32.xlu0 %v767, 92
  %v1059 = vpop.permute.xlu0 %1058
  %1060 = vrot.lane.b32.xlu0 %v768, 92
  %v1061 = vpop.permute.xlu0 %1060
  %1062 = vrot.lane.b32.xlu0 %v769, 92
  %v1063 = vpop.permute.xlu0 %1062
  %v1064 = vrot.slane %v1053, 4
  %v1065 = vrot.slane %v1055, 4
  %v1066 = vrot.slane %v1057, 4
  %v1067 = vrot.slane %v1059, 4
  %v1068 = vrot.slane %v1061, 4
  %v1069 = vrot.slane %v1063, 4
  %v1070 = vsel %vm49, %v1064, %v1065
  %v1071 = vsel %vm331, %v1053, %v1070
  %v1072 = vsel %vm49, %v1065, %v1066
  %v1073 = vsel %vm331, %v1055, %v1072
  %v1074 = vsel %vm49, %v1067, %v1068
  %v1075 = vsel %vm331, %v1059, %v1074
  %v1076 = vsel %vm49, %v1068, %v1069
  %v1077 = vsel %vm331, %v1061, %v1076
  %1082 = vst [vmem:[#allocation2 + $0x250] sm:$0xff] %v1071
  %1083 = vst [vmem:[#allocation2 + $0x258] sm:$0xff] %v1073
  %1084 = vst [vmem:[#allocation2 + $0x270] sm:$0xff] %v1075
  %1085 = vst [vmem:[#allocation2 + $0x278] sm:$0xff] %v1077
  %1086 = vrot.lane.b32.xlu0 %v764, 64
  %v1087 = vpop.permute.xlu0 %1086
  %1088 = vrot.lane.b32.xlu0 %v765, 64
  %v1089 = vpop.permute.xlu0 %1088
  %1090 = vrot.lane.b32.xlu0 %v766, 64
  %v1091 = vpop.permute.xlu0 %1090
  %1092 = vrot.lane.b32.xlu0 %v767, 64
  %v1093 = vpop.permute.xlu0 %1092
  %1094 = vrot.lane.b32.xlu0 %v768, 64
  %v1095 = vpop.permute.xlu0 %1094
  %1096 = vrot.lane.b32.xlu0 %v769, 64
  %v1097 = vpop.permute.xlu0 %1096
  %v1098 = vrot.slane %v1087, 4
  %v1099 = vrot.slane %v1089, 4
  %v1100 = vrot.slane %v1091, 4
  %v1101 = vrot.slane %v1093, 4
  %v1102 = vrot.slane %v1095, 4
  %v1103 = vrot.slane %v1097, 4
  %v1104 = vsel %vm49, %v1098, %v1099
  %v1105 = vsel %vm366, %v1087, %v1104
  %v1106 = vsel %vm49, %v1099, %v1100
  %v1107 = vsel %vm366, %v1089, %v1106
  %v1108 = vsel %vm49, %v1101, %v1102
  %v1109 = vsel %vm366, %v1093, %v1108
  %v1110 = vsel %vm49, %v1102, %v1103
  %v1111 = vsel %vm366, %v1095, %v1110
  %1116 = vst [vmem:[#allocation2 + $0x290] sm:$0xff] %v1105
  %1117 = vst [vmem:[#allocation2 + $0x298] sm:$0xff] %v1107
  %1118 = vst [vmem:[#allocation2 + $0x2b0] sm:$0xff] %v1109
  %1119 = vst [vmem:[#allocation2 + $0x2b8] sm:$0xff] %v1111
  %1120 = vrot.lane.b32.xlu0 %v764, 63
  %v1121 = vpop.permute.xlu0 %1120
  %1122 = vrot.lane.b32.xlu0 %v765, 63
  %v1123 = vpop.permute.xlu0 %1122
  %1124 = vrot.lane.b32.xlu0 %v766, 63
  %v1125 = vpop.permute.xlu0 %1124
  %1126 = vrot.lane.b32.xlu0 %v767, 63
  %v1127 = vpop.permute.xlu0 %1126
  %1128 = vrot.lane.b32.xlu0 %v768, 63
  %v1129 = vpop.permute.xlu0 %1128
  %1130 = vrot.lane.b32.xlu0 %v769, 63
  %v1131 = vpop.permute.xlu0 %1130
  %v1132 = vrot.slane %v1121, 4
  %v1133 = vrot.slane %v1123, 4
  %v1134 = vrot.slane %v1125, 4
  %v1135 = vrot.slane %v1127, 4
  %v1136 = vrot.slane %v1129, 4
  %v1137 = vrot.slane %v1131, 4
  %v1138 = vsel %vm49, %v1132, %v1133
  %v1139 = vsel %vm401, %v1121, %v1138
  %v1140 = vsel %vm49, %v1133, %v1134
  %v1141 = vsel %vm401, %v1123, %v1140
  %v1142 = vsel %vm49, %v1135, %v1136
  %v1143 = vsel %vm401, %v1127, %v1142
  %v1144 = vsel %vm49, %v1136, %v1137
  %v1145 = vsel %vm401, %v1129, %v1144
  %1150 = vst [vmem:[#allocation2 + $0x2d0] sm:$0xff] %v1139
  %1151 = vst [vmem:[#allocation2 + $0x2d8] sm:$0xff] %v1141
  %1152 = vst [vmem:[#allocation2 + $0x2f0] sm:$0xff] %v1143
  %1153 = vst [vmem:[#allocation2 + $0x2f8] sm:$0xff] %v1145
  %1154 = vrot.lane.b32.xlu0 %v764, 62
  %v1155 = vpop.permute.xlu0 %1154
  %1156 = vrot.lane.b32.xlu0 %v765, 62
  %v1157 = vpop.permute.xlu0 %1156
  %1158 = vrot.lane.b32.xlu0 %v766, 62
  %v1159 = vpop.permute.xlu0 %1158
  %1160 = vrot.lane.b32.xlu0 %v767, 62
  %v1161 = vpop.permute.xlu0 %1160
  %1162 = vrot.lane.b32.xlu0 %v768, 62
  %v1163 = vpop.permute.xlu0 %1162
  %1164 = vrot.lane.b32.xlu0 %v769, 62
  %v1165 = vpop.permute.xlu0 %1164
  %v1166 = vrot.slane %v1155, 4
  %v1167 = vrot.slane %v1157, 4
  %v1168 = vrot.slane %v1159, 4
  %v1169 = vrot.slane %v1161, 4
  %v1170 = vrot.slane %v1163, 4
  %v1171 = vrot.slane %v1165, 4
  %v1172 = vsel %vm49, %v1166, %v1167
  %v1173 = vsel %vm436, %v1155, %v1172
  %v1174 = vsel %vm49, %v1167, %v1168
  %v1175 = vsel %vm436, %v1157, %v1174
  %v1176 = vsel %vm49, %v1169, %v1170
  %v1177 = vsel %vm436, %v1161, %v1176
  %v1178 = vsel %vm49, %v1170, %v1171
  %v1179 = vsel %vm436, %v1163, %v1178
  %1184 = vst [vmem:[#allocation2 + $0x310] sm:$0xff] %v1173
  %1185 = vst [vmem:[#allocation2 + $0x318] sm:$0xff] %v1175
  %1186 = vst [vmem:[#allocation2 + $0x330] sm:$0xff] %v1177
  %1187 = vst [vmem:[#allocation2 + $0x338] sm:$0xff] %v1179
  %1188 = vrot.lane.b32.xlu0 %v764, 61
  %v1189 = vpop.permute.xlu0 %1188
  %1190 = vrot.lane.b32.xlu0 %v765, 61
  %v1191 = vpop.permute.xlu0 %1190
  %1192 = vrot.lane.b32.xlu0 %v766, 61
  %v1193 = vpop.permute.xlu0 %1192
  %1194 = vrot.lane.b32.xlu0 %v767, 61
  %v1195 = vpop.permute.xlu0 %1194
  %1196 = vrot.lane.b32.xlu0 %v768, 61
  %v1197 = vpop.permute.xlu0 %1196
  %1198 = vrot.lane.b32.xlu0 %v769, 61
  %v1199 = vpop.permute.xlu0 %1198
  %v1200 = vrot.slane %v1189, 4
  %v1201 = vrot.slane %v1191, 4
  %v1202 = vrot.slane %v1193, 4
  %v1203 = vrot.slane %v1195, 4
  %v1204 = vrot.slane %v1197, 4
  %v1205 = vrot.slane %v1199, 4
  %v1206 = vsel %vm49, %v1200, %v1201
  %v1207 = vsel %vm471, %v1189, %v1206
  %v1208 = vsel %vm49, %v1201, %v1202
  %v1209 = vsel %vm471, %v1191, %v1208
  %v1210 = vsel %vm49, %v1203, %v1204
  %v1211 = vsel %vm471, %v1195, %v1210
  %v1212 = vsel %vm49, %v1204, %v1205
  %v1213 = vsel %vm471, %v1197, %v1212
  %1218 = vst [vmem:[#allocation2 + $0x350] sm:$0xff] %v1207
  %1219 = vst [vmem:[#allocation2 + $0x358] sm:$0xff] %v1209
  %1220 = vst [vmem:[#allocation2 + $0x370] sm:$0xff] %v1211
  %1221 = vst [vmem:[#allocation2 + $0x378] sm:$0xff] %v1213
  %1222 = vrot.lane.b32.xlu0 %v764, 60
  %v1223 = vpop.permute.xlu0 %1222
  %1224 = vrot.lane.b32.xlu0 %v765, 60
  %v1225 = vpop.permute.xlu0 %1224
  %1226 = vrot.lane.b32.xlu0 %v766, 60
  %v1227 = vpop.permute.xlu0 %1226
  %1228 = vrot.lane.b32.xlu0 %v767, 60
  %v1229 = vpop.permute.xlu0 %1228
  %1230 = vrot.lane.b32.xlu0 %v768, 60
  %v1231 = vpop.permute.xlu0 %1230
  %1232 = vrot.lane.b32.xlu0 %v769, 60
  %v1233 = vpop.permute.xlu0 %1232
  %v1234 = vrot.slane %v1223, 4
  %v1235 = vrot.slane %v1225, 4
  %v1236 = vrot.slane %v1227, 4
  %v1237 = vrot.slane %v1229, 4
  %v1238 = vrot.slane %v1231, 4
  %v1239 = vrot.slane %v1233, 4
  %v1240 = vsel %vm49, %v1234, %v1235
  %v1241 = vsel %vm506, %v1223, %v1240
  %v1242 = vsel %vm49, %v1235, %v1236
  %v1243 = vsel %vm506, %v1225, %v1242
  %v1244 = vsel %vm49, %v1237, %v1238
  %v1245 = vsel %vm506, %v1229, %v1244
  %v1246 = vsel %vm49, %v1238, %v1239
  %v1247 = vsel %vm506, %v1231, %v1246
  %1252 = vst [vmem:[#allocation2 + $0x390] sm:$0xff] %v1241
  %1253 = vst [vmem:[#allocation2 + $0x398] sm:$0xff] %v1243
  %1254 = vst [vmem:[#allocation2 + $0x3b0] sm:$0xff] %v1245
  %1255 = vst [vmem:[#allocation2 + $0x3b8] sm:$0xff] %v1247
  %1256 = vrot.lane.b32.xlu0 %v764, 32
  %v1257 = vpop.permute.xlu0 %1256
  %1258 = vrot.lane.b32.xlu0 %v765, 32
  %v1259 = vpop.permute.xlu0 %1258
  %1260 = vrot.lane.b32.xlu0 %v766, 32
  %v1261 = vpop.permute.xlu0 %1260
  %1262 = vrot.lane.b32.xlu0 %v767, 32
  %v1263 = vpop.permute.xlu0 %1262
  %1264 = vrot.lane.b32.xlu0 %v768, 32
  %v1265 = vpop.permute.xlu0 %1264
  %1266 = vrot.lane.b32.xlu0 %v769, 32
  %v1267 = vpop.permute.xlu0 %1266
  %v1268 = vrot.slane %v1257, 4
  %v1269 = vrot.slane %v1259, 4
  %v1270 = vrot.slane %v1261, 4
  %v1271 = vrot.slane %v1263, 4
  %v1272 = vrot.slane %v1265, 4
  %v1273 = vrot.slane %v1267, 4
  %v1274 = vsel %vm49, %v1268, %v1269
  %v1275 = vsel %vm541, %v1257, %v1274
  %v1276 = vsel %vm49, %v1269, %v1270
  %v1277 = vsel %vm541, %v1259, %v1276
  %v1278 = vsel %vm49, %v1271, %v1272
  %v1279 = vsel %vm541, %v1263, %v1278
  %v1280 = vsel %vm49, %v1272, %v1273
  %v1281 = vsel %vm541, %v1265, %v1280
  %1286 = vst [vmem:[#allocation2 + $0x3d0] sm:$0xff] %v1275
  %1287 = vst [vmem:[#allocation2 + $0x3d8] sm:$0xff] %v1277
  %1288 = vst [vmem:[#allocation2 + $0x3f0] sm:$0xff] %v1279
  %1289 = vst [vmem:[#allocation2 + $0x3f8] sm:$0xff] %v1281
  %1290 = vrot.lane.b32.xlu0 %v764, 31
  %v1291 = vpop.permute.xlu0 %1290
  %1292 = vrot.lane.b32.xlu0 %v765, 31
  %v1293 = vpop.permute.xlu0 %1292
  %1294 = vrot.lane.b32.xlu0 %v766, 31
  %v1295 = vpop.permute.xlu0 %1294
  %1296 = vrot.lane.b32.xlu0 %v767, 31
  %v1297 = vpop.permute.xlu0 %1296
  %1298 = vrot.lane.b32.xlu0 %v768, 31
  %v1299 = vpop.permute.xlu0 %1298
  %1300 = vrot.lane.b32.xlu0 %v769, 31
  %v1301 = vpop.permute.xlu0 %1300
  %v1302 = vrot.slane %v1291, 4
  %v1303 = vrot.slane %v1293, 4
  %v1304 = vrot.slane %v1295, 4
  %v1305 = vrot.slane %v1297, 4
  %v1306 = vrot.slane %v1299, 4
  %v1307 = vrot.slane %v1301, 4
  %v1308 = vsel %vm49, %v1302, %v1303
  %v1309 = vsel %vm576, %v1291, %v1308
  %v1310 = vsel %vm49, %v1303, %v1304
  %v1311 = vsel %vm576, %v1293, %v1310
  %v1312 = vsel %vm49, %v1305, %v1306
  %v1313 = vsel %vm576, %v1297, %v1312
  %v1314 = vsel %vm49, %v1306, %v1307
  %v1315 = vsel %vm576, %v1299, %v1314
  %1320 = vst [vmem:[#allocation2 + $0x410] sm:$0xff] %v1309
  %1321 = vst [vmem:[#allocation2 + $0x418] sm:$0xff] %v1311
  %1322 = vst [vmem:[#allocation2 + $0x430] sm:$0xff] %v1313
  %1323 = vst [vmem:[#allocation2 + $0x438] sm:$0xff] %v1315
  %1324 = vrot.lane.b32.xlu0 %v764, 30
  %v1325 = vpop.permute.xlu0 %1324
  %1326 = vrot.lane.b32.xlu0 %v765, 30
  %v1327 = vpop.permute.xlu0 %1326
  %1328 = vrot.lane.b32.xlu0 %v766, 30
  %v1329 = vpop.permute.xlu0 %1328
  %1330 = vrot.lane.b32.xlu0 %v767, 30
  %v1331 = vpop.permute.xlu0 %1330
  %1332 = vrot.lane.b32.xlu0 %v768, 30
  %v1333 = vpop.permute.xlu0 %1332
  %1334 = vrot.lane.b32.xlu0 %v769, 30
  %v1335 = vpop.permute.xlu0 %1334
  %v1336 = vrot.slane %v1325, 4
  %v1337 = vrot.slane %v1327, 4
  %v1338 = vrot.slane %v1329, 4
  %v1339 = vrot.slane %v1331, 4
  %v1340 = vrot.slane %v1333, 4
  %v1341 = vrot.slane %v1335, 4
  %v1342 = vsel %vm49, %v1336, %v1337
  %v1343 = vsel %vm611, %v1325, %v1342
  %v1344 = vsel %vm49, %v1337, %v1338
  %v1345 = vsel %vm611, %v1327, %v1344
  %v1346 = vsel %vm49, %v1339, %v1340
  %v1347 = vsel %vm611, %v1331, %v1346
  %v1348 = vsel %vm49, %v1340, %v1341
  %v1349 = vsel %vm611, %v1333, %v1348
  %1354 = vst [vmem:[#allocation2 + $0x450] sm:$0xff] %v1343
  %1355 = vst [vmem:[#allocation2 + $0x458] sm:$0xff] %v1345
  %1356 = vst [vmem:[#allocation2 + $0x470] sm:$0xff] %v1347
  %1357 = vst [vmem:[#allocation2 + $0x478] sm:$0xff] %v1349
  %1358 = vrot.lane.b32.xlu0 %v764, 29
  %v1359 = vpop.permute.xlu0 %1358
  %1360 = vrot.lane.b32.xlu0 %v765, 29
  %v1361 = vpop.permute.xlu0 %1360
  %1362 = vrot.lane.b32.xlu0 %v766, 29
  %v1363 = vpop.permute.xlu0 %1362
  %1364 = vrot.lane.b32.xlu0 %v767, 29
  %v1365 = vpop.permute.xlu0 %1364
  %1366 = vrot.lane.b32.xlu0 %v768, 29
  %v1367 = vpop.permute.xlu0 %1366
  %1368 = vrot.lane.b32.xlu0 %v769, 29
  %v1369 = vpop.permute.xlu0 %1368
  %v1370 = vrot.slane %v1359, 4
  %v1371 = vrot.slane %v1361, 4
  %v1372 = vrot.slane %v1363, 4
  %v1373 = vrot.slane %v1365, 4
  %v1374 = vrot.slane %v1367, 4
  %v1375 = vrot.slane %v1369, 4
  %v1376 = vsel %vm49, %v1370, %v1371
  %v1377 = vsel %vm646, %v1359, %v1376
  %v1378 = vsel %vm49, %v1371, %v1372
  %v1379 = vsel %vm646, %v1361, %v1378
  %v1380 = vsel %vm49, %v1373, %v1374
  %v1381 = vsel %vm646, %v1365, %v1380
  %v1382 = vsel %vm49, %v1374, %v1375
  %v1383 = vsel %vm646, %v1367, %v1382
  %1388 = vst [vmem:[#allocation2 + $0x490] sm:$0xff] %v1377
  %1389 = vst [vmem:[#allocation2 + $0x498] sm:$0xff] %v1379
  %1390 = vst [vmem:[#allocation2 + $0x4b0] sm:$0xff] %v1381
  %1391 = vst [vmem:[#allocation2 + $0x4b8] sm:$0xff] %v1383
  %1392 = vrot.lane.b32.xlu0 %v764, 28
  %v1393 = vpop.permute.xlu0 %1392
  %1394 = vrot.lane.b32.xlu0 %v765, 28
  %v1395 = vpop.permute.xlu0 %1394
  %1396 = vrot.lane.b32.xlu0 %v766, 28
  %v1397 = vpop.permute.xlu0 %1396
  %1398 = vrot.lane.b32.xlu0 %v767, 28
  %v1399 = vpop.permute.xlu0 %1398
  %1400 = vrot.lane.b32.xlu0 %v768, 28
  %v1401 = vpop.permute.xlu0 %1400
  %1402 = vrot.lane.b32.xlu0 %v769, 28
  %v1403 = vpop.permute.xlu0 %1402
  %v1404 = vrot.slane %v1393, 4
  %v1405 = vrot.slane %v1395, 4
  %v1406 = vrot.slane %v1397, 4
  %v1407 = vrot.slane %v1399, 4
  %v1408 = vrot.slane %v1401, 4
  %v1409 = vrot.slane %v1403, 4
  %v1410 = vsel %vm49, %v1404, %v1405
  %v1411 = vsel %vm681, %v1393, %v1410
  %v1412 = vsel %vm49, %v1405, %v1406
  %v1413 = vsel %vm681, %v1395, %v1412
  %v1414 = vsel %vm49, %v1407, %v1408
  %v1415 = vsel %vm681, %v1399, %v1414
  %v1416 = vsel %vm49, %v1408, %v1409
  %v1417 = vsel %vm681, %v1401, %v1416
  %1422 = vst [vmem:[#allocation2 + $0x4d0] sm:$0xff] %v1411
  %1423 = vst [vmem:[#allocation2 + $0x4d8] sm:$0xff] %v1413
  %1424 = vst [vmem:[#allocation2 + $0x4f0] sm:$0xff] %v1415
  %1425 = vst [vmem:[#allocation2 + $0x4f8] sm:$0xff] %v1417
  %v1426 = vrot.slane %v764, 4
  %v1427 = vrot.slane %v765, 4
  %v1428 = vrot.slane %v766, 4
  %v1429 = vrot.slane %v767, 4
  %v1430 = vrot.slane %v768, 4
  %v1431 = vrot.slane %v769, 4
  %v1432 = vsel %vm49, %v1426, %v1427
  %v1433 = vsel %vm49, %v1427, %v1428
  %v1434 = vsel %vm49, %v1429, %v1430
  %v1435 = vsel %vm49, %v1430, %v1431
  %1440 = vst [vmem:[#allocation2 + $0x510] sm:$0xff] %v1432
  %1441 = vst [vmem:[#allocation2 + $0x518] sm:$0xff] %v1433
  %1442 = vst [vmem:[#allocation2 + $0x530] sm:$0xff] %v1434
  %1443 = vst [vmem:[#allocation2 + $0x538] sm:$0xff] %v1435
  %v1444 = vsel %vm51, %v798, %v783
  %v1445 = vsel %vm51, %v800, %v785
  %v1446 = vsel %vm51, %v802, %v789
  %v1447 = vsel %vm51, %v804, %v791
  %1452 = vst [vmem:[#allocation2 + $0x550] sm:$0xff] %v1444
  %1453 = vst [vmem:[#allocation2 + $0x558] sm:$0xff] %v1445
  %1454 = vst [vmem:[#allocation2 + $0x570] sm:$0xff] %v1446
  %1455 = vst [vmem:[#allocation2 + $0x578] sm:$0xff] %v1447
  %v1456 = vsel %vm86, %v832, %v817
  %v1457 = vsel %vm86, %v834, %v819
  %v1458 = vsel %vm86, %v836, %v823
  %v1459 = vsel %vm86, %v838, %v825
  %1464 = vst [vmem:[#allocation2 + $0x590] sm:$0xff] %v1456
  %1465 = vst [vmem:[#allocation2 + $0x598] sm:$0xff] %v1457
  %1466 = vst [vmem:[#allocation2 + $0x5b0] sm:$0xff] %v1458
  %1467 = vst [vmem:[#allocation2 + $0x5b8] sm:$0xff] %v1459
  %v1468 = vsel %vm121, %v866, %v851
  %v1469 = vsel %vm121, %v868, %v853
  %v1470 = vsel %vm121, %v870, %v857
  %v1471 = vsel %vm121, %v872, %v859
  %1476 = vst [vmem:[#allocation2 + $0x5d0] sm:$0xff] %v1468
  %1477 = vst [vmem:[#allocation2 + $0x5d8] sm:$0xff] %v1469
  %1478 = vst [vmem:[#allocation2 + $0x5f0] sm:$0xff] %v1470
  %1479 = vst [vmem:[#allocation2 + $0x5f8] sm:$0xff] %v1471
  %v1480 = vsel %vm156, %v900, %v885
  %v1481 = vsel %vm156, %v902, %v887
  %v1482 = vsel %vm156, %v904, %v891
  %v1483 = vsel %vm156, %v906, %v893
  %1488 = vst [vmem:[#allocation2 + $0x610] sm:$0xff] %v1480
  %1489 = vst [vmem:[#allocation2 + $0x618] sm:$0xff] %v1481
  %1490 = vst [vmem:[#allocation2 + $0x630] sm:$0xff] %v1482
  %1491 = vst [vmem:[#allocation2 + $0x638] sm:$0xff] %v1483
  %v1492 = vld [vmem:[%s1] sm:$0xff]
  %v1493 = vld [vmem:[%s1 + $0x8] sm:$0xff]
  %v1494 = vld [vmem:[%s1 + $0x10] sm:$0xff]
  %v1495 = vld [vmem:[%s1 + $0x18] sm:$0xff]
  %v1496 = vld [vmem:[%s1 + $0x20] sm:$0xff]
  %v1497 = vld [vmem:[%s1 + $0x28] sm:$0xff]
  %v1498 = vld [vmem:[%s1 + $0x30] sm:$0xff]
  %v1499 = vld [vmem:[%s1 + $0x38] sm:$0xff]
  %v1500 = vld [vmem:[#allocation2] sm:$0xff]
  %v1501 = vld [vmem:[#allocation2 + $0x8] sm:$0xff]
  %v1502 = vld [vmem:[#allocation2 + $0x10] sm:$0xff]
  %v1503 = vld [vmem:[#allocation2 + $0x18] sm:$0xff]
  %v1504 = vld [vmem:[#allocation2 + $0x20] sm:$0xff]
  %v1505 = vld [vmem:[#allocation2 + $0x28] sm:$0xff]
  %v1506 = vld [vmem:[#allocation2 + $0x30] sm:$0xff]
  %v1507 = vld [vmem:[#allocation2 + $0x38] sm:$0xff]
  %v1508 = vld [vmem:[#allocation2 + $0x40] sm:$0xff]
  %v1509 = vld [vmem:[#allocation2 + $0x48] sm:$0xff]
  %v1510 = vld [vmem:[#allocation2 + $0x50] sm:$0xff]
  %v1511 = vld [vmem:[#allocation2 + $0x58] sm:$0xff]
  %v1512 = vld [vmem:[#allocation2 + $0x60] sm:$0xff]
  %v1513 = vld [vmem:[#allocation2 + $0x68] sm:$0xff]
  %v1514 = vld [vmem:[#allocation2 + $0x70] sm:$0xff]
  %v1515 = vld [vmem:[#allocation2 + $0x78] sm:$0xff]
  %v1516 = vld [vmem:[#allocation2 + $0x80] sm:$0xff]
  %v1517 = vld [vmem:[#allocation2 + $0x88] sm:$0xff]
  %v1518 = vld [vmem:[#allocation2 + $0x90] sm:$0xff]
  %v1519 = vld [vmem:[#allocation2 + $0x98] sm:$0xff]
  %v1520 = vld [vmem:[#allocation2 + $0xa0] sm:$0xff]
  %v1521 = vld [vmem:[#allocation2 + $0xa8] sm:$0xff]
  %v1522 = vld [vmem:[#allocation2 + $0xb0] sm:$0xff]
  %v1523 = vld [vmem:[#allocation2 + $0xb8] sm:$0xff]
  %v1524 = vld [vmem:[#allocation2 + $0xc0] sm:$0xff]
  %v1525 = vld [vmem:[#allocation2 + $0xc8] sm:$0xff]
  %v1526 = vld [vmem:[#allocation2 + $0xd0] sm:$0xff]
  %v1527 = vld [vmem:[#allocation2 + $0xd8] sm:$0xff]
  %v1528 = vld [vmem:[#allocation2 + $0xe0] sm:$0xff]
  %v1529 = vld [vmem:[#allocation2 + $0xe8] sm:$0xff]
  %v1530 = vld [vmem:[#allocation2 + $0xf0] sm:$0xff]
  %v1531 = vld [vmem:[#allocation2 + $0xf8] sm:$0xff]
  %v1532 = vld [vmem:[#allocation2 + $0x100] sm:$0xff]
  %v1533 = vld [vmem:[#allocation2 + $0x108] sm:$0xff]
  %v1534 = vld [vmem:[#allocation2 + $0x110] sm:$0xff]
  %v1535 = vld [vmem:[#allocation2 + $0x118] sm:$0xff]
  %v1536 = vld [vmem:[#allocation2 + $0x120] sm:$0xff]
  %v1537 = vld [vmem:[#allocation2 + $0x128] sm:$0xff]
  %v1538 = vld [vmem:[#allocation2 + $0x130] sm:$0xff]
  %v1539 = vld [vmem:[#allocation2 + $0x138] sm:$0xff]
  %v1540 = vld [vmem:[#allocation2 + $0x140] sm:$0xff]
  %v1541 = vld [vmem:[#allocation2 + $0x148] sm:$0xff]
  %v1542 = vld [vmem:[#allocation2 + $0x150] sm:$0xff]
  %v1543 = vld [vmem:[#allocation2 + $0x158] sm:$0xff]
  %v1544 = vld [vmem:[#allocation2 + $0x160] sm:$0xff]
  %v1545 = vld [vmem:[#allocation2 + $0x168] sm:$0xff]
  %v1546 = vld [vmem:[#allocation2 + $0x170] sm:$0xff]
  %v1547 = vld [vmem:[#allocation2 + $0x178] sm:$0xff]
  %v1548 = vld [vmem:[#allocation2 + $0x180] sm:$0xff]
  %v1549 = vld [vmem:[#allocation2 + $0x188] sm:$0xff]
  %v1550 = vld [vmem:[#allocation2 + $0x190] sm:$0xff]
  %v1551 = vld [vmem:[#allocation2 + $0x198] sm:$0xff]
  %v1552 = vld [vmem:[#allocation2 + $0x1a0] sm:$0xff]
  %v1553 = vld [vmem:[#allocation2 + $0x1a8] sm:$0xff]
  %v1554 = vld [vmem:[#allocation2 + $0x1b0] sm:$0xff]
  %v1555 = vld [vmem:[#allocation2 + $0x1b8] sm:$0xff]
  %v1556 = vld [vmem:[#allocation2 + $0x1c0] sm:$0xff]
  %v1557 = vld [vmem:[#allocation2 + $0x1c8] sm:$0xff]
  %v1558 = vld [vmem:[#allocation2 + $0x1d0] sm:$0xff]
  %v1559 = vld [vmem:[#allocation2 + $0x1d8] sm:$0xff]
  %v1560 = vld [vmem:[#allocation2 + $0x1e0] sm:$0xff]
  %v1561 = vld [vmem:[#allocation2 + $0x1e8] sm:$0xff]
  %v1562 = vld [vmem:[#allocation2 + $0x1f0] sm:$0xff]
  %v1563 = vld [vmem:[#allocation2 + $0x1f8] sm:$0xff]
  %v1564 = vld [vmem:[#allocation2 + $0x200] sm:$0xff]
  %v1565 = vld [vmem:[#allocation2 + $0x208] sm:$0xff]
  %v1566 = vld [vmem:[#allocation2 + $0x210] sm:$0xff]
  %v1567 = vld [vmem:[#allocation2 + $0x218] sm:$0xff]
  %v1568 = vld [vmem:[#allocation2 + $0x220] sm:$0xff]
  %v1569 = vld [vmem:[#allocation2 + $0x228] sm:$0xff]
  %v1570 = vld [vmem:[#allocation2 + $0x230] sm:$0xff]
  %v1571 = vld [vmem:[#allocation2 + $0x238] sm:$0xff]
  %v1572 = vld [vmem:[#allocation2 + $0x240] sm:$0xff]
  %v1573 = vld [vmem:[#allocation2 + $0x248] sm:$0xff]
  %v1574 = vld [vmem:[#allocation2 + $0x250] sm:$0xff]
  %v1575 = vld [vmem:[#allocation2 + $0x258] sm:$0xff]
  %v1576 = vld [vmem:[#allocation2 + $0x260] sm:$0xff]
  %v1577 = vld [vmem:[#allocation2 + $0x268] sm:$0xff]
  %v1578 = vld [vmem:[#allocation2 + $0x270] sm:$0xff]
  %v1579 = vld [vmem:[#allocation2 + $0x278] sm:$0xff]
  %v1580 = vld [vmem:[#allocation2 + $0x280] sm:$0xff]
  %v1581 = vld [vmem:[#allocation2 + $0x288] sm:$0xff]
  %v1582 = vld [vmem:[#allocation2 + $0x290] sm:$0xff]
  %v1583 = vld [vmem:[#allocation2 + $0x298] sm:$0xff]
  %v1584 = vld [vmem:[#allocation2 + $0x2a0] sm:$0xff]
  %v1585 = vld [vmem:[#allocation2 + $0x2a8] sm:$0xff]
  %v1586 = vld [vmem:[#allocation2 + $0x2b0] sm:$0xff]
  %v1587 = vld [vmem:[#allocation2 + $0x2b8] sm:$0xff]
  %v1588 = vld [vmem:[#allocation2 + $0x2c0] sm:$0xff]
  %v1589 = vld [vmem:[#allocation2 + $0x2c8] sm:$0xff]
  %v1590 = vld [vmem:[#allocation2 + $0x2d0] sm:$0xff]
  %v1591 = vld [vmem:[#allocation2 + $0x2d8] sm:$0xff]
  %v1592 = vld [vmem:[#allocation2 + $0x2e0] sm:$0xff]
  %v1593 = vld [vmem:[#allocation2 + $0x2e8] sm:$0xff]
  %v1594 = vld [vmem:[#allocation2 + $0x2f0] sm:$0xff]
  %v1595 = vld [vmem:[#allocation2 + $0x2f8] sm:$0xff]
  %v1596 = vld [vmem:[#allocation2 + $0x300] sm:$0xff]
  %v1597 = vld [vmem:[#allocation2 + $0x308] sm:$0xff]
  %v1598 = vld [vmem:[#allocation2 + $0x310] sm:$0xff]
  %v1599 = vld [vmem:[#allocation2 + $0x318] sm:$0xff]
  %v1600 = vld [vmem:[#allocation2 + $0x320] sm:$0xff]
  %v1601 = vld [vmem:[#allocation2 + $0x328] sm:$0xff]
  %v1602 = vld [vmem:[#allocation2 + $0x330] sm:$0xff]
  %v1603 = vld [vmem:[#allocation2 + $0x338] sm:$0xff]
  %v1604 = vld [vmem:[#allocation2 + $0x340] sm:$0xff]
  %v1605 = vld [vmem:[#allocation2 + $0x348] sm:$0xff]
  %v1606 = vld [vmem:[#allocation2 + $0x350] sm:$0xff]
  %v1607 = vld [vmem:[#allocation2 + $0x358] sm:$0xff]
  %v1608 = vld [vmem:[#allocation2 + $0x360] sm:$0xff]
  %v1609 = vld [vmem:[#allocation2 + $0x368] sm:$0xff]
  %v1610 = vld [vmem:[#allocation2 + $0x370] sm:$0xff]
  %v1611 = vld [vmem:[#allocation2 + $0x378] sm:$0xff]
  %v1612 = vld [vmem:[#allocation2 + $0x380] sm:$0xff]
  %v1613 = vld [vmem:[#allocation2 + $0x388] sm:$0xff]
  %v1614 = vld [vmem:[#allocation2 + $0x390] sm:$0xff]
  %v1615 = vld [vmem:[#allocation2 + $0x398] sm:$0xff]
  %v1616 = vld [vmem:[#allocation2 + $0x3a0] sm:$0xff]
  %v1617 = vld [vmem:[#allocation2 + $0x3a8] sm:$0xff]
  %v1618 = vld [vmem:[#allocation2 + $0x3b0] sm:$0xff]
  %v1619 = vld [vmem:[#allocation2 + $0x3b8] sm:$0xff]
  %v1620 = vld [vmem:[#allocation2 + $0x3c0] sm:$0xff]
  %v1621 = vld [vmem:[#allocation2 + $0x3c8] sm:$0xff]
  %v1622 = vld [vmem:[#allocation2 + $0x3d0] sm:$0xff]
  %v1623 = vld [vmem:[#allocation2 + $0x3d8] sm:$0xff]
  %v1624 = vld [vmem:[#allocation2 + $0x3e0] sm:$0xff]
  %v1625 = vld [vmem:[#allocation2 + $0x3e8] sm:$0xff]
  %v1626 = vld [vmem:[#allocation2 + $0x3f0] sm:$0xff]
  %v1627 = vld [vmem:[#allocation2 + $0x3f8] sm:$0xff]
  %v1628 = vld [vmem:[#allocation2 + $0x400] sm:$0xff]
  %v1629 = vld [vmem:[#allocation2 + $0x408] sm:$0xff]
  %v1630 = vld [vmem:[#allocation2 + $0x410] sm:$0xff]
  %v1631 = vld [vmem:[#allocation2 + $0x418] sm:$0xff]
  %v1632 = vld [vmem:[#allocation2 + $0x420] sm:$0xff]
  %v1633 = vld [vmem:[#allocation2 + $0x428] sm:$0xff]
  %v1634 = vld [vmem:[#allocation2 + $0x430] sm:$0xff]
  %v1635 = vld [vmem:[#allocation2 + $0x438] sm:$0xff]
  %v1636 = vld [vmem:[#allocation2 + $0x440] sm:$0xff]
  %v1637 = vld [vmem:[#allocation2 + $0x448] sm:$0xff]
  %v1638 = vld [vmem:[#allocation2 + $0x450] sm:$0xff]
  %v1639 = vld [vmem:[#allocation2 + $0x458] sm:$0xff]
  %v1640 = vld [vmem:[#allocation2 + $0x460] sm:$0xff]
  %v1641 = vld [vmem:[#allocation2 + $0x468] sm:$0xff]
  %v1642 = vld [vmem:[#allocation2 + $0x470] sm:$0xff]
  %v1643 = vld [vmem:[#allocation2 + $0x478] sm:$0xff]
  %v1644 = vld [vmem:[#allocation2 + $0x480] sm:$0xff]
  %v1645 = vld [vmem:[#allocation2 + $0x488] sm:$0xff]
  %v1646 = vld [vmem:[#allocation2 + $0x490] sm:$0xff]
  %v1647 = vld [vmem:[#allocation2 + $0x498] sm:$0xff]
  %v1648 = vld [vmem:[#allocation2 + $0x4a0] sm:$0xff]
  %v1649 = vld [vmem:[#allocation2 + $0x4a8] sm:$0xff]
  %v1650 = vld [vmem:[#allocation2 + $0x4b0] sm:$0xff]
  %v1651 = vld [vmem:[#allocation2 + $0x4b8] sm:$0xff]
  %v1652 = vld [vmem:[#allocation2 + $0x4c0] sm:$0xff]
  %v1653 = vld [vmem:[#allocation2 + $0x4c8] sm:$0xff]
  %v1654 = vld [vmem:[#allocation2 + $0x4d0] sm:$0xff]
  %v1655 = vld [vmem:[#allocation2 + $0x4d8] sm:$0xff]
  %v1656 = vld [vmem:[#allocation2 + $0x4e0] sm:$0xff]
  %v1657 = vld [vmem:[#allocation2 + $0x4e8] sm:$0xff]
  %v1658 = vld [vmem:[#allocation2 + $0x4f0] sm:$0xff]
  %v1659 = vld [vmem:[#allocation2 + $0x4f8] sm:$0xff]
  %v1660 = vld [vmem:[#allocation2 + $0x500] sm:$0xff]
  %v1661 = vld [vmem:[#allocation2 + $0x508] sm:$0xff]
  %v1662 = vld [vmem:[#allocation2 + $0x510] sm:$0xff]
  %v1663 = vld [vmem:[#allocation2 + $0x518] sm:$0xff]
  %v1664 = vld [vmem:[#allocation2 + $0x520] sm:$0xff]
  %v1665 = vld [vmem:[#allocation2 + $0x528] sm:$0xff]
  %v1666 = vld [vmem:[#allocation2 + $0x530] sm:$0xff]
  %v1667 = vld [vmem:[#allocation2 + $0x538] sm:$0xff]
  %v1668 = vld [vmem:[#allocation2 + $0x540] sm:$0xff]
  %v1669 = vld [vmem:[#allocation2 + $0x548] sm:$0xff]
  %v1670 = vld [vmem:[#allocation2 + $0x550] sm:$0xff]
  %v1671 = vld [vmem:[#allocation2 + $0x558] sm:$0xff]
  %v1672 = vld [vmem:[#allocation2 + $0x560] sm:$0xff]
  %v1673 = vld [vmem:[#allocation2 + $0x568] sm:$0xff]
  %v1674 = vld [vmem:[#allocation2 + $0x570] sm:$0xff]
  %v1675 = vld [vmem:[#allocation2 + $0x578] sm:$0xff]
  %v1676 = vld [vmem:[#allocation2 + $0x580] sm:$0xff]
  %v1677 = vld [vmem:[#allocation2 + $0x588] sm:$0xff]
  %v1678 = vld [vmem:[#allocation2 + $0x590] sm:$0xff]
  %v1679 = vld [vmem:[#allocation2 + $0x598] sm:$0xff]
  %v1680 = vld [vmem:[#allocation2 + $0x5a0] sm:$0xff]
  %v1681 = vld [vmem:[#allocation2 + $0x5a8] sm:$0xff]
  %v1682 = vld [vmem:[#allocation2 + $0x5b0] sm:$0xff]
  %v1683 = vld [vmem:[#allocation2 + $0x5b8] sm:$0xff]
  %v1684 = vld [vmem:[#allocation2 + $0x5c0] sm:$0xff]
  %v1685 = vld [vmem:[#allocation2 + $0x5c8] sm:$0xff]
  %v1686 = vld [vmem:[#allocation2 + $0x5d0] sm:$0xff]
  %v1687 = vld [vmem:[#allocation2 + $0x5d8] sm:$0xff]
  %v1688 = vld [vmem:[#allocation2 + $0x5e0] sm:$0xff]
  %v1689 = vld [vmem:[#allocation2 + $0x5e8] sm:$0xff]
  %v1690 = vld [vmem:[#allocation2 + $0x5f0] sm:$0xff]
  %v1691 = vld [vmem:[#allocation2 + $0x5f8] sm:$0xff]
  %v1692 = vld [vmem:[#allocation2 + $0x600] sm:$0xff]
  %v1693 = vld [vmem:[#allocation2 + $0x608] sm:$0xff]
  %v1694 = vld [vmem:[#allocation2 + $0x610] sm:$0xff]
  %v1695 = vld [vmem:[#allocation2 + $0x618] sm:$0xff]
  %v1696 = vld [vmem:[#allocation2 + $0x620] sm:$0xff]
  %v1697 = vld [vmem:[#allocation2 + $0x628] sm:$0xff]
  %v1698 = vld [vmem:[#allocation2 + $0x630] sm:$0xff]
  %v1699 = vld [vmem:[#allocation2 + $0x638] sm:$0xff]
  %v1700 = vld [vmem:[%s2] sm:$0xff]
  %v1701 = vld [vmem:[%s2 + $0x8] sm:$0xff]
  %v1702 = vld [vmem:[%s2 + $0x10] sm:$0xff]
  %v1703 = vld [vmem:[%s2 + $0x18] sm:$0xff]
  %1705 = vset.pattern.permute.xlu0 0
  %1706 = vperm.xlu0 %1705, %v1700
  %v1707 = vpop.permute.xlu0 %1706
  %1710 = vset.pattern.permute.xlu0 0
  %1711 = vperm.xlu0 %1710, %v1701
  %v1712 = vpop.permute.xlu0 %1711
  %1715 = vset.pattern.permute.xlu0 0
  %1716 = vperm.xlu0 %1715, %v1702
  %v1717 = vpop.permute.xlu0 %1716
  %1720 = vset.pattern.permute.xlu0 0
  %1721 = vperm.xlu0 %1720, %v1703
  %v1722 = vpop.permute.xlu0 %1721
  %v1732 = vunpack.c.l.b16 %v1492
  %v1733 = vunpack.c.h.b16 %v1492
  %v1734 = vunpack.c.l.b16 %v1493
  %v1735 = vunpack.c.h.b16 %v1493
  %v1736 = vunpack.c.l.b16 %v1494
  %v1737 = vunpack.c.h.b16 %v1494
  %v1738 = vunpack.c.l.b16 %v1495
  %v1739 = vunpack.c.h.b16 %v1495
  %v1740 = vunpack.c.l.b16 %v1496
  %v1741 = vunpack.c.h.b16 %v1496
  %v1742 = vunpack.c.l.b16 %v1497
  %v1743 = vunpack.c.h.b16 %v1497
  %v1744 = vunpack.c.l.b16 %v1498
  %v1745 = vunpack.c.h.b16 %v1498
  %v1746 = vunpack.c.l.b16 %v1499
  %v1747 = vunpack.c.h.b16 %v1499
  %v1748 = vpack.c.b16 %v1736, %v1732
  %v1749 = vpack.c.b16 %v1737, %v1733
  %v1750 = vpack.c.b16 %v1738, %v1734
  %v1751 = vpack.c.b16 %v1739, %v1735
  %v1752 = vpack.c.b16 %v1744, %v1740
  %v1753 = vpack.c.b16 %v1745, %v1741
  %v1754 = vpack.c.b16 %v1746, %v1742
  %v1755 = vpack.c.b16 %v1747, %v1743
  %v1962 = vunpack.c.l.b16 %v1500
  %v1963 = vunpack.c.h.b16 %v1500
  %v1964 = vunpack.c.l.b16 %v1501
  %v1965 = vunpack.c.h.b16 %v1501
  %v1966 = vunpack.c.l.b16 %v1502
  %v1967 = vunpack.c.h.b16 %v1502
  %v1968 = vunpack.c.l.b16 %v1503
  %v1969 = vunpack.c.h.b16 %v1503
  %v1970 = vunpack.c.l.b16 %v1504
  %v1971 = vunpack.c.h.b16 %v1504
  %v1972 = vunpack.c.l.b16 %v1505
  %v1973 = vunpack.c.h.b16 %v1505
  %v1974 = vunpack.c.l.b16 %v1506
  %v1975 = vunpack.c.h.b16 %v1506
  %v1976 = vunpack.c.l.b16 %v1507
  %v1977 = vunpack.c.h.b16 %v1507
  %v1978 = vunpack.c.l.b16 %v1508
  %v1979 = vunpack.c.h.b16 %v1508
  %v1980 = vunpack.c.l.b16 %v1509
  %v1981 = vunpack.c.h.b16 %v1509
  %v1982 = vunpack.c.l.b16 %v1510
  %v1983 = vunpack.c.h.b16 %v1510
  %v1984 = vunpack.c.l.b16 %v1511
  %v1985 = vunpack.c.h.b16 %v1511
  %v1986 = vunpack.c.l.b16 %v1512
  %v1987 = vunpack.c.h.b16 %v1512
  %v1988 = vunpack.c.l.b16 %v1513
  %v1989 = vunpack.c.h.b16 %v1513
  %v1990 = vunpack.c.l.b16 %v1514
  %v1991 = vunpack.c.h.b16 %v1514
  %v1992 = vunpack.c.l.b16 %v1515
  %v1993 = vunpack.c.h.b16 %v1515
  %v1994 = vunpack.c.l.b16 %v1516
  %v1995 = vunpack.c.h.b16 %v1516
  %v1996 = vunpack.c.l.b16 %v1517
  %v1997 = vunpack.c.h.b16 %v1517
  %v1998 = vunpack.c.l.b16 %v1518
  %v1999 = vunpack.c.h.b16 %v1518
  %v2000 = vunpack.c.l.b16 %v1519
  %v2001 = vunpack.c.h.b16 %v1519
  %v2002 = vunpack.c.l.b16 %v1520
  %v2003 = vunpack.c.h.b16 %v1520
  %v2004 = vunpack.c.l.b16 %v1521
  %v2005 = vunpack.c.h.b16 %v1521
  %v2006 = vunpack.c.l.b16 %v1522
  %v2007 = vunpack.c.h.b16 %v1522
  %v2008 = vunpack.c.l.b16 %v1523
  %v2009 = vunpack.c.h.b16 %v1523
  %v2010 = vunpack.c.l.b16 %v1524
  %v2011 = vunpack.c.h.b16 %v1524
  %v2012 = vunpack.c.l.b16 %v1525
  %v2013 = vunpack.c.h.b16 %v1525
  %v2014 = vunpack.c.l.b16 %v1526
  %v2015 = vunpack.c.h.b16 %v1526
  %v2016 = vunpack.c.l.b16 %v1527
  %v2017 = vunpack.c.h.b16 %v1527
  %v2018 = vunpack.c.l.b16 %v1528
  %v2019 = vunpack.c.h.b16 %v1528
  %v2020 = vunpack.c.l.b16 %v1529
  %v2021 = vunpack.c.h.b16 %v1529
  %v2022 = vunpack.c.l.b16 %v1530
  %v2023 = vunpack.c.h.b16 %v1530
  %v2024 = vunpack.c.l.b16 %v1531
  %v2025 = vunpack.c.h.b16 %v1531
  %v2026 = vunpack.c.l.b16 %v1532
  %v2027 = vunpack.c.h.b16 %v1532
  %v2028 = vunpack.c.l.b16 %v1533
  %v2029 = vunpack.c.h.b16 %v1533
  %v2030 = vunpack.c.l.b16 %v1534
  %v2031 = vunpack.c.h.b16 %v1534
  %v2032 = vunpack.c.l.b16 %v1535
  %v2033 = vunpack.c.h.b16 %v1535
  %v2034 = vunpack.c.l.b16 %v1536
  %v2035 = vunpack.c.h.b16 %v1536
  %v2036 = vunpack.c.l.b16 %v1537
  %v2037 = vunpack.c.h.b16 %v1537
  %v2038 = vunpack.c.l.b16 %v1538
  %v2039 = vunpack.c.h.b16 %v1538
  %v2040 = vunpack.c.l.b16 %v1539
  %v2041 = vunpack.c.h.b16 %v1539
  %v2042 = vunpack.c.l.b16 %v1540
  %v2043 = vunpack.c.h.b16 %v1540
  %v2044 = vunpack.c.l.b16 %v1541
  %v2045 = vunpack.c.h.b16 %v1541
  %v2046 = vunpack.c.l.b16 %v1542
  %v2047 = vunpack.c.h.b16 %v1542
  %v2048 = vunpack.c.l.b16 %v1543
  %v2049 = vunpack.c.h.b16 %v1543
  %v2050 = vunpack.c.l.b16 %v1544
  %v2051 = vunpack.c.h.b16 %v1544
  %v2052 = vunpack.c.l.b16 %v1545
  %v2053 = vunpack.c.h.b16 %v1545
  %v2054 = vunpack.c.l.b16 %v1546
  %v2055 = vunpack.c.h.b16 %v1546
  %v2056 = vunpack.c.l.b16 %v1547
  %v2057 = vunpack.c.h.b16 %v1547
  %v2058 = vunpack.c.l.b16 %v1548
  %v2059 = vunpack.c.h.b16 %v1548
  %v2060 = vunpack.c.l.b16 %v1549
  %v2061 = vunpack.c.h.b16 %v1549
  %v2062 = vunpack.c.l.b16 %v1550
  %v2063 = vunpack.c.h.b16 %v1550
  %v2064 = vunpack.c.l.b16 %v1551
  %v2065 = vunpack.c.h.b16 %v1551
  %v2066 = vunpack.c.l.b16 %v1552
  %v2067 = vunpack.c.h.b16 %v1552
  %v2068 = vunpack.c.l.b16 %v1553
  %v2069 = vunpack.c.h.b16 %v1553
  %v2070 = vunpack.c.l.b16 %v1554
  %v2071 = vunpack.c.h.b16 %v1554
  %v2072 = vunpack.c.l.b16 %v1555
  %v2073 = vunpack.c.h.b16 %v1555
  %v2074 = vunpack.c.l.b16 %v1556
  %v2075 = vunpack.c.h.b16 %v1556
  %v2076 = vunpack.c.l.b16 %v1557
  %v2077 = vunpack.c.h.b16 %v1557
  %v2078 = vunpack.c.l.b16 %v1558
  %v2079 = vunpack.c.h.b16 %v1558
  %v2080 = vunpack.c.l.b16 %v1559
  %v2081 = vunpack.c.h.b16 %v1559
  %v2082 = vunpack.c.l.b16 %v1560
  %v2083 = vunpack.c.h.b16 %v1560
  %v2084 = vunpack.c.l.b16 %v1561
  %v2085 = vunpack.c.h.b16 %v1561
  %v2086 = vunpack.c.l.b16 %v1562
  %v2087 = vunpack.c.h.b16 %v1562
  %v2088 = vunpack.c.l.b16 %v1563
  %v2089 = vunpack.c.h.b16 %v1563
  %v2090 = vunpack.c.l.b16 %v1564
  %v2091 = vunpack.c.h.b16 %v1564
  %v2092 = vunpack.c.l.b16 %v1565
  %v2093 = vunpack.c.h.b16 %v1565
  %v2094 = vunpack.c.l.b16 %v1566
  %v2095 = vunpack.c.h.b16 %v1566
  %v2096 = vunpack.c.l.b16 %v1567
  %v2097 = vunpack.c.h.b16 %v1567
  %v2098 = vunpack.c.l.b16 %v1568
  %v2099 = vunpack.c.h.b16 %v1568
  %v2100 = vunpack.c.l.b16 %v1569
  %v2101 = vunpack.c.h.b16 %v1569
  %v2102 = vunpack.c.l.b16 %v1570
  %v2103 = vunpack.c.h.b16 %v1570
  %v2104 = vunpack.c.l.b16 %v1571
  %v2105 = vunpack.c.h.b16 %v1571
  %v2106 = vunpack.c.l.b16 %v1572
  %v2107 = vunpack.c.h.b16 %v1572
  %v2108 = vunpack.c.l.b16 %v1573
  %v2109 = vunpack.c.h.b16 %v1573
  %v2110 = vunpack.c.l.b16 %v1574
  %v2111 = vunpack.c.h.b16 %v1574
  %v2112 = vunpack.c.l.b16 %v1575
  %v2113 = vunpack.c.h.b16 %v1575
  %v2114 = vunpack.c.l.b16 %v1576
  %v2115 = vunpack.c.h.b16 %v1576
  %v2116 = vunpack.c.l.b16 %v1577
  %v2117 = vunpack.c.h.b16 %v1577
  %v2118 = vunpack.c.l.b16 %v1578
  %v2119 = vunpack.c.h.b16 %v1578
  %v2120 = vunpack.c.l.b16 %v1579
  %v2121 = vunpack.c.h.b16 %v1579
  %v2122 = vunpack.c.l.b16 %v1580
  %v2123 = vunpack.c.h.b16 %v1580
  %v2124 = vunpack.c.l.b16 %v1581
  %v2125 = vunpack.c.h.b16 %v1581
  %v2126 = vunpack.c.l.b16 %v1582
  %v2127 = vunpack.c.h.b16 %v1582
  %v2128 = vunpack.c.l.b16 %v1583
  %v2129 = vunpack.c.h.b16 %v1583
  %v2130 = vunpack.c.l.b16 %v1584
  %v2131 = vunpack.c.h.b16 %v1584
  %v2132 = vunpack.c.l.b16 %v1585
  %v2133 = vunpack.c.h.b16 %v1585
  %v2134 = vunpack.c.l.b16 %v1586
  %v2135 = vunpack.c.h.b16 %v1586
  %v2136 = vunpack.c.l.b16 %v1587
  %v2137 = vunpack.c.h.b16 %v1587
  %v2138 = vunpack.c.l.b16 %v1588
  %v2139 = vunpack.c.h.b16 %v1588
  %v2140 = vunpack.c.l.b16 %v1589
  %v2141 = vunpack.c.h.b16 %v1589
  %v2142 = vunpack.c.l.b16 %v1590
  %v2143 = vunpack.c.h.b16 %v1590
  %v2144 = vunpack.c.l.b16 %v1591
  %v2145 = vunpack.c.h.b16 %v1591
  %v2146 = vunpack.c.l.b16 %v1592
  %v2147 = vunpack.c.h.b16 %v1592
  %v2148 = vunpack.c.l.b16 %v1593
  %v2149 = vunpack.c.h.b16 %v1593
  %v2150 = vunpack.c.l.b16 %v1594
  %v2151 = vunpack.c.h.b16 %v1594
  %v2152 = vunpack.c.l.b16 %v1595
  %v2153 = vunpack.c.h.b16 %v1595
  %v2154 = vunpack.c.l.b16 %v1596
  %v2155 = vunpack.c.h.b16 %v1596
  %v2156 = vunpack.c.l.b16 %v1597
  %v2157 = vunpack.c.h.b16 %v1597
  %v2158 = vunpack.c.l.b16 %v1598
  %v2159 = vunpack.c.h.b16 %v1598
  %v2160 = vunpack.c.l.b16 %v1599
  %v2161 = vunpack.c.h.b16 %v1599
  %v2162 = vunpack.c.l.b16 %v1600
  %v2163 = vunpack.c.h.b16 %v1600
  %v2164 = vunpack.c.l.b16 %v1601
  %v2165 = vunpack.c.h.b16 %v1601
  %v2166 = vunpack.c.l.b16 %v1602
  %v2167 = vunpack.c.h.b16 %v1602
  %v2168 = vunpack.c.l.b16 %v1603
  %v2169 = vunpack.c.h.b16 %v1603
  %v2170 = vunpack.c.l.b16 %v1604
  %v2171 = vunpack.c.h.b16 %v1604
  %v2172 = vunpack.c.l.b16 %v1605
  %v2173 = vunpack.c.h.b16 %v1605
  %v2174 = vunpack.c.l.b16 %v1606
  %v2175 = vunpack.c.h.b16 %v1606
  %v2176 = vunpack.c.l.b16 %v1607
  %v2177 = vunpack.c.h.b16 %v1607
  %v2178 = vunpack.c.l.b16 %v1608
  %v2179 = vunpack.c.h.b16 %v1608
  %v2180 = vunpack.c.l.b16 %v1609
  %v2181 = vunpack.c.h.b16 %v1609
  %v2182 = vunpack.c.l.b16 %v1610
  %v2183 = vunpack.c.h.b16 %v1610
  %v2184 = vunpack.c.l.b16 %v1611
  %v2185 = vunpack.c.h.b16 %v1611
  %v2186 = vunpack.c.l.b16 %v1612
  %v2187 = vunpack.c.h.b16 %v1612
  %v2188 = vunpack.c.l.b16 %v1613
  %v2189 = vunpack.c.h.b16 %v1613
  %v2190 = vunpack.c.l.b16 %v1614
  %v2191 = vunpack.c.h.b16 %v1614
  %v2192 = vunpack.c.l.b16 %v1615
  %v2193 = vunpack.c.h.b16 %v1615
  %v2194 = vunpack.c.l.b16 %v1616
  %v2195 = vunpack.c.h.b16 %v1616
  %v2196 = vunpack.c.l.b16 %v1617
  %v2197 = vunpack.c.h.b16 %v1617
  %v2198 = vunpack.c.l.b16 %v1618
  %v2199 = vunpack.c.h.b16 %v1618
  %v2200 = vunpack.c.l.b16 %v1619
  %v2201 = vunpack.c.h.b16 %v1619
  %v2202 = vunpack.c.l.b16 %v1620
  %v2203 = vunpack.c.h.b16 %v1620
  %v2204 = vunpack.c.l.b16 %v1621
  %v2205 = vunpack.c.h.b16 %v1621
  %v2206 = vunpack.c.l.b16 %v1622
  %v2207 = vunpack.c.h.b16 %v1622
  %v2208 = vunpack.c.l.b16 %v1623
  %v2209 = vunpack.c.h.b16 %v1623
  %v2210 = vunpack.c.l.b16 %v1624
  %v2211 = vunpack.c.h.b16 %v1624
  %v2212 = vunpack.c.l.b16 %v1625
  %v2213 = vunpack.c.h.b16 %v1625
  %v2214 = vunpack.c.l.b16 %v1626
  %v2215 = vunpack.c.h.b16 %v1626
  %v2216 = vunpack.c.l.b16 %v1627
  %v2217 = vunpack.c.h.b16 %v1627
  %v2218 = vunpack.c.l.b16 %v1628
  %v2219 = vunpack.c.h.b16 %v1628
  %v2220 = vunpack.c.l.b16 %v1629
  %v2221 = vunpack.c.h.b16 %v1629
  %v2222 = vunpack.c.l.b16 %v1630
  %v2223 = vunpack.c.h.b16 %v1630
  %v2224 = vunpack.c.l.b16 %v1631
  %v2225 = vunpack.c.h.b16 %v1631
  %v2226 = vunpack.c.l.b16 %v1632
  %v2227 = vunpack.c.h.b16 %v1632
  %v2228 = vunpack.c.l.b16 %v1633
  %v2229 = vunpack.c.h.b16 %v1633
  %v2230 = vunpack.c.l.b16 %v1634
  %v2231 = vunpack.c.h.b16 %v1634
  %v2232 = vunpack.c.l.b16 %v1635
  %v2233 = vunpack.c.h.b16 %v1635
  %v2234 = vunpack.c.l.b16 %v1636
  %v2235 = vunpack.c.h.b16 %v1636
  %v2236 = vunpack.c.l.b16 %v1637
  %v2237 = vunpack.c.h.b16 %v1637
  %v2238 = vunpack.c.l.b16 %v1638
  %v2239 = vunpack.c.h.b16 %v1638
  %v2240 = vunpack.c.l.b16 %v1639
  %v2241 = vunpack.c.h.b16 %v1639
  %v2242 = vunpack.c.l.b16 %v1640
  %v2243 = vunpack.c.h.b16 %v1640
  %v2244 = vunpack.c.l.b16 %v1641
  %v2245 = vunpack.c.h.b16 %v1641
  %v2246 = vunpack.c.l.b16 %v1642
  %v2247 = vunpack.c.h.b16 %v1642
  %v2248 = vunpack.c.l.b16 %v1643
  %v2249 = vunpack.c.h.b16 %v1643
  %v2250 = vunpack.c.l.b16 %v1644
  %v2251 = vunpack.c.h.b16 %v1644
  %v2252 = vunpack.c.l.b16 %v1645
  %v2253 = vunpack.c.h.b16 %v1645
  %v2254 = vunpack.c.l.b16 %v1646
  %v2255 = vunpack.c.h.b16 %v1646
  %v2256 = vunpack.c.l.b16 %v1647
  %v2257 = vunpack.c.h.b16 %v1647
  %v2258 = vunpack.c.l.b16 %v1648
  %v2259 = vunpack.c.h.b16 %v1648
  %v2260 = vunpack.c.l.b16 %v1649
  %v2261 = vunpack.c.h.b16 %v1649
  %v2262 = vunpack.c.l.b16 %v1650
  %v2263 = vunpack.c.h.b16 %v1650
  %v2264 = vunpack.c.l.b16 %v1651
  %v2265 = vunpack.c.h.b16 %v1651
  %v2266 = vunpack.c.l.b16 %v1652
  %v2267 = vunpack.c.h.b16 %v1652
  %v2268 = vunpack.c.l.b16 %v1653
  %v2269 = vunpack.c.h.b16 %v1653
  %v2270 = vunpack.c.l.b16 %v1654
  %v2271 = vunpack.c.h.b16 %v1654
  %v2272 = vunpack.c.l.b16 %v1655
  %v2273 = vunpack.c.h.b16 %v1655
  %v2274 = vunpack.c.l.b16 %v1656
  %v2275 = vunpack.c.h.b16 %v1656
  %v2276 = vunpack.c.l.b16 %v1657
  %v2277 = vunpack.c.h.b16 %v1657
  %v2278 = vunpack.c.l.b16 %v1658
  %v2279 = vunpack.c.h.b16 %v1658
  %v2280 = vunpack.c.l.b16 %v1659
  %v2281 = vunpack.c.h.b16 %v1659
  %v2282 = vunpack.c.l.b16 %v1660
  %v2283 = vunpack.c.h.b16 %v1660
  %v2284 = vunpack.c.l.b16 %v1661
  %v2285 = vunpack.c.h.b16 %v1661
  %v2286 = vunpack.c.l.b16 %v1662
  %v2287 = vunpack.c.h.b16 %v1662
  %v2288 = vunpack.c.l.b16 %v1663
  %v2289 = vunpack.c.h.b16 %v1663
  %v2290 = vunpack.c.l.b16 %v1664
  %v2291 = vunpack.c.h.b16 %v1664
  %v2292 = vunpack.c.l.b16 %v1665
  %v2293 = vunpack.c.h.b16 %v1665
  %v2294 = vunpack.c.l.b16 %v1666
  %v2295 = vunpack.c.h.b16 %v1666
  %v2296 = vunpack.c.l.b16 %v1667
  %v2297 = vunpack.c.h.b16 %v1667
  %v2298 = vunpack.c.l.b16 %v1668
  %v2299 = vunpack.c.h.b16 %v1668
  %v2300 = vunpack.c.l.b16 %v1669
  %v2301 = vunpack.c.h.b16 %v1669
  %v2302 = vunpack.c.l.b16 %v1670
  %v2303 = vunpack.c.h.b16 %v1670
  %v2304 = vunpack.c.l.b16 %v1671
  %v2305 = vunpack.c.h.b16 %v1671
  %v2306 = vunpack.c.l.b16 %v1672
  %v2307 = vunpack.c.h.b16 %v1672
  %v2308 = vunpack.c.l.b16 %v1673
  %v2309 = vunpack.c.h.b16 %v1673
  %v2310 = vunpack.c.l.b16 %v1674
  %v2311 = vunpack.c.h.b16 %v1674
  %v2312 = vunpack.c.l.b16 %v1675
  %v2313 = vunpack.c.h.b16 %v1675
  %v2314 = vunpack.c.l.b16 %v1676
  %v2315 = vunpack.c.h.b16 %v1676
  %v2316 = vunpack.c.l.b16 %v1677
  %v2317 = vunpack.c.h.b16 %v1677
  %v2318 = vunpack.c.l.b16 %v1678
  %v2319 = vunpack.c.h.b16 %v1678
  %v2320 = vunpack.c.l.b16 %v1679
  %v2321 = vunpack.c.h.b16 %v1679
  %v2322 = vunpack.c.l.b16 %v1680
  %v2323 = vunpack.c.h.b16 %v1680
  %v2324 = vunpack.c.l.b16 %v1681
  %v2325 = vunpack.c.h.b16 %v1681
  %v2326 = vunpack.c.l.b16 %v1682
  %v2327 = vunpack.c.h.b16 %v1682
  %v2328 = vunpack.c.l.b16 %v1683
  %v2329 = vunpack.c.h.b16 %v1683
  %v2330 = vunpack.c.l.b16 %v1684
  %v2331 = vunpack.c.h.b16 %v1684
  %v2332 = vunpack.c.l.b16 %v1685
  %v2333 = vunpack.c.h.b16 %v1685
  %v2334 = vunpack.c.l.b16 %v1686
  %v2335 = vunpack.c.h.b16 %v1686
  %v2336 = vunpack.c.l.b16 %v1687
  %v2337 = vunpack.c.h.b16 %v1687
  %v2338 = vunpack.c.l.b16 %v1688
  %v2339 = vunpack.c.h.b16 %v1688
  %v2340 = vunpack.c.l.b16 %v1689
  %v2341 = vunpack.c.h.b16 %v1689
  %v2342 = vunpack.c.l.b16 %v1690
  %v2343 = vunpack.c.h.b16 %v1690
  %v2344 = vunpack.c.l.b16 %v1691
  %v2345 = vunpack.c.h.b16 %v1691
  %v2346 = vunpack.c.l.b16 %v1692
  %v2347 = vunpack.c.h.b16 %v1692
  %v2348 = vunpack.c.l.b16 %v1693
  %v2349 = vunpack.c.h.b16 %v1693
  %v2350 = vunpack.c.l.b16 %v1694
  %v2351 = vunpack.c.h.b16 %v1694
  %v2352 = vunpack.c.l.b16 %v1695
  %v2353 = vunpack.c.h.b16 %v1695
  %v2354 = vunpack.c.l.b16 %v1696
  %v2355 = vunpack.c.h.b16 %v1696
  %v2356 = vunpack.c.l.b16 %v1697
  %v2357 = vunpack.c.h.b16 %v1697
  %v2358 = vunpack.c.l.b16 %v1698
  %v2359 = vunpack.c.h.b16 %v1698
  %v2360 = vunpack.c.l.b16 %v1699
  %v2361 = vunpack.c.h.b16 %v1699
  %v2362 = vpack.c.b16 %v1970, %v1962
  %v2363 = vpack.c.b16 %v1971, %v1963
  %v2364 = vpack.c.b16 %v1972, %v1964
  %v2365 = vpack.c.b16 %v1973, %v1965
  %v2366 = vpack.c.b16 %v1974, %v1966
  %v2367 = vpack.c.b16 %v1975, %v1967
  %v2368 = vpack.c.b16 %v1976, %v1968
  %v2369 = vpack.c.b16 %v1977, %v1969
  %v2370 = vpack.c.b16 %v1986, %v1978
  %v2371 = vpack.c.b16 %v1987, %v1979
  %v2372 = vpack.c.b16 %v1988, %v1980
  %v2373 = vpack.c.b16 %v1989, %v1981
  %v2374 = vpack.c.b16 %v1990, %v1982
  %v2375 = vpack.c.b16 %v1991, %v1983
  %v2376 = vpack.c.b16 %v1992, %v1984
  %v2377 = vpack.c.b16 %v1993, %v1985
  %v2378 = vpack.c.b16 %v2002, %v1994
  %v2379 = vpack.c.b16 %v2003, %v1995
  %v2380 = vpack.c.b16 %v2004, %v1996
  %v2381 = vpack.c.b16 %v2005, %v1997
  %v2382 = vpack.c.b16 %v2006, %v1998
  %v2383 = vpack.c.b16 %v2007, %v1999
  %v2384 = vpack.c.b16 %v2008, %v2000
  %v2385 = vpack.c.b16 %v2009, %v2001
  %v2386 = vpack.c.b16 %v2018, %v2010
  %v2387 = vpack.c.b16 %v2019, %v2011
  %v2388 = vpack.c.b16 %v2020, %v2012
  %v2389 = vpack.c.b16 %v2021, %v2013
  %v2390 = vpack.c.b16 %v2022, %v2014
  %v2391 = vpack.c.b16 %v2023, %v2015
  %v2392 = vpack.c.b16 %v2024, %v2016
  %v2393 = vpack.c.b16 %v2025, %v2017
  %v2394 = vpack.c.b16 %v2034, %v2026
  %v2395 = vpack.c.b16 %v2035, %v2027
  %v2396 = vpack.c.b16 %v2036, %v2028
  %v2397 = vpack.c.b16 %v2037, %v2029
  %v2398 = vpack.c.b16 %v2038, %v2030
  %v2399 = vpack.c.b16 %v2039, %v2031
  %v2400 = vpack.c.b16 %v2040, %v2032
  %v2401 = vpack.c.b16 %v2041, %v2033
  %v2402 = vpack.c.b16 %v2050, %v2042
  %v2403 = vpack.c.b16 %v2051, %v2043
  %v2404 = vpack.c.b16 %v2052, %v2044
  %v2405 = vpack.c.b16 %v2053, %v2045
  %v2406 = vpack.c.b16 %v2054, %v2046
  %v2407 = vpack.c.b16 %v2055, %v2047
  %v2408 = vpack.c.b16 %v2056, %v2048
  %v2409 = vpack.c.b16 %v2057, %v2049
  %v2410 = vpack.c.b16 %v2066, %v2058
  %v2411 = vpack.c.b16 %v2067, %v2059
  %v2412 = vpack.c.b16 %v2068, %v2060
  %v2413 = vpack.c.b16 %v2069, %v2061
  %v2414 = vpack.c.b16 %v2070, %v2062
  %v2415 = vpack.c.b16 %v2071, %v2063
  %v2416 = vpack.c.b16 %v2072, %v2064
  %v2417 = vpack.c.b16 %v2073, %v2065
  %v2418 = vpack.c.b16 %v2082, %v2074
  %v2419 = vpack.c.b16 %v2083, %v2075
  %v2420 = vpack.c.b16 %v2084, %v2076
  %v2421 = vpack.c.b16 %v2085, %v2077
  %v2422 = vpack.c.b16 %v2086, %v2078
  %v2423 = vpack.c.b16 %v2087, %v2079
  %v2424 = vpack.c.b16 %v2088, %v2080
  %v2425 = vpack.c.b16 %v2089, %v2081
  %v2426 = vpack.c.b16 %v2098, %v2090
  %v2427 = vpack.c.b16 %v2099, %v2091
  %v2428 = vpack.c.b16 %v2100, %v2092
  %v2429 = vpack.c.b16 %v2101, %v2093
  %v2430 = vpack.c.b16 %v2102, %v2094
  %v2431 = vpack.c.b16 %v2103, %v2095
  %v2432 = vpack.c.b16 %v2104, %v2096
  %v2433 = vpack.c.b16 %v2105, %v2097
  %v2434 = vpack.c.b16 %v2114, %v2106
  %v2435 = vpack.c.b16 %v2115, %v2107
  %v2436 = vpack.c.b16 %v2116, %v2108
  %v2437 = vpack.c.b16 %v2117, %v2109
  %v2438 = vpack.c.b16 %v2118, %v2110
  %v2439 = vpack.c.b16 %v2119, %v2111
  %v2440 = vpack.c.b16 %v2120, %v2112
  %v2441 = vpack.c.b16 %v2121, %v2113
  %v2442 = vpack.c.b16 %v2130, %v2122
  %v2443 = vpack.c.b16 %v2131, %v2123
  %v2444 = vpack.c.b16 %v2132, %v2124
  %v2445 = vpack.c.b16 %v2133, %v2125
  %v2446 = vpack.c.b16 %v2134, %v2126
  %v2447 = vpack.c.b16 %v2135, %v2127
  %v2448 = vpack.c.b16 %v2136, %v2128
  %v2449 = vpack.c.b16 %v2137, %v2129
  %v2450 = vpack.c.b16 %v2146, %v2138
  %v2451 = vpack.c.b16 %v2147, %v2139
  %v2452 = vpack.c.b16 %v2148, %v2140
  %v2453 = vpack.c.b16 %v2149, %v2141
  %v2454 = vpack.c.b16 %v2150, %v2142
  %v2455 = vpack.c.b16 %v2151, %v2143
  %v2456 = vpack.c.b16 %v2152, %v2144
  %v2457 = vpack.c.b16 %v2153, %v2145
  %v2458 = vpack.c.b16 %v2162, %v2154
  %v2459 = vpack.c.b16 %v2163, %v2155
  %v2460 = vpack.c.b16 %v2164, %v2156
  %v2461 = vpack.c.b16 %v2165, %v2157
  %v2462 = vpack.c.b16 %v2166, %v2158
  %v2463 = vpack.c.b16 %v2167, %v2159
  %v2464 = vpack.c.b16 %v2168, %v2160
  %v2465 = vpack.c.b16 %v2169, %v2161
  %v2466 = vpack.c.b16 %v2178, %v2170
  %v2467 = vpack.c.b16 %v2179, %v2171
  %v2468 = vpack.c.b16 %v2180, %v2172
  %v2469 = vpack.c.b16 %v2181, %v2173
  %v2470 = vpack.c.b16 %v2182, %v2174
  %v2471 = vpack.c.b16 %v2183, %v2175
  %v2472 = vpack.c.b16 %v2184, %v2176
  %v2473 = vpack.c.b16 %v2185, %v2177
  %v2474 = vpack.c.b16 %v2194, %v2186
  %v2475 = vpack.c.b16 %v2195, %v2187
  %v2476 = vpack.c.b16 %v2196, %v2188
  %v2477 = vpack.c.b16 %v2197, %v2189
  %v2478 = vpack.c.b16 %v2198, %v2190
  %v2479 = vpack.c.b16 %v2199, %v2191
  %v2480 = vpack.c.b16 %v2200, %v2192
  %v2481 = vpack.c.b16 %v2201, %v2193
  %v2482 = vpack.c.b16 %v2210, %v2202
  %v2483 = vpack.c.b16 %v2211, %v2203
  %v2484 = vpack.c.b16 %v2212, %v2204
  %v2485 = vpack.c.b16 %v2213, %v2205
  %v2486 = vpack.c.b16 %v2214, %v2206
  %v2487 = vpack.c.b16 %v2215, %v2207
  %v2488 = vpack.c.b16 %v2216, %v2208
  %v2489 = vpack.c.b16 %v2217, %v2209
  %v2490 = vpack.c.b16 %v2226, %v2218
  %v2491 = vpack.c.b16 %v2227, %v2219
  %v2492 = vpack.c.b16 %v2228, %v2220
  %v2493 = vpack.c.b16 %v2229, %v2221
  %v2494 = vpack.c.b16 %v2230, %v2222
  %v2495 = vpack.c.b16 %v2231, %v2223
  %v2496 = vpack.c.b16 %v2232, %v2224
  %v2497 = vpack.c.b16 %v2233, %v2225
  %v2498 = vpack.c.b16 %v2242, %v2234
  %v2499 = vpack.c.b16 %v2243, %v2235
  %v2500 = vpack.c.b16 %v2244, %v2236
  %v2501 = vpack.c.b16 %v2245, %v2237
  %v2502 = vpack.c.b16 %v2246, %v2238
  %v2503 = vpack.c.b16 %v2247, %v2239
  %v2504 = vpack.c.b16 %v2248, %v2240
  %v2505 = vpack.c.b16 %v2249, %v2241
  %v2506 = vpack.c.b16 %v2258, %v2250
  %v2507 = vpack.c.b16 %v2259, %v2251
  %v2508 = vpack.c.b16 %v2260, %v2252
  %v2509 = vpack.c.b16 %v2261, %v2253
  %v2510 = vpack.c.b16 %v2262, %v2254
  %v2511 = vpack.c.b16 %v2263, %v2255
  %v2512 = vpack.c.b16 %v2264, %v2256
  %v2513 = vpack.c.b16 %v2265, %v2257
  %v2514 = vpack.c.b16 %v2274, %v2266
  %v2515 = vpack.c.b16 %v2275, %v2267
  %v2516 = vpack.c.b16 %v2276, %v2268
  %v2517 = vpack.c.b16 %v2277, %v2269
  %v2518 = vpack.c.b16 %v2278, %v2270
  %v2519 = vpack.c.b16 %v2279, %v2271
  %v2520 = vpack.c.b16 %v2280, %v2272
  %v2521 = vpack.c.b16 %v2281, %v2273
  %v2522 = vpack.c.b16 %v2290, %v2282
  %v2523 = vpack.c.b16 %v2291, %v2283
  %v2524 = vpack.c.b16 %v2292, %v2284
  %v2525 = vpack.c.b16 %v2293, %v2285
  %v2526 = vpack.c.b16 %v2294, %v2286
  %v2527 = vpack.c.b16 %v2295, %v2287
  %v2528 = vpack.c.b16 %v2296, %v2288
  %v2529 = vpack.c.b16 %v2297, %v2289
  %v2530 = vpack.c.b16 %v2306, %v2298
  %v2531 = vpack.c.b16 %v2307, %v2299
  %v2532 = vpack.c.b16 %v2308, %v2300
  %v2533 = vpack.c.b16 %v2309, %v2301
  %v2534 = vpack.c.b16 %v2310, %v2302
  %v2535 = vpack.c.b16 %v2311, %v2303
  %v2536 = vpack.c.b16 %v2312, %v2304
  %v2537 = vpack.c.b16 %v2313, %v2305
  %v2538 = vpack.c.b16 %v2322, %v2314
  %v2539 = vpack.c.b16 %v2323, %v2315
  %v2540 = vpack.c.b16 %v2324, %v2316
  %v2541 = vpack.c.b16 %v2325, %v2317
  %v2542 = vpack.c.b16 %v2326, %v2318
  %v2543 = vpack.c.b16 %v2327, %v2319
  %v2544 = vpack.c.b16 %v2328, %v2320
  %v2545 = vpack.c.b16 %v2329, %v2321
  %v2546 = vpack.c.b16 %v2338, %v2330
  %v2547 = vpack.c.b16 %v2339, %v2331
  %v2548 = vpack.c.b16 %v2340, %v2332
  %v2549 = vpack.c.b16 %v2341, %v2333
  %v2550 = vpack.c.b16 %v2342, %v2334
  %v2551 = vpack.c.b16 %v2343, %v2335
  %v2552 = vpack.c.b16 %v2344, %v2336
  %v2553 = vpack.c.b16 %v2345, %v2337
  %v2554 = vpack.c.b16 %v2354, %v2346
  %v2555 = vpack.c.b16 %v2355, %v2347
  %v2556 = vpack.c.b16 %v2356, %v2348
  %v2557 = vpack.c.b16 %v2357, %v2349
  %v2558 = vpack.c.b16 %v2358, %v2350
  %v2559 = vpack.c.b16 %v2359, %v2351
  %v2560 = vpack.c.b16 %v2360, %v2352
  %v2561 = vpack.c.b16 %v2361, %v2353
  %vm2762 = vcmask 130048
  %v2764 = vsel %vm2762, %v1751, 0
  %v2767 = vsel %vm2762, %v1755, 0
  %2769 = vmatpush.bf16.msra.mxu0 %v2418
  %2770 = vmatpush.bf16.msra.mxu0 %v2410
  %2771 = vmatpush.bf16.msra.mxu0 %v2402
  %2772 = vmatpush.bf16.msra.mxu0 %v2394
  %2773 = vmatpush.bf16.msra.mxu0 %v2386
  %2774 = vmatpush.bf16.msra.mxu0 %v2378
  %2775 = vmatpush.bf16.msra.mxu0 %v2370
  %2776 = vmatpush.bf16.msra.mxu0 %v2362
  %2777 = vmatmul.bf16.gmra.mxu0 %v1748
  %v2778 = vpop.f32.mrf.mxu0
  %v2779 = vadd.f32 %v1707, %v2778
  %v2780 = vpop.f32.mrf.mxu0
  %v2781 = vadd.f32 %v1712, %v2780
  %2782 = vmatmul.bf16.gmra.mxu0 %v1752
  %v2783 = vpop.f32.mrf.mxu0
  %v2784 = vadd.f32 %v1717, %v2783
  %v2785 = vpop.f32.mrf.mxu0
  %v2786 = vadd.f32 %v1722, %v2785
  %2787 = vdwg.mxu0
  %2788 = vmatpush.bf16.msra.mxu0 %v2482
  %2789 = vmatpush.bf16.msra.mxu0 %v2474
  %2790 = vmatpush.bf16.msra.mxu0 %v2466
  %2791 = vmatpush.bf16.msra.mxu0 %v2458
  %2792 = vmatpush.bf16.msra.mxu0 %v2450
  %2793 = vmatpush.bf16.msra.mxu0 %v2442
  %2794 = vmatpush.bf16.msra.mxu0 %v2434
  %2795 = vmatpush.bf16.msra.mxu0 %v2426
  %2796 = vmatmul.bf16.gmra.mxu0 %v1749
  %v2797 = vpop.f32.mrf.mxu0
  %v2798 = vadd.f32 %v2779, %v2797
  %v2799 = vpop.f32.mrf.mxu0
  %v2800 = vadd.f32 %v2781, %v2799
  %2801 = vmatmul.bf16.gmra.mxu0 %v1753
  %v2802 = vpop.f32.mrf.mxu0
  %v2803 = vadd.f32 %v2784, %v2802
  %v2804 = vpop.f32.mrf.mxu0
  %v2805 = vadd.f32 %v2786, %v2804
  %2806 = vdwg.mxu0
  %2807 = vmatpush.bf16.msra.mxu0 %v2546
  %2808 = vmatpush.bf16.msra.mxu0 %v2538
  %2809 = vmatpush.bf16.msra.mxu0 %v2530
  %2810 = vmatpush.bf16.msra.mxu0 %v2522
  %2811 = vmatpush.bf16.msra.mxu0 %v2514
  %2812 = vmatpush.bf16.msra.mxu0 %v2506
  %2813 = vmatpush.bf16.msra.mxu0 %v2498
  %2814 = vmatpush.bf16.msra.mxu0 %v2490
  %2815 = vmatmul.bf16.gmra.mxu0 %v1750
  %v2816 = vpop.f32.mrf.mxu0
  %v2817 = vadd.f32 %v2798, %v2816
  %v2818 = vpop.f32.mrf.mxu0
  %v2819 = vadd.f32 %v2800, %v2818
  %2820 = vmatmul.bf16.gmra.mxu0 %v1754
  %v2821 = vpop.f32.mrf.mxu0
  %v2822 = vadd.f32 %v2803, %v2821
  %v2823 = vpop.f32.mrf.mxu0
  %v2824 = vadd.f32 %v2805, %v2823
  %2825 = vdwg.mxu0
  %2826 = vmatpush.bf16.msra.mxu0 0
  %2827 = vmatpush.bf16.msra.mxu0 0
  %2828 = vmatpush.bf16.msra.mxu0 0
  %2829 = vmatpush.bf16.msra.mxu0 0
  %2830 = vmatpush.bf16.msra.mxu0 0
  %2831 = vmatpush.bf16.msra.mxu0 0
  %2832 = vmatpush.bf16.msra.mxu0 0
  %2833 = vmatpush.bf16.msra.mxu0 %v2554
  %2834 = vmatmul.bf16.gmra.mxu0 %v2764
  %v2835 = vpop.f32.mrf.mxu0
  %v2836 = vadd.f32 %v2817, %v2835
  %v2837 = vpop.f32.mrf.mxu0
  %v2838 = vadd.f32 %v2819, %v2837
  %2839 = vmatmul.bf16.gmra.mxu0 %v2767
  %v2840 = vpop.f32.mrf.mxu0
  %v2841 = vadd.f32 %v2822, %v2840
  %v2842 = vpop.f32.mrf.mxu0
  %v2843 = vadd.f32 %v2824, %v2842
  %2844 = vdwg.mxu0
  %2845 = vmatpush.bf16.msra.mxu0 %v2419
  %2846 = vmatpush.bf16.msra.mxu0 %v2411
  %2847 = vmatpush.bf16.msra.mxu0 %v2403
  %2848 = vmatpush.bf16.msra.mxu0 %v2395
  %2849 = vmatpush.bf16.msra.mxu0 %v2387
  %2850 = vmatpush.bf16.msra.mxu0 %v2379
  %2851 = vmatpush.bf16.msra.mxu0 %v2371
  %2852 = vmatpush.bf16.msra.mxu0 %v2363
  %2853 = vmatmul.bf16.gmra.mxu0 %v1748
  %v2854 = vpop.f32.mrf.mxu0
  %v2855 = vadd.f32 %v1707, %v2854
  %v2856 = vpop.f32.mrf.mxu0
  %v2857 = vadd.f32 %v1712, %v2856
  %2858 = vmatmul.bf16.gmra.mxu0 %v1752
  %v2859 = vpop.f32.mrf.mxu0
  %v2860 = vadd.f32 %v1717, %v2859
  %v2861 = vpop.f32.mrf.mxu0
  %v2862 = vadd.f32 %v1722, %v2861
  %2863 = vdwg.mxu0
  %2864 = vmatpush.bf16.msra.mxu0 %v2483
  %2865 = vmatpush.bf16.msra.mxu0 %v2475
  %2866 = vmatpush.bf16.msra.mxu0 %v2467
  %2867 = vmatpush.bf16.msra.mxu0 %v2459
  %2868 = vmatpush.bf16.msra.mxu0 %v2451
  %2869 = vmatpush.bf16.msra.mxu0 %v2443
  %2870 = vmatpush.bf16.msra.mxu0 %v2435
  %2871 = vmatpush.bf16.msra.mxu0 %v2427
  %2872 = vmatmul.bf16.gmra.mxu0 %v1749
  %v2873 = vpop.f32.mrf.mxu0
  %v2874 = vadd.f32 %v2855, %v2873
  %v2875 = vpop.f32.mrf.mxu0
  %v2876 = vadd.f32 %v2857, %v2875
  %2877 = vmatmul.bf16.gmra.mxu0 %v1753
  %v2878 = vpop.f32.mrf.mxu0
  %v2879 = vadd.f32 %v2860, %v2878
  %v2880 = vpop.f32.mrf.mxu0
  %v2881 = vadd.f32 %v2862, %v2880
  %2882 = vdwg.mxu0
  %2883 = vmatpush.bf16.msra.mxu0 %v2547
  %2884 = vmatpush.bf16.msra.mxu0 %v2539
  %2885 = vmatpush.bf16.msra.mxu0 %v2531
  %2886 = vmatpush.bf16.msra.mxu0 %v2523
  %2887 = vmatpush.bf16.msra.mxu0 %v2515
  %2888 = vmatpush.bf16.msra.mxu0 %v2507
  %2889 = vmatpush.bf16.msra.mxu0 %v2499
  %2890 = vmatpush.bf16.msra.mxu0 %v2491
  %2891 = vmatmul.bf16.gmra.mxu0 %v1750
  %v2892 = vpop.f32.mrf.mxu0
  %v2893 = vadd.f32 %v2874, %v2892
  %v2894 = vpop.f32.mrf.mxu0
  %v2895 = vadd.f32 %v2876, %v2894
  %2896 = vmatmul.bf16.gmra.mxu0 %v1754
  %v2897 = vpop.f32.mrf.mxu0
  %v2898 = vadd.f32 %v2879, %v2897
  %v2899 = vpop.f32.mrf.mxu0
  %v2900 = vadd.f32 %v2881, %v2899
  %2901 = vdwg.mxu0
  %2902 = vmatpush.bf16.msra.mxu0 0
  %2903 = vmatpush.bf16.msra.mxu0 0
  %2904 = vmatpush.bf16.msra.mxu0 0
  %2905 = vmatpush.bf16.msra.mxu0 0
  %2906 = vmatpush.bf16.msra.mxu0 0
  %2907 = vmatpush.bf16.msra.mxu0 0
  %2908 = vmatpush.bf16.msra.mxu0 0
  %2909 = vmatpush.bf16.msra.mxu0 %v2555
  %2910 = vmatmul.bf16.gmra.mxu0 %v2764
  %v2911 = vpop.f32.mrf.mxu0
  %v2912 = vadd.f32 %v2893, %v2911
  %v2913 = vpop.f32.mrf.mxu0
  %v2914 = vadd.f32 %v2895, %v2913
  %2915 = vmatmul.bf16.gmra.mxu0 %v2767
  %v2916 = vpop.f32.mrf.mxu0
  %v2917 = vadd.f32 %v2898, %v2916
  %v2918 = vpop.f32.mrf.mxu0
  %v2919 = vadd.f32 %v2900, %v2918
  %2920 = vdwg.mxu0
  %2921 = vmatpush.bf16.msra.mxu0 %v2420
  %2922 = vmatpush.bf16.msra.mxu0 %v2412
  %2923 = vmatpush.bf16.msra.mxu0 %v2404
  %2924 = vmatpush.bf16.msra.mxu0 %v2396
  %2925 = vmatpush.bf16.msra.mxu0 %v2388
  %2926 = vmatpush.bf16.msra.mxu0 %v2380
  %2927 = vmatpush.bf16.msra.mxu0 %v2372
  %2928 = vmatpush.bf16.msra.mxu0 %v2364
  %2929 = vmatmul.bf16.gmra.mxu0 %v1748
  %v2930 = vpop.f32.mrf.mxu0
  %v2931 = vadd.f32 %v1707, %v2930
  %v2932 = vpop.f32.mrf.mxu0
  %v2933 = vadd.f32 %v1712, %v2932
  %2934 = vmatmul.bf16.gmra.mxu0 %v1752
  %v2935 = vpop.f32.mrf.mxu0
  %v2936 = vadd.f32 %v1717, %v2935
  %v2937 = vpop.f32.mrf.mxu0
  %v2938 = vadd.f32 %v1722, %v2937
  %2939 = vdwg.mxu0
  %2940 = vmatpush.bf16.msra.mxu0 %v2484
  %2941 = vmatpush.bf16.msra.mxu0 %v2476
  %2942 = vmatpush.bf16.msra.mxu0 %v2468
  %2943 = vmatpush.bf16.msra.mxu0 %v2460
  %2944 = vmatpush.bf16.msra.mxu0 %v2452
  %2945 = vmatpush.bf16.msra.mxu0 %v2444
  %2946 = vmatpush.bf16.msra.mxu0 %v2436
  %2947 = vmatpush.bf16.msra.mxu0 %v2428
  %2948 = vmatmul.bf16.gmra.mxu0 %v1749
  %v2949 = vpop.f32.mrf.mxu0
  %v2950 = vadd.f32 %v2931, %v2949
  %v2951 = vpop.f32.mrf.mxu0
  %v2952 = vadd.f32 %v2933, %v2951
  %2953 = vmatmul.bf16.gmra.mxu0 %v1753
  %v2954 = vpop.f32.mrf.mxu0
  %v2955 = vadd.f32 %v2936, %v2954
  %v2956 = vpop.f32.mrf.mxu0
  %v2957 = vadd.f32 %v2938, %v2956
  %2958 = vdwg.mxu0
  %2959 = vmatpush.bf16.msra.mxu0 %v2548
  %2960 = vmatpush.bf16.msra.mxu0 %v2540
  %2961 = vmatpush.bf16.msra.mxu0 %v2532
  %2962 = vmatpush.bf16.msra.mxu0 %v2524
  %2963 = vmatpush.bf16.msra.mxu0 %v2516
  %2964 = vmatpush.bf16.msra.mxu0 %v2508
  %2965 = vmatpush.bf16.msra.mxu0 %v2500
  %2966 = vmatpush.bf16.msra.mxu0 %v2492
  %2967 = vmatmul.bf16.gmra.mxu0 %v1750
  %v2968 = vpop.f32.mrf.mxu0
  %v2969 = vadd.f32 %v2950, %v2968
  %v2970 = vpop.f32.mrf.mxu0
  %v2971 = vadd.f32 %v2952, %v2970
  %2972 = vmatmul.bf16.gmra.mxu0 %v1754
  %v2973 = vpop.f32.mrf.mxu0
  %v2974 = vadd.f32 %v2955, %v2973
  %v2975 = vpop.f32.mrf.mxu0
  %v2976 = vadd.f32 %v2957, %v2975
  %2977 = vdwg.mxu0
  %2978 = vmatpush.bf16.msra.mxu0 0
  %2979 = vmatpush.bf16.msra.mxu0 0
  %2980 = vmatpush.bf16.msra.mxu0 0
  %2981 = vmatpush.bf16.msra.mxu0 0
  %2982 = vmatpush.bf16.msra.mxu0 0
  %2983 = vmatpush.bf16.msra.mxu0 0
  %2984 = vmatpush.bf16.msra.mxu0 0
  %2985 = vmatpush.bf16.msra.mxu0 %v2556
  %2986 = vmatmul.bf16.gmra.mxu0 %v2764
  %v2987 = vpop.f32.mrf.mxu0
  %v2988 = vadd.f32 %v2969, %v2987
  %v2989 = vpop.f32.mrf.mxu0
  %v2990 = vadd.f32 %v2971, %v2989
  %2991 = vmatmul.bf16.gmra.mxu0 %v2767
  %v2992 = vpop.f32.mrf.mxu0
  %v2993 = vadd.f32 %v2974, %v2992
  %v2994 = vpop.f32.mrf.mxu0
  %v2995 = vadd.f32 %v2976, %v2994
  %2996 = vdwg.mxu0
  %2997 = vmatpush.bf16.msra.mxu0 %v2421
  %2998 = vmatpush.bf16.msra.mxu0 %v2413
  %2999 = vmatpush.bf16.msra.mxu0 %v2405
  %3000 = vmatpush.bf16.msra.mxu0 %v2397
  %3001 = vmatpush.bf16.msra.mxu0 %v2389
  %3002 = vmatpush.bf16.msra.mxu0 %v2381
  %3003 = vmatpush.bf16.msra.mxu0 %v2373
  %3004 = vmatpush.bf16.msra.mxu0 %v2365
  %3005 = vmatmul.bf16.gmra.mxu0 %v1748
  %v3006 = vpop.f32.mrf.mxu0
  %v3007 = vadd.f32 %v1707, %v3006
  %v3008 = vpop.f32.mrf.mxu0
  %v3009 = vadd.f32 %v1712, %v3008
  %3010 = vmatmul.bf16.gmra.mxu0 %v1752
  %v3011 = vpop.f32.mrf.mxu0
  %v3012 = vadd.f32 %v1717, %v3011
  %v3013 = vpop.f32.mrf.mxu0
  %v3014 = vadd.f32 %v1722, %v3013
  %3015 = vdwg.mxu0
  %3016 = vmatpush.bf16.msra.mxu0 %v2485
  %3017 = vmatpush.bf16.msra.mxu0 %v2477
  %3018 = vmatpush.bf16.msra.mxu0 %v2469
  %3019 = vmatpush.bf16.msra.mxu0 %v2461
  %3020 = vmatpush.bf16.msra.mxu0 %v2453
  %3021 = vmatpush.bf16.msra.mxu0 %v2445
  %3022 = vmatpush.bf16.msra.mxu0 %v2437
  %3023 = vmatpush.bf16.msra.mxu0 %v2429
  %3024 = vmatmul.bf16.gmra.mxu0 %v1749
  %v3025 = vpop.f32.mrf.mxu0
  %v3026 = vadd.f32 %v3007, %v3025
  %v3027 = vpop.f32.mrf.mxu0
  %v3028 = vadd.f32 %v3009, %v3027
  %3029 = vmatmul.bf16.gmra.mxu0 %v1753
  %v3030 = vpop.f32.mrf.mxu0
  %v3031 = vadd.f32 %v3012, %v3030
  %v3032 = vpop.f32.mrf.mxu0
  %v3033 = vadd.f32 %v3014, %v3032
  %3034 = vdwg.mxu0
  %3035 = vmatpush.bf16.msra.mxu0 %v2549
  %3036 = vmatpush.bf16.msra.mxu0 %v2541
  %3037 = vmatpush.bf16.msra.mxu0 %v2533
  %3038 = vmatpush.bf16.msra.mxu0 %v2525
  %3039 = vmatpush.bf16.msra.mxu0 %v2517
  %3040 = vmatpush.bf16.msra.mxu0 %v2509
  %3041 = vmatpush.bf16.msra.mxu0 %v2501
  %3042 = vmatpush.bf16.msra.mxu0 %v2493
  %3043 = vmatmul.bf16.gmra.mxu0 %v1750
  %v3044 = vpop.f32.mrf.mxu0
  %v3045 = vadd.f32 %v3026, %v3044
  %v3046 = vpop.f32.mrf.mxu0
  %v3047 = vadd.f32 %v3028, %v3046
  %3048 = vmatmul.bf16.gmra.mxu0 %v1754
  %v3049 = vpop.f32.mrf.mxu0
  %v3050 = vadd.f32 %v3031, %v3049
  %v3051 = vpop.f32.mrf.mxu0
  %v3052 = vadd.f32 %v3033, %v3051
  %3053 = vdwg.mxu0
  %3054 = vmatpush.bf16.msra.mxu0 0
  %3055 = vmatpush.bf16.msra.mxu0 0
  %3056 = vmatpush.bf16.msra.mxu0 0
  %3057 = vmatpush.bf16.msra.mxu0 0
  %3058 = vmatpush.bf16.msra.mxu0 0
  %3059 = vmatpush.bf16.msra.mxu0 0
  %3060 = vmatpush.bf16.msra.mxu0 0
  %3061 = vmatpush.bf16.msra.mxu0 %v2557
  %3062 = vmatmul.bf16.gmra.mxu0 %v2764
  %v3063 = vpop.f32.mrf.mxu0
  %v3064 = vadd.f32 %v3045, %v3063
  %v3065 = vpop.f32.mrf.mxu0
  %v3066 = vadd.f32 %v3047, %v3065
  %3067 = vmatmul.bf16.gmra.mxu0 %v2767
  %v3068 = vpop.f32.mrf.mxu0
  %v3069 = vadd.f32 %v3050, %v3068
  %v3070 = vpop.f32.mrf.mxu0
  %v3071 = vadd.f32 %v3052, %v3070
  %3072 = vdwg.mxu0
  %3073 = vmatpush.bf16.msra.mxu0 %v2422
  %3074 = vmatpush.bf16.msra.mxu0 %v2414
  %3075 = vmatpush.bf16.msra.mxu0 %v2406
  %3076 = vmatpush.bf16.msra.mxu0 %v2398
  %3077 = vmatpush.bf16.msra.mxu0 %v2390
  %3078 = vmatpush.bf16.msra.mxu0 %v2382
  %3079 = vmatpush.bf16.msra.mxu0 %v2374
  %3080 = vmatpush.bf16.msra.mxu0 %v2366
  %3081 = vmatmul.bf16.gmra.mxu0 %v1748
  %v3082 = vpop.f32.mrf.mxu0
  %v3083 = vadd.f32 %v1707, %v3082
  %v3084 = vpop.f32.mrf.mxu0
  %v3085 = vadd.f32 %v1712, %v3084
  %3086 = vmatmul.bf16.gmra.mxu0 %v1752
  %v3087 = vpop.f32.mrf.mxu0
  %v3088 = vadd.f32 %v1717, %v3087
  %v3089 = vpop.f32.mrf.mxu0
  %v3090 = vadd.f32 %v1722, %v3089
  %3091 = vdwg.mxu0
  %3092 = vmatpush.bf16.msra.mxu0 %v2486
  %3093 = vmatpush.bf16.msra.mxu0 %v2478
  %3094 = vmatpush.bf16.msra.mxu0 %v2470
  %3095 = vmatpush.bf16.msra.mxu0 %v2462
  %3096 = vmatpush.bf16.msra.mxu0 %v2454
  %3097 = vmatpush.bf16.msra.mxu0 %v2446
  %3098 = vmatpush.bf16.msra.mxu0 %v2438
  %3099 = vmatpush.bf16.msra.mxu0 %v2430
  %3100 = vmatmul.bf16.gmra.mxu0 %v1749
  %v3101 = vpop.f32.mrf.mxu0
  %v3102 = vadd.f32 %v3083, %v3101
  %v3103 = vpop.f32.mrf.mxu0
  %v3104 = vadd.f32 %v3085, %v3103
  %3105 = vmatmul.bf16.gmra.mxu0 %v1753
  %v3106 = vpop.f32.mrf.mxu0
  %v3107 = vadd.f32 %v3088, %v3106
  %v3108 = vpop.f32.mrf.mxu0
  %v3109 = vadd.f32 %v3090, %v3108
  %3110 = vdwg.mxu0
  %3111 = vmatpush.bf16.msra.mxu0 %v2550
  %3112 = vmatpush.bf16.msra.mxu0 %v2542
  %3113 = vmatpush.bf16.msra.mxu0 %v2534
  %3114 = vmatpush.bf16.msra.mxu0 %v2526
  %3115 = vmatpush.bf16.msra.mxu0 %v2518
  %3116 = vmatpush.bf16.msra.mxu0 %v2510
  %3117 = vmatpush.bf16.msra.mxu0 %v2502
  %3118 = vmatpush.bf16.msra.mxu0 %v2494
  %3119 = vmatmul.bf16.gmra.mxu0 %v1750
  %v3120 = vpop.f32.mrf.mxu0
  %v3121 = vadd.f32 %v3102, %v3120
  %v3122 = vpop.f32.mrf.mxu0
  %v3123 = vadd.f32 %v3104, %v3122
  %3124 = vmatmul.bf16.gmra.mxu0 %v1754
  %v3125 = vpop.f32.mrf.mxu0
  %v3126 = vadd.f32 %v3107, %v3125
  %v3127 = vpop.f32.mrf.mxu0
  %v3128 = vadd.f32 %v3109, %v3127
  %3129 = vdwg.mxu0
  %3130 = vmatpush.bf16.msra.mxu0 0
  %3131 = vmatpush.bf16.msra.mxu0 0
  %3132 = vmatpush.bf16.msra.mxu0 0
  %3133 = vmatpush.bf16.msra.mxu0 0
  %3134 = vmatpush.bf16.msra.mxu0 0
  %3135 = vmatpush.bf16.msra.mxu0 0
  %3136 = vmatpush.bf16.msra.mxu0 0
  %3137 = vmatpush.bf16.msra.mxu0 %v2558
  %3138 = vmatmul.bf16.gmra.mxu0 %v2764
  %v3139 = vpop.f32.mrf.mxu0
  %v3140 = vadd.f32 %v3121, %v3139
  %v3141 = vpop.f32.mrf.mxu0
  %v3142 = vadd.f32 %v3123, %v3141
  %3143 = vmatmul.bf16.gmra.mxu0 %v2767
  %v3144 = vpop.f32.mrf.mxu0
  %v3145 = vadd.f32 %v3126, %v3144
  %v3146 = vpop.f32.mrf.mxu0
  %v3147 = vadd.f32 %v3128, %v3146
  %3148 = vdwg.mxu0
  %3149 = vmatpush.bf16.msra.mxu0 %v2423
  %3150 = vmatpush.bf16.msra.mxu0 %v2415
  %3151 = vmatpush.bf16.msra.mxu0 %v2407
  %3152 = vmatpush.bf16.msra.mxu0 %v2399
  %3153 = vmatpush.bf16.msra.mxu0 %v2391
  %3154 = vmatpush.bf16.msra.mxu0 %v2383
  %3155 = vmatpush.bf16.msra.mxu0 %v2375
  %3156 = vmatpush.bf16.msra.mxu0 %v2367
  %3157 = vmatmul.bf16.gmra.mxu0 %v1748
  %v3158 = vpop.f32.mrf.mxu0
  %v3159 = vadd.f32 %v1707, %v3158
  %v3160 = vpop.f32.mrf.mxu0
  %v3161 = vadd.f32 %v1712, %v3160
  %3162 = vmatmul.bf16.gmra.mxu0 %v1752
  %v3163 = vpop.f32.mrf.mxu0
  %v3164 = vadd.f32 %v1717, %v3163
  %v3165 = vpop.f32.mrf.mxu0
  %v3166 = vadd.f32 %v1722, %v3165
  %3167 = vdwg.mxu0
  %3168 = vmatpush.bf16.msra.mxu0 %v2487
  %3169 = vmatpush.bf16.msra.mxu0 %v2479
  %3170 = vmatpush.bf16.msra.mxu0 %v2471
  %3171 = vmatpush.bf16.msra.mxu0 %v2463
  %3172 = vmatpush.bf16.msra.mxu0 %v2455
  %3173 = vmatpush.bf16.msra.mxu0 %v2447
  %3174 = vmatpush.bf16.msra.mxu0 %v2439
  %3175 = vmatpush.bf16.msra.mxu0 %v2431
  %3176 = vmatmul.bf16.gmra.mxu0 %v1749
  %v3177 = vpop.f32.mrf.mxu0
  %v3178 = vadd.f32 %v3159, %v3177
  %v3179 = vpop.f32.mrf.mxu0
  %v3180 = vadd.f32 %v3161, %v3179
  %3181 = vmatmul.bf16.gmra.mxu0 %v1753
  %v3182 = vpop.f32.mrf.mxu0
  %v3183 = vadd.f32 %v3164, %v3182
  %v3184 = vpop.f32.mrf.mxu0
  %v3185 = vadd.f32 %v3166, %v3184
  %3186 = vdwg.mxu0
  %3187 = vmatpush.bf16.msra.mxu0 %v2551
  %3188 = vmatpush.bf16.msra.mxu0 %v2543
  %3189 = vmatpush.bf16.msra.mxu0 %v2535
  %3190 = vmatpush.bf16.msra.mxu0 %v2527
  %3191 = vmatpush.bf16.msra.mxu0 %v2519
  %3192 = vmatpush.bf16.msra.mxu0 %v2511
  %3193 = vmatpush.bf16.msra.mxu0 %v2503
  %3194 = vmatpush.bf16.msra.mxu0 %v2495
  %3195 = vmatmul.bf16.gmra.mxu0 %v1750
  %v3196 = vpop.f32.mrf.mxu0
  %v3197 = vadd.f32 %v3178, %v3196
  %v3198 = vpop.f32.mrf.mxu0
  %v3199 = vadd.f32 %v3180, %v3198
  %3200 = vmatmul.bf16.gmra.mxu0 %v1754
  %v3201 = vpop.f32.mrf.mxu0
  %v3202 = vadd.f32 %v3183, %v3201
  %v3203 = vpop.f32.mrf.mxu0
  %v3204 = vadd.f32 %v3185, %v3203
  %3205 = vdwg.mxu0
  %3206 = vmatpush.bf16.msra.mxu0 0
  %3207 = vmatpush.bf16.msra.mxu0 0
  %3208 = vmatpush.bf16.msra.mxu0 0
  %3209 = vmatpush.bf16.msra.mxu0 0
  %3210 = vmatpush.bf16.msra.mxu0 0
  %3211 = vmatpush.bf16.msra.mxu0 0
  %3212 = vmatpush.bf16.msra.mxu0 0
  %3213 = vmatpush.bf16.msra.mxu0 %v2559
  %3214 = vmatmul.bf16.gmra.mxu0 %v2764
  %v3215 = vpop.f32.mrf.mxu0
  %v3216 = vadd.f32 %v3197, %v3215
  %v3217 = vpop.f32.mrf.mxu0
  %v3218 = vadd.f32 %v3199, %v3217
  %3219 = vmatmul.bf16.gmra.mxu0 %v2767
  %v3220 = vpop.f32.mrf.mxu0
  %v3221 = vadd.f32 %v3202, %v3220
  %v3222 = vpop.f32.mrf.mxu0
  %v3223 = vadd.f32 %v3204, %v3222
  %3224 = vdwg.mxu0
  %3225 = vmatpush.bf16.msra.mxu0 %v2424
  %3226 = vmatpush.bf16.msra.mxu0 %v2416
  %3227 = vmatpush.bf16.msra.mxu0 %v2408
  %3228 = vmatpush.bf16.msra.mxu0 %v2400
  %3229 = vmatpush.bf16.msra.mxu0 %v2392
  %3230 = vmatpush.bf16.msra.mxu0 %v2384
  %3231 = vmatpush.bf16.msra.mxu0 %v2376
  %3232 = vmatpush.bf16.msra.mxu0 %v2368
  %3233 = vmatmul.bf16.gmra.mxu0 %v1748
  %v3234 = vpop.f32.mrf.mxu0
  %v3235 = vadd.f32 %v1707, %v3234
  %v3236 = vpop.f32.mrf.mxu0
  %v3237 = vadd.f32 %v1712, %v3236
  %3238 = vmatmul.bf16.gmra.mxu0 %v1752
  %v3239 = vpop.f32.mrf.mxu0
  %v3240 = vadd.f32 %v1717, %v3239
  %v3241 = vpop.f32.mrf.mxu0
  %v3242 = vadd.f32 %v1722, %v3241
  %3243 = vdwg.mxu0
  %3244 = vmatpush.bf16.msra.mxu0 %v2488
  %3245 = vmatpush.bf16.msra.mxu0 %v2480
  %3246 = vmatpush.bf16.msra.mxu0 %v2472
  %3247 = vmatpush.bf16.msra.mxu0 %v2464
  %3248 = vmatpush.bf16.msra.mxu0 %v2456
  %3249 = vmatpush.bf16.msra.mxu0 %v2448
  %3250 = vmatpush.bf16.msra.mxu0 %v2440
  %3251 = vmatpush.bf16.msra.mxu0 %v2432
  %3252 = vmatmul.bf16.gmra.mxu0 %v1749
  %v3253 = vpop.f32.mrf.mxu0
  %v3254 = vadd.f32 %v3235, %v3253
  %v3255 = vpop.f32.mrf.mxu0
  %v3256 = vadd.f32 %v3237, %v3255
  %3257 = vmatmul.bf16.gmra.mxu0 %v1753
  %v3258 = vpop.f32.mrf.mxu0
  %v3259 = vadd.f32 %v3240, %v3258
  %v3260 = vpop.f32.mrf.mxu0
  %v3261 = vadd.f32 %v3242, %v3260
  %3262 = vdwg.mxu0
  %3263 = vmatpush.bf16.msra.mxu0 %v2552
  %3264 = vmatpush.bf16.msra.mxu0 %v2544
  %3265 = vmatpush.bf16.msra.mxu0 %v2536
  %3266 = vmatpush.bf16.msra.mxu0 %v2528
  %3267 = vmatpush.bf16.msra.mxu0 %v2520
  %3268 = vmatpush.bf16.msra.mxu0 %v2512
  %3269 = vmatpush.bf16.msra.mxu0 %v2504
  %3270 = vmatpush.bf16.msra.mxu0 %v2496
  %3271 = vmatmul.bf16.gmra.mxu0 %v1750
  %v3272 = vpop.f32.mrf.mxu0
  %v3273 = vadd.f32 %v3254, %v3272
  %v3274 = vpop.f32.mrf.mxu0
  %v3275 = vadd.f32 %v3256, %v3274
  %3276 = vmatmul.bf16.gmra.mxu0 %v1754
  %v3277 = vpop.f32.mrf.mxu0
  %v3278 = vadd.f32 %v3259, %v3277
  %v3279 = vpop.f32.mrf.mxu0
  %v3280 = vadd.f32 %v3261, %v3279
  %3281 = vdwg.mxu0
  %3282 = vmatpush.bf16.msra.mxu0 0
  %3283 = vmatpush.bf16.msra.mxu0 0
  %3284 = vmatpush.bf16.msra.mxu0 0
  %3285 = vmatpush.bf16.msra.mxu0 0
  %3286 = vmatpush.bf16.msra.mxu0 0
  %3287 = vmatpush.bf16.msra.mxu0 0
  %3288 = vmatpush.bf16.msra.mxu0 0
  %3289 = vmatpush.bf16.msra.mxu0 %v2560
  %3290 = vmatmul.bf16.gmra.mxu0 %v2764
  %v3291 = vpop.f32.mrf.mxu0
  %v3292 = vadd.f32 %v3273, %v3291
  %v3293 = vpop.f32.mrf.mxu0
  %v3294 = vadd.f32 %v3275, %v3293
  %3295 = vmatmul.bf16.gmra.mxu0 %v2767
  %v3296 = vpop.f32.mrf.mxu0
  %v3297 = vadd.f32 %v3278, %v3296
  %v3298 = vpop.f32.mrf.mxu0
  %v3299 = vadd.f32 %v3280, %v3298
  %3300 = vdwg.mxu0
  %3301 = vmatpush.bf16.msra.mxu0 %v2425
  %3302 = vmatpush.bf16.msra.mxu0 %v2417
  %3303 = vmatpush.bf16.msra.mxu0 %v2409
  %3304 = vmatpush.bf16.msra.mxu0 %v2401
  %3305 = vmatpush.bf16.msra.mxu0 %v2393
  %3306 = vmatpush.bf16.msra.mxu0 %v2385
  %3307 = vmatpush.bf16.msra.mxu0 %v2377
  %3308 = vmatpush.bf16.msra.mxu0 %v2369
  %3309 = vmatmul.bf16.gmra.mxu0 %v1748
  %v3310 = vpop.f32.mrf.mxu0
  %v3311 = vadd.f32 %v1707, %v3310
  %v3312 = vpop.f32.mrf.mxu0
  %v3313 = vadd.f32 %v1712, %v3312
  %3314 = vmatmul.bf16.gmra.mxu0 %v1752
  %v3315 = vpop.f32.mrf.mxu0
  %v3316 = vadd.f32 %v1717, %v3315
  %v3317 = vpop.f32.mrf.mxu0
  %v3318 = vadd.f32 %v1722, %v3317
  %3319 = vdwg.mxu0
  %3320 = vmatpush.bf16.msra.mxu0 %v2489
  %3321 = vmatpush.bf16.msra.mxu0 %v2481
  %3322 = vmatpush.bf16.msra.mxu0 %v2473
  %3323 = vmatpush.bf16.msra.mxu0 %v2465
  %3324 = vmatpush.bf16.msra.mxu0 %v2457
  %3325 = vmatpush.bf16.msra.mxu0 %v2449
  %3326 = vmatpush.bf16.msra.mxu0 %v2441
  %3327 = vmatpush.bf16.msra.mxu0 %v2433
  %3328 = vmatmul.bf16.gmra.mxu0 %v1749
  %v3329 = vpop.f32.mrf.mxu0
  %v3330 = vadd.f32 %v3311, %v3329
  %v3331 = vpop.f32.mrf.mxu0
  %v3332 = vadd.f32 %v3313, %v3331
  %3333 = vmatmul.bf16.gmra.mxu0 %v1753
  %v3334 = vpop.f32.mrf.mxu0
  %v3335 = vadd.f32 %v3316, %v3334
  %v3336 = vpop.f32.mrf.mxu0
  %v3337 = vadd.f32 %v3318, %v3336
  %3338 = vdwg.mxu0
  %3339 = vmatpush.bf16.msra.mxu0 %v2553
  %3340 = vmatpush.bf16.msra.mxu0 %v2545
  %3341 = vmatpush.bf16.msra.mxu0 %v2537
  %3342 = vmatpush.bf16.msra.mxu0 %v2529
  %3343 = vmatpush.bf16.msra.mxu0 %v2521
  %3344 = vmatpush.bf16.msra.mxu0 %v2513
  %3345 = vmatpush.bf16.msra.mxu0 %v2505
  %3346 = vmatpush.bf16.msra.mxu0 %v2497
  %3347 = vmatmul.bf16.gmra.mxu0 %v1750
  %v3348 = vpop.f32.mrf.mxu0
  %v3349 = vadd.f32 %v3330, %v3348
  %v3350 = vpop.f32.mrf.mxu0
  %v3351 = vadd.f32 %v3332, %v3350
  %3352 = vmatmul.bf16.gmra.mxu0 %v1754
  %v3353 = vpop.f32.mrf.mxu0
  %v3354 = vadd.f32 %v3335, %v3353
  %v3355 = vpop.f32.mrf.mxu0
  %v3356 = vadd.f32 %v3337, %v3355
  %3357 = vdwg.mxu0
  %3358 = vmatpush.bf16.msra.mxu0 0
  %3359 = vmatpush.bf16.msra.mxu0 0
  %3360 = vmatpush.bf16.msra.mxu0 0
  %3361 = vmatpush.bf16.msra.mxu0 0
  %3362 = vmatpush.bf16.msra.mxu0 0
  %3363 = vmatpush.bf16.msra.mxu0 0
  %3364 = vmatpush.bf16.msra.mxu0 0
  %3365 = vmatpush.bf16.msra.mxu0 %v2561
  %3366 = vmatmul.bf16.gmra.mxu0 %v2764
  %v3367 = vpop.f32.mrf.mxu0
  %v3368 = vadd.f32 %v3349, %v3367
  %v3369 = vpop.f32.mrf.mxu0
  %v3370 = vadd.f32 %v3351, %v3369
  %3371 = vmatmul.bf16.gmra.mxu0 %v2767
  %v3372 = vpop.f32.mrf.mxu0
  %v3373 = vadd.f32 %v3354, %v3372
  %v3374 = vpop.f32.mrf.mxu0
  %v3375 = vadd.f32 %v3356, %v3374
  %3376 = vdwg.mxu0
  %v3377 = vmax.f32 %v2836, 0.0
  %v3378 = vmax.f32 %v2912, 0.0
  %v3379 = vmax.f32 %v2988, 0.0
  %v3380 = vmax.f32 %v3064, 0.0
  %v3381 = vmax.f32 %v3140, 0.0
  %v3382 = vmax.f32 %v3216, 0.0
  %v3383 = vmax.f32 %v3292, 0.0
  %v3384 = vmax.f32 %v3368, 0.0
  %v3385 = vmax.f32 %v2838, 0.0
  %v3386 = vmax.f32 %v2914, 0.0
  %v3387 = vmax.f32 %v2990, 0.0
  %v3388 = vmax.f32 %v3066, 0.0
  %v3389 = vmax.f32 %v3142, 0.0
  %v3390 = vmax.f32 %v3218, 0.0
  %v3391 = vmax.f32 %v3294, 0.0
  %v3392 = vmax.f32 %v3370, 0.0
  %v3393 = vmax.f32 %v2841, 0.0
  %v3394 = vmax.f32 %v2917, 0.0
  %v3395 = vmax.f32 %v2993, 0.0
  %v3396 = vmax.f32 %v3069, 0.0
  %v3397 = vmax.f32 %v3145, 0.0
  %v3398 = vmax.f32 %v3221, 0.0
  %v3399 = vmax.f32 %v3297, 0.0
  %v3400 = vmax.f32 %v3373, 0.0
  %v3401 = vmax.f32 %v2843, 0.0
  %v3402 = vmax.f32 %v2919, 0.0
  %v3403 = vmax.f32 %v2995, 0.0
  %v3404 = vmax.f32 %v3071, 0.0
  %v3405 = vmax.f32 %v3147, 0.0
  %v3406 = vmax.f32 %v3223, 0.0
  %v3407 = vmax.f32 %v3299, 0.0
  %v3408 = vmax.f32 %v3375, 0.0
  %3409 = vrot.lane.b32.xlu0 %v3377, 127
  %v3410 = vpop.permute.xlu0 %3409
  %3411 = vrot.lane.b32.xlu0 %v3385, 127
  %v3412 = vpop.permute.xlu0 %3411
  %3413 = vrot.lane.b32.xlu0 %v3393, 127
  %v3414 = vpop.permute.xlu0 %3413
  %3415 = vrot.lane.b32.xlu0 %v3401, 127
  %v3416 = vpop.permute.xlu0 %3415
  %3417 = vrot.lane.b32.xlu0 %v3378, 127
  %v3418 = vpop.permute.xlu0 %3417
  %3419 = vrot.lane.b32.xlu0 %v3386, 127
  %v3420 = vpop.permute.xlu0 %3419
  %3421 = vrot.lane.b32.xlu0 %v3394, 127
  %v3422 = vpop.permute.xlu0 %3421
  %3423 = vrot.lane.b32.xlu0 %v3402, 127
  %v3424 = vpop.permute.xlu0 %3423
  %3425 = vrot.lane.b32.xlu0 %v3379, 127
  %v3426 = vpop.permute.xlu0 %3425
  %3427 = vrot.lane.b32.xlu0 %v3387, 127
  %v3428 = vpop.permute.xlu0 %3427
  %3429 = vrot.lane.b32.xlu0 %v3395, 127
  %v3430 = vpop.permute.xlu0 %3429
  %3431 = vrot.lane.b32.xlu0 %v3403, 127
  %v3432 = vpop.permute.xlu0 %3431
  %3433 = vrot.lane.b32.xlu0 %v3380, 127
  %v3434 = vpop.permute.xlu0 %3433
  %3435 = vrot.lane.b32.xlu0 %v3388, 127
  %v3436 = vpop.permute.xlu0 %3435
  %3437 = vrot.lane.b32.xlu0 %v3396, 127
  %v3438 = vpop.permute.xlu0 %3437
  %3439 = vrot.lane.b32.xlu0 %v3404, 127
  %v3440 = vpop.permute.xlu0 %3439
  %3441 = vrot.lane.b32.xlu0 %v3381, 127
  %v3442 = vpop.permute.xlu0 %3441
  %3443 = vrot.lane.b32.xlu0 %v3389, 127
  %v3444 = vpop.permute.xlu0 %3443
  %3445 = vrot.lane.b32.xlu0 %v3397, 127
  %v3446 = vpop.permute.xlu0 %3445
  %3447 = vrot.lane.b32.xlu0 %v3405, 127
  %v3448 = vpop.permute.xlu0 %3447
  %3449 = vrot.lane.b32.xlu0 %v3382, 127
  %v3450 = vpop.permute.xlu0 %3449
  %3451 = vrot.lane.b32.xlu0 %v3390, 127
  %v3452 = vpop.permute.xlu0 %3451
  %3453 = vrot.lane.b32.xlu0 %v3398, 127
  %v3454 = vpop.permute.xlu0 %3453
  %3455 = vrot.lane.b32.xlu0 %v3406, 127
  %v3456 = vpop.permute.xlu0 %3455
  %3457 = vrot.lane.b32.xlu0 %v3383, 127
  %v3458 = vpop.permute.xlu0 %3457
  %3459 = vrot.lane.b32.xlu0 %v3391, 127
  %v3460 = vpop.permute.xlu0 %3459
  %3461 = vrot.lane.b32.xlu0 %v3399, 127
  %v3462 = vpop.permute.xlu0 %3461
  %3463 = vrot.lane.b32.xlu0 %v3407, 127
  %v3464 = vpop.permute.xlu0 %3463
  %3465 = vrot.lane.b32.xlu0 %v3384, 127
  %v3466 = vpop.permute.xlu0 %3465
  %3467 = vrot.lane.b32.xlu0 %v3392, 127
  %v3468 = vpop.permute.xlu0 %3467
  %3469 = vrot.lane.b32.xlu0 %v3400, 127
  %v3470 = vpop.permute.xlu0 %3469
  %3471 = vrot.lane.b32.xlu0 %v3408, 127
  %v3472 = vpop.permute.xlu0 %3471
  %v3473 = vlaneseq
  %v3474 = vand.u32 %v3473, 127
  %vm3475 = vcmp.lt.s32.totalorder %v3474, 127
  %v3476 = vsel %vm3475, %v3458, %v3466
  %v3477 = vsel %vm3475, %v3460, %v3468
  %v3478 = vsel %vm3475, %v3462, %v3470
  %v3479 = vsel %vm3475, %v3464, %v3472
  %v3480 = vsel %vm3475, %v3450, %v3458
  %v3481 = vsel %vm3475, %v3452, %v3460
  %v3482 = vsel %vm3475, %v3454, %v3462
  %v3483 = vsel %vm3475, %v3456, %v3464
  %v3484 = vsel %vm3475, %v3442, %v3450
  %v3485 = vsel %vm3475, %v3444, %v3452
  %v3486 = vsel %vm3475, %v3446, %v3454
  %v3487 = vsel %vm3475, %v3448, %v3456
  %v3488 = vsel %vm3475, %v3434, %v3442
  %v3489 = vsel %vm3475, %v3436, %v3444
  %v3490 = vsel %vm3475, %v3438, %v3446
  %v3491 = vsel %vm3475, %v3440, %v3448
  %v3492 = vsel %vm3475, %v3426, %v3434
  %v3493 = vsel %vm3475, %v3428, %v3436
  %v3494 = vsel %vm3475, %v3430, %v3438
  %v3495 = vsel %vm3475, %v3432, %v3440
  %v3496 = vsel %vm3475, %v3418, %v3426
  %v3497 = vsel %vm3475, %v3420, %v3428
  %v3498 = vsel %vm3475, %v3422, %v3430
  %v3499 = vsel %vm3475, %v3424, %v3432
  %v3500 = vsel %vm3475, %v3410, %v3418
  %v3501 = vsel %vm3475, %v3412, %v3420
  %v3502 = vsel %vm3475, %v3414, %v3422
  %v3503 = vsel %vm3475, %v3416, %v3424
  %v3504 = vsel %vm3475, %v3466, %v3410
  %v3505 = vsel %vm3475, %v3468, %v3412
  %v3506 = vsel %vm3475, %v3470, %v3414
  %v3507 = vsel %vm3475, %v3472, %v3416
  %v3508 = vmax.f32 %v3377, %v3500
  %v3509 = vmax.f32 %v3378, %v3496
  %v3510 = vmax.f32 %v3379, %v3492
  %v3511 = vmax.f32 %v3380, %v3488
  %v3512 = vmax.f32 %v3381, %v3484
  %v3513 = vmax.f32 %v3382, %v3480
  %v3514 = vmax.f32 %v3383, %v3476
  %v3515 = vmax.f32 %v3384, %v3504
  %v3516 = vmax.f32 %v3385, %v3501
  %v3517 = vmax.f32 %v3386, %v3497
  %v3518 = vmax.f32 %v3387, %v3493
  %v3519 = vmax.f32 %v3388, %v3489
  %v3520 = vmax.f32 %v3389, %v3485
  %v3521 = vmax.f32 %v3390, %v3481
  %v3522 = vmax.f32 %v3391, %v3477
  %v3523 = vmax.f32 %v3392, %v3505
  %v3524 = vmax.f32 %v3393, %v3502
  %v3525 = vmax.f32 %v3394, %v3498
  %v3526 = vmax.f32 %v3395, %v3494
  %v3527 = vmax.f32 %v3396, %v3490
  %v3528 = vmax.f32 %v3397, %v3486
  %v3529 = vmax.f32 %v3398, %v3482
  %v3530 = vmax.f32 %v3399, %v3478
  %v3531 = vmax.f32 %v3400, %v3506
  %v3532 = vmax.f32 %v3401, %v3503
  %v3533 = vmax.f32 %v3402, %v3499
  %v3534 = vmax.f32 %v3403, %v3495
  %v3535 = vmax.f32 %v3404, %v3491
  %v3536 = vmax.f32 %v3405, %v3487
  %v3537 = vmax.f32 %v3406, %v3483
  %v3538 = vmax.f32 %v3407, %v3479
  %v3539 = vmax.f32 %v3408, %v3507
  %3540 = vrot.lane.b32.xlu0 %v3508, 96
  %v3541 = vpop.permute.xlu0 %3540
  %3542 = vrot.lane.b32.xlu0 %v3516, 96
  %v3543 = vpop.permute.xlu0 %3542
  %3544 = vrot.lane.b32.xlu0 %v3524, 96
  %v3545 = vpop.permute.xlu0 %3544
  %3546 = vrot.lane.b32.xlu0 %v3532, 96
  %v3547 = vpop.permute.xlu0 %3546
  %3548 = vrot.lane.b32.xlu0 %v3509, 96
  %v3549 = vpop.permute.xlu0 %3548
  %3550 = vrot.lane.b32.xlu0 %v3517, 96
  %v3551 = vpop.permute.xlu0 %3550
  %3552 = vrot.lane.b32.xlu0 %v3525, 96
  %v3553 = vpop.permute.xlu0 %3552
  %3554 = vrot.lane.b32.xlu0 %v3533, 96
  %v3555 = vpop.permute.xlu0 %3554
  %3556 = vrot.lane.b32.xlu0 %v3510, 96
  %v3557 = vpop.permute.xlu0 %3556
  %3558 = vrot.lane.b32.xlu0 %v3518, 96
  %v3559 = vpop.permute.xlu0 %3558
  %3560 = vrot.lane.b32.xlu0 %v3526, 96
  %v3561 = vpop.permute.xlu0 %3560
  %3562 = vrot.lane.b32.xlu0 %v3534, 96
  %v3563 = vpop.permute.xlu0 %3562
  %3564 = vrot.lane.b32.xlu0 %v3511, 96
  %v3565 = vpop.permute.xlu0 %3564
  %3566 = vrot.lane.b32.xlu0 %v3519, 96
  %v3567 = vpop.permute.xlu0 %3566
  %3568 = vrot.lane.b32.xlu0 %v3527, 96
  %v3569 = vpop.permute.xlu0 %3568
  %3570 = vrot.lane.b32.xlu0 %v3535, 96
  %v3571 = vpop.permute.xlu0 %3570
  %3572 = vrot.lane.b32.xlu0 %v3512, 96
  %v3573 = vpop.permute.xlu0 %3572
  %3574 = vrot.lane.b32.xlu0 %v3520, 96
  %v3575 = vpop.permute.xlu0 %3574
  %3576 = vrot.lane.b32.xlu0 %v3528, 96
  %v3577 = vpop.permute.xlu0 %3576
  %3578 = vrot.lane.b32.xlu0 %v3536, 96
  %v3579 = vpop.permute.xlu0 %3578
  %3580 = vrot.lane.b32.xlu0 %v3513, 96
  %v3581 = vpop.permute.xlu0 %3580
  %3582 = vrot.lane.b32.xlu0 %v3521, 96
  %v3583 = vpop.permute.xlu0 %3582
  %3584 = vrot.lane.b32.xlu0 %v3529, 96
  %v3585 = vpop.permute.xlu0 %3584
  %3586 = vrot.lane.b32.xlu0 %v3537, 96
  %v3587 = vpop.permute.xlu0 %3586
  %3588 = vrot.lane.b32.xlu0 %v3514, 96
  %v3589 = vpop.permute.xlu0 %3588
  %3590 = vrot.lane.b32.xlu0 %v3522, 96
  %v3591 = vpop.permute.xlu0 %3590
  %3592 = vrot.lane.b32.xlu0 %v3530, 96
  %v3593 = vpop.permute.xlu0 %3592
  %3594 = vrot.lane.b32.xlu0 %v3538, 96
  %v3595 = vpop.permute.xlu0 %3594
  %3596 = vrot.lane.b32.xlu0 %v3515, 96
  %v3597 = vpop.permute.xlu0 %3596
  %3598 = vrot.lane.b32.xlu0 %v3523, 96
  %v3599 = vpop.permute.xlu0 %3598
  %3600 = vrot.lane.b32.xlu0 %v3531, 96
  %v3601 = vpop.permute.xlu0 %3600
  %3602 = vrot.lane.b32.xlu0 %v3539, 96
  %v3603 = vpop.permute.xlu0 %3602
  %vm3604 = vcmp.lt.s32.totalorder %v3474, 96
  %v3605 = vsel %vm3604, %v3589, %v3597
  %v3606 = vsel %vm3604, %v3591, %v3599
  %v3607 = vsel %vm3604, %v3593, %v3601
  %v3608 = vsel %vm3604, %v3595, %v3603
  %v3609 = vsel %vm3604, %v3581, %v3589
  %v3610 = vsel %vm3604, %v3583, %v3591
  %v3611 = vsel %vm3604, %v3585, %v3593
  %v3612 = vsel %vm3604, %v3587, %v3595
  %v3613 = vsel %vm3604, %v3573, %v3581
  %v3614 = vsel %vm3604, %v3575, %v3583
  %v3615 = vsel %vm3604, %v3577, %v3585
  %v3616 = vsel %vm3604, %v3579, %v3587
  %v3617 = vsel %vm3604, %v3565, %v3573
  %v3618 = vsel %vm3604, %v3567, %v3575
  %v3619 = vsel %vm3604, %v3569, %v3577
  %v3620 = vsel %vm3604, %v3571, %v3579
  %v3621 = vsel %vm3604, %v3557, %v3565
  %v3622 = vsel %vm3604, %v3559, %v3567
  %v3623 = vsel %vm3604, %v3561, %v3569
  %v3624 = vsel %vm3604, %v3563, %v3571
  %v3625 = vsel %vm3604, %v3549, %v3557
  %v3626 = vsel %vm3604, %v3551, %v3559
  %v3627 = vsel %vm3604, %v3553, %v3561
  %v3628 = vsel %vm3604, %v3555, %v3563
  %v3629 = vsel %vm3604, %v3541, %v3549
  %v3630 = vsel %vm3604, %v3543, %v3551
  %v3631 = vsel %vm3604, %v3545, %v3553
  %v3632 = vsel %vm3604, %v3547, %v3555
  %v3633 = vsel %vm3604, %v3597, %v3541
  %v3634 = vsel %vm3604, %v3599, %v3543
  %v3635 = vsel %vm3604, %v3601, %v3545
  %v3636 = vsel %vm3604, %v3603, %v3547
  %v3637 = vmax.f32 %v3508, %v3629
  %v3638 = vmax.f32 %v3509, %v3625
  %v3639 = vmax.f32 %v3510, %v3621
  %v3640 = vmax.f32 %v3511, %v3617
  %v3641 = vmax.f32 %v3512, %v3613
  %v3642 = vmax.f32 %v3513, %v3609
  %v3643 = vmax.f32 %v3514, %v3605
  %v3644 = vmax.f32 %v3515, %v3633
  %v3645 = vmax.f32 %v3516, %v3630
  %v3646 = vmax.f32 %v3517, %v3626
  %v3647 = vmax.f32 %v3518, %v3622
  %v3648 = vmax.f32 %v3519, %v3618
  %v3649 = vmax.f32 %v3520, %v3614
  %v3650 = vmax.f32 %v3521, %v3610
  %v3651 = vmax.f32 %v3522, %v3606
  %v3652 = vmax.f32 %v3523, %v3634
  %v3653 = vmax.f32 %v3524, %v3631
  %v3654 = vmax.f32 %v3525, %v3627
  %v3655 = vmax.f32 %v3526, %v3623
  %v3656 = vmax.f32 %v3527, %v3619
  %v3657 = vmax.f32 %v3528, %v3615
  %v3658 = vmax.f32 %v3529, %v3611
  %v3659 = vmax.f32 %v3530, %v3607
  %v3660 = vmax.f32 %v3531, %v3635
  %v3661 = vmax.f32 %v3532, %v3632
  %v3662 = vmax.f32 %v3533, %v3628
  %v3663 = vmax.f32 %v3534, %v3624
  %v3664 = vmax.f32 %v3535, %v3620
  %v3665 = vmax.f32 %v3536, %v3616
  %v3666 = vmax.f32 %v3537, %v3612
  %v3667 = vmax.f32 %v3538, %v3608
  %v3668 = vmax.f32 %v3539, %v3636
  %v3669 = vpack.c.bf16 %v3638, %v3637
  %v3670 = vpack.c.bf16 %v3640, %v3639
  %v3671 = vpack.c.bf16 %v3646, %v3645
  %v3672 = vpack.c.bf16 %v3648, %v3647
  %v3673 = vpack.c.bf16 %v3654, %v3653
  %v3674 = vpack.c.bf16 %v3656, %v3655
  %v3675 = vpack.c.bf16 %v3662, %v3661
  %v3676 = vpack.c.bf16 %v3664, %v3663
  %3677 = vst [vmem:[%s3] sm:$0xff] %v3669
  %3678 = vst [vmem:[%s3 + $0x8] sm:$0xff] %v3670
  %3679 = vst [vmem:[%s3 + $0x10] sm:$0xff] %v3671
  %3680 = vst [vmem:[%s3 + $0x18] sm:$0xff] %v3672
  %3681 = vst [vmem:[%s3 + $0x20] sm:$0xff] %v3673
  %3682 = vst [vmem:[%s3 + $0x28] sm:$0xff] %v3674
  %3683 = vst [vmem:[%s3 + $0x30] sm:$0xff] %v3675
  %3684 = vst [vmem:[%s3 + $0x38] sm:$0xff] %v3676
  %v3685 = vpack.c.bf16 %v3642, %v3641
  %v3686 = vpack.c.bf16 %v3644, %v3643
  %v3687 = vpack.c.bf16 %v3650, %v3649
  %v3688 = vpack.c.bf16 %v3652, %v3651
  %v3689 = vpack.c.bf16 %v3658, %v3657
  %v3690 = vpack.c.bf16 %v3660, %v3659
  %v3691 = vpack.c.bf16 %v3666, %v3665
  %v3692 = vpack.c.bf16 %v3668, %v3667
  %s3693 = scalar_lea.vmem %s3, 64
  %3694 = vst [vmem:[%s3693] sm:$0xff] %v3685
  %3695 = vst [vmem:[%s3693 + $0x8] sm:$0xff] %v3686
  %3696 = vst [vmem:[%s3693 + $0x10] sm:$0xff] %v3687
  %3697 = vst [vmem:[%s3693 + $0x18] sm:$0xff] %v3688
  %3698 = vst [vmem:[%s3693 + $0x20] sm:$0xff] %v3689
  %3699 = vst [vmem:[%s3693 + $0x28] sm:$0xff] %v3690
  %3700 = vst [vmem:[%s3693 + $0x30] sm:$0xff] %v3691
  %3701 = vst [vmem:[%s3693 + $0x38] sm:$0xff] %v3692
  // Predicated region
  $region14: #{cnn_forward.4} parent=0 // pred_check
    _
  $region15: #{cnn_forward.4} parent=0 // pred_check_branch
    %3703 = sbr.rel (0) target = $region17
  $region16: #{cnn_forward.4} parent=0 // pred_region
    _
  $region17: #{cnn_forward.4} parent=0 // pred_fallthru
    _
  // Predicated region
  $region18: #{cnn_forward.4} parent=0 // pred_check
    _
  $region19: #{cnn_forward.4} parent=0 // pred_check_branch
    %3705 = sbr.rel (0) target = $region21
  $region20: #{cnn_forward.4} parent=0 // pred_region
    _
  $region21: #{cnn_forward.4} parent=0 // pred_fallthru
    _

// kernel: cnn_forward.5
$region0: #{cnn_forward.5}
  #allocation0 [shape = 'u32[]', space=smem, size = 0x4, offset = 0x4, fixed_abs, tag = 'smem constant byte address 0x4 - core index']
  #allocation1 [shape = 'u32[72,128]{1,0:T(1,128)}', space=vmem, size = 0x9000, scoped, tag = 'internal scratch']
  %s0 = inlined_call_operand.vmem [shape: bf16[16,1568], index: 0, kind: input, shape index: {}]
  %s1 = inlined_call_operand.vmem [shape: bf16[1568,128], index: 1, kind: input, shape index: {}]
  %s2 = inlined_call_operand.vmem [shape: f32[1,128], index: 2, kind: input, shape index: {}]
  %s3 = inlined_call_operand.vmem [shape: bf16[128,10], index: 3, kind: input, shape index: {}]
  %s4 = inlined_call_operand.vmem [shape: f32[1,10], index: 4, kind: input, shape index: {}]
  %s5 = inlined_call_operand.vmem [shape: f32[16,10], index: 5, kind: output, shape index: {}]
  %s6 = sld [smem:[#allocation0]]
  $region30: #{cnn_forward.5} parent=0
    _
  %s8 = ssub.s32 1, %s6
  %s9 = scalar_select 0, %s8, %s6
  // Predicated region
  $region2: #{cnn_forward.5} parent=0 // pred_check
    _
  $region3: #{cnn_forward.5} parent=0 // pred_check_branch
    %11 = sbr.rel (0) target = $region5
  $region4: #{cnn_forward.5} parent=0 // pred_region
    _
  $region5: #{cnn_forward.5} parent=0 // pred_fallthru
    _
  // Predicated region
  $region6: #{cnn_forward.5} parent=0 // pred_check
    _
  $region7: #{cnn_forward.5} parent=0 // pred_check_branch
    %13 = sbr.rel (0) target = $region9
  $region8: #{cnn_forward.5} parent=0 // pred_region
    _
  $region9: #{cnn_forward.5} parent=0 // pred_fallthru
    _
  // Predicated region
  $region10: #{cnn_forward.5} parent=0 // pred_check
    _
  $region11: #{cnn_forward.5} parent=0 // pred_check_branch
    %15 = sbr.rel (0) target = $region13
  $region12: #{cnn_forward.5} parent=0 // pred_region
    _
  $region13: #{cnn_forward.5} parent=0 // pred_fallthru
    _
  // Predicated region
  $region14: #{cnn_forward.5} parent=0 // pred_check
    _
  $region15: #{cnn_forward.5} parent=0 // pred_check_branch
    %17 = sbr.rel (0) target = $region17
  $region16: #{cnn_forward.5} parent=0 // pred_region
    _
  $region17: #{cnn_forward.5} parent=0 // pred_fallthru
    _
  // Predicated region
  $region18: #{cnn_forward.5} parent=0 // pred_check
    _
  $region19: #{cnn_forward.5} parent=0 // pred_check_branch
    %19 = sbr.rel (0) target = $region21
  $region20: #{cnn_forward.5} parent=0 // pred_region
    _
  $region21: #{cnn_forward.5} parent=0 // pred_fallthru
    _
  %v21 = vld [vmem:[%s0] sm:$0xff]
  %v22 = vld [vmem:[%s0 + $0x8] sm:$0xff]
  %v23 = vld [vmem:[%s0 + $0x10] sm:$0xff]
  %v24 = vld [vmem:[%s0 + $0x18] sm:$0xff]
  %v25 = vld [vmem:[%s0 + $0x20] sm:$0xff]
  %v26 = vld [vmem:[%s0 + $0x28] sm:$0xff]
  %v27 = vld [vmem:[%s0 + $0x30] sm:$0xf]
  %v28 = vld [vmem:[%s0 + $0x34] sm:$0xff]
  %v29 = vld [vmem:[%s0 + $0x3c] sm:$0xff]
  %v30 = vld [vmem:[%s0 + $0x44] sm:$0xff]
  %v31 = vld [vmem:[%s0 + $0x4c] sm:$0xff]
  %v32 = vld [vmem:[%s0 + $0x54] sm:$0xff]
  %v33 = vld [vmem:[%s0 + $0x5c] sm:$0xff]
  %v34 = vld [vmem:[%s0 + $0x64] sm:$0xf]
  %v35 = vld [vmem:[%s1] sm:$0xf]
  %v36 = vld [vmem:[%s1 + $0x4] sm:$0xf]
  %v37 = vld [vmem:[%s1 + $0x8] sm:$0xf]
  %v38 = vld [vmem:[%s1 + $0xc] sm:$0xf]
  %v39 = vld [vmem:[%s1 + $0x10] sm:$0xf]
  %v40 = vld [vmem:[%s1 + $0x14] sm:$0xf]
  %v41 = vld [vmem:[%s1 + $0x18] sm:$0xf]
  %v42 = vld [vmem:[%s1 + $0x1c] sm:$0xf]
  %v43 = vld [vmem:[%s1 + $0x20] sm:$0xf]
  %v44 = vld [vmem:[%s1 + $0x24] sm:$0xf]
  %v45 = vld [vmem:[%s1 + $0x28] sm:$0xf]
  %v46 = vld [vmem:[%s1 + $0x2c] sm:$0xf]
  %v47 = vld [vmem:[%s1 + $0x30] sm:$0xf]
  %v48 = vld [vmem:[%s1 + $0x34] sm:$0xf]
  %v49 = vld [vmem:[%s1 + $0x38] sm:$0xf]
  %v50 = vld [vmem:[%s1 + $0x3c] sm:$0xf]
  %v51 = vld [vmem:[%s1 + $0x40] sm:$0xf]
  %v52 = vld [vmem:[%s1 + $0x44] sm:$0xf]
  %v53 = vld [vmem:[%s1 + $0x48] sm:$0xf]
  %v54 = vld [vmem:[%s1 + $0x4c] sm:$0xf]
  %v55 = vld [vmem:[%s1 + $0x50] sm:$0xf]
  %v56 = vld [vmem:[%s1 + $0x54] sm:$0xf]
  %v57 = vld [vmem:[%s1 + $0x58] sm:$0xf]
  %v58 = vld [vmem:[%s1 + $0x5c] sm:$0xf]
  %v59 = vld [vmem:[%s1 + $0x60] sm:$0xf]
  %v60 = vld [vmem:[%s1 + $0x64] sm:$0xf]
  %v61 = vld [vmem:[%s1 + $0x68] sm:$0xf]
  %v62 = vld [vmem:[%s1 + $0x6c] sm:$0xf]
  %v63 = vld [vmem:[%s1 + $0x70] sm:$0xf]
  %v64 = vld [vmem:[%s1 + $0x74] sm:$0xf]
  %v65 = vld [vmem:[%s1 + $0x78] sm:$0xf]
  %v66 = vld [vmem:[%s1 + $0x7c] sm:$0xf]
  %v67 = vld [vmem:[%s1 + $0x80] sm:$0xf]
  %v68 = vld [vmem:[%s1 + $0x84] sm:$0xf]
  %v69 = vld [vmem:[%s1 + $0x88] sm:$0xf]
  %v70 = vld [vmem:[%s1 + $0x8c] sm:$0xf]
  %v71 = vld [vmem:[%s1 + $0x90] sm:$0xf]
  %v72 = vld [vmem:[%s1 + $0x94] sm:$0xf]
  %v73 = vld [vmem:[%s1 + $0x98] sm:$0xf]
  %v74 = vld [vmem:[%s1 + $0x9c] sm:$0xf]
  %v75 = vld [vmem:[%s1 + $0xa0] sm:$0xf]
  %v76 = vld [vmem:[%s1 + $0xa4] sm:$0xf]
  %v77 = vld [vmem:[%s1 + $0xa8] sm:$0xf]
  %v78 = vld [vmem:[%s1 + $0xac] sm:$0xf]
  %v79 = vld [vmem:[%s1 + $0xb0] sm:$0xf]
  %v80 = vld [vmem:[%s1 + $0xb4] sm:$0xf]
  %v81 = vld [vmem:[%s1 + $0xb8] sm:$0xf]
  %v82 = vld [vmem:[%s1 + $0xbc] sm:$0xf]
  %v83 = vld [vmem:[%s1 + $0xc0] sm:$0xf]
  %v84 = vld [vmem:[%s1 + $0xc4] sm:$0xf]
  %v85 = vld [vmem:[%s1 + $0xc8] sm:$0xf]
  %v86 = vld [vmem:[%s1 + $0xcc] sm:$0xf]
  %v87 = vld [vmem:[%s1 + $0xd0] sm:$0xf]
  %v88 = vld [vmem:[%s1 + $0xd4] sm:$0xf]
  %v89 = vld [vmem:[%s1 + $0xd8] sm:$0xf]
  %v90 = vld [vmem:[%s1 + $0xdc] sm:$0xf]
  %v91 = vld [vmem:[%s1 + $0xe0] sm:$0xf]
  %v92 = vld [vmem:[%s1 + $0xe4] sm:$0xf]
  %v93 = vld [vmem:[%s1 + $0xe8] sm:$0xf]
  %v94 = vld [vmem:[%s1 + $0xec] sm:$0xf]
  %v95 = vld [vmem:[%s1 + $0xf0] sm:$0xf]
  %v96 = vld [vmem:[%s1 + $0xf4] sm:$0xf]
  %v97 = vld [vmem:[%s1 + $0xf8] sm:$0xf]
  %v98 = vld [vmem:[%s1 + $0xfc] sm:$0xf]
  %v99 = vld [vmem:[%s1 + $0x100] sm:$0xf]
  %v100 = vld [vmem:[%s1 + $0x104] sm:$0xf]
  %v101 = vld [vmem:[%s1 + $0x108] sm:$0xf]
  %v102 = vld [vmem:[%s1 + $0x10c] sm:$0xf]
  %v103 = vld [vmem:[%s1 + $0x110] sm:$0xf]
  %v104 = vld [vmem:[%s1 + $0x114] sm:$0xf]
  %v105 = vld [vmem:[%s1 + $0x118] sm:$0xf]
  %v106 = vld [vmem:[%s1 + $0x11c] sm:$0xf]
  %v107 = vld [vmem:[%s1 + $0x120] sm:$0xf]
  %v108 = vld [vmem:[%s1 + $0x124] sm:$0xf]
  %v109 = vld [vmem:[%s1 + $0x128] sm:$0xf]
  %v110 = vld [vmem:[%s1 + $0x12c] sm:$0xf]
  %v111 = vld [vmem:[%s1 + $0x130] sm:$0xf]
  %v112 = vld [vmem:[%s1 + $0x134] sm:$0xf]
  %v113 = vld [vmem:[%s1 + $0x138] sm:$0xf]
  %v114 = vld [vmem:[%s1 + $0x13c] sm:$0xf]
  %v115 = vld [vmem:[%s1 + $0x140] sm:$0xf]
  %v116 = vld [vmem:[%s1 + $0x144] sm:$0xf]
  %v117 = vld [vmem:[%s1 + $0x148] sm:$0xf]
  %v118 = vld [vmem:[%s1 + $0x14c] sm:$0xf]
  %v119 = vld [vmem:[%s1 + $0x150] sm:$0xf]
  %v120 = vld [vmem:[%s1 + $0x154] sm:$0xf]
  %v121 = vld [vmem:[%s1 + $0x158] sm:$0xf]
  %v122 = vld [vmem:[%s1 + $0x15c] sm:$0xf]
  %v123 = vld [vmem:[%s1 + $0x160] sm:$0xf]
  %v124 = vld [vmem:[%s1 + $0x164] sm:$0xf]
  %v125 = vld [vmem:[%s1 + $0x168] sm:$0xf]
  %v126 = vld [vmem:[%s1 + $0x16c] sm:$0xf]
  %v127 = vld [vmem:[%s1 + $0x170] sm:$0xf]
  %v128 = vld [vmem:[%s1 + $0x174] sm:$0xf]
  %v129 = vld [vmem:[%s1 + $0x178] sm:$0xf]
  %v130 = vld [vmem:[%s1 + $0x17c] sm:$0xf]
  %v131 = vld [vmem:[%s1 + $0x180] sm:$0xf]
  %v132 = vld [vmem:[%s1 + $0x184] sm:$0xf]
  %v133 = vld [vmem:[%s1 + $0x188] sm:$0xf]
  %v134 = vld [vmem:[%s1 + $0x18c] sm:$0xf]
  %v135 = vld [vmem:[%s1 + $0x190] sm:$0xf]
  %v136 = vld [vmem:[%s1 + $0x194] sm:$0xf]
  %v137 = vld [vmem:[%s1 + $0x198] sm:$0xf]
  %v138 = vld [vmem:[%s1 + $0x19c] sm:$0xf]
  %v139 = vld [vmem:[%s1 + $0x1a0] sm:$0xf]
  %v140 = vld [vmem:[%s1 + $0x1a4] sm:$0xf]
  %v141 = vld [vmem:[%s1 + $0x1a8] sm:$0xf]
  %v142 = vld [vmem:[%s1 + $0x1ac] sm:$0xf]
  %v143 = vld [vmem:[%s1 + $0x1b0] sm:$0xf]
  %v144 = vld [vmem:[%s1 + $0x1b4] sm:$0xf]
  %v145 = vld [vmem:[%s1 + $0x1b8] sm:$0xf]
  %v146 = vld [vmem:[%s1 + $0x1bc] sm:$0xf]
  %v147 = vld [vmem:[%s1 + $0x1c0] sm:$0xf]
  %v148 = vld [vmem:[%s1 + $0x1c4] sm:$0xf]
  %v149 = vld [vmem:[%s1 + $0x1c8] sm:$0xf]
  %v150 = vld [vmem:[%s1 + $0x1cc] sm:$0xf]
  %v151 = vld [vmem:[%s1 + $0x1d0] sm:$0xf]
  %v152 = vld [vmem:[%s1 + $0x1d4] sm:$0xf]
  %v153 = vld [vmem:[%s1 + $0x1d8] sm:$0xf]
  %v154 = vld [vmem:[%s1 + $0x1dc] sm:$0xf]
  %v155 = vld [vmem:[%s1 + $0x1e0] sm:$0xf]
  %v156 = vld [vmem:[%s1 + $0x1e4] sm:$0xf]
  %v157 = vld [vmem:[%s1 + $0x1e8] sm:$0xf]
  %v158 = vld [vmem:[%s1 + $0x1ec] sm:$0xf]
  %v159 = vld [vmem:[%s1 + $0x1f0] sm:$0xf]
  %v160 = vld [vmem:[%s1 + $0x1f4] sm:$0xf]
  %v161 = vld [vmem:[%s1 + $0x1f8] sm:$0xf]
  %v162 = vld [vmem:[%s1 + $0x1fc] sm:$0xf]
  %v163 = vld [vmem:[%s1 + $0x200] sm:$0xf]
  %v164 = vld [vmem:[%s1 + $0x204] sm:$0xf]
  %v165 = vld [vmem:[%s1 + $0x208] sm:$0xf]
  %v166 = vld [vmem:[%s1 + $0x20c] sm:$0xf]
  %v167 = vld [vmem:[%s1 + $0x210] sm:$0xf]
  %v168 = vld [vmem:[%s1 + $0x214] sm:$0xf]
  %v169 = vld [vmem:[%s1 + $0x218] sm:$0xf]
  %v170 = vld [vmem:[%s1 + $0x21c] sm:$0xf]
  %v171 = vld [vmem:[%s1 + $0x220] sm:$0xf]
  %v172 = vld [vmem:[%s1 + $0x224] sm:$0xf]
  %v173 = vld [vmem:[%s1 + $0x228] sm:$0xf]
  %v174 = vld [vmem:[%s1 + $0x22c] sm:$0xf]
  %v175 = vld [vmem:[%s1 + $0x230] sm:$0xf]
  %v176 = vld [vmem:[%s1 + $0x234] sm:$0xf]
  %v177 = vld [vmem:[%s1 + $0x238] sm:$0xf]
  %v178 = vld [vmem:[%s1 + $0x23c] sm:$0xf]
  %v179 = vld [vmem:[%s1 + $0x240] sm:$0xf]
  %v180 = vld [vmem:[%s1 + $0x244] sm:$0xf]
  %v181 = vld [vmem:[%s1 + $0x248] sm:$0xf]
  %v182 = vld [vmem:[%s1 + $0x24c] sm:$0xf]
  %v183 = vld [vmem:[%s1 + $0x250] sm:$0xf]
  %v184 = vld [vmem:[%s1 + $0x254] sm:$0xf]
  %v185 = vld [vmem:[%s1 + $0x258] sm:$0xf]
  %v186 = vld [vmem:[%s1 + $0x25c] sm:$0xf]
  %v187 = vld [vmem:[%s1 + $0x260] sm:$0xf]
  %v188 = vld [vmem:[%s1 + $0x264] sm:$0xf]
  %v189 = vld [vmem:[%s1 + $0x268] sm:$0xf]
  %v190 = vld [vmem:[%s1 + $0x26c] sm:$0xf]
  %v191 = vld [vmem:[%s1 + $0x270] sm:$0xf]
  %v192 = vld [vmem:[%s1 + $0x274] sm:$0xf]
  %v193 = vld [vmem:[%s1 + $0x278] sm:$0xf]
  %v194 = vld [vmem:[%s1 + $0x27c] sm:$0xf]
  %v195 = vld [vmem:[%s1 + $0x280] sm:$0xf]
  %v196 = vld [vmem:[%s1 + $0x284] sm:$0xf]
  %v197 = vld [vmem:[%s1 + $0x288] sm:$0xf]
  %v198 = vld [vmem:[%s1 + $0x28c] sm:$0xf]
  %v199 = vld [vmem:[%s1 + $0x290] sm:$0xf]
  %v200 = vld [vmem:[%s1 + $0x294] sm:$0xf]
  %v201 = vld [vmem:[%s1 + $0x298] sm:$0xf]
  %v202 = vld [vmem:[%s1 + $0x29c] sm:$0xf]
  %v203 = vld [vmem:[%s1 + $0x2a0] sm:$0xf]
  %v204 = vld [vmem:[%s1 + $0x2a4] sm:$0xf]
  %v205 = vld [vmem:[%s1 + $0x2a8] sm:$0xf]
  %v206 = vld [vmem:[%s1 + $0x2ac] sm:$0xf]
  %v207 = vld [vmem:[%s1 + $0x2b0] sm:$0xf]
  %v208 = vld [vmem:[%s1 + $0x2b4] sm:$0xf]
  %v209 = vld [vmem:[%s1 + $0x2b8] sm:$0xf]
  %v210 = vld [vmem:[%s1 + $0x2bc] sm:$0xf]
  %v211 = vld [vmem:[%s1 + $0x2c0] sm:$0xf]
  %v212 = vld [vmem:[%s1 + $0x2c4] sm:$0xf]
  %v213 = vld [vmem:[%s1 + $0x2c8] sm:$0xf]
  %v214 = vld [vmem:[%s1 + $0x2cc] sm:$0xf]
  %v215 = vld [vmem:[%s1 + $0x2d0] sm:$0xf]
  %v216 = vld [vmem:[%s1 + $0x2d4] sm:$0xf]
  %v217 = vld [vmem:[%s1 + $0x2d8] sm:$0xf]
  %v218 = vld [vmem:[%s1 + $0x2dc] sm:$0xf]
  %v219 = vld [vmem:[%s1 + $0x2e0] sm:$0xf]
  %v220 = vld [vmem:[%s1 + $0x2e4] sm:$0xf]
  %v221 = vld [vmem:[%s1 + $0x2e8] sm:$0xf]
  %v222 = vld [vmem:[%s1 + $0x2ec] sm:$0xf]
  %v223 = vld [vmem:[%s1 + $0x2f0] sm:$0xf]
  %v224 = vld [vmem:[%s1 + $0x2f4] sm:$0xf]
  %v225 = vld [vmem:[%s1 + $0x2f8] sm:$0xf]
  %v226 = vld [vmem:[%s1 + $0x2fc] sm:$0xf]
  %v227 = vld [vmem:[%s1 + $0x300] sm:$0xf]
  %v228 = vld [vmem:[%s1 + $0x304] sm:$0xf]
  %v229 = vld [vmem:[%s1 + $0x308] sm:$0xf]
  %v230 = vld [vmem:[%s1 + $0x30c] sm:$0xf]
  %v231 = vld [vmem:[%s2] sm:$0x1]
  %v233 = vperm.slane %v231, 0
  %v249 = vunpack.c.l.b16 %v21
  %v250 = vunpack.c.h.b16 %v21
  %v251 = vunpack.c.l.b16 %v22
  %v252 = vunpack.c.h.b16 %v22
  %v253 = vunpack.c.l.b16 %v23
  %v254 = vunpack.c.h.b16 %v23
  %v255 = vunpack.c.l.b16 %v24
  %v256 = vunpack.c.h.b16 %v24
  %v257 = vunpack.c.l.b16 %v25
  %v258 = vunpack.c.h.b16 %v25
  %v259 = vunpack.c.l.b16 %v26
  %v260 = vunpack.c.h.b16 %v26
  %v261 = vunpack.c.l.b16 %v27
  %v262 = vunpack.c.l.b16 %v28
  %v263 = vunpack.c.h.b16 %v28
  %v264 = vunpack.c.l.b16 %v29
  %v265 = vunpack.c.h.b16 %v29
  %v266 = vunpack.c.l.b16 %v30
  %v267 = vunpack.c.h.b16 %v30
  %v268 = vunpack.c.l.b16 %v31
  %v269 = vunpack.c.h.b16 %v31
  %v270 = vunpack.c.l.b16 %v32
  %v271 = vunpack.c.h.b16 %v32
  %v272 = vunpack.c.l.b16 %v33
  %v273 = vunpack.c.h.b16 %v33
  %v274 = vunpack.c.l.b16 %v34
  %v275 = vpack.c.b16 %v262, %v249
  %v276 = vpack.c.b16 %v263, %v250
  %v277 = vpack.c.b16 %v264, %v251
  %v278 = vpack.c.b16 %v265, %v252
  %v279 = vpack.c.b16 %v266, %v253
  %v280 = vpack.c.b16 %v267, %v254
  %v281 = vpack.c.b16 %v268, %v255
  %v282 = vpack.c.b16 %v269, %v256
  %v283 = vpack.c.b16 %v270, %v257
  %v284 = vpack.c.b16 %v271, %v258
  %v285 = vpack.c.b16 %v272, %v259
  %v286 = vpack.c.b16 %v273, %v260
  %v287 = vpack.c.b16 %v274, %v261
  %v496 = vunpack.c.l.b16 %v35
  %v497 = vunpack.c.l.b16 %v36
  %v498 = vunpack.c.l.b16 %v37
  %v499 = vunpack.c.l.b16 %v38
  %v500 = vunpack.c.l.b16 %v39
  %v501 = vunpack.c.l.b16 %v40
  %v502 = vunpack.c.l.b16 %v41
  %v503 = vunpack.c.l.b16 %v42
  %v504 = vunpack.c.l.b16 %v43
  %v505 = vunpack.c.l.b16 %v44
  %v506 = vunpack.c.l.b16 %v45
  %v507 = vunpack.c.l.b16 %v46
  %v508 = vunpack.c.l.b16 %v47
  %v509 = vunpack.c.l.b16 %v48
  %v510 = vunpack.c.l.b16 %v49
  %v511 = vunpack.c.l.b16 %v50
  %v512 = vunpack.c.l.b16 %v51
  %v513 = vunpack.c.l.b16 %v52
  %v514 = vunpack.c.l.b16 %v53
  %v515 = vunpack.c.l.b16 %v54
  %v516 = vunpack.c.l.b16 %v55
  %v517 = vunpack.c.l.b16 %v56
  %v518 = vunpack.c.l.b16 %v57
  %v519 = vunpack.c.l.b16 %v58
  %v520 = vunpack.c.l.b16 %v59
  %v521 = vunpack.c.l.b16 %v60
  %v522 = vunpack.c.l.b16 %v61
  %v523 = vunpack.c.l.b16 %v62
  %v524 = vunpack.c.l.b16 %v63
  %v525 = vunpack.c.l.b16 %v64
  %v526 = vunpack.c.l.b16 %v65
  %v527 = vunpack.c.l.b16 %v66
  %v528 = vunpack.c.l.b16 %v67
  %v529 = vunpack.c.l.b16 %v68
  %v530 = vunpack.c.l.b16 %v69
  %v531 = vunpack.c.l.b16 %v70
  %v532 = vunpack.c.l.b16 %v71
  %v533 = vunpack.c.l.b16 %v72
  %v534 = vunpack.c.l.b16 %v73
  %v535 = vunpack.c.l.b16 %v74
  %v536 = vunpack.c.l.b16 %v75
  %v537 = vunpack.c.l.b16 %v76
  %v538 = vunpack.c.l.b16 %v77
  %v539 = vunpack.c.l.b16 %v78
  %v540 = vunpack.c.l.b16 %v79
  %v541 = vunpack.c.l.b16 %v80
  %v542 = vunpack.c.l.b16 %v81
  %v543 = vunpack.c.l.b16 %v82
  %v544 = vunpack.c.l.b16 %v83
  %v545 = vunpack.c.l.b16 %v84
  %v546 = vunpack.c.l.b16 %v85
  %v547 = vunpack.c.l.b16 %v86
  %v548 = vunpack.c.l.b16 %v87
  %v549 = vunpack.c.l.b16 %v88
  %v550 = vunpack.c.l.b16 %v89
  %v551 = vunpack.c.l.b16 %v90
  %v552 = vunpack.c.l.b16 %v91
  %v553 = vunpack.c.l.b16 %v92
  %v554 = vunpack.c.l.b16 %v93
  %v555 = vunpack.c.l.b16 %v94
  %v556 = vunpack.c.l.b16 %v95
  %v557 = vunpack.c.l.b16 %v96
  %v558 = vunpack.c.l.b16 %v97
  %v559 = vunpack.c.l.b16 %v98
  %v560 = vunpack.c.l.b16 %v99
  %v561 = vunpack.c.l.b16 %v100
  %v562 = vunpack.c.l.b16 %v101
  %v563 = vunpack.c.l.b16 %v102
  %v564 = vunpack.c.l.b16 %v103
  %v565 = vunpack.c.l.b16 %v104
  %v566 = vunpack.c.l.b16 %v105
  %v567 = vunpack.c.l.b16 %v106
  %v568 = vunpack.c.l.b16 %v107
  %v569 = vunpack.c.l.b16 %v108
  %v570 = vunpack.c.l.b16 %v109
  %v571 = vunpack.c.l.b16 %v110
  %v572 = vunpack.c.l.b16 %v111
  %v573 = vunpack.c.l.b16 %v112
  %v574 = vunpack.c.l.b16 %v113
  %v575 = vunpack.c.l.b16 %v114
  %v576 = vunpack.c.l.b16 %v115
  %v577 = vunpack.c.l.b16 %v116
  %v578 = vunpack.c.l.b16 %v117
  %v579 = vunpack.c.l.b16 %v118
  %v580 = vunpack.c.l.b16 %v119
  %v581 = vunpack.c.l.b16 %v120
  %v582 = vunpack.c.l.b16 %v121
  %v583 = vunpack.c.l.b16 %v122
  %v584 = vunpack.c.l.b16 %v123
  %v585 = vunpack.c.l.b16 %v124
  %v586 = vunpack.c.l.b16 %v125
  %v587 = vunpack.c.l.b16 %v126
  %v588 = vunpack.c.l.b16 %v127
  %v589 = vunpack.c.l.b16 %v128
  %v590 = vunpack.c.l.b16 %v129
  %v591 = vunpack.c.l.b16 %v130
  %v592 = vunpack.c.l.b16 %v131
  %v593 = vunpack.c.l.b16 %v132
  %v594 = vunpack.c.l.b16 %v133
  %v595 = vunpack.c.l.b16 %v134
  %v596 = vunpack.c.l.b16 %v135
  %v597 = vunpack.c.l.b16 %v136
  %v598 = vunpack.c.l.b16 %v137
  %v599 = vunpack.c.l.b16 %v138
  %v600 = vunpack.c.l.b16 %v139
  %v601 = vunpack.c.l.b16 %v140
  %v602 = vunpack.c.l.b16 %v141
  %v603 = vunpack.c.l.b16 %v142
  %v604 = vunpack.c.l.b16 %v143
  %v605 = vunpack.c.l.b16 %v144
  %v606 = vunpack.c.l.b16 %v145
  %v607 = vunpack.c.l.b16 %v146
  %v608 = vunpack.c.l.b16 %v147
  %v609 = vunpack.c.l.b16 %v148
  %v610 = vunpack.c.l.b16 %v149
  %v611 = vunpack.c.l.b16 %v150
  %v612 = vunpack.c.l.b16 %v151
  %v613 = vunpack.c.l.b16 %v152
  %v614 = vunpack.c.l.b16 %v153
  %v615 = vunpack.c.l.b16 %v154
  %v616 = vunpack.c.l.b16 %v155
  %v617 = vunpack.c.l.b16 %v156
  %v618 = vunpack.c.l.b16 %v157
  %v619 = vunpack.c.l.b16 %v158
  %v620 = vunpack.c.l.b16 %v159
  %v621 = vunpack.c.l.b16 %v160
  %v622 = vunpack.c.l.b16 %v161
  %v623 = vunpack.c.l.b16 %v162
  %v624 = vunpack.c.l.b16 %v163
  %v625 = vunpack.c.l.b16 %v164
  %v626 = vunpack.c.l.b16 %v165
  %v627 = vunpack.c.l.b16 %v166
  %v628 = vunpack.c.l.b16 %v167
  %v629 = vunpack.c.l.b16 %v168
  %v630 = vunpack.c.l.b16 %v169
  %v631 = vunpack.c.l.b16 %v170
  %v632 = vunpack.c.l.b16 %v171
  %v633 = vunpack.c.l.b16 %v172
  %v634 = vunpack.c.l.b16 %v173
  %v635 = vunpack.c.l.b16 %v174
  %v636 = vunpack.c.l.b16 %v175
  %v637 = vunpack.c.l.b16 %v176
  %v638 = vunpack.c.l.b16 %v177
  %v639 = vunpack.c.l.b16 %v178
  %v640 = vunpack.c.l.b16 %v179
  %v641 = vunpack.c.l.b16 %v180
  %v642 = vunpack.c.l.b16 %v181
  %v643 = vunpack.c.l.b16 %v182
  %v644 = vunpack.c.l.b16 %v183
  %v645 = vunpack.c.l.b16 %v184
  %v646 = vunpack.c.l.b16 %v185
  %v647 = vunpack.c.l.b16 %v186
  %v648 = vunpack.c.l.b16 %v187
  %v649 = vunpack.c.l.b16 %v188
  %v650 = vunpack.c.l.b16 %v189
  %v651 = vunpack.c.l.b16 %v190
  %v652 = vunpack.c.l.b16 %v191
  %v653 = vunpack.c.l.b16 %v192
  %v654 = vunpack.c.l.b16 %v193
  %v655 = vunpack.c.l.b16 %v194
  %v656 = vunpack.c.l.b16 %v195
  %v657 = vunpack.c.l.b16 %v196
  %v658 = vunpack.c.l.b16 %v197
  %v659 = vunpack.c.l.b16 %v198
  %v660 = vunpack.c.l.b16 %v199
  %v661 = vunpack.c.l.b16 %v200
  %v662 = vunpack.c.l.b16 %v201
  %v663 = vunpack.c.l.b16 %v202
  %v664 = vunpack.c.l.b16 %v203
  %v665 = vunpack.c.l.b16 %v204
  %v666 = vunpack.c.l.b16 %v205
  %v667 = vunpack.c.l.b16 %v206
  %v668 = vunpack.c.l.b16 %v207
  %v669 = vunpack.c.l.b16 %v208
  %v670 = vunpack.c.l.b16 %v209
  %v671 = vunpack.c.l.b16 %v210
  %v672 = vunpack.c.l.b16 %v211
  %v673 = vunpack.c.l.b16 %v212
  %v674 = vunpack.c.l.b16 %v213
  %v675 = vunpack.c.l.b16 %v214
  %v676 = vunpack.c.l.b16 %v215
  %v677 = vunpack.c.l.b16 %v216
  %v678 = vunpack.c.l.b16 %v217
  %v679 = vunpack.c.l.b16 %v218
  %v680 = vunpack.c.l.b16 %v219
  %v681 = vunpack.c.l.b16 %v220
  %v682 = vunpack.c.l.b16 %v221
  %v683 = vunpack.c.l.b16 %v222
  %v684 = vunpack.c.l.b16 %v223
  %v685 = vunpack.c.l.b16 %v224
  %v686 = vunpack.c.l.b16 %v225
  %v687 = vunpack.c.l.b16 %v226
  %v688 = vunpack.c.l.b16 %v227
  %v689 = vunpack.c.l.b16 %v228
  %v690 = vunpack.c.l.b16 %v229
  %v691 = vunpack.c.l.b16 %v230
  %v692 = vpack.c.b16 %v497, %v496
  %v693 = vpack.c.b16 %v499, %v498
  %v694 = vpack.c.b16 %v501, %v500
  %v695 = vpack.c.b16 %v503, %v502
  %v696 = vpack.c.b16 %v505, %v504
  %v697 = vpack.c.b16 %v507, %v506
  %v698 = vpack.c.b16 %v509, %v508
  %v699 = vpack.c.b16 %v511, %v510
  %v700 = vpack.c.b16 %v513, %v512
  %v701 = vpack.c.b16 %v515, %v514
  %v702 = vpack.c.b16 %v517, %v516
  %v703 = vpack.c.b16 %v519, %v518
  %v704 = vpack.c.b16 %v521, %v520
  %v705 = vpack.c.b16 %v523, %v522
  %v706 = vpack.c.b16 %v525, %v524
  %v707 = vpack.c.b16 %v527, %v526
  %v708 = vpack.c.b16 %v529, %v528
  %v709 = vpack.c.b16 %v531, %v530
  %v710 = vpack.c.b16 %v533, %v532
  %v711 = vpack.c.b16 %v535, %v534
  %v712 = vpack.c.b16 %v537, %v536
  %v713 = vpack.c.b16 %v539, %v538
  %v714 = vpack.c.b16 %v541, %v540
  %v715 = vpack.c.b16 %v543, %v542
  %v716 = vpack.c.b16 %v545, %v544
  %v717 = vpack.c.b16 %v547, %v546
  %v718 = vpack.c.b16 %v549, %v548
  %v719 = vpack.c.b16 %v551, %v550
  %v720 = vpack.c.b16 %v553, %v552
  %v721 = vpack.c.b16 %v555, %v554
  %v722 = vpack.c.b16 %v557, %v556
  %v723 = vpack.c.b16 %v559, %v558
  %v724 = vpack.c.b16 %v561, %v560
  %v725 = vpack.c.b16 %v563, %v562
  %v726 = vpack.c.b16 %v565, %v564
  %v727 = vpack.c.b16 %v567, %v566
  %v728 = vpack.c.b16 %v569, %v568
  %v729 = vpack.c.b16 %v571, %v570
  %v730 = vpack.c.b16 %v573, %v572
  %v731 = vpack.c.b16 %v575, %v574
  %v732 = vpack.c.b16 %v577, %v576
  %v733 = vpack.c.b16 %v579, %v578
  %v734 = vpack.c.b16 %v581, %v580
  %v735 = vpack.c.b16 %v583, %v582
  %v736 = vpack.c.b16 %v585, %v584
  %v737 = vpack.c.b16 %v587, %v586
  %v738 = vpack.c.b16 %v589, %v588
  %v739 = vpack.c.b16 %v591, %v590
  %v740 = vpack.c.b16 %v593, %v592
  %v741 = vpack.c.b16 %v595, %v594
  %v742 = vpack.c.b16 %v597, %v596
  %v743 = vpack.c.b16 %v599, %v598
  %v744 = vpack.c.b16 %v601, %v600
  %v745 = vpack.c.b16 %v603, %v602
  %v746 = vpack.c.b16 %v605, %v604
  %v747 = vpack.c.b16 %v607, %v606
  %v748 = vpack.c.b16 %v609, %v608
  %v749 = vpack.c.b16 %v611, %v610
  %v750 = vpack.c.b16 %v613, %v612
  %v751 = vpack.c.b16 %v615, %v614
  %v752 = vpack.c.b16 %v617, %v616
  %v753 = vpack.c.b16 %v619, %v618
  %v754 = vpack.c.b16 %v621, %v620
  %v755 = vpack.c.b16 %v623, %v622
  %v756 = vpack.c.b16 %v625, %v624
  %v757 = vpack.c.b16 %v627, %v626
  %v758 = vpack.c.b16 %v629, %v628
  %v759 = vpack.c.b16 %v631, %v630
  %v760 = vpack.c.b16 %v633, %v632
  %v761 = vpack.c.b16 %v635, %v634
  %v762 = vpack.c.b16 %v637, %v636
  %v763 = vpack.c.b16 %v639, %v638
  %v764 = vpack.c.b16 %v641, %v640
  %v765 = vpack.c.b16 %v643, %v642
  %v766 = vpack.c.b16 %v645, %v644
  %v767 = vpack.c.b16 %v647, %v646
  %v768 = vpack.c.b16 %v649, %v648
  %v769 = vpack.c.b16 %v651, %v650
  %v770 = vpack.c.b16 %v653, %v652
  %v771 = vpack.c.b16 %v655, %v654
  %v772 = vpack.c.b16 %v657, %v656
  %v773 = vpack.c.b16 %v659, %v658
  %v774 = vpack.c.b16 %v661, %v660
  %v775 = vpack.c.b16 %v663, %v662
  %v776 = vpack.c.b16 %v665, %v664
  %v777 = vpack.c.b16 %v667, %v666
  %v778 = vpack.c.b16 %v669, %v668
  %v779 = vpack.c.b16 %v671, %v670
  %v780 = vpack.c.b16 %v673, %v672
  %v781 = vpack.c.b16 %v675, %v674
  %v782 = vpack.c.b16 %v677, %v676
  %v783 = vpack.c.b16 %v679, %v678
  %v784 = vpack.c.b16 %v681, %v680
  %v785 = vpack.c.b16 %v683, %v682
  %v786 = vpack.c.b16 %v685, %v684
  %v787 = vpack.c.b16 %v687, %v686
  %v788 = vpack.c.b16 %v689, %v688
  %v789 = vpack.c.b16 %v691, %v690
  %vm888 = vcmask 261120
  %v890 = vsel %vm888, %v287, 0
  %892 = vmatpush.bf16.msra.mxu0 %v699
  %893 = vmatpush.bf16.msra.mxu0 %v698
  %894 = vmatpush.bf16.msra.mxu0 %v697
  %895 = vmatpush.bf16.msra.mxu0 %v696
  %896 = vmatpush.bf16.msra.mxu0 %v695
  %897 = vmatpush.bf16.msra.mxu0 %v694
  %898 = vmatpush.bf16.msra.mxu0 %v693
  %899 = vmatpush.bf16.msra.mxu0 %v692
  %900 = vmatmul.bf16.gmra.mxu0 %v275
  %v901 = vpop.f32.mrf.mxu0
  %v902 = vadd.f32 %v233, %v901
  %v903 = vpop.f32.mrf.mxu0
  %v904 = vadd.f32 %v233, %v903
  %905 = vdwg.mxu0
  %906 = vmatpush.bf16.msra.mxu0 %v707
  %907 = vmatpush.bf16.msra.mxu0 %v706
  %908 = vmatpush.bf16.msra.mxu0 %v705
  %909 = vmatpush.bf16.msra.mxu0 %v704
  %910 = vmatpush.bf16.msra.mxu0 %v703
  %911 = vmatpush.bf16.msra.mxu0 %v702
  %912 = vmatpush.bf16.msra.mxu0 %v701
  %913 = vmatpush.bf16.msra.mxu0 %v700
  %914 = vmatmul.bf16.gmra.mxu0 %v276
  %v915 = vpop.f32.mrf.mxu0
  %v916 = vadd.f32 %v902, %v915
  %v917 = vpop.f32.mrf.mxu0
  %v918 = vadd.f32 %v904, %v917
  %919 = vdwg.mxu0
  %920 = vmatpush.bf16.msra.mxu0 %v715
  %921 = vmatpush.bf16.msra.mxu0 %v714
  %922 = vmatpush.bf16.msra.mxu0 %v713
  %923 = vmatpush.bf16.msra.mxu0 %v712
  %924 = vmatpush.bf16.msra.mxu0 %v711
  %925 = vmatpush.bf16.msra.mxu0 %v710
  %926 = vmatpush.bf16.msra.mxu0 %v709
  %927 = vmatpush.bf16.msra.mxu0 %v708
  %928 = vmatmul.bf16.gmra.mxu0 %v277
  %v929 = vpop.f32.mrf.mxu0
  %v930 = vadd.f32 %v916, %v929
  %v931 = vpop.f32.mrf.mxu0
  %v932 = vadd.f32 %v918, %v931
  %933 = vdwg.mxu0
  %934 = vmatpush.bf16.msra.mxu0 %v723
  %935 = vmatpush.bf16.msra.mxu0 %v722
  %936 = vmatpush.bf16.msra.mxu0 %v721
  %937 = vmatpush.bf16.msra.mxu0 %v720
  %938 = vmatpush.bf16.msra.mxu0 %v719
  %939 = vmatpush.bf16.msra.mxu0 %v718
  %940 = vmatpush.bf16.msra.mxu0 %v717
  %941 = vmatpush.bf16.msra.mxu0 %v716
  %942 = vmatmul.bf16.gmra.mxu0 %v278
  %v943 = vpop.f32.mrf.mxu0
  %v944 = vadd.f32 %v930, %v943
  %v945 = vpop.f32.mrf.mxu0
  %v946 = vadd.f32 %v932, %v945
  %947 = vdwg.mxu0
  %948 = vmatpush.bf16.msra.mxu0 %v731
  %949 = vmatpush.bf16.msra.mxu0 %v730
  %950 = vmatpush.bf16.msra.mxu0 %v729
  %951 = vmatpush.bf16.msra.mxu0 %v728
  %952 = vmatpush.bf16.msra.mxu0 %v727
  %953 = vmatpush.bf16.msra.mxu0 %v726
  %954 = vmatpush.bf16.msra.mxu0 %v725
  %955 = vmatpush.bf16.msra.mxu0 %v724
  %956 = vmatmul.bf16.gmra.mxu0 %v279
  %v957 = vpop.f32.mrf.mxu0
  %v958 = vadd.f32 %v944, %v957
  %v959 = vpop.f32.mrf.mxu0
  %v960 = vadd.f32 %v946, %v959
  %961 = vdwg.mxu0
  %962 = vmatpush.bf16.msra.mxu0 %v739
  %963 = vmatpush.bf16.msra.mxu0 %v738
  %964 = vmatpush.bf16.msra.mxu0 %v737
  %965 = vmatpush.bf16.msra.mxu0 %v736
  %966 = vmatpush.bf16.msra.mxu0 %v735
  %967 = vmatpush.bf16.msra.mxu0 %v734
  %968 = vmatpush.bf16.msra.mxu0 %v733
  %969 = vmatpush.bf16.msra.mxu0 %v732
  %970 = vmatmul.bf16.gmra.mxu0 %v280
  %v971 = vpop.f32.mrf.mxu0
  %v972 = vadd.f32 %v958, %v971
  %v973 = vpop.f32.mrf.mxu0
  %v974 = vadd.f32 %v960, %v973
  %975 = vdwg.mxu0
  %976 = vmatpush.bf16.msra.mxu0 %v747
  %977 = vmatpush.bf16.msra.mxu0 %v746
  %978 = vmatpush.bf16.msra.mxu0 %v745
  %979 = vmatpush.bf16.msra.mxu0 %v744
  %980 = vmatpush.bf16.msra.mxu0 %v743
  %981 = vmatpush.bf16.msra.mxu0 %v742
  %982 = vmatpush.bf16.msra.mxu0 %v741
  %983 = vmatpush.bf16.msra.mxu0 %v740
  %984 = vmatmul.bf16.gmra.mxu0 %v281
  %v985 = vpop.f32.mrf.mxu0
  %v986 = vadd.f32 %v972, %v985
  %v987 = vpop.f32.mrf.mxu0
  %v988 = vadd.f32 %v974, %v987
  %989 = vdwg.mxu0
  %990 = vmatpush.bf16.msra.mxu0 %v755
  %991 = vmatpush.bf16.msra.mxu0 %v754
  %992 = vmatpush.bf16.msra.mxu0 %v753
  %993 = vmatpush.bf16.msra.mxu0 %v752
  %994 = vmatpush.bf16.msra.mxu0 %v751
  %995 = vmatpush.bf16.msra.mxu0 %v750
  %996 = vmatpush.bf16.msra.mxu0 %v749
  %997 = vmatpush.bf16.msra.mxu0 %v748
  %998 = vmatmul.bf16.gmra.mxu0 %v282
  %v999 = vpop.f32.mrf.mxu0
  %v1000 = vadd.f32 %v986, %v999
  %v1001 = vpop.f32.mrf.mxu0
  %v1002 = vadd.f32 %v988, %v1001
  %1003 = vdwg.mxu0
  %1004 = vmatpush.bf16.msra.mxu0 %v763
  %1005 = vmatpush.bf16.msra.mxu0 %v762
  %1006 = vmatpush.bf16.msra.mxu0 %v761
  %1007 = vmatpush.bf16.msra.mxu0 %v760
  %1008 = vmatpush.bf16.msra.mxu0 %v759
  %1009 = vmatpush.bf16.msra.mxu0 %v758
  %1010 = vmatpush.bf16.msra.mxu0 %v757
  %1011 = vmatpush.bf16.msra.mxu0 %v756
  %1012 = vmatmul.bf16.gmra.mxu0 %v283
  %v1013 = vpop.f32.mrf.mxu0
  %v1014 = vadd.f32 %v1000, %v1013
  %v1015 = vpop.f32.mrf.mxu0
  %v1016 = vadd.f32 %v1002, %v1015
  %1017 = vdwg.mxu0
  %1018 = vmatpush.bf16.msra.mxu0 %v771
  %1019 = vmatpush.bf16.msra.mxu0 %v770
  %1020 = vmatpush.bf16.msra.mxu0 %v769
  %1021 = vmatpush.bf16.msra.mxu0 %v768
  %1022 = vmatpush.bf16.msra.mxu0 %v767
  %1023 = vmatpush.bf16.msra.mxu0 %v766
  %1024 = vmatpush.bf16.msra.mxu0 %v765
  %1025 = vmatpush.bf16.msra.mxu0 %v764
  %1026 = vmatmul.bf16.gmra.mxu0 %v284
  %v1027 = vpop.f32.mrf.mxu0
  %v1028 = vadd.f32 %v1014, %v1027
  %v1029 = vpop.f32.mrf.mxu0
  %v1030 = vadd.f32 %v1016, %v1029
  %1031 = vdwg.mxu0
  %1032 = vmatpush.bf16.msra.mxu0 %v779
  %1033 = vmatpush.bf16.msra.mxu0 %v778
  %1034 = vmatpush.bf16.msra.mxu0 %v777
  %1035 = vmatpush.bf16.msra.mxu0 %v776
  %1036 = vmatpush.bf16.msra.mxu0 %v775
  %1037 = vmatpush.bf16.msra.mxu0 %v774
  %1038 = vmatpush.bf16.msra.mxu0 %v773
  %1039 = vmatpush.bf16.msra.mxu0 %v772
  %1040 = vmatmul.bf16.gmra.mxu0 %v285
  %v1041 = vpop.f32.mrf.mxu0
  %v1042 = vadd.f32 %v1028, %v1041
  %v1043 = vpop.f32.mrf.mxu0
  %v1044 = vadd.f32 %v1030, %v1043
  %1045 = vdwg.mxu0
  %1046 = vmatpush.bf16.msra.mxu0 %v787
  %1047 = vmatpush.bf16.msra.mxu0 %v786
  %1048 = vmatpush.bf16.msra.mxu0 %v785
  %1049 = vmatpush.bf16.msra.mxu0 %v784
  %1050 = vmatpush.bf16.msra.mxu0 %v783
  %1051 = vmatpush.bf16.msra.mxu0 %v782
  %1052 = vmatpush.bf16.msra.mxu0 %v781
  %1053 = vmatpush.bf16.msra.mxu0 %v780
  %1054 = vmatmul.bf16.gmra.mxu0 %v286
  %v1055 = vpop.f32.mrf.mxu0
  %v1056 = vadd.f32 %v1042, %v1055
  %v1057 = vpop.f32.mrf.mxu0
  %v1058 = vadd.f32 %v1044, %v1057
  %1059 = vdwg.mxu0
  %1060 = vmatpush.bf16.msra.mxu0 0
  %1061 = vmatpush.bf16.msra.mxu0 0
  %1062 = vmatpush.bf16.msra.mxu0 0
  %1063 = vmatpush.bf16.msra.mxu0 0
  %1064 = vmatpush.bf16.msra.mxu0 0
  %1065 = vmatpush.bf16.msra.mxu0 0
  %1066 = vmatpush.bf16.msra.mxu0 %v789
  %1067 = vmatpush.bf16.msra.mxu0 %v788
  %1068 = vmatmul.bf16.gmra.mxu0 %v890
  %v1069 = vpop.f32.mrf.mxu0
  %v1070 = vadd.f32 %v1056, %v1069
  %v1071 = vpop.f32.mrf.mxu0
  %v1072 = vadd.f32 %v1058, %v1071
  %1073 = vdwg.mxu0
  %v1074 = vmax.f32 %v1070, 0.0
  %v1075 = vmax.f32 %v1072, 0.0
  %v1076 = vpack.c.bf16 %v1075, %v1074
  %v1077 = vld [vmem:[%s3] sm:$0xf]
  %v1078 = vld [vmem:[%s3 + $0x4] sm:$0xf]
  %v1079 = vld [vmem:[%s3 + $0x8] sm:$0xf]
  %v1080 = vld [vmem:[%s3 + $0xc] sm:$0xf]
  %v1081 = vld [vmem:[%s3 + $0x10] sm:$0xf]
  %v1082 = vld [vmem:[%s3 + $0x14] sm:$0xf]
  %v1083 = vld [vmem:[%s3 + $0x18] sm:$0xf]
  %v1084 = vld [vmem:[%s3 + $0x1c] sm:$0xf]
  %v1085 = vld [vmem:[%s3 + $0x20] sm:$0xf]
  %v1086 = vld [vmem:[%s3 + $0x24] sm:$0xf]
  %v1087 = vld [vmem:[%s3 + $0x28] sm:$0xf]
  %v1088 = vld [vmem:[%s3 + $0x2c] sm:$0xf]
  %v1089 = vld [vmem:[%s3 + $0x30] sm:$0xf]
  %v1090 = vld [vmem:[%s3 + $0x34] sm:$0xf]
  %v1091 = vld [vmem:[%s3 + $0x38] sm:$0xf]
  %v1092 = vld [vmem:[%s3 + $0x3c] sm:$0xf]
  %v1093 = vld [vmem:[%s4] sm:$0x1]
  %v1095 = vperm.slane %v1093, 0
  %v1113 = vunpack.c.l.b16 %v1077
  %v1114 = vunpack.c.l.b16 %v1078
  %v1115 = vunpack.c.l.b16 %v1079
  %v1116 = vunpack.c.l.b16 %v1080
  %v1117 = vunpack.c.l.b16 %v1081
  %v1118 = vunpack.c.l.b16 %v1082
  %v1119 = vunpack.c.l.b16 %v1083
  %v1120 = vunpack.c.l.b16 %v1084
  %v1121 = vunpack.c.l.b16 %v1085
  %v1122 = vunpack.c.l.b16 %v1086
  %v1123 = vunpack.c.l.b16 %v1087
  %v1124 = vunpack.c.l.b16 %v1088
  %v1125 = vunpack.c.l.b16 %v1089
  %v1126 = vunpack.c.l.b16 %v1090
  %v1127 = vunpack.c.l.b16 %v1091
  %v1128 = vunpack.c.l.b16 %v1092
  %v1129 = vpack.c.b16 %v1114, %v1113
  %v1130 = vpack.c.b16 %v1116, %v1115
  %v1131 = vpack.c.b16 %v1118, %v1117
  %v1132 = vpack.c.b16 %v1120, %v1119
  %v1133 = vpack.c.b16 %v1122, %v1121
  %v1134 = vpack.c.b16 %v1124, %v1123
  %v1135 = vpack.c.b16 %v1126, %v1125
  %v1136 = vpack.c.b16 %v1128, %v1127
  %1145 = vmatpush.bf16.msra.mxu0 %v1136
  %1146 = vmatpush.bf16.msra.mxu0 %v1135
  %1147 = vmatpush.bf16.msra.mxu0 %v1134
  %1148 = vmatpush.bf16.msra.mxu0 %v1133
  %1149 = vmatpush.bf16.msra.mxu0 %v1132
  %1150 = vmatpush.bf16.msra.mxu0 %v1131
  %1151 = vmatpush.bf16.msra.mxu0 %v1130
  %1152 = vmatpush.bf16.msra.mxu0 %v1129
  %1153 = vmatmul.bf16.gmra.mxu0 %v1076
  %v1154 = vpop.f32.mrf.mxu0
  %v1155 = vadd.f32 %v1095, %v1154
  %v1156 = vpop.f32.mrf.mxu0
  %v1157 = vadd.f32 %v1095, %v1156
  %1158 = vdwg.mxu0
  %vm1159 = vcmask 80896
  %1160 = vst.msk [vmem:[%s5] sm:$0xff] %vm1159, %v1155
  %1161 = vst.msk [vmem:[%s5 + $0x8] sm:$0xff] %vm1159, %v1157
  // Predicated region
  $region22: #{cnn_forward.5} parent=0 // pred_check
    _
  $region23: #{cnn_forward.5} parent=0 // pred_check_branch
    %1163 = sbr.rel (0) target = $region25
  $region24: #{cnn_forward.5} parent=0 // pred_region
    _
  $region25: #{cnn_forward.5} parent=0 // pred_fallthru
    _
  // Predicated region
  $region26: #{cnn_forward.5} parent=0 // pred_check
    _
  $region27: #{cnn_forward.5} parent=0 // pred_check_branch
    %1165 = sbr.rel (0) target = $region29
  $region28: #{cnn_forward.5} parent=0 // pred_region
    _
  $region29: #{cnn_forward.5} parent=0 // pred_fallthru
    _

</llo_original>
